<compile_context>
chip_gen: v5e
topology: v5e:2x2
jax: 0.10.0
libtpu: 0.0.40
codegen_flags: <defaults>
</compile_context>

<pallas_src>
import functools

import jax
import jax.numpy as jnp
from jax.experimental import pallas as pl
from jax.experimental.pallas import tpu as pltpu

_EPS = 1e-5        # PyTorch BatchNorm2d default
_BASE_TM = 512     # target rows per grid step over the flattened padded grid


def _vmem_limit_bytes():
    """cap/2 clamped to [32, 64] MiB: big on v5e/v6e (128 MiB), safe on v7x (64 MiB)."""
    try:
        cap = int(pltpu.get_tpu_info().vmem_capacity_bytes)
        return int(min(max(cap // 2, 32 * 1024 * 1024), 64 * 1024 * 1024))
    except Exception:
        return 32 * 1024 * 1024


# ------------------------------ Pallas kernels ------------------------------ #

def _make_kernel(offs, tm, halo, mode):
    """Fused (conv3x3 [+ 1x1 shortcut]) + folded-BN + epilogue for one row tile.

    mode: "relu"     out = relu(conv + b) * mask        (conv1+bn1+relu, masked to
                     the valid pad-2 grid region so it IS conv2's input layout)
          "add"      out = relu(conv + b + residual)    (conv2+bn2+identity shortcut)
          "proj_add" out = relu([taps|xs]@[w2;wsc] + b) (conv2+bn2+1x1 shortcut
                     folded into the same matmul; b = b2 + bsc host-side)
    """

    def build_lhs(xm_ref, xh_ref, xbuf_ref, extra_cols=None):
        # Stage the tm + halo rows once (f32: arbitrary row offsets are cheap
        # sublane relayouts), concatenate the 9 shifted tap windows along K and
        # cast to bf16 ONCE -> a single (tm, 9*Cin[+Csc]) MXU matmul.
        xbuf_ref[0:tm, :] = xm_ref[...].astype(jnp.float32)
        xbuf_ref[tm:tm + halo, :] = xh_ref[...].astype(jnp.float32)
        cols = [xbuf_ref[off:off + tm, :] for off in offs]   # static slices
        if extra_cols is not None:
            cols.append(extra_cols)
        return jnp.concatenate(cols, axis=1).astype(jnp.bfloat16)

    if mode == "relu":
        def kernel(xm_ref, xh_ref, m_ref, w_ref, b_ref, o_ref, xbuf_ref):
            lhs = build_lhs(xm_ref, xh_ref, xbuf_ref)
            acc = jnp.dot(lhs, w_ref[...], preferred_element_type=jnp.float32)
            val = jnp.maximum(acc + b_ref[...], 0.0)
            o_ref[...] = (val * m_ref[...].astype(jnp.float32)).astype(o_ref.dtype)
    elif mode == "add":
        def kernel(xm_ref, xh_ref, r_ref, w_ref, b_ref, o_ref, xbuf_ref):
            lhs = build_lhs(xm_ref, xh_ref, xbuf_ref)
            acc = jnp.dot(lhs, w_ref[...], preferred_element_type=jnp.float32)
            # residual kept f32 (never quantized); use bf16 in prod if tolerated.
            o_ref[...] = jnp.maximum(acc + b_ref[...] + r_ref[...], 0.0).astype(o_ref.dtype)
    elif mode == "proj_add":
        def kernel(xm_ref, xh_ref, xs_ref, w_ref, b_ref, o_ref, xbuf_ref):
            lhs = build_lhs(xm_ref, xh_ref, xbuf_ref, xs_ref[...].astype(jnp.float32))
            acc = jnp.dot(lhs, w_ref[...], preferred_element_type=jnp.float32)
            o_ref[...] = jnp.maximum(acc + b_ref[...], 0.0).astype(o_ref.dtype)
    else:
        raise ValueError(mode)
    return kernel


def _conv_call(x_flat, extra, w_cat, bias, *, mode, wp, tm, halo, nblk, out_dtype, vmem):
    """extra: valid-mask (tm,1) for "relu", residual (tm,Cout) for "add",
    shortcut input xs (tm,Csc) for "proj_add"."""
    cin = x_flat.shape[1]
    cout = w_cat.shape[1]
    cextra = extra.shape[1]
    assert tm % halo == 0 and tm % 16 == 0 and halo % 16 == 0 and halo >= 2 * wp + 2
    hb = tm // halo
    # Clamp the last tile's halo block in-bounds: its contents are never read by
    # valid outputs (their taps provably stay inside the main rows).
    last_hblk = nblk * hb - 1
    offs = tuple(dy * wp + dx for dy in range(3) for dx in range(3))

    in_specs = [
        pl.BlockSpec((tm, cin), lambda i: (i, 0)),                                  # main rows
        pl.BlockSpec((halo, cin),
                     lambda i, hb=hb, last=last_hblk: (jnp.minimum((i + 1) * hb, last), 0)),
        pl.BlockSpec((tm, cextra), lambda i: (i, 0)),                               # mask / res / xs
        pl.BlockSpec(w_cat.shape, lambda i: (0, 0)),                                # folded weights
        pl.BlockSpec((1, cout), lambda i: (0, 0)),                                  # folded BN bias
    ]
    return pl.pallas_call(
        _make_kernel(offs, tm, halo, mode),
        out_shape=jax.ShapeDtypeStruct((nblk * tm, cout), out_dtype),
        grid_spec=pltpu.PrefetchScalarGridSpec(
            num_scalar_prefetch=0,
            grid=(nblk,),
            in_specs=in_specs,
            out_specs=pl.BlockSpec((tm, cout), lambda i: (i, 0)),
            scratch_shapes=[pltpu.VMEM((tm + halo, cin), jnp.float32)],
        ),
        compiler_params=pltpu.CompilerParams(
            dimension_semantics=("parallel",),
            vmem_limit_bytes=vmem,
        ),
    )(x_flat, x_flat, extra, w_cat, bias)


# ------------------------------ host-side glue ------------------------------ #

def _halo_rows(wp):
    """Round the max tap offset (2*Wp + 2) up to a multiple of 16 (bf16 packing)."""
    return max(16, ((2 * wp + 2 + 15) // 16) * 16)


def _choose_tiling(rows, wp, base_tm):
    """halo | tm, tm ~ base_tm, >=2 grid steps with ~even real work (2-TC balance)."""
    halo = _halo_rows(wp)
    n_t = max(2, pl.cdiv(rows, base_tm))
    tm = max(halo, ((pl.cdiv(rows, n_t) + halo - 1) // halo) * halo)
    nblk = pl.cdiv(rows, tm)
    return tm, halo, nblk


def _pad_rows(flat, rows_pad, dtype):
    return jnp.pad(flat, ((0, rows_pad - flat.shape[0]), (0, 0))).astype(dtype)


def _valid_mask(n, h, w, rows_pad):
    """1.0 at pad-2 grid positions (1..h, 1..w) (conv1's valid outputs), 0 elsewhere."""
    hp, wp = h + 4, w + 4
    m = jnp.pad(jnp.ones((h, w), jnp.float32), ((1, 3), (1, 3)))
    m = jnp.broadcast_to(m.reshape(1, hp * wp), (n, hp * wp)).reshape(n * hp * wp, 1)
    return _pad_rows(m, rows_pad, jnp.bfloat16)


def _fold_conv_bn(w_oihw, gamma, beta, mean, var):
    """Fold BN scale into conv weights: ((k*k*Cin, Cout) f32, (1, Cout) f32).
    K ordering is (ky, kx, ci) -- must match the LHS tap-concat order."""
    cout, cin, kh, kw = w_oihw.shape
    scale = gamma / jnp.sqrt(var + _EPS)
    w = jnp.transpose(w_oihw, (2, 3, 1, 0)).reshape(kh * kw * cin, cout) * scale
    b = (beta - mean * scale).reshape(1, cout)
    return w.astype(jnp.float32), b.astype(jnp.float32)


@functools.partial(jax.jit, static_argnames=("stride", "base_tm"))
def residual_block_forward(x_nchw, params, stride=1, base_tm=_BASE_TM):
    x = jnp.transpose(x_nchw, (0, 2, 3, 1)).astype(jnp.float32)   # NCHW -> NHWC
    n, h, w, cin = x.shape
    cout = params["conv1_w"].shape[0]
    ho, wo = (h - 1) // stride + 1, (w - 1) // stride + 1
    vmem = _vmem_limit_bytes()

    # -------- kernel 1: conv1 + bn1 + relu (stride-1 flat-shift on a pad-2 grid;
    # output masked to the zero-bordered layout that conv2 consumes) --------
    hp1, wp1 = h + 4, w + 4
    rows1 = n * hp1 * wp1
    tm1, halo1, nblk1 = _choose_tiling(rows1, wp1, base_tm)
    x_flat = _pad_rows(jnp.pad(x, ((0, 0), (2, 2), (2, 2), (0, 0))).reshape(rows1, cin),
                       nblk1 * tm1, jnp.bfloat16)
    mask1 = _valid_mask(n, h, w, nblk1 * tm1)
    w1, b1 = _fold_conv_bn(params["conv1_w"], params["bn1_gamma"], params["bn1_beta"],
                           params["bn1_mean"], params["bn1_var"])
    o1 = _conv_call(x_flat, mask1, w1.astype(jnp.bfloat16), b1, mode="relu",
                    wp=wp1, tm=tm1, halo=halo1, nblk=nblk1,
                    out_dtype=jnp.bfloat16, vmem=vmem)

    # -------- layout for kernel 2 --------
    hp2, wp2 = ho + 4, wo + 4
    rows2 = n * hp2 * wp2
    if stride == 1:
        tm2, halo2, nblk2 = tm1, halo1, nblk1          # o1 already IS conv2's input
        h1_flat = o1
    else:
        # stride-2: subsample the stride-1 conv1 output (subsample(conv_s1)==conv_s)
        # and re-embed on the smaller pad-2 grid.
        tm2, halo2, nblk2 = _choose_tiling(rows2, wp2, base_tm)
        h1s = o1[:rows1].reshape(n, hp1, wp1, cout)[:, 1:2 * ho:2, 1:2 * wo:2, :]
        h1_flat = _pad_rows(jnp.pad(h1s, ((0, 0), (1, 3), (1, 3), (0, 0))).reshape(rows2, cout),
                            nblk2 * tm2, jnp.bfloat16)

    # -------- kernel 2: conv2 + bn2 + shortcut + relu --------
    w2, b2 = _fold_conv_bn(params["conv2_w"], params["bn2_gamma"], params["bn2_beta"],
                           params["bn2_mean"], params["bn2_var"])
    if stride != 1 or cin != cout:
        # projection shortcut (strided 1x1 conv + BN) folded into the same matmul.
        xs = x[:, ::stride, ::stride, :]
        xs_flat = _pad_rows(jnp.pad(xs, ((0, 0), (0, 4), (0, 4), (0, 0))).reshape(rows2, cin),
                            nblk2 * tm2, jnp.bfloat16)
        wsc, bsc = _fold_conv_bn(params["sc_w"], params["sc_gamma"], params["sc_beta"],
                                 params["sc_mean"], params["sc_var"])
        w_cat = jnp.concatenate([w2, wsc], axis=0).astype(jnp.bfloat16)
        o2 = _conv_call(h1_flat, xs_flat, w_cat, b2 + bsc, mode="proj_add",
                        wp=wp2, tm=tm2, halo=halo2, nblk=nblk2,
                        out_dtype=jnp.float32, vmem=vmem)
    else:
        # identity shortcut: residual streamed f32, plain add inside the kernel.
        res_flat = _pad_rows(jnp.pad(x, ((0, 0), (0, 4), (0, 4), (0, 0))).reshape(rows2, cout),
                             nblk2 * tm2, jnp.float32)
        o2 = _conv_call(h1_flat, res_flat, w2.astype(jnp.bfloat16), b2, mode="add",
                        wp=wp2, tm=tm2, halo=halo2, nblk=nblk2,
                        out_dtype=jnp.float32, vmem=vmem)

    out = o2[:rows2].reshape(n, hp2, wp2, cout)[:, :ho, :wo, :]
    return jnp.transpose(out, (0, 3, 1, 2))                       # NHWC -> NCHW


# -------------------------------- pure-JAX ref ------------------------------- #

def _ref_forward(x_nchw, params, stride=1):
    x = jnp.transpose(x_nchw, (0, 2, 3, 1)).astype(jnp.float32)

    def conv(inp, w_oihw, s, pad):
        return jax.lax.conv_general_dilated(
            inp, jnp.transpose(w_oihw, (2, 3, 1, 0)),
            window_strides=(s, s), padding=((pad, pad), (pad, pad)),
            dimension_numbers=("NHWC", "HWIO", "NHWC"))

    def bn(inp, g, b, m, v):
        return (inp - m) / jnp.sqrt(v + _EPS) * g + b

    cin = x.shape[-1]
    cout = params["conv1_w"].shape[0]
    out = jax.nn.relu(bn(conv(x, params["conv1_w"], stride, 1),
                         params["bn1_gamma"], params["bn1_beta"],
                         params["bn1_mean"], params["bn1_var"]))
    out = bn(conv(out, params["conv2_w"], 1, 1),
             params["bn2_gamma"], params["bn2_beta"],
             params["bn2_mean"], params["bn2_var"])
    if stride != 1 or cin != cout:
        sc = bn(conv(x, params["sc_w"], stride, 0),
                params["sc_gamma"], params["sc_beta"],
                params["sc_mean"], params["sc_var"])
    else:
        sc = x
    return jnp.transpose(jax.nn.relu(out + sc), (0, 3, 1, 2))


# ------------------------------------ main ----------------------------------- #

def _make_params(key, in_ch, out_ch, need_sc):
    ks = jax.random.split(key, 16)

    def u(k, shape):  # positive values for gammas / variances
        return jax.random.uniform(k, shape, jnp.float32, 0.5, 1.5)

    p = {
        "conv1_w": jax.random.normal(ks[1], (out_ch, in_ch, 3, 3), jnp.float32) * 0.1,
        "bn1_gamma": u(ks[2], (out_ch,)),
        "bn1_beta": jax.random.normal(ks[3], (out_ch,), jnp.float32) * 0.1,
        "bn1_mean": jax.random.normal(ks[4], (out_ch,), jnp.float32) * 0.1,
        "bn1_var": u(ks[5], (out_ch,)),
        "conv2_w": jax.random.normal(ks[6], (out_ch, out_ch, 3, 3), jnp.float32) * 0.1,
        "bn2_gamma": u(ks[7], (out_ch,)),
        "bn2_beta": jax.random.normal(ks[8], (out_ch,), jnp.float32) * 0.1,
        "bn2_mean": jax.random.normal(ks[9], (out_ch,), jnp.float32) * 0.1,
        "bn2_var": u(ks[10], (out_ch,)),
    }
    if need_sc:
        p.update({
            "sc_w": jax.random.normal(ks[11], (out_ch, in_ch, 1, 1), jnp.float32) * 0.1,
            "sc_gamma": u(ks[12], (out_ch,)),
            "sc_beta": jax.random.normal(ks[13], (out_ch,), jnp.float32) * 0.1,
            "sc_mean": jax.random.normal(ks[14], (out_ch,), jnp.float32) * 0.1,
            "sc_var": u(ks[15], (out_ch,)),
        })
    return p


if __name__ == "__main__":
    n, hgt, wid = 2, 16, 16
    configs = [
        ("proj_s1", 4, 8, 1),    # projection shortcut (cin != cout), stride 1
        ("identity", 8, 8, 1),   # identity shortcut (plain-add kernel variant)
        ("proj_s2", 4, 8, 2),    # strided downsample block
    ]
    key = jax.random.PRNGKey(0)
    for name, in_ch, out_ch, stride in configs:
        kx, kp, key = jax.random.split(key, 3)
        x = jax.random.normal(kx, (n, in_ch, hgt, wid), jnp.float32)
        params = _make_params(kp, in_ch, out_ch,
                              need_sc=(stride != 1 or in_ch != out_ch))

        out = jax.block_until_ready(residual_block_forward(x, params, stride=stride))
        ho = (hgt - 1) // stride + 1
        wo = (wid - 1) // stride + 1
        assert out.shape == (n, out_ch, ho, wo), (name, out.shape)

        ref = jax.block_until_ready(_ref_forward(x, params, stride))
        err = float(jnp.max(jnp.abs(out - ref)))
        if err > 5e-2:  # bf16 activation/weight path vs f32 reference
            raise AssertionError(f"{name}: kernel/reference mismatch, max |err| = {err}")

    print("KERNEL_OK")
</pallas_src>

<mosaic_0001>
module attributes {stable_mosaic.version = 11 : i64} {
  func.func @kernel(%arg0: i32, %arg1: memref<432x4xbf16, #tpu.memory_space<vmem>>, %arg2: memref<48x4xbf16, #tpu.memory_space<vmem>>, %arg3: memref<432x1xbf16, #tpu.memory_space<vmem>>, %arg4: memref<36x8xbf16, #tpu.memory_space<vmem>>, %arg5: memref<1x8xf32, #tpu.memory_space<vmem>>, %arg6: memref<432x8xbf16, #tpu.memory_space<vmem>>, %arg7: memref<480x4xf32, #tpu.memory_space<vmem>>) attributes {dimension_semantics = [#tpu.dimension_semantics<parallel>], iteration_bounds = array<i64: 2>, scalar_prefetch = 0 : i64, scratch_operands = 1 : i64, tpu.core_type = #tpu.core_type<tc>, window_params = [{transform_indices = @transform_0, window_bounds = array<i64: 432, 4>}, {transform_indices = @transform_1, window_bounds = array<i64: 48, 4>}, {transform_indices = @transform_2, window_bounds = array<i64: 432, 1>}, {pipeline_mode = #tpu.pipeline_mode<synchronous>, transform_indices = @transform_3, window_bounds = array<i64: 36, 8>}, {pipeline_mode = #tpu.pipeline_mode<synchronous>, transform_indices = @transform_4, window_bounds = array<i64: 1, 8>}, {transform_indices = @transform_5, window_bounds = array<i64: 432, 8>}]} {
    %c0 = arith.constant 0 : index
    %c0_0 = arith.constant 0 : index
    %0 = vector.load %arg1[%c0, %c0_0] : memref<432x4xbf16, #tpu.memory_space<vmem>>, vector<432x4xbf16>
    %1 = arith.extf %0 : vector<432x4xbf16> to vector<432x4xf32>
    %c0_1 = arith.constant 0 : index
    %c0_2 = arith.constant 0 : index
    %2 = vector.load %arg7[%c0_1, %c0_2] : memref<480x4xf32, #tpu.memory_space<vmem>>, vector<432x4xf32>
    tpu.vector_store %arg7[%c0_1, %c0_2], %1 {strides = array<i32>} : memref<480x4xf32, #tpu.memory_space<vmem>>, vector<432x4xf32>,
    %c0_3 = arith.constant 0 : index
    %c0_4 = arith.constant 0 : index
    %3 = vector.load %arg2[%c0_3, %c0_4] : memref<48x4xbf16, #tpu.memory_space<vmem>>, vector<48x4xbf16>
    %4 = arith.extf %3 : vector<48x4xbf16> to vector<48x4xf32>
    %c432 = arith.constant 432 : index
    %c0_5 = arith.constant 0 : index
    %5 = vector.load %arg7[%c432, %c0_5] : memref<480x4xf32, #tpu.memory_space<vmem>>, vector<48x4xf32>
    tpu.vector_store %arg7[%c432, %c0_5], %4 {strides = array<i32>} : memref<480x4xf32, #tpu.memory_space<vmem>>, vector<48x4xf32>,
    %c0_6 = arith.constant 0 : index
    %c0_7 = arith.constant 0 : index
    %6 = vector.load %arg7[%c0_6, %c0_7] : memref<480x4xf32, #tpu.memory_space<vmem>>, vector<432x4xf32>
    %c1 = arith.constant 1 : index
    %c0_8 = arith.constant 0 : index
    %7 = vector.load %arg7[%c1, %c0_8] : memref<480x4xf32, #tpu.memory_space<vmem>>, vector<432x4xf32>
    %c2 = arith.constant 2 : index
    %c0_9 = arith.constant 0 : index
    %8 = vector.load %arg7[%c2, %c0_9] : memref<480x4xf32, #tpu.memory_space<vmem>>, vector<432x4xf32>
    %c20 = arith.constant 20 : index
    %c0_10 = arith.constant 0 : index
    %9 = vector.load %arg7[%c20, %c0_10] : memref<480x4xf32, #tpu.memory_space<vmem>>, vector<432x4xf32>
    %c21 = arith.constant 21 : index
    %c0_11 = arith.constant 0 : index
    %10 = vector.load %arg7[%c21, %c0_11] : memref<480x4xf32, #tpu.memory_space<vmem>>, vector<432x4xf32>
    %c22 = arith.constant 22 : index
    %c0_12 = arith.constant 0 : index
    %11 = vector.load %arg7[%c22, %c0_12] : memref<480x4xf32, #tpu.memory_space<vmem>>, vector<432x4xf32>
    %c40 = arith.constant 40 : index
    %c0_13 = arith.constant 0 : index
    %12 = vector.load %arg7[%c40, %c0_13] : memref<480x4xf32, #tpu.memory_space<vmem>>, vector<432x4xf32>
    %c41 = arith.constant 41 : index
    %c0_14 = arith.constant 0 : index
    %13 = vector.load %arg7[%c41, %c0_14] : memref<480x4xf32, #tpu.memory_space<vmem>>, vector<432x4xf32>
    %c42 = arith.constant 42 : index
    %c0_15 = arith.constant 0 : index
    %14 = vector.load %arg7[%c42, %c0_15] : memref<480x4xf32, #tpu.memory_space<vmem>>, vector<432x4xf32>
    %15 = tpu.concatenate %6, %7, %8, %9, %10, %11, %12, %13, %14 in 1 : vector<432x4xf32>, vector<432x4xf32>, vector<432x4xf32>, vector<432x4xf32>, vector<432x4xf32>, vector<432x4xf32>, vector<432x4xf32>, vector<432x4xf32>, vector<432x4xf32> -> vector<432x36xf32>
    %16 = arith.truncf %15 : vector<432x36xf32> to vector<432x36xbf16>
    %c0_16 = arith.constant 0 : index
    %c0_17 = arith.constant 0 : index
    %17 = vector.load %arg4[%c0_16, %c0_17] : memref<36x8xbf16, #tpu.memory_space<vmem>>, vector<36x8xbf16>
    %cst = arith.constant dense<0.000000e+00> : vector<432x8xf32>
    %18 = tpu.matmul %16, %17, %cst {dimension_numbers = #tpu.dot_dimension_numbers<[1], [0], [0], [1], [0, 0, 1, 1], [], []>} : vector<432x36xbf16>, vector<36x8xbf16>, vector<432x8xf32> -> vector<432x8xf32>
    %c0_18 = arith.constant 0 : index
    %c0_19 = arith.constant 0 : index
    %19 = vector.load %arg5[%c0_18, %c0_19] : memref<1x8xf32, #tpu.memory_space<vmem>>, vector<1x8xf32>
    %20 = vector.broadcast %19 : vector<1x8xf32> to vector<432x8xf32>
    %21 = arith.addf %18, %20 : vector<432x8xf32>
    %cst_20 = arith.constant 0.000000e+00 : f32
    %22 = vector.broadcast %cst_20 : f32 to vector<432x8xf32>
    %23 = arith.maximumf %21, %22 : vector<432x8xf32>
    %c0_21 = arith.constant 0 : index
    %c0_22 = arith.constant 0 : index
    %24 = vector.load %arg3[%c0_21, %c0_22] : memref<432x1xbf16, #tpu.memory_space<vmem>>, vector<432x1xbf16>
    %25 = arith.extf %24 : vector<432x1xbf16> to vector<432x1xf32>
    %26 = vector.broadcast %25 : vector<432x1xf32> to vector<432x8xf32>
    %27 = arith.mulf %23, %26 : vector<432x8xf32>
    %28 = arith.truncf %27 : vector<432x8xf32> to vector<432x8xbf16>
    %c0_23 = arith.constant 0 : index
    %c0_24 = arith.constant 0 : index
    %29 = vector.load %arg6[%c0_23, %c0_24] : memref<432x8xbf16, #tpu.memory_space<vmem>>, vector<432x8xbf16>
    tpu.vector_store %arg6[%c0_23, %c0_24], %28 {strides = array<i32>} : memref<432x8xbf16, #tpu.memory_space<vmem>>, vector<432x8xbf16>,
    return
  }
  func.func @transform_0(%arg0: i32) -> (i32, i32) {
    %c0_i32 = arith.constant 0 : i32
    %c0_i32_0 = arith.constant 0 : i32
    return %arg0, %c0_i32 : i32, i32
  }
  func.func @transform_1(%arg0: i32) -> (i32, i32) {
    %c1_i32 = arith.constant 1 : i32
    %0 = arith.addi %arg0, %c1_i32 : i32
    %c9_i32 = arith.constant 9 : i32
    %1 = arith.muli %0, %c9_i32 : i32
    %c17_i32 = arith.constant 17 : i32
    %2 = arith.minsi %1, %c17_i32 : i32
    %c0_i32 = arith.constant 0 : i32
    %c0_i32_0 = arith.constant 0 : i32
    return %2, %c0_i32 : i32, i32
  }
  func.func @transform_2(%arg0: i32) -> (i32, i32) {
    %c0_i32 = arith.constant 0 : i32
    %c0_i32_0 = arith.constant 0 : i32
    return %arg0, %c0_i32 : i32, i32
  }
  func.func @transform_3(%arg0: i32) -> (i32, i32) {
    %c0_i32 = arith.constant 0 : i32
    %c0_i32_0 = arith.constant 0 : i32
    %c0_i32_1 = arith.constant 0 : i32
    return %c0_i32, %c0_i32_0 : i32, i32
  }
  func.func @transform_4(%arg0: i32) -> (i32, i32) {
    %c0_i32 = arith.constant 0 : i32
    %c0_i32_0 = arith.constant 0 : i32
    %c0_i32_1 = arith.constant 0 : i32
    return %c0_i32, %c0_i32_0 : i32, i32
  }
  func.func @transform_5(%arg0: i32) -> (i32, i32) {
    %c0_i32 = arith.constant 0 : i32
    %c0_i32_0 = arith.constant 0 : i32
    return %arg0, %c0_i32 : i32, i32
  }
}

module attributes {stable_mosaic.version = 11 : i64} {
  func.func @kernel(%arg0: i32, %arg1: memref<432x8xbf16, #tpu.memory_space<vmem>>, %arg2: memref<48x8xbf16, #tpu.memory_space<vmem>>, %arg3: memref<432x4xbf16, #tpu.memory_space<vmem>>, %arg4: memref<76x8xbf16, #tpu.memory_space<vmem>>, %arg5: memref<1x8xf32, #tpu.memory_space<vmem>>, %arg6: memref<432x8xf32, #tpu.memory_space<vmem>>, %arg7: memref<480x8xf32, #tpu.memory_space<vmem>>) attributes {dimension_semantics = [#tpu.dimension_semantics<parallel>], iteration_bounds = array<i64: 2>, scalar_prefetch = 0 : i64, scratch_operands = 1 : i64, tpu.core_type = #tpu.core_type<tc>, window_params = [{transform_indices = @transform_0, window_bounds = array<i64: 432, 8>}, {transform_indices = @transform_1, window_bounds = array<i64: 48, 8>}, {transform_indices = @transform_2, window_bounds = array<i64: 432, 4>}, {pipeline_mode = #tpu.pipeline_mode<synchronous>, transform_indices = @transform_3, window_bounds = array<i64: 76, 8>}, {pipeline_mode = #tpu.pipeline_mode<synchronous>, transform_indices = @transform_4, window_bounds = array<i64: 1, 8>}, {transform_indices = @transform_5, window_bounds = array<i64: 432, 8>}]} {
    %c0 = arith.constant 0 : index
    %c0_0 = arith.constant 0 : index
    %0 = vector.load %arg3[%c0, %c0_0] : memref<432x4xbf16, #tpu.memory_space<vmem>>, vector<432x4xbf16>
    %1 = arith.extf %0 : vector<432x4xbf16> to vector<432x4xf32>
    %c0_1 = arith.constant 0 : index
    %c0_2 = arith.constant 0 : index
    %2 = vector.load %arg1[%c0_1, %c0_2] : memref<432x8xbf16, #tpu.memory_space<vmem>>, vector<432x8xbf16>
    %3 = arith.extf %2 : vector<432x8xbf16> to vector<432x8xf32>
    %c0_3 = arith.constant 0 : index
    %c0_4 = arith.constant 0 : index
    %4 = vector.load %arg7[%c0_3, %c0_4] : memref<480x8xf32, #tpu.memory_space<vmem>>, vector<432x8xf32>
    tpu.vector_store %arg7[%c0_3, %c0_4], %3 {strides = array<i32>} : memref<480x8xf32, #tpu.memory_space<vmem>>, vector<432x8xf32>,
    %c0_5 = arith.constant 0 : index
    %c0_6 = arith.constant 0 : index
    %5 = vector.load %arg2[%c0_5, %c0_6] : memref<48x8xbf16, #tpu.memory_space<vmem>>, vector<48x8xbf16>
    %6 = arith.extf %5 : vector<48x8xbf16> to vector<48x8xf32>
    %c432 = arith.constant 432 : index
    %c0_7 = arith.constant 0 : index
    %7 = vector.load %arg7[%c432, %c0_7] : memref<480x8xf32, #tpu.memory_space<vmem>>, vector<48x8xf32>
    tpu.vector_store %arg7[%c432, %c0_7], %6 {strides = array<i32>} : memref<480x8xf32, #tpu.memory_space<vmem>>, vector<48x8xf32>,
    %c0_8 = arith.constant 0 : index
    %c0_9 = arith.constant 0 : index
    %8 = vector.load %arg7[%c0_8, %c0_9] : memref<480x8xf32, #tpu.memory_space<vmem>>, vector<432x8xf32>
    %c1 = arith.constant 1 : index
    %c0_10 = arith.constant 0 : index
    %9 = vector.load %arg7[%c1, %c0_10] : memref<480x8xf32, #tpu.memory_space<vmem>>, vector<432x8xf32>
    %c2 = arith.constant 2 : index
    %c0_11 = arith.constant 0 : index
    %10 = vector.load %arg7[%c2, %c0_11] : memref<480x8xf32, #tpu.memory_space<vmem>>, vector<432x8xf32>
    %c20 = arith.constant 20 : index
    %c0_12 = arith.constant 0 : index
    %11 = vector.load %arg7[%c20, %c0_12] : memref<480x8xf32, #tpu.memory_space<vmem>>, vector<432x8xf32>
    %c21 = arith.constant 21 : index
    %c0_13 = arith.constant 0 : index
    %12 = vector.load %arg7[%c21, %c0_13] : memref<480x8xf32, #tpu.memory_space<vmem>>, vector<432x8xf32>
    %c22 = arith.constant 22 : index
    %c0_14 = arith.constant 0 : index
    %13 = vector.load %arg7[%c22, %c0_14] : memref<480x8xf32, #tpu.memory_space<vmem>>, vector<432x8xf32>
    %c40 = arith.constant 40 : index
    %c0_15 = arith.constant 0 : index
    %14 = vector.load %arg7[%c40, %c0_15] : memref<480x8xf32, #tpu.memory_space<vmem>>, vector<432x8xf32>
    %c41 = arith.constant 41 : index
    %c0_16 = arith.constant 0 : index
    %15 = vector.load %arg7[%c41, %c0_16] : memref<480x8xf32, #tpu.memory_space<vmem>>, vector<432x8xf32>
    %c42 = arith.constant 42 : index
    %c0_17 = arith.constant 0 : index
    %16 = vector.load %arg7[%c42, %c0_17] : memref<480x8xf32, #tpu.memory_space<vmem>>, vector<432x8xf32>
    %17 = tpu.concatenate %8, %9, %10, %11, %12, %13, %14, %15, %16, %1 in 1 : vector<432x8xf32>, vector<432x8xf32>, vector<432x8xf32>, vector<432x8xf32>, vector<432x8xf32>, vector<432x8xf32>, vector<432x8xf32>, vector<432x8xf32>, vector<432x8xf32>, vector<432x4xf32> -> vector<432x76xf32>
    %18 = arith.truncf %17 : vector<432x76xf32> to vector<432x76xbf16>
    %c0_18 = arith.constant 0 : index
    %c0_19 = arith.constant 0 : index
    %19 = vector.load %arg4[%c0_18, %c0_19] : memref<76x8xbf16, #tpu.memory_space<vmem>>, vector<76x8xbf16>
    %cst = arith.constant dense<0.000000e+00> : vector<432x8xf32>
    %20 = tpu.matmul %18, %19, %cst {dimension_numbers = #tpu.dot_dimension_numbers<[1], [0], [0], [1], [0, 0, 1, 1], [], []>} : vector<432x76xbf16>, vector<76x8xbf16>, vector<432x8xf32> -> vector<432x8xf32>
    %c0_20 = arith.constant 0 : index
    %c0_21 = arith.constant 0 : index
    %21 = vector.load %arg5[%c0_20, %c0_21] : memref<1x8xf32, #tpu.memory_space<vmem>>, vector<1x8xf32>
    %22 = vector.broadcast %21 : vector<1x8xf32> to vector<432x8xf32>
    %23 = arith.addf %20, %22 : vector<432x8xf32>
    %cst_22 = arith.constant 0.000000e+00 : f32
    %24 = vector.broadcast %cst_22 : f32 to vector<432x8xf32>
    %25 = arith.maximumf %23, %24 : vector<432x8xf32>
    %c0_23 = arith.constant 0 : index
    %c0_24 = arith.constant 0 : index
    %26 = vector.load %arg6[%c0_23, %c0_24] : memref<432x8xf32, #tpu.memory_space<vmem>>, vector<432x8xf32>
    tpu.vector_store %arg6[%c0_23, %c0_24], %25 {strides = array<i32>} : memref<432x8xf32, #tpu.memory_space<vmem>>, vector<432x8xf32>,
    return
  }
  func.func @transform_0(%arg0: i32) -> (i32, i32) {
    %c0_i32 = arith.constant 0 : i32
    %c0_i32_0 = arith.constant 0 : i32
    return %arg0, %c0_i32 : i32, i32
  }
  func.func @transform_1(%arg0: i32) -> (i32, i32) {
    %c1_i32 = arith.constant 1 : i32
    %0 = arith.addi %arg0, %c1_i32 : i32
    %c9_i32 = arith.constant 9 : i32
    %1 = arith.muli %0, %c9_i32 : i32
    %c17_i32 = arith.constant 17 : i32
    %2 = arith.minsi %1, %c17_i32 : i32
    %c0_i32 = arith.constant 0 : i32
    %c0_i32_0 = arith.constant 0 : i32
    return %2, %c0_i32 : i32, i32
  }
  func.func @transform_2(%arg0: i32) -> (i32, i32) {
    %c0_i32 = arith.constant 0 : i32
    %c0_i32_0 = arith.constant 0 : i32
    return %arg0, %c0_i32 : i32, i32
  }
  func.func @transform_3(%arg0: i32) -> (i32, i32) {
    %c0_i32 = arith.constant 0 : i32
    %c0_i32_0 = arith.constant 0 : i32
    %c0_i32_1 = arith.constant 0 : i32
    return %c0_i32, %c0_i32_0 : i32, i32
  }
  func.func @transform_4(%arg0: i32) -> (i32, i32) {
    %c0_i32 = arith.constant 0 : i32
    %c0_i32_0 = arith.constant 0 : i32
    %c0_i32_1 = arith.constant 0 : i32
    return %c0_i32, %c0_i32_0 : i32, i32
  }
  func.func @transform_5(%arg0: i32) -> (i32, i32) {
    %c0_i32 = arith.constant 0 : i32
    %c0_i32_0 = arith.constant 0 : i32
    return %arg0, %c0_i32 : i32, i32
  }
}

</mosaic_0001>

<llo_original>
// kernel: residual_block_forward.2
$region0: #{residual_block_forward.2}
  #allocation0 [shape = 'u32[]', space=smem, size = 0x4, offset = 0x4, fixed_abs, tag = 'smem constant byte address 0x4 - core index']
  #allocation1 [shape = 'u32[72,128]{1,0:T(1,128)}', space=vmem, size = 0x9000, scoped, tag = 'internal scratch']
  #allocation2 [shape = 'f32[480,4]{1,0:T(8,128)}', space=vmem, size = 0x3c000, scoped, tag = 'scratch operand']
  %s0 = inlined_call_operand.vmem [shape: bf16[864,4], index: 0, kind: input, shape index: {}, may-alias: {0,1}]
  %s1 = inlined_call_operand.vmem [shape: bf16[864,4], index: 1, kind: input, shape index: {}, may-alias: {0,1}]
  %s2 = inlined_call_operand.vmem [shape: bf16[864,1], index: 2, kind: input, shape index: {}]
  %s3 = inlined_call_operand.vmem [shape: bf16[36,8], index: 3, kind: input, shape index: {}]
  %s4 = inlined_call_operand.vmem [shape: f32[1,8], index: 4, kind: input, shape index: {}]
  %s5 = inlined_call_operand.vmem [shape: bf16[864,8], index: 5, kind: output, shape index: {}]
  %s6 = sld [smem:[#allocation0]]
  $region53: #{residual_block_forward.2} parent=0
    _
  %s8 = ssub.s32 1, %s6
  %s9 = scalar_select 0, %s8, %s6
  loop: start=0, step=1, limit=4
  $region2: #{residual_block_forward.2} parent=0 // loop_pre_header
    _
  $region3: #{residual_block_forward.2} parent=0 // loop_header
    %s11 = sphi 0, %s15
    %p12 = scmp.ge.s32.totalorder %s11, 4
    %s21 = sphi 0, %s23
    %s24 = sphi 0, %s21
    %s25 = sphi 0, %s24
    %s41 = sphi 0, %s25
    %s55 = sphi 0, %s57
    %s58 = sphi 0, %s55
    %s59 = sphi 0, %s58
    %s75 = sphi 0, %s59
    %s81 = sphi 0, %s83
    %s84 = sphi 0, %s81
    %s85 = sphi 0, %s84
    %s101 = sphi 0, %s85
    %s105 = sphi 0, %s105
    %s107 = sphi 0, %s105
    %s108 = sphi 0, %s107
    %s122 = sphi 0, %s108
    %s126 = sphi 0, %s126
    %s128 = sphi 0, %s126
    %s129 = sphi 0, %s128
    %s143 = sphi 0, %s129
    %s149 = sphi 0, %s151
    %s152 = sphi 0, %s149
    %s153 = sphi 0, %s152
    %s169 = sphi 0, %s153
  $region4: #{residual_block_forward.2} parent=0 // loop_header_branch
    %14 = sbr.rel (%p12) target = $region8
  $region5: #{residual_block_forward.2} parent=0 // loop_body
    %s16 = ssub.s32 %s11, 1
    %s17 = ssub.s32 %s11, 2
    %s18 = sadd.s32 %s11, 1
    %s19 = ssub.s32 %s11, %s18
    %p20 = scmp.eq.s32.totalorder %s19, 0
    %s22 = sadd.s32 %s21, 1
    %s23 = scalar_select %p20, %s21, %s22
    %p26 = pneg %p20
    %p27 = scmp.eq.s32.totalorder %s11, 1
    %p28 = por %p26, %p27
    %p29 = scmp.ne.s32.totalorder %s21, %s24
    %p30 = scmp.eq.s32.totalorder %s11, 0
    %p31 = por %p29, %p30
    %p32 = scmp.ne.s32.totalorder %s21, %s24
    %p33 = scmp.eq.s32.totalorder %s16, 1
    %p34 = por %p32, %p33
    %p35 = scmp.ne.s32.totalorder %s24, %s25
    %p36 = scmp.eq.s32.totalorder %s16, 0
    %p37 = por %p35, %p36
    %p38 = scmp.ne.s32.totalorder %s24, %s25
    %p39 = scmp.eq.s32.totalorder %s17, 1
    %p40 = por %p38, %p39
    %p42 = scmp.ne.s32.totalorder %s25, %s41
    %p43 = scmp.eq.s32.totalorder %s17, 0
    %p44 = por %p42, %p43
    %s45 = sadd.s32 %s11, 1
    %s46 = smul.u32 %s45, 9
    %p47 = scmp.lt.s32.totalorder %s46, 17
    %s48 = scalar_select %p47, %s46, 17
    %s49 = sadd.s32 %s18, 1
    %s50 = smul.u32 %s49, 9
    %p51 = scmp.lt.s32.totalorder %s50, 17
    %s52 = scalar_select %p51, %s50, 17
    %s53 = ssub.s32 %s48, %s52
    %p54 = scmp.eq.s32.totalorder %s53, 0
    %s56 = sadd.s32 %s55, 1
    %s57 = scalar_select %p54, %s55, %s56
    %p60 = pneg %p54
    %p61 = scmp.eq.s32.totalorder %s11, 1
    %p62 = por %p60, %p61
    %p63 = scmp.ne.s32.totalorder %s55, %s58
    %p64 = scmp.eq.s32.totalorder %s11, 0
    %p65 = por %p63, %p64
    %p66 = scmp.ne.s32.totalorder %s55, %s58
    %p67 = scmp.eq.s32.totalorder %s16, 1
    %p68 = por %p66, %p67
    %p69 = scmp.ne.s32.totalorder %s58, %s59
    %p70 = scmp.eq.s32.totalorder %s16, 0
    %p71 = por %p69, %p70
    %p72 = scmp.ne.s32.totalorder %s58, %s59
    %p73 = scmp.eq.s32.totalorder %s17, 1
    %p74 = por %p72, %p73
    %p76 = scmp.ne.s32.totalorder %s59, %s75
    %p77 = scmp.eq.s32.totalorder %s17, 0
    %p78 = por %p76, %p77
    %s79 = ssub.s32 %s11, %s18
    %p80 = scmp.eq.s32.totalorder %s79, 0
    %s82 = sadd.s32 %s81, 1
    %s83 = scalar_select %p80, %s81, %s82
    %p86 = pneg %p80
    %p87 = scmp.eq.s32.totalorder %s11, 1
    %p88 = por %p86, %p87
    %p89 = scmp.ne.s32.totalorder %s81, %s84
    %p90 = scmp.eq.s32.totalorder %s11, 0
    %p91 = por %p89, %p90
    %p92 = scmp.ne.s32.totalorder %s81, %s84
    %p93 = scmp.eq.s32.totalorder %s16, 1
    %p94 = por %p92, %p93
    %p95 = scmp.ne.s32.totalorder %s84, %s85
    %p96 = scmp.eq.s32.totalorder %s16, 0
    %p97 = por %p95, %p96
    %p98 = scmp.ne.s32.totalorder %s84, %s85
    %p99 = scmp.eq.s32.totalorder %s17, 1
    %p100 = por %p98, %p99
    %p102 = scmp.ne.s32.totalorder %s85, %s101
    %p103 = scmp.eq.s32.totalorder %s17, 0
    %p104 = por %p102, %p103
    %s106 = sadd.s32 %s105, 1
    %p109 = scmp.eq.s32.totalorder %s11, 1
    %p110 = scmp.ne.s32.totalorder %s105, %s107
    %p111 = scmp.eq.s32.totalorder %s11, 0
    %p112 = por %p110, %p111
    %p113 = scmp.ne.s32.totalorder %s105, %s107
    %p114 = scmp.eq.s32.totalorder %s16, 1
    %p115 = por %p113, %p114
    %p116 = scmp.ne.s32.totalorder %s107, %s108
    %p117 = scmp.eq.s32.totalorder %s16, 0
    %p118 = por %p116, %p117
    %p119 = scmp.ne.s32.totalorder %s107, %s108
    %p120 = scmp.eq.s32.totalorder %s17, 1
    %p121 = por %p119, %p120
    %p123 = scmp.ne.s32.totalorder %s108, %s122
    %p124 = scmp.eq.s32.totalorder %s17, 0
    %p125 = por %p123, %p124
    %s127 = sadd.s32 %s126, 1
    %p130 = scmp.eq.s32.totalorder %s11, 1
    %p131 = scmp.ne.s32.totalorder %s126, %s128
    %p132 = scmp.eq.s32.totalorder %s11, 0
    %p133 = por %p131, %p132
    %p134 = scmp.ne.s32.totalorder %s126, %s128
    %p135 = scmp.eq.s32.totalorder %s16, 1
    %p136 = por %p134, %p135
    %p137 = scmp.ne.s32.totalorder %s128, %s129
    %p138 = scmp.eq.s32.totalorder %s16, 0
    %p139 = por %p137, %p138
    %p140 = scmp.ne.s32.totalorder %s128, %s129
    %p141 = scmp.eq.s32.totalorder %s17, 1
    %p142 = por %p140, %p141
    %p144 = scmp.ne.s32.totalorder %s129, %s143
    %p145 = scmp.eq.s32.totalorder %s17, 0
    %p146 = por %p144, %p145
    %s147 = ssub.s32 %s11, %s18
    %p148 = scmp.eq.s32.totalorder %s147, 0
    %s150 = sadd.s32 %s149, 1
    %s151 = scalar_select %p148, %s149, %s150
    %p154 = pneg %p148
    %p155 = scmp.eq.s32.totalorder %s11, 1
    %p156 = por %p154, %p155
    %p157 = scmp.ne.s32.totalorder %s149, %s152
    %p158 = scmp.eq.s32.totalorder %s11, 0
    %p159 = por %p157, %p158
    %p160 = scmp.ne.s32.totalorder %s149, %s152
    %p161 = scmp.eq.s32.totalorder %s16, 1
    %p162 = por %p160, %p161
    %p163 = scmp.ne.s32.totalorder %s152, %s153
    %p164 = scmp.eq.s32.totalorder %s16, 0
    %p165 = por %p163, %p164
    %p166 = scmp.ne.s32.totalorder %s152, %s153
    %p167 = scmp.eq.s32.totalorder %s17, 1
    %p168 = por %p166, %p167
    %p170 = scmp.ne.s32.totalorder %s153, %s169
    %p171 = scmp.eq.s32.totalorder %s17, 0
    %p172 = por %p170, %p171
    %p173 = scmp.le.s32.totalorder 1, %s11
    %p174 = scmp.lt.s32.totalorder %s11, 3
    %p175 = pnand %p173, %p174
    %p176 = pneg %p175
    // Predicated region
    $region9: #{residual_block_forward.2} parent=5 // pred_check
      _
    $region10: #{residual_block_forward.2} parent=5 // pred_check_branch
      %178 = sbr.rel (%p175) target = $region12
    $region11: #{residual_block_forward.2} parent=5 // pred_region
      %s179 = ssub.s32 %s11, 1
      // Predicated region
      $region13: #{residual_block_forward.2} parent=11 // pred_check
        %p180 = pneg %p118
      $region14: #{residual_block_forward.2} parent=11 // pred_check_branch
        %182 = sbr.rel (%p180) target = $region16
      $region15: #{residual_block_forward.2} parent=11 // pred_region
        _
      $region16: #{residual_block_forward.2} parent=11 // pred_fallthru
        _
      // Predicated region
      $region17: #{residual_block_forward.2} parent=11 // pred_check
        %p183 = pneg %p139
      $region18: #{residual_block_forward.2} parent=11 // pred_check_branch
        %185 = sbr.rel (%p183) target = $region20
      $region19: #{residual_block_forward.2} parent=11 // pred_region
        _
      $region20: #{residual_block_forward.2} parent=11 // pred_fallthru
        _
    $region12: #{residual_block_forward.2} parent=5 // pred_fallthru
      _
    %p186 = scmp.lt.s32.totalorder %s11, 2
    // Predicated region
    $region21: #{residual_block_forward.2} parent=5 // pred_check
      %p187 = pneg %p186
    $region22: #{residual_block_forward.2} parent=5 // pred_check_branch
      %189 = sbr.rel (%p187) target = $region24
    $region23: #{residual_block_forward.2} parent=5 // pred_region
      // Predicated region
      $region25: #{residual_block_forward.2} parent=23 // pred_check
        %p190 = pneg %p31
      $region26: #{residual_block_forward.2} parent=23 // pred_check_branch
        %192 = sbr.rel (%p190) target = $region28
      $region27: #{residual_block_forward.2} parent=23 // pred_region
        %s193 = smul.u32 54, %s11
        %p194 = scmp.lt.s32.totalorder %s193, 107
        %s195 = scalar_select %p194, %s193, 107
        %s196 = smul.addr %s195, 4
        %s197 = scalar_lea.vmem %s0, %s196
        %s198 = smul.u32 54, %s11
      $region28: #{residual_block_forward.2} parent=23 // pred_fallthru
        _
      // Predicated region
      $region29: #{residual_block_forward.2} parent=23 // pred_check
        %p199 = pneg %p65
      $region30: #{residual_block_forward.2} parent=23 // pred_check_branch
        %201 = sbr.rel (%p199) target = $region32
      $region31: #{residual_block_forward.2} parent=23 // pred_region
        %s202 = sadd.s32 %s11, 1
        %s203 = smul.u32 %s202, 9
        %p204 = scmp.lt.s32.totalorder %s203, 17
        %s205 = scalar_select %p204, %s203, 17
        %s206 = smul.u32 6, %s205
        %p207 = scmp.lt.s32.totalorder %s206, 107
        %s208 = scalar_select %p207, %s206, 107
        %s209 = smul.addr %s208, 4
        %s210 = scalar_lea.vmem %s1, %s209
        %s211 = sadd.s32 %s11, 1
        %s212 = smul.u32 %s211, 9
        %p213 = scmp.lt.s32.totalorder %s212, 17
        %s214 = scalar_select %p213, %s212, 17
        %s215 = smul.u32 6, %s214
      $region32: #{residual_block_forward.2} parent=23 // pred_fallthru
        _
      // Predicated region
      $region33: #{residual_block_forward.2} parent=23 // pred_check
        %p216 = pneg %p91
      $region34: #{residual_block_forward.2} parent=23 // pred_check_branch
        %218 = sbr.rel (%p216) target = $region36
      $region35: #{residual_block_forward.2} parent=23 // pred_region
        %s219 = smul.u32 54, %s11
        %p220 = scmp.lt.s32.totalorder %s219, 107
        %s221 = scalar_select %p220, %s219, 107
        %s222 = smul.addr %s221, 4
        %s223 = scalar_lea.vmem %s2, %s222
        %s224 = smul.u32 54, %s11
      $region36: #{residual_block_forward.2} parent=23 // pred_fallthru
        _
    $region24: #{residual_block_forward.2} parent=5 // pred_fallthru
      _
    %p225 = scmp.le.s32.totalorder 1, %s11
    %p226 = scmp.lt.s32.totalorder %s11, 3
    %p227 = pnand %p225, %p226
    %p228 = pneg %p227
    // Predicated region
    $region37: #{residual_block_forward.2} parent=5 // pred_check
      _
    $region38: #{residual_block_forward.2} parent=5 // pred_check_branch
      %230 = sbr.rel (%p227) target = $region40
    $region39: #{residual_block_forward.2} parent=5 // pred_region
      %s231 = ssub.s32 %s11, 1
      %s232 = smul.u32 54, %s16
      %p233 = scmp.lt.s32.totalorder %s232, 107
      %s234 = scalar_select %p233, %s232, 107
      %s235 = smul.addr %s234, 4
      %s236 = scalar_lea.vmem %s0, %s235
      %p237 = pneg %p37
      %p238 = pneg %p34
      %s239 = sadd.s32 %s16, 1
      %s240 = smul.u32 %s239, 9
      %p241 = scmp.lt.s32.totalorder %s240, 17
      %s242 = scalar_select %p241, %s240, 17
      %s243 = smul.u32 6, %s242
      %p244 = scmp.lt.s32.totalorder %s243, 107
      %s245 = scalar_select %p244, %s243, 107
      %s246 = smul.addr %s245, 4
      %s247 = scalar_lea.vmem %s1, %s246
      %p248 = pneg %p71
      %p249 = pneg %p68
      %s250 = smul.u32 54, %s16
      %p251 = scmp.lt.s32.totalorder %s250, 107
      %s252 = scalar_select %p251, %s250, 107
      %s253 = smul.addr %s252, 4
      %s254 = scalar_lea.vmem %s2, %s253
      %p255 = pneg %p97
      %p256 = pneg %p94
      %p257 = pneg %p118
      %p258 = pneg %p115
      %p259 = pneg %p139
      %p260 = pneg %p136
      %p261 = pneg %p165
      %p262 = pneg %p162
      %s263 = smul.u32 54, %s16
      %p264 = scmp.lt.s32.totalorder %s263, 107
      %s265 = scalar_select %p264, %s263, 107
      %s266 = smul.addr %s265, 4
      %s267 = scalar_lea.vmem %s5, %s266
      %s268 = smul.u32 54, %s16
      %p269 = scmp.lt.s32.totalorder %s268, 107
      %s270 = scalar_select %p269, %s268, 107
      %s271 = smul.addr %s270, 4
      %s272 = scalar_lea.vmem %s0, %s271
      %s273 = smul.u32 54, %s16
      %s274 = sadd.s32 %s16, 1
      %s275 = smul.u32 %s274, 9
      %p276 = scmp.lt.s32.totalorder %s275, 17
      %s277 = scalar_select %p276, %s275, 17
      %s278 = smul.u32 6, %s277
      %p279 = scmp.lt.s32.totalorder %s278, 107
      %s280 = scalar_select %p279, %s278, 107
      %s281 = smul.addr %s280, 4
      %s282 = scalar_lea.vmem %s1, %s281
      %s283 = sadd.s32 %s16, 1
      %s284 = smul.u32 %s283, 9
      %p285 = scmp.lt.s32.totalorder %s284, 17
      %s286 = scalar_select %p285, %s284, 17
      %s287 = smul.u32 6, %s286
      %s288 = smul.u32 54, %s16
      %p289 = scmp.lt.s32.totalorder %s288, 107
      %s290 = scalar_select %p289, %s288, 107
      %s291 = smul.addr %s290, 4
      %s292 = scalar_lea.vmem %s2, %s291
      %s293 = smul.u32 54, %s16
      %s294 = smul.u32 54, %s16
      %p295 = scmp.lt.s32.totalorder %s294, 107
      %s296 = scalar_select %p295, %s294, 107
      %s297 = smul.addr %s296, 4
      %s298 = scalar_lea.vmem %s5, %s297
      %s299 = smul.u32 54, %s16
      %v301 = vld [vmem:[%s272] sm:$0xf]
      %v302 = vld [vmem:[%s272 + $0x4] sm:$0xf]
      %v303 = vld [vmem:[%s272 + $0x8] sm:$0xf]
      %v304 = vld [vmem:[%s272 + $0xc] sm:$0xf]
      %v305 = vld [vmem:[%s272 + $0x10] sm:$0xf]
      %v306 = vld [vmem:[%s272 + $0x14] sm:$0xf]
      %v307 = vld [vmem:[%s272 + $0x18] sm:$0xf]
      %v308 = vld [vmem:[%s272 + $0x1c] sm:$0xf]
      %v309 = vld [vmem:[%s272 + $0x20] sm:$0xf]
      %v310 = vld [vmem:[%s272 + $0x24] sm:$0xf]
      %v311 = vld [vmem:[%s272 + $0x28] sm:$0xf]
      %v312 = vld [vmem:[%s272 + $0x2c] sm:$0xf]
      %v313 = vld [vmem:[%s272 + $0x30] sm:$0xf]
      %v314 = vld [vmem:[%s272 + $0x34] sm:$0xf]
      %v315 = vld [vmem:[%s272 + $0x38] sm:$0xf]
      %v316 = vld [vmem:[%s272 + $0x3c] sm:$0xf]
      %v317 = vld [vmem:[%s272 + $0x40] sm:$0xf]
      %v318 = vld [vmem:[%s272 + $0x44] sm:$0xf]
      %v319 = vld [vmem:[%s272 + $0x48] sm:$0xf]
      %v320 = vld [vmem:[%s272 + $0x4c] sm:$0xf]
      %v321 = vld [vmem:[%s272 + $0x50] sm:$0xf]
      %v322 = vld [vmem:[%s272 + $0x54] sm:$0xf]
      %v323 = vld [vmem:[%s272 + $0x58] sm:$0xf]
      %v324 = vld [vmem:[%s272 + $0x5c] sm:$0xf]
      %v325 = vld [vmem:[%s272 + $0x60] sm:$0xf]
      %v326 = vld [vmem:[%s272 + $0x64] sm:$0xf]
      %v327 = vld [vmem:[%s272 + $0x68] sm:$0xf]
      %v328 = vld [vmem:[%s272 + $0x6c] sm:$0xf]
      %v329 = vld [vmem:[%s272 + $0x70] sm:$0xf]
      %v330 = vld [vmem:[%s272 + $0x74] sm:$0xf]
      %v331 = vld [vmem:[%s272 + $0x78] sm:$0xf]
      %v332 = vld [vmem:[%s272 + $0x7c] sm:$0xf]
      %v333 = vld [vmem:[%s272 + $0x80] sm:$0xf]
      %v334 = vld [vmem:[%s272 + $0x84] sm:$0xf]
      %v335 = vld [vmem:[%s272 + $0x88] sm:$0xf]
      %v336 = vld [vmem:[%s272 + $0x8c] sm:$0xf]
      %v337 = vld [vmem:[%s272 + $0x90] sm:$0xf]
      %v338 = vld [vmem:[%s272 + $0x94] sm:$0xf]
      %v339 = vld [vmem:[%s272 + $0x98] sm:$0xf]
      %v340 = vld [vmem:[%s272 + $0x9c] sm:$0xf]
      %v341 = vld [vmem:[%s272 + $0xa0] sm:$0xf]
      %v342 = vld [vmem:[%s272 + $0xa4] sm:$0xf]
      %v343 = vld [vmem:[%s272 + $0xa8] sm:$0xf]
      %v344 = vld [vmem:[%s272 + $0xac] sm:$0xf]
      %v345 = vld [vmem:[%s272 + $0xb0] sm:$0xf]
      %v346 = vld [vmem:[%s272 + $0xb4] sm:$0xf]
      %v347 = vld [vmem:[%s272 + $0xb8] sm:$0xf]
      %v348 = vld [vmem:[%s272 + $0xbc] sm:$0xf]
      %v349 = vld [vmem:[%s272 + $0xc0] sm:$0xf]
      %v350 = vld [vmem:[%s272 + $0xc4] sm:$0xf]
      %v351 = vld [vmem:[%s272 + $0xc8] sm:$0xf]
      %v352 = vld [vmem:[%s272 + $0xcc] sm:$0xf]
      %v353 = vld [vmem:[%s272 + $0xd0] sm:$0xf]
      %v354 = vld [vmem:[%s272 + $0xd4] sm:$0xf]
      %v355 = vunpack.c.l.bf16 %v301
      %v356 = vunpack.c.l.bf16 %v302
      %v357 = vunpack.c.l.bf16 %v303
      %v358 = vunpack.c.l.bf16 %v304
      %v359 = vunpack.c.l.bf16 %v305
      %v360 = vunpack.c.l.bf16 %v306
      %v361 = vunpack.c.l.bf16 %v307
      %v362 = vunpack.c.l.bf16 %v308
      %v363 = vunpack.c.l.bf16 %v309
      %v364 = vunpack.c.l.bf16 %v310
      %v365 = vunpack.c.l.bf16 %v311
      %v366 = vunpack.c.l.bf16 %v312
      %v367 = vunpack.c.l.bf16 %v313
      %v368 = vunpack.c.l.bf16 %v314
      %v369 = vunpack.c.l.bf16 %v315
      %v370 = vunpack.c.l.bf16 %v316
      %v371 = vunpack.c.l.bf16 %v317
      %v372 = vunpack.c.l.bf16 %v318
      %v373 = vunpack.c.l.bf16 %v319
      %v374 = vunpack.c.l.bf16 %v320
      %v375 = vunpack.c.l.bf16 %v321
      %v376 = vunpack.c.l.bf16 %v322
      %v377 = vunpack.c.l.bf16 %v323
      %v378 = vunpack.c.l.bf16 %v324
      %v379 = vunpack.c.l.bf16 %v325
      %v380 = vunpack.c.l.bf16 %v326
      %v381 = vunpack.c.l.bf16 %v327
      %v382 = vunpack.c.l.bf16 %v328
      %v383 = vunpack.c.l.bf16 %v329
      %v384 = vunpack.c.l.bf16 %v330
      %v385 = vunpack.c.l.bf16 %v331
      %v386 = vunpack.c.l.bf16 %v332
      %v387 = vunpack.c.l.bf16 %v333
      %v388 = vunpack.c.l.bf16 %v334
      %v389 = vunpack.c.l.bf16 %v335
      %v390 = vunpack.c.l.bf16 %v336
      %v391 = vunpack.c.l.bf16 %v337
      %v392 = vunpack.c.l.bf16 %v338
      %v393 = vunpack.c.l.bf16 %v339
      %v394 = vunpack.c.l.bf16 %v340
      %v395 = vunpack.c.l.bf16 %v341
      %v396 = vunpack.c.l.bf16 %v342
      %v397 = vunpack.c.l.bf16 %v343
      %v398 = vunpack.c.l.bf16 %v344
      %v399 = vunpack.c.l.bf16 %v345
      %v400 = vunpack.c.l.bf16 %v346
      %v401 = vunpack.c.l.bf16 %v347
      %v402 = vunpack.c.l.bf16 %v348
      %v403 = vunpack.c.l.bf16 %v349
      %v404 = vunpack.c.l.bf16 %v350
      %v405 = vunpack.c.l.bf16 %v351
      %v406 = vunpack.c.l.bf16 %v352
      %v407 = vunpack.c.l.bf16 %v353
      %v408 = vunpack.c.l.bf16 %v354
      %vm409 = vcmask 31744
      %410 = vst.msk [vmem:[#allocation2] sm:$0xff] %vm409, %v355
      %411 = vst.msk [vmem:[#allocation2 + $0x8] sm:$0xff] %vm409, %v356
      %412 = vst.msk [vmem:[#allocation2 + $0x10] sm:$0xff] %vm409, %v357
      %413 = vst.msk [vmem:[#allocation2 + $0x18] sm:$0xff] %vm409, %v358
      %414 = vst.msk [vmem:[#allocation2 + $0x20] sm:$0xff] %vm409, %v359
      %415 = vst.msk [vmem:[#allocation2 + $0x28] sm:$0xff] %vm409, %v360
      %416 = vst.msk [vmem:[#allocation2 + $0x30] sm:$0xff] %vm409, %v361
      %417 = vst.msk [vmem:[#allocation2 + $0x38] sm:$0xff] %vm409, %v362
      %418 = vst.msk [vmem:[#allocation2 + $0x40] sm:$0xff] %vm409, %v363
      %419 = vst.msk [vmem:[#allocation2 + $0x48] sm:$0xff] %vm409, %v364
      %420 = vst.msk [vmem:[#allocation2 + $0x50] sm:$0xff] %vm409, %v365
      %421 = vst.msk [vmem:[#allocation2 + $0x58] sm:$0xff] %vm409, %v366
      %422 = vst.msk [vmem:[#allocation2 + $0x60] sm:$0xff] %vm409, %v367
      %423 = vst.msk [vmem:[#allocation2 + $0x68] sm:$0xff] %vm409, %v368
      %424 = vst.msk [vmem:[#allocation2 + $0x70] sm:$0xff] %vm409, %v369
      %425 = vst.msk [vmem:[#allocation2 + $0x78] sm:$0xff] %vm409, %v370
      %426 = vst.msk [vmem:[#allocation2 + $0x80] sm:$0xff] %vm409, %v371
      %427 = vst.msk [vmem:[#allocation2 + $0x88] sm:$0xff] %vm409, %v372
      %428 = vst.msk [vmem:[#allocation2 + $0x90] sm:$0xff] %vm409, %v373
      %429 = vst.msk [vmem:[#allocation2 + $0x98] sm:$0xff] %vm409, %v374
      %430 = vst.msk [vmem:[#allocation2 + $0xa0] sm:$0xff] %vm409, %v375
      %431 = vst.msk [vmem:[#allocation2 + $0xa8] sm:$0xff] %vm409, %v376
      %432 = vst.msk [vmem:[#allocation2 + $0xb0] sm:$0xff] %vm409, %v377
      %433 = vst.msk [vmem:[#allocation2 + $0xb8] sm:$0xff] %vm409, %v378
      %434 = vst.msk [vmem:[#allocation2 + $0xc0] sm:$0xff] %vm409, %v379
      %435 = vst.msk [vmem:[#allocation2 + $0xc8] sm:$0xff] %vm409, %v380
      %436 = vst.msk [vmem:[#allocation2 + $0xd0] sm:$0xff] %vm409, %v381
      %437 = vst.msk [vmem:[#allocation2 + $0xd8] sm:$0xff] %vm409, %v382
      %438 = vst.msk [vmem:[#allocation2 + $0xe0] sm:$0xff] %vm409, %v383
      %439 = vst.msk [vmem:[#allocation2 + $0xe8] sm:$0xff] %vm409, %v384
      %440 = vst.msk [vmem:[#allocation2 + $0xf0] sm:$0xff] %vm409, %v385
      %441 = vst.msk [vmem:[#allocation2 + $0xf8] sm:$0xff] %vm409, %v386
      %442 = vst.msk [vmem:[#allocation2 + $0x100] sm:$0xff] %vm409, %v387
      %443 = vst.msk [vmem:[#allocation2 + $0x108] sm:$0xff] %vm409, %v388
      %444 = vst.msk [vmem:[#allocation2 + $0x110] sm:$0xff] %vm409, %v389
      %445 = vst.msk [vmem:[#allocation2 + $0x118] sm:$0xff] %vm409, %v390
      %446 = vst.msk [vmem:[#allocation2 + $0x120] sm:$0xff] %vm409, %v391
      %447 = vst.msk [vmem:[#allocation2 + $0x128] sm:$0xff] %vm409, %v392
      %448 = vst.msk [vmem:[#allocation2 + $0x130] sm:$0xff] %vm409, %v393
      %449 = vst.msk [vmem:[#allocation2 + $0x138] sm:$0xff] %vm409, %v394
      %450 = vst.msk [vmem:[#allocation2 + $0x140] sm:$0xff] %vm409, %v395
      %451 = vst.msk [vmem:[#allocation2 + $0x148] sm:$0xff] %vm409, %v396
      %452 = vst.msk [vmem:[#allocation2 + $0x150] sm:$0xff] %vm409, %v397
      %453 = vst.msk [vmem:[#allocation2 + $0x158] sm:$0xff] %vm409, %v398
      %454 = vst.msk [vmem:[#allocation2 + $0x160] sm:$0xff] %vm409, %v399
      %455 = vst.msk [vmem:[#allocation2 + $0x168] sm:$0xff] %vm409, %v400
      %456 = vst.msk [vmem:[#allocation2 + $0x170] sm:$0xff] %vm409, %v401
      %457 = vst.msk [vmem:[#allocation2 + $0x178] sm:$0xff] %vm409, %v402
      %458 = vst.msk [vmem:[#allocation2 + $0x180] sm:$0xff] %vm409, %v403
      %459 = vst.msk [vmem:[#allocation2 + $0x188] sm:$0xff] %vm409, %v404
      %460 = vst.msk [vmem:[#allocation2 + $0x190] sm:$0xff] %vm409, %v405
      %461 = vst.msk [vmem:[#allocation2 + $0x198] sm:$0xff] %vm409, %v406
      %462 = vst.msk [vmem:[#allocation2 + $0x1a0] sm:$0xff] %vm409, %v407
      %463 = vst.msk [vmem:[#allocation2 + $0x1a8] sm:$0xff] %vm409, %v408
      %v464 = vld [vmem:[%s282] sm:$0xf]
      %v465 = vld [vmem:[%s282 + $0x4] sm:$0xf]
      %v466 = vld [vmem:[%s282 + $0x8] sm:$0xf]
      %v467 = vld [vmem:[%s282 + $0xc] sm:$0xf]
      %v468 = vld [vmem:[%s282 + $0x10] sm:$0xf]
      %v469 = vld [vmem:[%s282 + $0x14] sm:$0xf]
      %v470 = vunpack.c.l.bf16 %v464
      %v471 = vunpack.c.l.bf16 %v465
      %v472 = vunpack.c.l.bf16 %v466
      %v473 = vunpack.c.l.bf16 %v467
      %v474 = vunpack.c.l.bf16 %v468
      %v475 = vunpack.c.l.bf16 %v469
      %476 = vst.msk [vmem:[#allocation2 + $0x1b0] sm:$0xff] %vm409, %v470
      %477 = vst.msk [vmem:[#allocation2 + $0x1b8] sm:$0xff] %vm409, %v471
      %478 = vst.msk [vmem:[#allocation2 + $0x1c0] sm:$0xff] %vm409, %v472
      %479 = vst.msk [vmem:[#allocation2 + $0x1c8] sm:$0xff] %vm409, %v473
      %480 = vst.msk [vmem:[#allocation2 + $0x1d0] sm:$0xff] %vm409, %v474
      %481 = vst.msk [vmem:[#allocation2 + $0x1d8] sm:$0xff] %vm409, %v475
      %v482 = vld [vmem:[#allocation2] sm:$0xff]
      %v483 = vld [vmem:[#allocation2 + $0x8] sm:$0xff]
      %v484 = vld [vmem:[#allocation2 + $0x10] sm:$0xff]
      %v485 = vld [vmem:[#allocation2 + $0x18] sm:$0xff]
      %v486 = vld [vmem:[#allocation2 + $0x20] sm:$0xff]
      %v487 = vld [vmem:[#allocation2 + $0x28] sm:$0xff]
      %v488 = vld [vmem:[#allocation2 + $0x30] sm:$0xff]
      %v489 = vld [vmem:[#allocation2 + $0x38] sm:$0xff]
      %v490 = vld [vmem:[#allocation2 + $0x40] sm:$0xff]
      %v491 = vld [vmem:[#allocation2 + $0x48] sm:$0xff]
      %v492 = vld [vmem:[#allocation2 + $0x50] sm:$0xff]
      %v493 = vld [vmem:[#allocation2 + $0x58] sm:$0xff]
      %v494 = vld [vmem:[#allocation2 + $0x60] sm:$0xff]
      %v495 = vld [vmem:[#allocation2 + $0x68] sm:$0xff]
      %v496 = vld [vmem:[#allocation2 + $0x70] sm:$0xff]
      %v497 = vld [vmem:[#allocation2 + $0x78] sm:$0xff]
      %v498 = vld [vmem:[#allocation2 + $0x80] sm:$0xff]
      %v499 = vld [vmem:[#allocation2 + $0x88] sm:$0xff]
      %v500 = vld [vmem:[#allocation2 + $0x90] sm:$0xff]
      %v501 = vld [vmem:[#allocation2 + $0x98] sm:$0xff]
      %v502 = vld [vmem:[#allocation2 + $0xa0] sm:$0xff]
      %v503 = vld [vmem:[#allocation2 + $0xa8] sm:$0xff]
      %v504 = vld [vmem:[#allocation2 + $0xb0] sm:$0xff]
      %v505 = vld [vmem:[#allocation2 + $0xb8] sm:$0xff]
      %v506 = vld [vmem:[#allocation2 + $0xc0] sm:$0xff]
      %v507 = vld [vmem:[#allocation2 + $0xc8] sm:$0xff]
      %v508 = vld [vmem:[#allocation2 + $0xd0] sm:$0xff]
      %v509 = vld [vmem:[#allocation2 + $0xd8] sm:$0xff]
      %v510 = vld [vmem:[#allocation2 + $0xe0] sm:$0xff]
      %v511 = vld [vmem:[#allocation2 + $0xe8] sm:$0xff]
      %v512 = vld [vmem:[#allocation2 + $0xf0] sm:$0xff]
      %v513 = vld [vmem:[#allocation2 + $0xf8] sm:$0xff]
      %v514 = vld [vmem:[#allocation2 + $0x100] sm:$0xff]
      %v515 = vld [vmem:[#allocation2 + $0x108] sm:$0xff]
      %v516 = vld [vmem:[#allocation2 + $0x110] sm:$0xff]
      %v517 = vld [vmem:[#allocation2 + $0x118] sm:$0xff]
      %v518 = vld [vmem:[#allocation2 + $0x120] sm:$0xff]
      %v519 = vld [vmem:[#allocation2 + $0x128] sm:$0xff]
      %v520 = vld [vmem:[#allocation2 + $0x130] sm:$0xff]
      %v521 = vld [vmem:[#allocation2 + $0x138] sm:$0xff]
      %v522 = vld [vmem:[#allocation2 + $0x140] sm:$0xff]
      %v523 = vld [vmem:[#allocation2 + $0x148] sm:$0xff]
      %v524 = vld [vmem:[#allocation2 + $0x150] sm:$0xff]
      %v525 = vld [vmem:[#allocation2 + $0x158] sm:$0xff]
      %v526 = vld [vmem:[#allocation2 + $0x160] sm:$0xff]
      %v527 = vld [vmem:[#allocation2 + $0x168] sm:$0xff]
      %v528 = vld [vmem:[#allocation2 + $0x170] sm:$0xff]
      %v529 = vld [vmem:[#allocation2 + $0x178] sm:$0xff]
      %v530 = vld [vmem:[#allocation2 + $0x180] sm:$0xff]
      %v531 = vld [vmem:[#allocation2 + $0x188] sm:$0xff]
      %v532 = vld [vmem:[#allocation2 + $0x190] sm:$0xff]
      %v533 = vld [vmem:[#allocation2 + $0x198] sm:$0xff]
      %v534 = vld [vmem:[#allocation2 + $0x1a0] sm:$0xff]
      %v535 = vld [vmem:[#allocation2 + $0x1a8] sm:$0xff]
      %v536 = vld [vmem:[#allocation2 + $0x1] sm:$0xff]
      %v537 = vld [vmem:[#allocation2 + $0x9] sm:$0xff]
      %v538 = vld [vmem:[#allocation2 + $0x11] sm:$0xff]
      %v539 = vld [vmem:[#allocation2 + $0x19] sm:$0xff]
      %v540 = vld [vmem:[#allocation2 + $0x21] sm:$0xff]
      %v541 = vld [vmem:[#allocation2 + $0x29] sm:$0xff]
      %v542 = vld [vmem:[#allocation2 + $0x31] sm:$0xff]
      %v543 = vld [vmem:[#allocation2 + $0x39] sm:$0xff]
      %v544 = vld [vmem:[#allocation2 + $0x41] sm:$0xff]
      %v545 = vld [vmem:[#allocation2 + $0x49] sm:$0xff]
      %v546 = vld [vmem:[#allocation2 + $0x51] sm:$0xff]
      %v547 = vld [vmem:[#allocation2 + $0x59] sm:$0xff]
      %v548 = vld [vmem:[#allocation2 + $0x61] sm:$0xff]
      %v549 = vld [vmem:[#allocation2 + $0x69] sm:$0xff]
      %v550 = vld [vmem:[#allocation2 + $0x71] sm:$0xff]
      %v551 = vld [vmem:[#allocation2 + $0x79] sm:$0xff]
      %v552 = vld [vmem:[#allocation2 + $0x81] sm:$0xff]
      %v553 = vld [vmem:[#allocation2 + $0x89] sm:$0xff]
      %v554 = vld [vmem:[#allocation2 + $0x91] sm:$0xff]
      %v555 = vld [vmem:[#allocation2 + $0x99] sm:$0xff]
      %v556 = vld [vmem:[#allocation2 + $0xa1] sm:$0xff]
      %v557 = vld [vmem:[#allocation2 + $0xa9] sm:$0xff]
      %v558 = vld [vmem:[#allocation2 + $0xb1] sm:$0xff]
      %v559 = vld [vmem:[#allocation2 + $0xb9] sm:$0xff]
      %v560 = vld [vmem:[#allocation2 + $0xc1] sm:$0xff]
      %v561 = vld [vmem:[#allocation2 + $0xc9] sm:$0xff]
      %v562 = vld [vmem:[#allocation2 + $0xd1] sm:$0xff]
      %v563 = vld [vmem:[#allocation2 + $0xd9] sm:$0xff]
      %v564 = vld [vmem:[#allocation2 + $0xe1] sm:$0xff]
      %v565 = vld [vmem:[#allocation2 + $0xe9] sm:$0xff]
      %v566 = vld [vmem:[#allocation2 + $0xf1] sm:$0xff]
      %v567 = vld [vmem:[#allocation2 + $0xf9] sm:$0xff]
      %v568 = vld [vmem:[#allocation2 + $0x101] sm:$0xff]
      %v569 = vld [vmem:[#allocation2 + $0x109] sm:$0xff]
      %v570 = vld [vmem:[#allocation2 + $0x111] sm:$0xff]
      %v571 = vld [vmem:[#allocation2 + $0x119] sm:$0xff]
      %v572 = vld [vmem:[#allocation2 + $0x121] sm:$0xff]
      %v573 = vld [vmem:[#allocation2 + $0x129] sm:$0xff]
      %v574 = vld [vmem:[#allocation2 + $0x131] sm:$0xff]
      %v575 = vld [vmem:[#allocation2 + $0x139] sm:$0xff]
      %v576 = vld [vmem:[#allocation2 + $0x141] sm:$0xff]
      %v577 = vld [vmem:[#allocation2 + $0x149] sm:$0xff]
      %v578 = vld [vmem:[#allocation2 + $0x151] sm:$0xff]
      %v579 = vld [vmem:[#allocation2 + $0x159] sm:$0xff]
      %v580 = vld [vmem:[#allocation2 + $0x161] sm:$0xff]
      %v581 = vld [vmem:[#allocation2 + $0x169] sm:$0xff]
      %v582 = vld [vmem:[#allocation2 + $0x171] sm:$0xff]
      %v583 = vld [vmem:[#allocation2 + $0x179] sm:$0xff]
      %v584 = vld [vmem:[#allocation2 + $0x181] sm:$0xff]
      %v585 = vld [vmem:[#allocation2 + $0x189] sm:$0xff]
      %v586 = vld [vmem:[#allocation2 + $0x191] sm:$0xff]
      %v587 = vld [vmem:[#allocation2 + $0x199] sm:$0xff]
      %v588 = vld [vmem:[#allocation2 + $0x1a1] sm:$0xff]
      %v589 = vld [vmem:[#allocation2 + $0x1a9] sm:$0xff]
      %v590 = vld [vmem:[#allocation2 + $0x2] sm:$0xff]
      %v591 = vld [vmem:[#allocation2 + $0xa] sm:$0xff]
      %v592 = vld [vmem:[#allocation2 + $0x12] sm:$0xff]
      %v593 = vld [vmem:[#allocation2 + $0x1a] sm:$0xff]
      %v594 = vld [vmem:[#allocation2 + $0x22] sm:$0xff]
      %v595 = vld [vmem:[#allocation2 + $0x2a] sm:$0xff]
      %v596 = vld [vmem:[#allocation2 + $0x32] sm:$0xff]
      %v597 = vld [vmem:[#allocation2 + $0x3a] sm:$0xff]
      %v598 = vld [vmem:[#allocation2 + $0x42] sm:$0xff]
      %v599 = vld [vmem:[#allocation2 + $0x4a] sm:$0xff]
      %v600 = vld [vmem:[#allocation2 + $0x52] sm:$0xff]
      %v601 = vld [vmem:[#allocation2 + $0x5a] sm:$0xff]
      %v602 = vld [vmem:[#allocation2 + $0x62] sm:$0xff]
      %v603 = vld [vmem:[#allocation2 + $0x6a] sm:$0xff]
      %v604 = vld [vmem:[#allocation2 + $0x72] sm:$0xff]
      %v605 = vld [vmem:[#allocation2 + $0x7a] sm:$0xff]
      %v606 = vld [vmem:[#allocation2 + $0x82] sm:$0xff]
      %v607 = vld [vmem:[#allocation2 + $0x8a] sm:$0xff]
      %v608 = vld [vmem:[#allocation2 + $0x92] sm:$0xff]
      %v609 = vld [vmem:[#allocation2 + $0x9a] sm:$0xff]
      %v610 = vld [vmem:[#allocation2 + $0xa2] sm:$0xff]
      %v611 = vld [vmem:[#allocation2 + $0xaa] sm:$0xff]
      %v612 = vld [vmem:[#allocation2 + $0xb2] sm:$0xff]
      %v613 = vld [vmem:[#allocation2 + $0xba] sm:$0xff]
      %v614 = vld [vmem:[#allocation2 + $0xc2] sm:$0xff]
      %v615 = vld [vmem:[#allocation2 + $0xca] sm:$0xff]
      %v616 = vld [vmem:[#allocation2 + $0xd2] sm:$0xff]
      %v617 = vld [vmem:[#allocation2 + $0xda] sm:$0xff]
      %v618 = vld [vmem:[#allocation2 + $0xe2] sm:$0xff]
      %v619 = vld [vmem:[#allocation2 + $0xea] sm:$0xff]
      %v620 = vld [vmem:[#allocation2 + $0xf2] sm:$0xff]
      %v621 = vld [vmem:[#allocation2 + $0xfa] sm:$0xff]
      %v622 = vld [vmem:[#allocation2 + $0x102] sm:$0xff]
      %v623 = vld [vmem:[#allocation2 + $0x10a] sm:$0xff]
      %v624 = vld [vmem:[#allocation2 + $0x112] sm:$0xff]
      %v625 = vld [vmem:[#allocation2 + $0x11a] sm:$0xff]
      %v626 = vld [vmem:[#allocation2 + $0x122] sm:$0xff]
      %v627 = vld [vmem:[#allocation2 + $0x12a] sm:$0xff]
      %v628 = vld [vmem:[#allocation2 + $0x132] sm:$0xff]
      %v629 = vld [vmem:[#allocation2 + $0x13a] sm:$0xff]
      %v630 = vld [vmem:[#allocation2 + $0x142] sm:$0xff]
      %v631 = vld [vmem:[#allocation2 + $0x14a] sm:$0xff]
      %v632 = vld [vmem:[#allocation2 + $0x152] sm:$0xff]
      %v633 = vld [vmem:[#allocation2 + $0x15a] sm:$0xff]
      %v634 = vld [vmem:[#allocation2 + $0x162] sm:$0xff]
      %v635 = vld [vmem:[#allocation2 + $0x16a] sm:$0xff]
      %v636 = vld [vmem:[#allocation2 + $0x172] sm:$0xff]
      %v637 = vld [vmem:[#allocation2 + $0x17a] sm:$0xff]
      %v638 = vld [vmem:[#allocation2 + $0x182] sm:$0xff]
      %v639 = vld [vmem:[#allocation2 + $0x18a] sm:$0xff]
      %v640 = vld [vmem:[#allocation2 + $0x192] sm:$0xff]
      %v641 = vld [vmem:[#allocation2 + $0x19a] sm:$0xff]
      %v642 = vld [vmem:[#allocation2 + $0x1a2] sm:$0xff]
      %v643 = vld [vmem:[#allocation2 + $0x1aa] sm:$0xff]
      %v644 = vld [vmem:[#allocation2 + $0x14] sm:$0xff]
      %v645 = vld [vmem:[#allocation2 + $0x1c] sm:$0xff]
      %v646 = vld [vmem:[#allocation2 + $0x24] sm:$0xff]
      %v647 = vld [vmem:[#allocation2 + $0x2c] sm:$0xff]
      %v648 = vld [vmem:[#allocation2 + $0x34] sm:$0xff]
      %v649 = vld [vmem:[#allocation2 + $0x3c] sm:$0xff]
      %v650 = vld [vmem:[#allocation2 + $0x44] sm:$0xff]
      %v651 = vld [vmem:[#allocation2 + $0x4c] sm:$0xff]
      %v652 = vld [vmem:[#allocation2 + $0x54] sm:$0xff]
      %v653 = vld [vmem:[#allocation2 + $0x5c] sm:$0xff]
      %v654 = vld [vmem:[#allocation2 + $0x64] sm:$0xff]
      %v655 = vld [vmem:[#allocation2 + $0x6c] sm:$0xff]
      %v656 = vld [vmem:[#allocation2 + $0x74] sm:$0xff]
      %v657 = vld [vmem:[#allocation2 + $0x7c] sm:$0xff]
      %v658 = vld [vmem:[#allocation2 + $0x84] sm:$0xff]
      %v659 = vld [vmem:[#allocation2 + $0x8c] sm:$0xff]
      %v660 = vld [vmem:[#allocation2 + $0x94] sm:$0xff]
      %v661 = vld [vmem:[#allocation2 + $0x9c] sm:$0xff]
      %v662 = vld [vmem:[#allocation2 + $0xa4] sm:$0xff]
      %v663 = vld [vmem:[#allocation2 + $0xac] sm:$0xff]
      %v664 = vld [vmem:[#allocation2 + $0xb4] sm:$0xff]
      %v665 = vld [vmem:[#allocation2 + $0xbc] sm:$0xff]
      %v666 = vld [vmem:[#allocation2 + $0xc4] sm:$0xff]
      %v667 = vld [vmem:[#allocation2 + $0xcc] sm:$0xff]
      %v668 = vld [vmem:[#allocation2 + $0xd4] sm:$0xff]
      %v669 = vld [vmem:[#allocation2 + $0xdc] sm:$0xff]
      %v670 = vld [vmem:[#allocation2 + $0xe4] sm:$0xff]
      %v671 = vld [vmem:[#allocation2 + $0xec] sm:$0xff]
      %v672 = vld [vmem:[#allocation2 + $0xf4] sm:$0xff]
      %v673 = vld [vmem:[#allocation2 + $0xfc] sm:$0xff]
      %v674 = vld [vmem:[#allocation2 + $0x104] sm:$0xff]
      %v675 = vld [vmem:[#allocation2 + $0x10c] sm:$0xff]
      %v676 = vld [vmem:[#allocation2 + $0x114] sm:$0xff]
      %v677 = vld [vmem:[#allocation2 + $0x11c] sm:$0xff]
      %v678 = vld [vmem:[#allocation2 + $0x124] sm:$0xff]
      %v679 = vld [vmem:[#allocation2 + $0x12c] sm:$0xff]
      %v680 = vld [vmem:[#allocation2 + $0x134] sm:$0xff]
      %v681 = vld [vmem:[#allocation2 + $0x13c] sm:$0xff]
      %v682 = vld [vmem:[#allocation2 + $0x144] sm:$0xff]
      %v683 = vld [vmem:[#allocation2 + $0x14c] sm:$0xff]
      %v684 = vld [vmem:[#allocation2 + $0x154] sm:$0xff]
      %v685 = vld [vmem:[#allocation2 + $0x15c] sm:$0xff]
      %v686 = vld [vmem:[#allocation2 + $0x164] sm:$0xff]
      %v687 = vld [vmem:[#allocation2 + $0x16c] sm:$0xff]
      %v688 = vld [vmem:[#allocation2 + $0x174] sm:$0xff]
      %v689 = vld [vmem:[#allocation2 + $0x17c] sm:$0xff]
      %v690 = vld [vmem:[#allocation2 + $0x184] sm:$0xff]
      %v691 = vld [vmem:[#allocation2 + $0x18c] sm:$0xff]
      %v692 = vld [vmem:[#allocation2 + $0x194] sm:$0xff]
      %v693 = vld [vmem:[#allocation2 + $0x19c] sm:$0xff]
      %v694 = vld [vmem:[#allocation2 + $0x1a4] sm:$0xff]
      %v695 = vld [vmem:[#allocation2 + $0x1ac] sm:$0xff]
      %v696 = vld [vmem:[#allocation2 + $0x1b4] sm:$0xff]
      %v697 = vld [vmem:[#allocation2 + $0x1bc] sm:$0xff]
      %v698 = vld [vmem:[#allocation2 + $0x15] sm:$0xff]
      %v699 = vld [vmem:[#allocation2 + $0x1d] sm:$0xff]
      %v700 = vld [vmem:[#allocation2 + $0x25] sm:$0xff]
      %v701 = vld [vmem:[#allocation2 + $0x2d] sm:$0xff]
      %v702 = vld [vmem:[#allocation2 + $0x35] sm:$0xff]
      %v703 = vld [vmem:[#allocation2 + $0x3d] sm:$0xff]
      %v704 = vld [vmem:[#allocation2 + $0x45] sm:$0xff]
      %v705 = vld [vmem:[#allocation2 + $0x4d] sm:$0xff]
      %v706 = vld [vmem:[#allocation2 + $0x55] sm:$0xff]
      %v707 = vld [vmem:[#allocation2 + $0x5d] sm:$0xff]
      %v708 = vld [vmem:[#allocation2 + $0x65] sm:$0xff]
      %v709 = vld [vmem:[#allocation2 + $0x6d] sm:$0xff]
      %v710 = vld [vmem:[#allocation2 + $0x75] sm:$0xff]
      %v711 = vld [vmem:[#allocation2 + $0x7d] sm:$0xff]
      %v712 = vld [vmem:[#allocation2 + $0x85] sm:$0xff]
      %v713 = vld [vmem:[#allocation2 + $0x8d] sm:$0xff]
      %v714 = vld [vmem:[#allocation2 + $0x95] sm:$0xff]
      %v715 = vld [vmem:[#allocation2 + $0x9d] sm:$0xff]
      %v716 = vld [vmem:[#allocation2 + $0xa5] sm:$0xff]
      %v717 = vld [vmem:[#allocation2 + $0xad] sm:$0xff]
      %v718 = vld [vmem:[#allocation2 + $0xb5] sm:$0xff]
      %v719 = vld [vmem:[#allocation2 + $0xbd] sm:$0xff]
      %v720 = vld [vmem:[#allocation2 + $0xc5] sm:$0xff]
      %v721 = vld [vmem:[#allocation2 + $0xcd] sm:$0xff]
      %v722 = vld [vmem:[#allocation2 + $0xd5] sm:$0xff]
      %v723 = vld [vmem:[#allocation2 + $0xdd] sm:$0xff]
      %v724 = vld [vmem:[#allocation2 + $0xe5] sm:$0xff]
      %v725 = vld [vmem:[#allocation2 + $0xed] sm:$0xff]
      %v726 = vld [vmem:[#allocation2 + $0xf5] sm:$0xff]
      %v727 = vld [vmem:[#allocation2 + $0xfd] sm:$0xff]
      %v728 = vld [vmem:[#allocation2 + $0x105] sm:$0xff]
      %v729 = vld [vmem:[#allocation2 + $0x10d] sm:$0xff]
      %v730 = vld [vmem:[#allocation2 + $0x115] sm:$0xff]
      %v731 = vld [vmem:[#allocation2 + $0x11d] sm:$0xff]
      %v732 = vld [vmem:[#allocation2 + $0x125] sm:$0xff]
      %v733 = vld [vmem:[#allocation2 + $0x12d] sm:$0xff]
      %v734 = vld [vmem:[#allocation2 + $0x135] sm:$0xff]
      %v735 = vld [vmem:[#allocation2 + $0x13d] sm:$0xff]
      %v736 = vld [vmem:[#allocation2 + $0x145] sm:$0xff]
      %v737 = vld [vmem:[#allocation2 + $0x14d] sm:$0xff]
      %v738 = vld [vmem:[#allocation2 + $0x155] sm:$0xff]
      %v739 = vld [vmem:[#allocation2 + $0x15d] sm:$0xff]
      %v740 = vld [vmem:[#allocation2 + $0x165] sm:$0xff]
      %v741 = vld [vmem:[#allocation2 + $0x16d] sm:$0xff]
      %v742 = vld [vmem:[#allocation2 + $0x175] sm:$0xff]
      %v743 = vld [vmem:[#allocation2 + $0x17d] sm:$0xff]
      %v744 = vld [vmem:[#allocation2 + $0x185] sm:$0xff]
      %v745 = vld [vmem:[#allocation2 + $0x18d] sm:$0xff]
      %v746 = vld [vmem:[#allocation2 + $0x195] sm:$0xff]
      %v747 = vld [vmem:[#allocation2 + $0x19d] sm:$0xff]
      %v748 = vld [vmem:[#allocation2 + $0x1a5] sm:$0xff]
      %v749 = vld [vmem:[#allocation2 + $0x1ad] sm:$0xff]
      %v750 = vld [vmem:[#allocation2 + $0x1b5] sm:$0xff]
      %v751 = vld [vmem:[#allocation2 + $0x1bd] sm:$0xff]
      %v752 = vld [vmem:[#allocation2 + $0x16] sm:$0xff]
      %v753 = vld [vmem:[#allocation2 + $0x1e] sm:$0xff]
      %v754 = vld [vmem:[#allocation2 + $0x26] sm:$0xff]
      %v755 = vld [vmem:[#allocation2 + $0x2e] sm:$0xff]
      %v756 = vld [vmem:[#allocation2 + $0x36] sm:$0xff]
      %v757 = vld [vmem:[#allocation2 + $0x3e] sm:$0xff]
      %v758 = vld [vmem:[#allocation2 + $0x46] sm:$0xff]
      %v759 = vld [vmem:[#allocation2 + $0x4e] sm:$0xff]
      %v760 = vld [vmem:[#allocation2 + $0x56] sm:$0xff]
      %v761 = vld [vmem:[#allocation2 + $0x5e] sm:$0xff]
      %v762 = vld [vmem:[#allocation2 + $0x66] sm:$0xff]
      %v763 = vld [vmem:[#allocation2 + $0x6e] sm:$0xff]
      %v764 = vld [vmem:[#allocation2 + $0x76] sm:$0xff]
      %v765 = vld [vmem:[#allocation2 + $0x7e] sm:$0xff]
      %v766 = vld [vmem:[#allocation2 + $0x86] sm:$0xff]
      %v767 = vld [vmem:[#allocation2 + $0x8e] sm:$0xff]
      %v768 = vld [vmem:[#allocation2 + $0x96] sm:$0xff]
      %v769 = vld [vmem:[#allocation2 + $0x9e] sm:$0xff]
      %v770 = vld [vmem:[#allocation2 + $0xa6] sm:$0xff]
      %v771 = vld [vmem:[#allocation2 + $0xae] sm:$0xff]
      %v772 = vld [vmem:[#allocation2 + $0xb6] sm:$0xff]
      %v773 = vld [vmem:[#allocation2 + $0xbe] sm:$0xff]
      %v774 = vld [vmem:[#allocation2 + $0xc6] sm:$0xff]
      %v775 = vld [vmem:[#allocation2 + $0xce] sm:$0xff]
      %v776 = vld [vmem:[#allocation2 + $0xd6] sm:$0xff]
      %v777 = vld [vmem:[#allocation2 + $0xde] sm:$0xff]
      %v778 = vld [vmem:[#allocation2 + $0xe6] sm:$0xff]
      %v779 = vld [vmem:[#allocation2 + $0xee] sm:$0xff]
      %v780 = vld [vmem:[#allocation2 + $0xf6] sm:$0xff]
      %v781 = vld [vmem:[#allocation2 + $0xfe] sm:$0xff]
      %v782 = vld [vmem:[#allocation2 + $0x106] sm:$0xff]
      %v783 = vld [vmem:[#allocation2 + $0x10e] sm:$0xff]
      %v784 = vld [vmem:[#allocation2 + $0x116] sm:$0xff]
      %v785 = vld [vmem:[#allocation2 + $0x11e] sm:$0xff]
      %v786 = vld [vmem:[#allocation2 + $0x126] sm:$0xff]
      %v787 = vld [vmem:[#allocation2 + $0x12e] sm:$0xff]
      %v788 = vld [vmem:[#allocation2 + $0x136] sm:$0xff]
      %v789 = vld [vmem:[#allocation2 + $0x13e] sm:$0xff]
      %v790 = vld [vmem:[#allocation2 + $0x146] sm:$0xff]
      %v791 = vld [vmem:[#allocation2 + $0x14e] sm:$0xff]
      %v792 = vld [vmem:[#allocation2 + $0x156] sm:$0xff]
      %v793 = vld [vmem:[#allocation2 + $0x15e] sm:$0xff]
      %v794 = vld [vmem:[#allocation2 + $0x166] sm:$0xff]
      %v795 = vld [vmem:[#allocation2 + $0x16e] sm:$0xff]
      %v796 = vld [vmem:[#allocation2 + $0x176] sm:$0xff]
      %v797 = vld [vmem:[#allocation2 + $0x17e] sm:$0xff]
      %v798 = vld [vmem:[#allocation2 + $0x186] sm:$0xff]
      %v799 = vld [vmem:[#allocation2 + $0x18e] sm:$0xff]
      %v800 = vld [vmem:[#allocation2 + $0x196] sm:$0xff]
      %v801 = vld [vmem:[#allocation2 + $0x19e] sm:$0xff]
      %v802 = vld [vmem:[#allocation2 + $0x1a6] sm:$0xff]
      %v803 = vld [vmem:[#allocation2 + $0x1ae] sm:$0xff]
      %v804 = vld [vmem:[#allocation2 + $0x1b6] sm:$0xff]
      %v805 = vld [vmem:[#allocation2 + $0x1be] sm:$0xff]
      %v806 = vld [vmem:[#allocation2 + $0x1b0] sm:$0xff]
      %v807 = vld [vmem:[#allocation2 + $0x1b8] sm:$0xff]
      %v808 = vld [vmem:[#allocation2 + $0x1c0] sm:$0xff]
      %v809 = vld [vmem:[#allocation2 + $0x1c8] sm:$0xff]
      %v810 = vld [vmem:[#allocation2 + $0x1d0] sm:$0xff]
      %v811 = vld [vmem:[#allocation2 + $0x1b1] sm:$0xff]
      %v812 = vld [vmem:[#allocation2 + $0x1b9] sm:$0xff]
      %v813 = vld [vmem:[#allocation2 + $0x1c1] sm:$0xff]
      %v814 = vld [vmem:[#allocation2 + $0x1c9] sm:$0xff]
      %v815 = vld [vmem:[#allocation2 + $0x1d1] sm:$0xff]
      %v816 = vld [vmem:[#allocation2 + $0x1b2] sm:$0xff]
      %v817 = vld [vmem:[#allocation2 + $0x1ba] sm:$0xff]
      %v818 = vld [vmem:[#allocation2 + $0x1c2] sm:$0xff]
      %v819 = vld [vmem:[#allocation2 + $0x1ca] sm:$0xff]
      %v820 = vld [vmem:[#allocation2 + $0x1d2] sm:$0xff]
      %875 = vrot.lane.b32.xlu0 %v536, 4
      %v876 = vpop.permute.xlu0 %875
      %877 = vrot.lane.b32.xlu0 %v537, 4
      %v878 = vpop.permute.xlu0 %877
      %879 = vrot.lane.b32.xlu0 %v538, 4
      %v880 = vpop.permute.xlu0 %879
      %881 = vrot.lane.b32.xlu0 %v539, 4
      %v882 = vpop.permute.xlu0 %881
      %883 = vrot.lane.b32.xlu0 %v540, 4
      %v884 = vpop.permute.xlu0 %883
      %885 = vrot.lane.b32.xlu0 %v541, 4
      %v886 = vpop.permute.xlu0 %885
      %887 = vrot.lane.b32.xlu0 %v542, 4
      %v888 = vpop.permute.xlu0 %887
      %889 = vrot.lane.b32.xlu0 %v543, 4
      %v890 = vpop.permute.xlu0 %889
      %891 = vrot.lane.b32.xlu0 %v544, 4
      %v892 = vpop.permute.xlu0 %891
      %893 = vrot.lane.b32.xlu0 %v545, 4
      %v894 = vpop.permute.xlu0 %893
      %895 = vrot.lane.b32.xlu0 %v546, 4
      %v896 = vpop.permute.xlu0 %895
      %897 = vrot.lane.b32.xlu0 %v547, 4
      %v898 = vpop.permute.xlu0 %897
      %899 = vrot.lane.b32.xlu0 %v548, 4
      %v900 = vpop.permute.xlu0 %899
      %901 = vrot.lane.b32.xlu0 %v549, 4
      %v902 = vpop.permute.xlu0 %901
      %903 = vrot.lane.b32.xlu0 %v550, 4
      %v904 = vpop.permute.xlu0 %903
      %905 = vrot.lane.b32.xlu0 %v551, 4
      %v906 = vpop.permute.xlu0 %905
      %907 = vrot.lane.b32.xlu0 %v552, 4
      %v908 = vpop.permute.xlu0 %907
      %909 = vrot.lane.b32.xlu0 %v553, 4
      %v910 = vpop.permute.xlu0 %909
      %911 = vrot.lane.b32.xlu0 %v554, 4
      %v912 = vpop.permute.xlu0 %911
      %913 = vrot.lane.b32.xlu0 %v555, 4
      %v914 = vpop.permute.xlu0 %913
      %915 = vrot.lane.b32.xlu0 %v556, 4
      %v916 = vpop.permute.xlu0 %915
      %917 = vrot.lane.b32.xlu0 %v557, 4
      %v918 = vpop.permute.xlu0 %917
      %919 = vrot.lane.b32.xlu0 %v558, 4
      %v920 = vpop.permute.xlu0 %919
      %921 = vrot.lane.b32.xlu0 %v559, 4
      %v922 = vpop.permute.xlu0 %921
      %923 = vrot.lane.b32.xlu0 %v560, 4
      %v924 = vpop.permute.xlu0 %923
      %925 = vrot.lane.b32.xlu0 %v561, 4
      %v926 = vpop.permute.xlu0 %925
      %927 = vrot.lane.b32.xlu0 %v562, 4
      %v928 = vpop.permute.xlu0 %927
      %929 = vrot.lane.b32.xlu0 %v563, 4
      %v930 = vpop.permute.xlu0 %929
      %931 = vrot.lane.b32.xlu0 %v564, 4
      %v932 = vpop.permute.xlu0 %931
      %933 = vrot.lane.b32.xlu0 %v565, 4
      %v934 = vpop.permute.xlu0 %933
      %935 = vrot.lane.b32.xlu0 %v566, 4
      %v936 = vpop.permute.xlu0 %935
      %937 = vrot.lane.b32.xlu0 %v567, 4
      %v938 = vpop.permute.xlu0 %937
      %939 = vrot.lane.b32.xlu0 %v568, 4
      %v940 = vpop.permute.xlu0 %939
      %941 = vrot.lane.b32.xlu0 %v569, 4
      %v942 = vpop.permute.xlu0 %941
      %943 = vrot.lane.b32.xlu0 %v570, 4
      %v944 = vpop.permute.xlu0 %943
      %945 = vrot.lane.b32.xlu0 %v571, 4
      %v946 = vpop.permute.xlu0 %945
      %947 = vrot.lane.b32.xlu0 %v572, 4
      %v948 = vpop.permute.xlu0 %947
      %949 = vrot.lane.b32.xlu0 %v573, 4
      %v950 = vpop.permute.xlu0 %949
      %951 = vrot.lane.b32.xlu0 %v574, 4
      %v952 = vpop.permute.xlu0 %951
      %953 = vrot.lane.b32.xlu0 %v575, 4
      %v954 = vpop.permute.xlu0 %953
      %955 = vrot.lane.b32.xlu0 %v576, 4
      %v956 = vpop.permute.xlu0 %955
      %957 = vrot.lane.b32.xlu0 %v577, 4
      %v958 = vpop.permute.xlu0 %957
      %959 = vrot.lane.b32.xlu0 %v578, 4
      %v960 = vpop.permute.xlu0 %959
      %961 = vrot.lane.b32.xlu0 %v579, 4
      %v962 = vpop.permute.xlu0 %961
      %963 = vrot.lane.b32.xlu0 %v580, 4
      %v964 = vpop.permute.xlu0 %963
      %965 = vrot.lane.b32.xlu0 %v581, 4
      %v966 = vpop.permute.xlu0 %965
      %967 = vrot.lane.b32.xlu0 %v582, 4
      %v968 = vpop.permute.xlu0 %967
      %969 = vrot.lane.b32.xlu0 %v583, 4
      %v970 = vpop.permute.xlu0 %969
      %971 = vrot.lane.b32.xlu0 %v584, 4
      %v972 = vpop.permute.xlu0 %971
      %973 = vrot.lane.b32.xlu0 %v585, 4
      %v974 = vpop.permute.xlu0 %973
      %975 = vrot.lane.b32.xlu0 %v586, 4
      %v976 = vpop.permute.xlu0 %975
      %977 = vrot.lane.b32.xlu0 %v587, 4
      %v978 = vpop.permute.xlu0 %977
      %979 = vrot.lane.b32.xlu0 %v588, 4
      %v980 = vpop.permute.xlu0 %979
      %981 = vrot.lane.b32.xlu0 %v589, 4
      %v982 = vpop.permute.xlu0 %981
      %1091 = vrot.lane.b32.xlu0 %v590, 8
      %v1092 = vpop.permute.xlu0 %1091
      %1093 = vrot.lane.b32.xlu0 %v591, 8
      %v1094 = vpop.permute.xlu0 %1093
      %1095 = vrot.lane.b32.xlu0 %v592, 8
      %v1096 = vpop.permute.xlu0 %1095
      %1097 = vrot.lane.b32.xlu0 %v593, 8
      %v1098 = vpop.permute.xlu0 %1097
      %1099 = vrot.lane.b32.xlu0 %v594, 8
      %v1100 = vpop.permute.xlu0 %1099
      %1101 = vrot.lane.b32.xlu0 %v595, 8
      %v1102 = vpop.permute.xlu0 %1101
      %1103 = vrot.lane.b32.xlu0 %v596, 8
      %v1104 = vpop.permute.xlu0 %1103
      %1105 = vrot.lane.b32.xlu0 %v597, 8
      %v1106 = vpop.permute.xlu0 %1105
      %1107 = vrot.lane.b32.xlu0 %v598, 8
      %v1108 = vpop.permute.xlu0 %1107
      %1109 = vrot.lane.b32.xlu0 %v599, 8
      %v1110 = vpop.permute.xlu0 %1109
      %1111 = vrot.lane.b32.xlu0 %v600, 8
      %v1112 = vpop.permute.xlu0 %1111
      %1113 = vrot.lane.b32.xlu0 %v601, 8
      %v1114 = vpop.permute.xlu0 %1113
      %1115 = vrot.lane.b32.xlu0 %v602, 8
      %v1116 = vpop.permute.xlu0 %1115
      %1117 = vrot.lane.b32.xlu0 %v603, 8
      %v1118 = vpop.permute.xlu0 %1117
      %1119 = vrot.lane.b32.xlu0 %v604, 8
      %v1120 = vpop.permute.xlu0 %1119
      %1121 = vrot.lane.b32.xlu0 %v605, 8
      %v1122 = vpop.permute.xlu0 %1121
      %1123 = vrot.lane.b32.xlu0 %v606, 8
      %v1124 = vpop.permute.xlu0 %1123
      %1125 = vrot.lane.b32.xlu0 %v607, 8
      %v1126 = vpop.permute.xlu0 %1125
      %1127 = vrot.lane.b32.xlu0 %v608, 8
      %v1128 = vpop.permute.xlu0 %1127
      %1129 = vrot.lane.b32.xlu0 %v609, 8
      %v1130 = vpop.permute.xlu0 %1129
      %1131 = vrot.lane.b32.xlu0 %v610, 8
      %v1132 = vpop.permute.xlu0 %1131
      %1133 = vrot.lane.b32.xlu0 %v611, 8
      %v1134 = vpop.permute.xlu0 %1133
      %1135 = vrot.lane.b32.xlu0 %v612, 8
      %v1136 = vpop.permute.xlu0 %1135
      %1137 = vrot.lane.b32.xlu0 %v613, 8
      %v1138 = vpop.permute.xlu0 %1137
      %1139 = vrot.lane.b32.xlu0 %v614, 8
      %v1140 = vpop.permute.xlu0 %1139
      %1141 = vrot.lane.b32.xlu0 %v615, 8
      %v1142 = vpop.permute.xlu0 %1141
      %1143 = vrot.lane.b32.xlu0 %v616, 8
      %v1144 = vpop.permute.xlu0 %1143
      %1145 = vrot.lane.b32.xlu0 %v617, 8
      %v1146 = vpop.permute.xlu0 %1145
      %1147 = vrot.lane.b32.xlu0 %v618, 8
      %v1148 = vpop.permute.xlu0 %1147
      %1149 = vrot.lane.b32.xlu0 %v619, 8
      %v1150 = vpop.permute.xlu0 %1149
      %1151 = vrot.lane.b32.xlu0 %v620, 8
      %v1152 = vpop.permute.xlu0 %1151
      %1153 = vrot.lane.b32.xlu0 %v621, 8
      %v1154 = vpop.permute.xlu0 %1153
      %1155 = vrot.lane.b32.xlu0 %v622, 8
      %v1156 = vpop.permute.xlu0 %1155
      %1157 = vrot.lane.b32.xlu0 %v623, 8
      %v1158 = vpop.permute.xlu0 %1157
      %1159 = vrot.lane.b32.xlu0 %v624, 8
      %v1160 = vpop.permute.xlu0 %1159
      %1161 = vrot.lane.b32.xlu0 %v625, 8
      %v1162 = vpop.permute.xlu0 %1161
      %1163 = vrot.lane.b32.xlu0 %v626, 8
      %v1164 = vpop.permute.xlu0 %1163
      %1165 = vrot.lane.b32.xlu0 %v627, 8
      %v1166 = vpop.permute.xlu0 %1165
      %1167 = vrot.lane.b32.xlu0 %v628, 8
      %v1168 = vpop.permute.xlu0 %1167
      %1169 = vrot.lane.b32.xlu0 %v629, 8
      %v1170 = vpop.permute.xlu0 %1169
      %1171 = vrot.lane.b32.xlu0 %v630, 8
      %v1172 = vpop.permute.xlu0 %1171
      %1173 = vrot.lane.b32.xlu0 %v631, 8
      %v1174 = vpop.permute.xlu0 %1173
      %1175 = vrot.lane.b32.xlu0 %v632, 8
      %v1176 = vpop.permute.xlu0 %1175
      %1177 = vrot.lane.b32.xlu0 %v633, 8
      %v1178 = vpop.permute.xlu0 %1177
      %1179 = vrot.lane.b32.xlu0 %v634, 8
      %v1180 = vpop.permute.xlu0 %1179
      %1181 = vrot.lane.b32.xlu0 %v635, 8
      %v1182 = vpop.permute.xlu0 %1181
      %1183 = vrot.lane.b32.xlu0 %v636, 8
      %v1184 = vpop.permute.xlu0 %1183
      %1185 = vrot.lane.b32.xlu0 %v637, 8
      %v1186 = vpop.permute.xlu0 %1185
      %1187 = vrot.lane.b32.xlu0 %v638, 8
      %v1188 = vpop.permute.xlu0 %1187
      %1189 = vrot.lane.b32.xlu0 %v639, 8
      %v1190 = vpop.permute.xlu0 %1189
      %1191 = vrot.lane.b32.xlu0 %v640, 8
      %v1192 = vpop.permute.xlu0 %1191
      %1193 = vrot.lane.b32.xlu0 %v641, 8
      %v1194 = vpop.permute.xlu0 %1193
      %1195 = vrot.lane.b32.xlu0 %v642, 8
      %v1196 = vpop.permute.xlu0 %1195
      %1197 = vrot.lane.b32.xlu0 %v643, 8
      %v1198 = vpop.permute.xlu0 %1197
      %1307 = vrot.lane.b32.xlu0 %v644, 12
      %v1308 = vpop.permute.xlu0 %1307
      %1309 = vrot.lane.b32.xlu0 %v645, 12
      %v1310 = vpop.permute.xlu0 %1309
      %1311 = vrot.lane.b32.xlu0 %v646, 12
      %v1312 = vpop.permute.xlu0 %1311
      %1313 = vrot.lane.b32.xlu0 %v647, 12
      %v1314 = vpop.permute.xlu0 %1313
      %1315 = vrot.lane.b32.xlu0 %v648, 12
      %v1316 = vpop.permute.xlu0 %1315
      %1317 = vrot.lane.b32.xlu0 %v649, 12
      %v1318 = vpop.permute.xlu0 %1317
      %1319 = vrot.lane.b32.xlu0 %v650, 12
      %v1320 = vpop.permute.xlu0 %1319
      %1321 = vrot.lane.b32.xlu0 %v651, 12
      %v1322 = vpop.permute.xlu0 %1321
      %1323 = vrot.lane.b32.xlu0 %v652, 12
      %v1324 = vpop.permute.xlu0 %1323
      %1325 = vrot.lane.b32.xlu0 %v653, 12
      %v1326 = vpop.permute.xlu0 %1325
      %1327 = vrot.lane.b32.xlu0 %v654, 12
      %v1328 = vpop.permute.xlu0 %1327
      %1329 = vrot.lane.b32.xlu0 %v655, 12
      %v1330 = vpop.permute.xlu0 %1329
      %1331 = vrot.lane.b32.xlu0 %v656, 12
      %v1332 = vpop.permute.xlu0 %1331
      %1333 = vrot.lane.b32.xlu0 %v657, 12
      %v1334 = vpop.permute.xlu0 %1333
      %1335 = vrot.lane.b32.xlu0 %v658, 12
      %v1336 = vpop.permute.xlu0 %1335
      %1337 = vrot.lane.b32.xlu0 %v659, 12
      %v1338 = vpop.permute.xlu0 %1337
      %1339 = vrot.lane.b32.xlu0 %v660, 12
      %v1340 = vpop.permute.xlu0 %1339
      %1341 = vrot.lane.b32.xlu0 %v661, 12
      %v1342 = vpop.permute.xlu0 %1341
      %1343 = vrot.lane.b32.xlu0 %v662, 12
      %v1344 = vpop.permute.xlu0 %1343
      %1345 = vrot.lane.b32.xlu0 %v663, 12
      %v1346 = vpop.permute.xlu0 %1345
      %1347 = vrot.lane.b32.xlu0 %v664, 12
      %v1348 = vpop.permute.xlu0 %1347
      %1349 = vrot.lane.b32.xlu0 %v665, 12
      %v1350 = vpop.permute.xlu0 %1349
      %1351 = vrot.lane.b32.xlu0 %v666, 12
      %v1352 = vpop.permute.xlu0 %1351
      %1353 = vrot.lane.b32.xlu0 %v667, 12
      %v1354 = vpop.permute.xlu0 %1353
      %1355 = vrot.lane.b32.xlu0 %v668, 12
      %v1356 = vpop.permute.xlu0 %1355
      %1357 = vrot.lane.b32.xlu0 %v669, 12
      %v1358 = vpop.permute.xlu0 %1357
      %1359 = vrot.lane.b32.xlu0 %v670, 12
      %v1360 = vpop.permute.xlu0 %1359
      %1361 = vrot.lane.b32.xlu0 %v671, 12
      %v1362 = vpop.permute.xlu0 %1361
      %1363 = vrot.lane.b32.xlu0 %v672, 12
      %v1364 = vpop.permute.xlu0 %1363
      %1365 = vrot.lane.b32.xlu0 %v673, 12
      %v1366 = vpop.permute.xlu0 %1365
      %1367 = vrot.lane.b32.xlu0 %v674, 12
      %v1368 = vpop.permute.xlu0 %1367
      %1369 = vrot.lane.b32.xlu0 %v675, 12
      %v1370 = vpop.permute.xlu0 %1369
      %1371 = vrot.lane.b32.xlu0 %v676, 12
      %v1372 = vpop.permute.xlu0 %1371
      %1373 = vrot.lane.b32.xlu0 %v677, 12
      %v1374 = vpop.permute.xlu0 %1373
      %1375 = vrot.lane.b32.xlu0 %v678, 12
      %v1376 = vpop.permute.xlu0 %1375
      %1377 = vrot.lane.b32.xlu0 %v679, 12
      %v1378 = vpop.permute.xlu0 %1377
      %1379 = vrot.lane.b32.xlu0 %v680, 12
      %v1380 = vpop.permute.xlu0 %1379
      %1381 = vrot.lane.b32.xlu0 %v681, 12
      %v1382 = vpop.permute.xlu0 %1381
      %1383 = vrot.lane.b32.xlu0 %v682, 12
      %v1384 = vpop.permute.xlu0 %1383
      %1385 = vrot.lane.b32.xlu0 %v683, 12
      %v1386 = vpop.permute.xlu0 %1385
      %1387 = vrot.lane.b32.xlu0 %v684, 12
      %v1388 = vpop.permute.xlu0 %1387
      %1389 = vrot.lane.b32.xlu0 %v685, 12
      %v1390 = vpop.permute.xlu0 %1389
      %1391 = vrot.lane.b32.xlu0 %v686, 12
      %v1392 = vpop.permute.xlu0 %1391
      %1393 = vrot.lane.b32.xlu0 %v687, 12
      %v1394 = vpop.permute.xlu0 %1393
      %1395 = vrot.lane.b32.xlu0 %v688, 12
      %v1396 = vpop.permute.xlu0 %1395
      %1397 = vrot.lane.b32.xlu0 %v689, 12
      %v1398 = vpop.permute.xlu0 %1397
      %1399 = vrot.lane.b32.xlu0 %v690, 12
      %v1400 = vpop.permute.xlu0 %1399
      %1401 = vrot.lane.b32.xlu0 %v691, 12
      %v1402 = vpop.permute.xlu0 %1401
      %1403 = vrot.lane.b32.xlu0 %v692, 12
      %v1404 = vpop.permute.xlu0 %1403
      %1405 = vrot.lane.b32.xlu0 %v693, 12
      %v1406 = vpop.permute.xlu0 %1405
      %1407 = vrot.lane.b32.xlu0 %v694, 12
      %v1408 = vpop.permute.xlu0 %1407
      %1409 = vrot.lane.b32.xlu0 %v695, 12
      %v1410 = vpop.permute.xlu0 %1409
      %1411 = vrot.lane.b32.xlu0 %v696, 12
      %v1412 = vpop.permute.xlu0 %1411
      %1413 = vrot.lane.b32.xlu0 %v697, 12
      %v1414 = vpop.permute.xlu0 %1413
      %1523 = vrot.lane.b32.xlu0 %v698, 16
      %v1524 = vpop.permute.xlu0 %1523
      %1525 = vrot.lane.b32.xlu0 %v699, 16
      %v1526 = vpop.permute.xlu0 %1525
      %1527 = vrot.lane.b32.xlu0 %v700, 16
      %v1528 = vpop.permute.xlu0 %1527
      %1529 = vrot.lane.b32.xlu0 %v701, 16
      %v1530 = vpop.permute.xlu0 %1529
      %1531 = vrot.lane.b32.xlu0 %v702, 16
      %v1532 = vpop.permute.xlu0 %1531
      %1533 = vrot.lane.b32.xlu0 %v703, 16
      %v1534 = vpop.permute.xlu0 %1533
      %1535 = vrot.lane.b32.xlu0 %v704, 16
      %v1536 = vpop.permute.xlu0 %1535
      %1537 = vrot.lane.b32.xlu0 %v705, 16
      %v1538 = vpop.permute.xlu0 %1537
      %1539 = vrot.lane.b32.xlu0 %v706, 16
      %v1540 = vpop.permute.xlu0 %1539
      %1541 = vrot.lane.b32.xlu0 %v707, 16
      %v1542 = vpop.permute.xlu0 %1541
      %1543 = vrot.lane.b32.xlu0 %v708, 16
      %v1544 = vpop.permute.xlu0 %1543
      %1545 = vrot.lane.b32.xlu0 %v709, 16
      %v1546 = vpop.permute.xlu0 %1545
      %1547 = vrot.lane.b32.xlu0 %v710, 16
      %v1548 = vpop.permute.xlu0 %1547
      %1549 = vrot.lane.b32.xlu0 %v711, 16
      %v1550 = vpop.permute.xlu0 %1549
      %1551 = vrot.lane.b32.xlu0 %v712, 16
      %v1552 = vpop.permute.xlu0 %1551
      %1553 = vrot.lane.b32.xlu0 %v713, 16
      %v1554 = vpop.permute.xlu0 %1553
      %1555 = vrot.lane.b32.xlu0 %v714, 16
      %v1556 = vpop.permute.xlu0 %1555
      %1557 = vrot.lane.b32.xlu0 %v715, 16
      %v1558 = vpop.permute.xlu0 %1557
      %1559 = vrot.lane.b32.xlu0 %v716, 16
      %v1560 = vpop.permute.xlu0 %1559
      %1561 = vrot.lane.b32.xlu0 %v717, 16
      %v1562 = vpop.permute.xlu0 %1561
      %1563 = vrot.lane.b32.xlu0 %v718, 16
      %v1564 = vpop.permute.xlu0 %1563
      %1565 = vrot.lane.b32.xlu0 %v719, 16
      %v1566 = vpop.permute.xlu0 %1565
      %1567 = vrot.lane.b32.xlu0 %v720, 16
      %v1568 = vpop.permute.xlu0 %1567
      %1569 = vrot.lane.b32.xlu0 %v721, 16
      %v1570 = vpop.permute.xlu0 %1569
      %1571 = vrot.lane.b32.xlu0 %v722, 16
      %v1572 = vpop.permute.xlu0 %1571
      %1573 = vrot.lane.b32.xlu0 %v723, 16
      %v1574 = vpop.permute.xlu0 %1573
      %1575 = vrot.lane.b32.xlu0 %v724, 16
      %v1576 = vpop.permute.xlu0 %1575
      %1577 = vrot.lane.b32.xlu0 %v725, 16
      %v1578 = vpop.permute.xlu0 %1577
      %1579 = vrot.lane.b32.xlu0 %v726, 16
      %v1580 = vpop.permute.xlu0 %1579
      %1581 = vrot.lane.b32.xlu0 %v727, 16
      %v1582 = vpop.permute.xlu0 %1581
      %1583 = vrot.lane.b32.xlu0 %v728, 16
      %v1584 = vpop.permute.xlu0 %1583
      %1585 = vrot.lane.b32.xlu0 %v729, 16
      %v1586 = vpop.permute.xlu0 %1585
      %1587 = vrot.lane.b32.xlu0 %v730, 16
      %v1588 = vpop.permute.xlu0 %1587
      %1589 = vrot.lane.b32.xlu0 %v731, 16
      %v1590 = vpop.permute.xlu0 %1589
      %1591 = vrot.lane.b32.xlu0 %v732, 16
      %v1592 = vpop.permute.xlu0 %1591
      %1593 = vrot.lane.b32.xlu0 %v733, 16
      %v1594 = vpop.permute.xlu0 %1593
      %1595 = vrot.lane.b32.xlu0 %v734, 16
      %v1596 = vpop.permute.xlu0 %1595
      %1597 = vrot.lane.b32.xlu0 %v735, 16
      %v1598 = vpop.permute.xlu0 %1597
      %1599 = vrot.lane.b32.xlu0 %v736, 16
      %v1600 = vpop.permute.xlu0 %1599
      %1601 = vrot.lane.b32.xlu0 %v737, 16
      %v1602 = vpop.permute.xlu0 %1601
      %1603 = vrot.lane.b32.xlu0 %v738, 16
      %v1604 = vpop.permute.xlu0 %1603
      %1605 = vrot.lane.b32.xlu0 %v739, 16
      %v1606 = vpop.permute.xlu0 %1605
      %1607 = vrot.lane.b32.xlu0 %v740, 16
      %v1608 = vpop.permute.xlu0 %1607
      %1609 = vrot.lane.b32.xlu0 %v741, 16
      %v1610 = vpop.permute.xlu0 %1609
      %1611 = vrot.lane.b32.xlu0 %v742, 16
      %v1612 = vpop.permute.xlu0 %1611
      %1613 = vrot.lane.b32.xlu0 %v743, 16
      %v1614 = vpop.permute.xlu0 %1613
      %1615 = vrot.lane.b32.xlu0 %v744, 16
      %v1616 = vpop.permute.xlu0 %1615
      %1617 = vrot.lane.b32.xlu0 %v745, 16
      %v1618 = vpop.permute.xlu0 %1617
      %1619 = vrot.lane.b32.xlu0 %v746, 16
      %v1620 = vpop.permute.xlu0 %1619
      %1621 = vrot.lane.b32.xlu0 %v747, 16
      %v1622 = vpop.permute.xlu0 %1621
      %1623 = vrot.lane.b32.xlu0 %v748, 16
      %v1624 = vpop.permute.xlu0 %1623
      %1625 = vrot.lane.b32.xlu0 %v749, 16
      %v1626 = vpop.permute.xlu0 %1625
      %1627 = vrot.lane.b32.xlu0 %v750, 16
      %v1628 = vpop.permute.xlu0 %1627
      %1629 = vrot.lane.b32.xlu0 %v751, 16
      %v1630 = vpop.permute.xlu0 %1629
      %1739 = vrot.lane.b32.xlu0 %v752, 20
      %v1740 = vpop.permute.xlu0 %1739
      %1741 = vrot.lane.b32.xlu0 %v753, 20
      %v1742 = vpop.permute.xlu0 %1741
      %1743 = vrot.lane.b32.xlu0 %v754, 20
      %v1744 = vpop.permute.xlu0 %1743
      %1745 = vrot.lane.b32.xlu0 %v755, 20
      %v1746 = vpop.permute.xlu0 %1745
      %1747 = vrot.lane.b32.xlu0 %v756, 20
      %v1748 = vpop.permute.xlu0 %1747
      %1749 = vrot.lane.b32.xlu0 %v757, 20
      %v1750 = vpop.permute.xlu0 %1749
      %1751 = vrot.lane.b32.xlu0 %v758, 20
      %v1752 = vpop.permute.xlu0 %1751
      %1753 = vrot.lane.b32.xlu0 %v759, 20
      %v1754 = vpop.permute.xlu0 %1753
      %1755 = vrot.lane.b32.xlu0 %v760, 20
      %v1756 = vpop.permute.xlu0 %1755
      %1757 = vrot.lane.b32.xlu0 %v761, 20
      %v1758 = vpop.permute.xlu0 %1757
      %1759 = vrot.lane.b32.xlu0 %v762, 20
      %v1760 = vpop.permute.xlu0 %1759
      %1761 = vrot.lane.b32.xlu0 %v763, 20
      %v1762 = vpop.permute.xlu0 %1761
      %1763 = vrot.lane.b32.xlu0 %v764, 20
      %v1764 = vpop.permute.xlu0 %1763
      %1765 = vrot.lane.b32.xlu0 %v765, 20
      %v1766 = vpop.permute.xlu0 %1765
      %1767 = vrot.lane.b32.xlu0 %v766, 20
      %v1768 = vpop.permute.xlu0 %1767
      %1769 = vrot.lane.b32.xlu0 %v767, 20
      %v1770 = vpop.permute.xlu0 %1769
      %1771 = vrot.lane.b32.xlu0 %v768, 20
      %v1772 = vpop.permute.xlu0 %1771
      %1773 = vrot.lane.b32.xlu0 %v769, 20
      %v1774 = vpop.permute.xlu0 %1773
      %1775 = vrot.lane.b32.xlu0 %v770, 20
      %v1776 = vpop.permute.xlu0 %1775
      %1777 = vrot.lane.b32.xlu0 %v771, 20
      %v1778 = vpop.permute.xlu0 %1777
      %1779 = vrot.lane.b32.xlu0 %v772, 20
      %v1780 = vpop.permute.xlu0 %1779
      %1781 = vrot.lane.b32.xlu0 %v773, 20
      %v1782 = vpop.permute.xlu0 %1781
      %1783 = vrot.lane.b32.xlu0 %v774, 20
      %v1784 = vpop.permute.xlu0 %1783
      %1785 = vrot.lane.b32.xlu0 %v775, 20
      %v1786 = vpop.permute.xlu0 %1785
      %1787 = vrot.lane.b32.xlu0 %v776, 20
      %v1788 = vpop.permute.xlu0 %1787
      %1789 = vrot.lane.b32.xlu0 %v777, 20
      %v1790 = vpop.permute.xlu0 %1789
      %1791 = vrot.lane.b32.xlu0 %v778, 20
      %v1792 = vpop.permute.xlu0 %1791
      %1793 = vrot.lane.b32.xlu0 %v779, 20
      %v1794 = vpop.permute.xlu0 %1793
      %1795 = vrot.lane.b32.xlu0 %v780, 20
      %v1796 = vpop.permute.xlu0 %1795
      %1797 = vrot.lane.b32.xlu0 %v781, 20
      %v1798 = vpop.permute.xlu0 %1797
      %1799 = vrot.lane.b32.xlu0 %v782, 20
      %v1800 = vpop.permute.xlu0 %1799
      %1801 = vrot.lane.b32.xlu0 %v783, 20
      %v1802 = vpop.permute.xlu0 %1801
      %1803 = vrot.lane.b32.xlu0 %v784, 20
      %v1804 = vpop.permute.xlu0 %1803
      %1805 = vrot.lane.b32.xlu0 %v785, 20
      %v1806 = vpop.permute.xlu0 %1805
      %1807 = vrot.lane.b32.xlu0 %v786, 20
      %v1808 = vpop.permute.xlu0 %1807
      %1809 = vrot.lane.b32.xlu0 %v787, 20
      %v1810 = vpop.permute.xlu0 %1809
      %1811 = vrot.lane.b32.xlu0 %v788, 20
      %v1812 = vpop.permute.xlu0 %1811
      %1813 = vrot.lane.b32.xlu0 %v789, 20
      %v1814 = vpop.permute.xlu0 %1813
      %1815 = vrot.lane.b32.xlu0 %v790, 20
      %v1816 = vpop.permute.xlu0 %1815
      %1817 = vrot.lane.b32.xlu0 %v791, 20
      %v1818 = vpop.permute.xlu0 %1817
      %1819 = vrot.lane.b32.xlu0 %v792, 20
      %v1820 = vpop.permute.xlu0 %1819
      %1821 = vrot.lane.b32.xlu0 %v793, 20
      %v1822 = vpop.permute.xlu0 %1821
      %1823 = vrot.lane.b32.xlu0 %v794, 20
      %v1824 = vpop.permute.xlu0 %1823
      %1825 = vrot.lane.b32.xlu0 %v795, 20
      %v1826 = vpop.permute.xlu0 %1825
      %1827 = vrot.lane.b32.xlu0 %v796, 20
      %v1828 = vpop.permute.xlu0 %1827
      %1829 = vrot.lane.b32.xlu0 %v797, 20
      %v1830 = vpop.permute.xlu0 %1829
      %1831 = vrot.lane.b32.xlu0 %v798, 20
      %v1832 = vpop.permute.xlu0 %1831
      %1833 = vrot.lane.b32.xlu0 %v799, 20
      %v1834 = vpop.permute.xlu0 %1833
      %1835 = vrot.lane.b32.xlu0 %v800, 20
      %v1836 = vpop.permute.xlu0 %1835
      %1837 = vrot.lane.b32.xlu0 %v801, 20
      %v1838 = vpop.permute.xlu0 %1837
      %1839 = vrot.lane.b32.xlu0 %v802, 20
      %v1840 = vpop.permute.xlu0 %1839
      %1841 = vrot.lane.b32.xlu0 %v803, 20
      %v1842 = vpop.permute.xlu0 %1841
      %1843 = vrot.lane.b32.xlu0 %v804, 20
      %v1844 = vpop.permute.xlu0 %1843
      %1845 = vrot.lane.b32.xlu0 %v805, 20
      %v1846 = vpop.permute.xlu0 %1845
      %1955 = vrot.lane.b32.xlu0 %v487, 24
      %v1956 = vpop.permute.xlu0 %1955
      %1957 = vrot.lane.b32.xlu0 %v488, 24
      %v1958 = vpop.permute.xlu0 %1957
      %1959 = vrot.lane.b32.xlu0 %v489, 24
      %v1960 = vpop.permute.xlu0 %1959
      %1961 = vrot.lane.b32.xlu0 %v490, 24
      %v1962 = vpop.permute.xlu0 %1961
      %1963 = vrot.lane.b32.xlu0 %v491, 24
      %v1964 = vpop.permute.xlu0 %1963
      %1965 = vrot.lane.b32.xlu0 %v492, 24
      %v1966 = vpop.permute.xlu0 %1965
      %1967 = vrot.lane.b32.xlu0 %v493, 24
      %v1968 = vpop.permute.xlu0 %1967
      %1969 = vrot.lane.b32.xlu0 %v494, 24
      %v1970 = vpop.permute.xlu0 %1969
      %1971 = vrot.lane.b32.xlu0 %v495, 24
      %v1972 = vpop.permute.xlu0 %1971
      %1973 = vrot.lane.b32.xlu0 %v496, 24
      %v1974 = vpop.permute.xlu0 %1973
      %1975 = vrot.lane.b32.xlu0 %v497, 24
      %v1976 = vpop.permute.xlu0 %1975
      %1977 = vrot.lane.b32.xlu0 %v498, 24
      %v1978 = vpop.permute.xlu0 %1977
      %1979 = vrot.lane.b32.xlu0 %v499, 24
      %v1980 = vpop.permute.xlu0 %1979
      %1981 = vrot.lane.b32.xlu0 %v500, 24
      %v1982 = vpop.permute.xlu0 %1981
      %1983 = vrot.lane.b32.xlu0 %v501, 24
      %v1984 = vpop.permute.xlu0 %1983
      %1985 = vrot.lane.b32.xlu0 %v502, 24
      %v1986 = vpop.permute.xlu0 %1985
      %1987 = vrot.lane.b32.xlu0 %v503, 24
      %v1988 = vpop.permute.xlu0 %1987
      %1989 = vrot.lane.b32.xlu0 %v504, 24
      %v1990 = vpop.permute.xlu0 %1989
      %1991 = vrot.lane.b32.xlu0 %v505, 24
      %v1992 = vpop.permute.xlu0 %1991
      %1993 = vrot.lane.b32.xlu0 %v506, 24
      %v1994 = vpop.permute.xlu0 %1993
      %1995 = vrot.lane.b32.xlu0 %v507, 24
      %v1996 = vpop.permute.xlu0 %1995
      %1997 = vrot.lane.b32.xlu0 %v508, 24
      %v1998 = vpop.permute.xlu0 %1997
      %1999 = vrot.lane.b32.xlu0 %v509, 24
      %v2000 = vpop.permute.xlu0 %1999
      %2001 = vrot.lane.b32.xlu0 %v510, 24
      %v2002 = vpop.permute.xlu0 %2001
      %2003 = vrot.lane.b32.xlu0 %v511, 24
      %v2004 = vpop.permute.xlu0 %2003
      %2005 = vrot.lane.b32.xlu0 %v512, 24
      %v2006 = vpop.permute.xlu0 %2005
      %2007 = vrot.lane.b32.xlu0 %v513, 24
      %v2008 = vpop.permute.xlu0 %2007
      %2009 = vrot.lane.b32.xlu0 %v514, 24
      %v2010 = vpop.permute.xlu0 %2009
      %2011 = vrot.lane.b32.xlu0 %v515, 24
      %v2012 = vpop.permute.xlu0 %2011
      %2013 = vrot.lane.b32.xlu0 %v516, 24
      %v2014 = vpop.permute.xlu0 %2013
      %2015 = vrot.lane.b32.xlu0 %v517, 24
      %v2016 = vpop.permute.xlu0 %2015
      %2017 = vrot.lane.b32.xlu0 %v518, 24
      %v2018 = vpop.permute.xlu0 %2017
      %2019 = vrot.lane.b32.xlu0 %v519, 24
      %v2020 = vpop.permute.xlu0 %2019
      %2021 = vrot.lane.b32.xlu0 %v520, 24
      %v2022 = vpop.permute.xlu0 %2021
      %2023 = vrot.lane.b32.xlu0 %v521, 24
      %v2024 = vpop.permute.xlu0 %2023
      %2025 = vrot.lane.b32.xlu0 %v522, 24
      %v2026 = vpop.permute.xlu0 %2025
      %2027 = vrot.lane.b32.xlu0 %v523, 24
      %v2028 = vpop.permute.xlu0 %2027
      %2029 = vrot.lane.b32.xlu0 %v524, 24
      %v2030 = vpop.permute.xlu0 %2029
      %2031 = vrot.lane.b32.xlu0 %v525, 24
      %v2032 = vpop.permute.xlu0 %2031
      %2033 = vrot.lane.b32.xlu0 %v526, 24
      %v2034 = vpop.permute.xlu0 %2033
      %2035 = vrot.lane.b32.xlu0 %v527, 24
      %v2036 = vpop.permute.xlu0 %2035
      %2037 = vrot.lane.b32.xlu0 %v528, 24
      %v2038 = vpop.permute.xlu0 %2037
      %2039 = vrot.lane.b32.xlu0 %v529, 24
      %v2040 = vpop.permute.xlu0 %2039
      %2041 = vrot.lane.b32.xlu0 %v530, 24
      %v2042 = vpop.permute.xlu0 %2041
      %2043 = vrot.lane.b32.xlu0 %v531, 24
      %v2044 = vpop.permute.xlu0 %2043
      %2045 = vrot.lane.b32.xlu0 %v532, 24
      %v2046 = vpop.permute.xlu0 %2045
      %2047 = vrot.lane.b32.xlu0 %v533, 24
      %v2048 = vpop.permute.xlu0 %2047
      %2049 = vrot.lane.b32.xlu0 %v534, 24
      %v2050 = vpop.permute.xlu0 %2049
      %2051 = vrot.lane.b32.xlu0 %v535, 24
      %v2052 = vpop.permute.xlu0 %2051
      %2053 = vrot.lane.b32.xlu0 %v806, 24
      %v2054 = vpop.permute.xlu0 %2053
      %2055 = vrot.lane.b32.xlu0 %v807, 24
      %v2056 = vpop.permute.xlu0 %2055
      %2057 = vrot.lane.b32.xlu0 %v808, 24
      %v2058 = vpop.permute.xlu0 %2057
      %2059 = vrot.lane.b32.xlu0 %v809, 24
      %v2060 = vpop.permute.xlu0 %2059
      %2061 = vrot.lane.b32.xlu0 %v810, 24
      %v2062 = vpop.permute.xlu0 %2061
      %2122 = vrot.lane.b32.xlu0 %v541, 28
      %v2123 = vpop.permute.xlu0 %2122
      %2124 = vrot.lane.b32.xlu0 %v542, 28
      %v2125 = vpop.permute.xlu0 %2124
      %2126 = vrot.lane.b32.xlu0 %v543, 28
      %v2127 = vpop.permute.xlu0 %2126
      %2128 = vrot.lane.b32.xlu0 %v544, 28
      %v2129 = vpop.permute.xlu0 %2128
      %2130 = vrot.lane.b32.xlu0 %v545, 28
      %v2131 = vpop.permute.xlu0 %2130
      %2132 = vrot.lane.b32.xlu0 %v546, 28
      %v2133 = vpop.permute.xlu0 %2132
      %2134 = vrot.lane.b32.xlu0 %v547, 28
      %v2135 = vpop.permute.xlu0 %2134
      %2136 = vrot.lane.b32.xlu0 %v548, 28
      %v2137 = vpop.permute.xlu0 %2136
      %2138 = vrot.lane.b32.xlu0 %v549, 28
      %v2139 = vpop.permute.xlu0 %2138
      %2140 = vrot.lane.b32.xlu0 %v550, 28
      %v2141 = vpop.permute.xlu0 %2140
      %2142 = vrot.lane.b32.xlu0 %v551, 28
      %v2143 = vpop.permute.xlu0 %2142
      %2144 = vrot.lane.b32.xlu0 %v552, 28
      %v2145 = vpop.permute.xlu0 %2144
      %2146 = vrot.lane.b32.xlu0 %v553, 28
      %v2147 = vpop.permute.xlu0 %2146
      %2148 = vrot.lane.b32.xlu0 %v554, 28
      %v2149 = vpop.permute.xlu0 %2148
      %2150 = vrot.lane.b32.xlu0 %v555, 28
      %v2151 = vpop.permute.xlu0 %2150
      %2152 = vrot.lane.b32.xlu0 %v556, 28
      %v2153 = vpop.permute.xlu0 %2152
      %2154 = vrot.lane.b32.xlu0 %v557, 28
      %v2155 = vpop.permute.xlu0 %2154
      %2156 = vrot.lane.b32.xlu0 %v558, 28
      %v2157 = vpop.permute.xlu0 %2156
      %2158 = vrot.lane.b32.xlu0 %v559, 28
      %v2159 = vpop.permute.xlu0 %2158
      %2160 = vrot.lane.b32.xlu0 %v560, 28
      %v2161 = vpop.permute.xlu0 %2160
      %2162 = vrot.lane.b32.xlu0 %v561, 28
      %v2163 = vpop.permute.xlu0 %2162
      %2164 = vrot.lane.b32.xlu0 %v562, 28
      %v2165 = vpop.permute.xlu0 %2164
      %2166 = vrot.lane.b32.xlu0 %v563, 28
      %v2167 = vpop.permute.xlu0 %2166
      %2168 = vrot.lane.b32.xlu0 %v564, 28
      %v2169 = vpop.permute.xlu0 %2168
      %2170 = vrot.lane.b32.xlu0 %v565, 28
      %v2171 = vpop.permute.xlu0 %2170
      %2172 = vrot.lane.b32.xlu0 %v566, 28
      %v2173 = vpop.permute.xlu0 %2172
      %2174 = vrot.lane.b32.xlu0 %v567, 28
      %v2175 = vpop.permute.xlu0 %2174
      %2176 = vrot.lane.b32.xlu0 %v568, 28
      %v2177 = vpop.permute.xlu0 %2176
      %2178 = vrot.lane.b32.xlu0 %v569, 28
      %v2179 = vpop.permute.xlu0 %2178
      %2180 = vrot.lane.b32.xlu0 %v570, 28
      %v2181 = vpop.permute.xlu0 %2180
      %2182 = vrot.lane.b32.xlu0 %v571, 28
      %v2183 = vpop.permute.xlu0 %2182
      %2184 = vrot.lane.b32.xlu0 %v572, 28
      %v2185 = vpop.permute.xlu0 %2184
      %2186 = vrot.lane.b32.xlu0 %v573, 28
      %v2187 = vpop.permute.xlu0 %2186
      %2188 = vrot.lane.b32.xlu0 %v574, 28
      %v2189 = vpop.permute.xlu0 %2188
      %2190 = vrot.lane.b32.xlu0 %v575, 28
      %v2191 = vpop.permute.xlu0 %2190
      %2192 = vrot.lane.b32.xlu0 %v576, 28
      %v2193 = vpop.permute.xlu0 %2192
      %2194 = vrot.lane.b32.xlu0 %v577, 28
      %v2195 = vpop.permute.xlu0 %2194
      %2196 = vrot.lane.b32.xlu0 %v578, 28
      %v2197 = vpop.permute.xlu0 %2196
      %2198 = vrot.lane.b32.xlu0 %v579, 28
      %v2199 = vpop.permute.xlu0 %2198
      %2200 = vrot.lane.b32.xlu0 %v580, 28
      %v2201 = vpop.permute.xlu0 %2200
      %2202 = vrot.lane.b32.xlu0 %v581, 28
      %v2203 = vpop.permute.xlu0 %2202
      %2204 = vrot.lane.b32.xlu0 %v582, 28
      %v2205 = vpop.permute.xlu0 %2204
      %2206 = vrot.lane.b32.xlu0 %v583, 28
      %v2207 = vpop.permute.xlu0 %2206
      %2208 = vrot.lane.b32.xlu0 %v584, 28
      %v2209 = vpop.permute.xlu0 %2208
      %2210 = vrot.lane.b32.xlu0 %v585, 28
      %v2211 = vpop.permute.xlu0 %2210
      %2212 = vrot.lane.b32.xlu0 %v586, 28
      %v2213 = vpop.permute.xlu0 %2212
      %2214 = vrot.lane.b32.xlu0 %v587, 28
      %v2215 = vpop.permute.xlu0 %2214
      %2216 = vrot.lane.b32.xlu0 %v588, 28
      %v2217 = vpop.permute.xlu0 %2216
      %2218 = vrot.lane.b32.xlu0 %v589, 28
      %v2219 = vpop.permute.xlu0 %2218
      %2220 = vrot.lane.b32.xlu0 %v811, 28
      %v2221 = vpop.permute.xlu0 %2220
      %2222 = vrot.lane.b32.xlu0 %v812, 28
      %v2223 = vpop.permute.xlu0 %2222
      %2224 = vrot.lane.b32.xlu0 %v813, 28
      %v2225 = vpop.permute.xlu0 %2224
      %2226 = vrot.lane.b32.xlu0 %v814, 28
      %v2227 = vpop.permute.xlu0 %2226
      %2228 = vrot.lane.b32.xlu0 %v815, 28
      %v2229 = vpop.permute.xlu0 %2228
      %2289 = vrot.lane.b32.xlu0 %v595, 32
      %v2290 = vpop.permute.xlu0 %2289
      %2291 = vrot.lane.b32.xlu0 %v596, 32
      %v2292 = vpop.permute.xlu0 %2291
      %2293 = vrot.lane.b32.xlu0 %v597, 32
      %v2294 = vpop.permute.xlu0 %2293
      %2295 = vrot.lane.b32.xlu0 %v598, 32
      %v2296 = vpop.permute.xlu0 %2295
      %2297 = vrot.lane.b32.xlu0 %v599, 32
      %v2298 = vpop.permute.xlu0 %2297
      %2299 = vrot.lane.b32.xlu0 %v600, 32
      %v2300 = vpop.permute.xlu0 %2299
      %2301 = vrot.lane.b32.xlu0 %v601, 32
      %v2302 = vpop.permute.xlu0 %2301
      %2303 = vrot.lane.b32.xlu0 %v602, 32
      %v2304 = vpop.permute.xlu0 %2303
      %2305 = vrot.lane.b32.xlu0 %v603, 32
      %v2306 = vpop.permute.xlu0 %2305
      %2307 = vrot.lane.b32.xlu0 %v604, 32
      %v2308 = vpop.permute.xlu0 %2307
      %2309 = vrot.lane.b32.xlu0 %v605, 32
      %v2310 = vpop.permute.xlu0 %2309
      %2311 = vrot.lane.b32.xlu0 %v606, 32
      %v2312 = vpop.permute.xlu0 %2311
      %2313 = vrot.lane.b32.xlu0 %v607, 32
      %v2314 = vpop.permute.xlu0 %2313
      %2315 = vrot.lane.b32.xlu0 %v608, 32
      %v2316 = vpop.permute.xlu0 %2315
      %2317 = vrot.lane.b32.xlu0 %v609, 32
      %v2318 = vpop.permute.xlu0 %2317
      %2319 = vrot.lane.b32.xlu0 %v610, 32
      %v2320 = vpop.permute.xlu0 %2319
      %2321 = vrot.lane.b32.xlu0 %v611, 32
      %v2322 = vpop.permute.xlu0 %2321
      %2323 = vrot.lane.b32.xlu0 %v612, 32
      %v2324 = vpop.permute.xlu0 %2323
      %2325 = vrot.lane.b32.xlu0 %v613, 32
      %v2326 = vpop.permute.xlu0 %2325
      %2327 = vrot.lane.b32.xlu0 %v614, 32
      %v2328 = vpop.permute.xlu0 %2327
      %2329 = vrot.lane.b32.xlu0 %v615, 32
      %v2330 = vpop.permute.xlu0 %2329
      %2331 = vrot.lane.b32.xlu0 %v616, 32
      %v2332 = vpop.permute.xlu0 %2331
      %2333 = vrot.lane.b32.xlu0 %v617, 32
      %v2334 = vpop.permute.xlu0 %2333
      %2335 = vrot.lane.b32.xlu0 %v618, 32
      %v2336 = vpop.permute.xlu0 %2335
      %2337 = vrot.lane.b32.xlu0 %v619, 32
      %v2338 = vpop.permute.xlu0 %2337
      %2339 = vrot.lane.b32.xlu0 %v620, 32
      %v2340 = vpop.permute.xlu0 %2339
      %2341 = vrot.lane.b32.xlu0 %v621, 32
      %v2342 = vpop.permute.xlu0 %2341
      %2343 = vrot.lane.b32.xlu0 %v622, 32
      %v2344 = vpop.permute.xlu0 %2343
      %2345 = vrot.lane.b32.xlu0 %v623, 32
      %v2346 = vpop.permute.xlu0 %2345
      %2347 = vrot.lane.b32.xlu0 %v624, 32
      %v2348 = vpop.permute.xlu0 %2347
      %2349 = vrot.lane.b32.xlu0 %v625, 32
      %v2350 = vpop.permute.xlu0 %2349
      %2351 = vrot.lane.b32.xlu0 %v626, 32
      %v2352 = vpop.permute.xlu0 %2351
      %2353 = vrot.lane.b32.xlu0 %v627, 32
      %v2354 = vpop.permute.xlu0 %2353
      %2355 = vrot.lane.b32.xlu0 %v628, 32
      %v2356 = vpop.permute.xlu0 %2355
      %2357 = vrot.lane.b32.xlu0 %v629, 32
      %v2358 = vpop.permute.xlu0 %2357
      %2359 = vrot.lane.b32.xlu0 %v630, 32
      %v2360 = vpop.permute.xlu0 %2359
      %2361 = vrot.lane.b32.xlu0 %v631, 32
      %v2362 = vpop.permute.xlu0 %2361
      %2363 = vrot.lane.b32.xlu0 %v632, 32
      %v2364 = vpop.permute.xlu0 %2363
      %2365 = vrot.lane.b32.xlu0 %v633, 32
      %v2366 = vpop.permute.xlu0 %2365
      %2367 = vrot.lane.b32.xlu0 %v634, 32
      %v2368 = vpop.permute.xlu0 %2367
      %2369 = vrot.lane.b32.xlu0 %v635, 32
      %v2370 = vpop.permute.xlu0 %2369
      %2371 = vrot.lane.b32.xlu0 %v636, 32
      %v2372 = vpop.permute.xlu0 %2371
      %2373 = vrot.lane.b32.xlu0 %v637, 32
      %v2374 = vpop.permute.xlu0 %2373
      %2375 = vrot.lane.b32.xlu0 %v638, 32
      %v2376 = vpop.permute.xlu0 %2375
      %2377 = vrot.lane.b32.xlu0 %v639, 32
      %v2378 = vpop.permute.xlu0 %2377
      %2379 = vrot.lane.b32.xlu0 %v640, 32
      %v2380 = vpop.permute.xlu0 %2379
      %2381 = vrot.lane.b32.xlu0 %v641, 32
      %v2382 = vpop.permute.xlu0 %2381
      %2383 = vrot.lane.b32.xlu0 %v642, 32
      %v2384 = vpop.permute.xlu0 %2383
      %2385 = vrot.lane.b32.xlu0 %v643, 32
      %v2386 = vpop.permute.xlu0 %2385
      %2387 = vrot.lane.b32.xlu0 %v816, 32
      %v2388 = vpop.permute.xlu0 %2387
      %2389 = vrot.lane.b32.xlu0 %v817, 32
      %v2390 = vpop.permute.xlu0 %2389
      %2391 = vrot.lane.b32.xlu0 %v818, 32
      %v2392 = vpop.permute.xlu0 %2391
      %2393 = vrot.lane.b32.xlu0 %v819, 32
      %v2394 = vpop.permute.xlu0 %2393
      %2395 = vrot.lane.b32.xlu0 %v820, 32
      %v2396 = vpop.permute.xlu0 %2395
      %v2451 = vsel %vm409, %v482, %v876
      %v2452 = vsel %vm409, %v483, %v878
      %v2453 = vsel %vm409, %v484, %v880
      %v2454 = vsel %vm409, %v485, %v882
      %v2455 = vsel %vm409, %v486, %v884
      %v2456 = vsel %vm409, %v487, %v886
      %v2457 = vsel %vm409, %v488, %v888
      %v2458 = vsel %vm409, %v489, %v890
      %v2459 = vsel %vm409, %v490, %v892
      %v2460 = vsel %vm409, %v491, %v894
      %v2461 = vsel %vm409, %v492, %v896
      %v2462 = vsel %vm409, %v493, %v898
      %v2463 = vsel %vm409, %v494, %v900
      %v2464 = vsel %vm409, %v495, %v902
      %v2465 = vsel %vm409, %v496, %v904
      %v2466 = vsel %vm409, %v497, %v906
      %v2467 = vsel %vm409, %v498, %v908
      %v2468 = vsel %vm409, %v499, %v910
      %v2469 = vsel %vm409, %v500, %v912
      %v2470 = vsel %vm409, %v501, %v914
      %v2471 = vsel %vm409, %v502, %v916
      %v2472 = vsel %vm409, %v503, %v918
      %v2473 = vsel %vm409, %v504, %v920
      %v2474 = vsel %vm409, %v505, %v922
      %v2475 = vsel %vm409, %v506, %v924
      %v2476 = vsel %vm409, %v507, %v926
      %v2477 = vsel %vm409, %v508, %v928
      %v2478 = vsel %vm409, %v509, %v930
      %v2479 = vsel %vm409, %v510, %v932
      %v2480 = vsel %vm409, %v511, %v934
      %v2481 = vsel %vm409, %v512, %v936
      %v2482 = vsel %vm409, %v513, %v938
      %v2483 = vsel %vm409, %v514, %v940
      %v2484 = vsel %vm409, %v515, %v942
      %v2485 = vsel %vm409, %v516, %v944
      %v2486 = vsel %vm409, %v517, %v946
      %v2487 = vsel %vm409, %v518, %v948
      %v2488 = vsel %vm409, %v519, %v950
      %v2489 = vsel %vm409, %v520, %v952
      %v2490 = vsel %vm409, %v521, %v954
      %v2491 = vsel %vm409, %v522, %v956
      %v2492 = vsel %vm409, %v523, %v958
      %v2493 = vsel %vm409, %v524, %v960
      %v2494 = vsel %vm409, %v525, %v962
      %v2495 = vsel %vm409, %v526, %v964
      %v2496 = vsel %vm409, %v527, %v966
      %v2497 = vsel %vm409, %v528, %v968
      %v2498 = vsel %vm409, %v529, %v970
      %v2499 = vsel %vm409, %v530, %v972
      %v2500 = vsel %vm409, %v531, %v974
      %v2501 = vsel %vm409, %v532, %v976
      %v2502 = vsel %vm409, %v533, %v978
      %v2503 = vsel %vm409, %v534, %v980
      %v2504 = vsel %vm409, %v535, %v982
      %vm2505 = vcmask 64512
      %v2506 = vsel %vm2505, %v2451, %v1092
      %v2507 = vsel %vm2505, %v2452, %v1094
      %v2508 = vsel %vm2505, %v2453, %v1096
      %v2509 = vsel %vm2505, %v2454, %v1098
      %v2510 = vsel %vm2505, %v2455, %v1100
      %v2511 = vsel %vm2505, %v2456, %v1102
      %v2512 = vsel %vm2505, %v2457, %v1104
      %v2513 = vsel %vm2505, %v2458, %v1106
      %v2514 = vsel %vm2505, %v2459, %v1108
      %v2515 = vsel %vm2505, %v2460, %v1110
      %v2516 = vsel %vm2505, %v2461, %v1112
      %v2517 = vsel %vm2505, %v2462, %v1114
      %v2518 = vsel %vm2505, %v2463, %v1116
      %v2519 = vsel %vm2505, %v2464, %v1118
      %v2520 = vsel %vm2505, %v2465, %v1120
      %v2521 = vsel %vm2505, %v2466, %v1122
      %v2522 = vsel %vm2505, %v2467, %v1124
      %v2523 = vsel %vm2505, %v2468, %v1126
      %v2524 = vsel %vm2505, %v2469, %v1128
      %v2525 = vsel %vm2505, %v2470, %v1130
      %v2526 = vsel %vm2505, %v2471, %v1132
      %v2527 = vsel %vm2505, %v2472, %v1134
      %v2528 = vsel %vm2505, %v2473, %v1136
      %v2529 = vsel %vm2505, %v2474, %v1138
      %v2530 = vsel %vm2505, %v2475, %v1140
      %v2531 = vsel %vm2505, %v2476, %v1142
      %v2532 = vsel %vm2505, %v2477, %v1144
      %v2533 = vsel %vm2505, %v2478, %v1146
      %v2534 = vsel %vm2505, %v2479, %v1148
      %v2535 = vsel %vm2505, %v2480, %v1150
      %v2536 = vsel %vm2505, %v2481, %v1152
      %v2537 = vsel %vm2505, %v2482, %v1154
      %v2538 = vsel %vm2505, %v2483, %v1156
      %v2539 = vsel %vm2505, %v2484, %v1158
      %v2540 = vsel %vm2505, %v2485, %v1160
      %v2541 = vsel %vm2505, %v2486, %v1162
      %v2542 = vsel %vm2505, %v2487, %v1164
      %v2543 = vsel %vm2505, %v2488, %v1166
      %v2544 = vsel %vm2505, %v2489, %v1168
      %v2545 = vsel %vm2505, %v2490, %v1170
      %v2546 = vsel %vm2505, %v2491, %v1172
      %v2547 = vsel %vm2505, %v2492, %v1174
      %v2548 = vsel %vm2505, %v2493, %v1176
      %v2549 = vsel %vm2505, %v2494, %v1178
      %v2550 = vsel %vm2505, %v2495, %v1180
      %v2551 = vsel %vm2505, %v2496, %v1182
      %v2552 = vsel %vm2505, %v2497, %v1184
      %v2553 = vsel %vm2505, %v2498, %v1186
      %v2554 = vsel %vm2505, %v2499, %v1188
      %v2555 = vsel %vm2505, %v2500, %v1190
      %v2556 = vsel %vm2505, %v2501, %v1192
      %v2557 = vsel %vm2505, %v2502, %v1194
      %v2558 = vsel %vm2505, %v2503, %v1196
      %v2559 = vsel %vm2505, %v2504, %v1198
      %vm2560 = vcmask 97280
      %v2561 = vsel %vm2560, %v2506, %v1308
      %v2562 = vsel %vm2560, %v2507, %v1310
      %v2563 = vsel %vm2560, %v2508, %v1312
      %v2564 = vsel %vm2560, %v2509, %v1314
      %v2565 = vsel %vm2560, %v2510, %v1316
      %v2566 = vsel %vm2560, %v2511, %v1318
      %v2567 = vsel %vm2560, %v2512, %v1320
      %v2568 = vsel %vm2560, %v2513, %v1322
      %v2569 = vsel %vm2560, %v2514, %v1324
      %v2570 = vsel %vm2560, %v2515, %v1326
      %v2571 = vsel %vm2560, %v2516, %v1328
      %v2572 = vsel %vm2560, %v2517, %v1330
      %v2573 = vsel %vm2560, %v2518, %v1332
      %v2574 = vsel %vm2560, %v2519, %v1334
      %v2575 = vsel %vm2560, %v2520, %v1336
      %v2576 = vsel %vm2560, %v2521, %v1338
      %v2577 = vsel %vm2560, %v2522, %v1340
      %v2578 = vsel %vm2560, %v2523, %v1342
      %v2579 = vsel %vm2560, %v2524, %v1344
      %v2580 = vsel %vm2560, %v2525, %v1346
      %v2581 = vsel %vm2560, %v2526, %v1348
      %v2582 = vsel %vm2560, %v2527, %v1350
      %v2583 = vsel %vm2560, %v2528, %v1352
      %v2584 = vsel %vm2560, %v2529, %v1354
      %v2585 = vsel %vm2560, %v2530, %v1356
      %v2586 = vsel %vm2560, %v2531, %v1358
      %v2587 = vsel %vm2560, %v2532, %v1360
      %v2588 = vsel %vm2560, %v2533, %v1362
      %v2589 = vsel %vm2560, %v2534, %v1364
      %v2590 = vsel %vm2560, %v2535, %v1366
      %v2591 = vsel %vm2560, %v2536, %v1368
      %v2592 = vsel %vm2560, %v2537, %v1370
      %v2593 = vsel %vm2560, %v2538, %v1372
      %v2594 = vsel %vm2560, %v2539, %v1374
      %v2595 = vsel %vm2560, %v2540, %v1376
      %v2596 = vsel %vm2560, %v2541, %v1378
      %v2597 = vsel %vm2560, %v2542, %v1380
      %v2598 = vsel %vm2560, %v2543, %v1382
      %v2599 = vsel %vm2560, %v2544, %v1384
      %v2600 = vsel %vm2560, %v2545, %v1386
      %v2601 = vsel %vm2560, %v2546, %v1388
      %v2602 = vsel %vm2560, %v2547, %v1390
      %v2603 = vsel %vm2560, %v2548, %v1392
      %v2604 = vsel %vm2560, %v2549, %v1394
      %v2605 = vsel %vm2560, %v2550, %v1396
      %v2606 = vsel %vm2560, %v2551, %v1398
      %v2607 = vsel %vm2560, %v2552, %v1400
      %v2608 = vsel %vm2560, %v2553, %v1402
      %v2609 = vsel %vm2560, %v2554, %v1404
      %v2610 = vsel %vm2560, %v2555, %v1406
      %v2611 = vsel %vm2560, %v2556, %v1408
      %v2612 = vsel %vm2560, %v2557, %v1410
      %v2613 = vsel %vm2560, %v2558, %v1412
      %v2614 = vsel %vm2560, %v2559, %v1414
      %vm2615 = vcmask 130048
      %v2616 = vsel %vm2615, %v2561, %v1524
      %v2617 = vsel %vm2615, %v2562, %v1526
      %v2618 = vsel %vm2615, %v2563, %v1528
      %v2619 = vsel %vm2615, %v2564, %v1530
      %v2620 = vsel %vm2615, %v2565, %v1532
      %v2621 = vsel %vm2615, %v2566, %v1534
      %v2622 = vsel %vm2615, %v2567, %v1536
      %v2623 = vsel %vm2615, %v2568, %v1538
      %v2624 = vsel %vm2615, %v2569, %v1540
      %v2625 = vsel %vm2615, %v2570, %v1542
      %v2626 = vsel %vm2615, %v2571, %v1544
      %v2627 = vsel %vm2615, %v2572, %v1546
      %v2628 = vsel %vm2615, %v2573, %v1548
      %v2629 = vsel %vm2615, %v2574, %v1550
      %v2630 = vsel %vm2615, %v2575, %v1552
      %v2631 = vsel %vm2615, %v2576, %v1554
      %v2632 = vsel %vm2615, %v2577, %v1556
      %v2633 = vsel %vm2615, %v2578, %v1558
      %v2634 = vsel %vm2615, %v2579, %v1560
      %v2635 = vsel %vm2615, %v2580, %v1562
      %v2636 = vsel %vm2615, %v2581, %v1564
      %v2637 = vsel %vm2615, %v2582, %v1566
      %v2638 = vsel %vm2615, %v2583, %v1568
      %v2639 = vsel %vm2615, %v2584, %v1570
      %v2640 = vsel %vm2615, %v2585, %v1572
      %v2641 = vsel %vm2615, %v2586, %v1574
      %v2642 = vsel %vm2615, %v2587, %v1576
      %v2643 = vsel %vm2615, %v2588, %v1578
      %v2644 = vsel %vm2615, %v2589, %v1580
      %v2645 = vsel %vm2615, %v2590, %v1582
      %v2646 = vsel %vm2615, %v2591, %v1584
      %v2647 = vsel %vm2615, %v2592, %v1586
      %v2648 = vsel %vm2615, %v2593, %v1588
      %v2649 = vsel %vm2615, %v2594, %v1590
      %v2650 = vsel %vm2615, %v2595, %v1592
      %v2651 = vsel %vm2615, %v2596, %v1594
      %v2652 = vsel %vm2615, %v2597, %v1596
      %v2653 = vsel %vm2615, %v2598, %v1598
      %v2654 = vsel %vm2615, %v2599, %v1600
      %v2655 = vsel %vm2615, %v2600, %v1602
      %v2656 = vsel %vm2615, %v2601, %v1604
      %v2657 = vsel %vm2615, %v2602, %v1606
      %v2658 = vsel %vm2615, %v2603, %v1608
      %v2659 = vsel %vm2615, %v2604, %v1610
      %v2660 = vsel %vm2615, %v2605, %v1612
      %v2661 = vsel %vm2615, %v2606, %v1614
      %v2662 = vsel %vm2615, %v2607, %v1616
      %v2663 = vsel %vm2615, %v2608, %v1618
      %v2664 = vsel %vm2615, %v2609, %v1620
      %v2665 = vsel %vm2615, %v2610, %v1622
      %v2666 = vsel %vm2615, %v2611, %v1624
      %v2667 = vsel %vm2615, %v2612, %v1626
      %v2668 = vsel %vm2615, %v2613, %v1628
      %v2669 = vsel %vm2615, %v2614, %v1630
      %vm2670 = vcmask 162816
      %v2671 = vsel %vm2670, %v2616, %v1740
      %v2672 = vsel %vm2670, %v2617, %v1742
      %v2673 = vsel %vm2670, %v2618, %v1744
      %v2674 = vsel %vm2670, %v2619, %v1746
      %v2675 = vsel %vm2670, %v2620, %v1748
      %v2676 = vsel %vm2670, %v2621, %v1750
      %v2677 = vsel %vm2670, %v2622, %v1752
      %v2678 = vsel %vm2670, %v2623, %v1754
      %v2679 = vsel %vm2670, %v2624, %v1756
      %v2680 = vsel %vm2670, %v2625, %v1758
      %v2681 = vsel %vm2670, %v2626, %v1760
      %v2682 = vsel %vm2670, %v2627, %v1762
      %v2683 = vsel %vm2670, %v2628, %v1764
      %v2684 = vsel %vm2670, %v2629, %v1766
      %v2685 = vsel %vm2670, %v2630, %v1768
      %v2686 = vsel %vm2670, %v2631, %v1770
      %v2687 = vsel %vm2670, %v2632, %v1772
      %v2688 = vsel %vm2670, %v2633, %v1774
      %v2689 = vsel %vm2670, %v2634, %v1776
      %v2690 = vsel %vm2670, %v2635, %v1778
      %v2691 = vsel %vm2670, %v2636, %v1780
      %v2692 = vsel %vm2670, %v2637, %v1782
      %v2693 = vsel %vm2670, %v2638, %v1784
      %v2694 = vsel %vm2670, %v2639, %v1786
      %v2695 = vsel %vm2670, %v2640, %v1788
      %v2696 = vsel %vm2670, %v2641, %v1790
      %v2697 = vsel %vm2670, %v2642, %v1792
      %v2698 = vsel %vm2670, %v2643, %v1794
      %v2699 = vsel %vm2670, %v2644, %v1796
      %v2700 = vsel %vm2670, %v2645, %v1798
      %v2701 = vsel %vm2670, %v2646, %v1800
      %v2702 = vsel %vm2670, %v2647, %v1802
      %v2703 = vsel %vm2670, %v2648, %v1804
      %v2704 = vsel %vm2670, %v2649, %v1806
      %v2705 = vsel %vm2670, %v2650, %v1808
      %v2706 = vsel %vm2670, %v2651, %v1810
      %v2707 = vsel %vm2670, %v2652, %v1812
      %v2708 = vsel %vm2670, %v2653, %v1814
      %v2709 = vsel %vm2670, %v2654, %v1816
      %v2710 = vsel %vm2670, %v2655, %v1818
      %v2711 = vsel %vm2670, %v2656, %v1820
      %v2712 = vsel %vm2670, %v2657, %v1822
      %v2713 = vsel %vm2670, %v2658, %v1824
      %v2714 = vsel %vm2670, %v2659, %v1826
      %v2715 = vsel %vm2670, %v2660, %v1828
      %v2716 = vsel %vm2670, %v2661, %v1830
      %v2717 = vsel %vm2670, %v2662, %v1832
      %v2718 = vsel %vm2670, %v2663, %v1834
      %v2719 = vsel %vm2670, %v2664, %v1836
      %v2720 = vsel %vm2670, %v2665, %v1838
      %v2721 = vsel %vm2670, %v2666, %v1840
      %v2722 = vsel %vm2670, %v2667, %v1842
      %v2723 = vsel %vm2670, %v2668, %v1844
      %v2724 = vsel %vm2670, %v2669, %v1846
      %vm2725 = vcmask 195584
      %v2726 = vsel %vm2725, %v2671, %v1956
      %v2727 = vsel %vm2725, %v2672, %v1958
      %v2728 = vsel %vm2725, %v2673, %v1960
      %v2729 = vsel %vm2725, %v2674, %v1962
      %v2730 = vsel %vm2725, %v2675, %v1964
      %v2731 = vsel %vm2725, %v2676, %v1966
      %v2732 = vsel %vm2725, %v2677, %v1968
      %v2733 = vsel %vm2725, %v2678, %v1970
      %v2734 = vsel %vm2725, %v2679, %v1972
      %v2735 = vsel %vm2725, %v2680, %v1974
      %v2736 = vsel %vm2725, %v2681, %v1976
      %v2737 = vsel %vm2725, %v2682, %v1978
      %v2738 = vsel %vm2725, %v2683, %v1980
      %v2739 = vsel %vm2725, %v2684, %v1982
      %v2740 = vsel %vm2725, %v2685, %v1984
      %v2741 = vsel %vm2725, %v2686, %v1986
      %v2742 = vsel %vm2725, %v2687, %v1988
      %v2743 = vsel %vm2725, %v2688, %v1990
      %v2744 = vsel %vm2725, %v2689, %v1992
      %v2745 = vsel %vm2725, %v2690, %v1994
      %v2746 = vsel %vm2725, %v2691, %v1996
      %v2747 = vsel %vm2725, %v2692, %v1998
      %v2748 = vsel %vm2725, %v2693, %v2000
      %v2749 = vsel %vm2725, %v2694, %v2002
      %v2750 = vsel %vm2725, %v2695, %v2004
      %v2751 = vsel %vm2725, %v2696, %v2006
      %v2752 = vsel %vm2725, %v2697, %v2008
      %v2753 = vsel %vm2725, %v2698, %v2010
      %v2754 = vsel %vm2725, %v2699, %v2012
      %v2755 = vsel %vm2725, %v2700, %v2014
      %v2756 = vsel %vm2725, %v2701, %v2016
      %v2757 = vsel %vm2725, %v2702, %v2018
      %v2758 = vsel %vm2725, %v2703, %v2020
      %v2759 = vsel %vm2725, %v2704, %v2022
      %v2760 = vsel %vm2725, %v2705, %v2024
      %v2761 = vsel %vm2725, %v2706, %v2026
      %v2762 = vsel %vm2725, %v2707, %v2028
      %v2763 = vsel %vm2725, %v2708, %v2030
      %v2764 = vsel %vm2725, %v2709, %v2032
      %v2765 = vsel %vm2725, %v2710, %v2034
      %v2766 = vsel %vm2725, %v2711, %v2036
      %v2767 = vsel %vm2725, %v2712, %v2038
      %v2768 = vsel %vm2725, %v2713, %v2040
      %v2769 = vsel %vm2725, %v2714, %v2042
      %v2770 = vsel %vm2725, %v2715, %v2044
      %v2771 = vsel %vm2725, %v2716, %v2046
      %v2772 = vsel %vm2725, %v2717, %v2048
      %v2773 = vsel %vm2725, %v2718, %v2050
      %v2774 = vsel %vm2725, %v2719, %v2052
      %v2775 = vsel %vm2725, %v2720, %v2054
      %v2776 = vsel %vm2725, %v2721, %v2056
      %v2777 = vsel %vm2725, %v2722, %v2058
      %v2778 = vsel %vm2725, %v2723, %v2060
      %v2779 = vsel %vm2725, %v2724, %v2062
      %vm2780 = vcmask 228352
      %v2781 = vsel %vm2780, %v2726, %v2123
      %v2782 = vsel %vm2780, %v2727, %v2125
      %v2783 = vsel %vm2780, %v2728, %v2127
      %v2784 = vsel %vm2780, %v2729, %v2129
      %v2785 = vsel %vm2780, %v2730, %v2131
      %v2786 = vsel %vm2780, %v2731, %v2133
      %v2787 = vsel %vm2780, %v2732, %v2135
      %v2788 = vsel %vm2780, %v2733, %v2137
      %v2789 = vsel %vm2780, %v2734, %v2139
      %v2790 = vsel %vm2780, %v2735, %v2141
      %v2791 = vsel %vm2780, %v2736, %v2143
      %v2792 = vsel %vm2780, %v2737, %v2145
      %v2793 = vsel %vm2780, %v2738, %v2147
      %v2794 = vsel %vm2780, %v2739, %v2149
      %v2795 = vsel %vm2780, %v2740, %v2151
      %v2796 = vsel %vm2780, %v2741, %v2153
      %v2797 = vsel %vm2780, %v2742, %v2155
      %v2798 = vsel %vm2780, %v2743, %v2157
      %v2799 = vsel %vm2780, %v2744, %v2159
      %v2800 = vsel %vm2780, %v2745, %v2161
      %v2801 = vsel %vm2780, %v2746, %v2163
      %v2802 = vsel %vm2780, %v2747, %v2165
      %v2803 = vsel %vm2780, %v2748, %v2167
      %v2804 = vsel %vm2780, %v2749, %v2169
      %v2805 = vsel %vm2780, %v2750, %v2171
      %v2806 = vsel %vm2780, %v2751, %v2173
      %v2807 = vsel %vm2780, %v2752, %v2175
      %v2808 = vsel %vm2780, %v2753, %v2177
      %v2809 = vsel %vm2780, %v2754, %v2179
      %v2810 = vsel %vm2780, %v2755, %v2181
      %v2811 = vsel %vm2780, %v2756, %v2183
      %v2812 = vsel %vm2780, %v2757, %v2185
      %v2813 = vsel %vm2780, %v2758, %v2187
      %v2814 = vsel %vm2780, %v2759, %v2189
      %v2815 = vsel %vm2780, %v2760, %v2191
      %v2816 = vsel %vm2780, %v2761, %v2193
      %v2817 = vsel %vm2780, %v2762, %v2195
      %v2818 = vsel %vm2780, %v2763, %v2197
      %v2819 = vsel %vm2780, %v2764, %v2199
      %v2820 = vsel %vm2780, %v2765, %v2201
      %v2821 = vsel %vm2780, %v2766, %v2203
      %v2822 = vsel %vm2780, %v2767, %v2205
      %v2823 = vsel %vm2780, %v2768, %v2207
      %v2824 = vsel %vm2780, %v2769, %v2209
      %v2825 = vsel %vm2780, %v2770, %v2211
      %v2826 = vsel %vm2780, %v2771, %v2213
      %v2827 = vsel %vm2780, %v2772, %v2215
      %v2828 = vsel %vm2780, %v2773, %v2217
      %v2829 = vsel %vm2780, %v2774, %v2219
      %v2830 = vsel %vm2780, %v2775, %v2221
      %v2831 = vsel %vm2780, %v2776, %v2223
      %v2832 = vsel %vm2780, %v2777, %v2225
      %v2833 = vsel %vm2780, %v2778, %v2227
      %v2834 = vsel %vm2780, %v2779, %v2229
      %vm2835 = vcmask 261120
      %v2836 = vsel %vm2835, %v2781, %v2290
      %v2837 = vsel %vm2835, %v2782, %v2292
      %v2838 = vsel %vm2835, %v2783, %v2294
      %v2839 = vsel %vm2835, %v2784, %v2296
      %v2840 = vsel %vm2835, %v2785, %v2298
      %v2841 = vsel %vm2835, %v2786, %v2300
      %v2842 = vsel %vm2835, %v2787, %v2302
      %v2843 = vsel %vm2835, %v2788, %v2304
      %v2844 = vsel %vm2835, %v2789, %v2306
      %v2845 = vsel %vm2835, %v2790, %v2308
      %v2846 = vsel %vm2835, %v2791, %v2310
      %v2847 = vsel %vm2835, %v2792, %v2312
      %v2848 = vsel %vm2835, %v2793, %v2314
      %v2849 = vsel %vm2835, %v2794, %v2316
      %v2850 = vsel %vm2835, %v2795, %v2318
      %v2851 = vsel %vm2835, %v2796, %v2320
      %v2852 = vsel %vm2835, %v2797, %v2322
      %v2853 = vsel %vm2835, %v2798, %v2324
      %v2854 = vsel %vm2835, %v2799, %v2326
      %v2855 = vsel %vm2835, %v2800, %v2328
      %v2856 = vsel %vm2835, %v2801, %v2330
      %v2857 = vsel %vm2835, %v2802, %v2332
      %v2858 = vsel %vm2835, %v2803, %v2334
      %v2859 = vsel %vm2835, %v2804, %v2336
      %v2860 = vsel %vm2835, %v2805, %v2338
      %v2861 = vsel %vm2835, %v2806, %v2340
      %v2862 = vsel %vm2835, %v2807, %v2342
      %v2863 = vsel %vm2835, %v2808, %v2344
      %v2864 = vsel %vm2835, %v2809, %v2346
      %v2865 = vsel %vm2835, %v2810, %v2348
      %v2866 = vsel %vm2835, %v2811, %v2350
      %v2867 = vsel %vm2835, %v2812, %v2352
      %v2868 = vsel %vm2835, %v2813, %v2354
      %v2869 = vsel %vm2835, %v2814, %v2356
      %v2870 = vsel %vm2835, %v2815, %v2358
      %v2871 = vsel %vm2835, %v2816, %v2360
      %v2872 = vsel %vm2835, %v2817, %v2362
      %v2873 = vsel %vm2835, %v2818, %v2364
      %v2874 = vsel %vm2835, %v2819, %v2366
      %v2875 = vsel %vm2835, %v2820, %v2368
      %v2876 = vsel %vm2835, %v2821, %v2370
      %v2877 = vsel %vm2835, %v2822, %v2372
      %v2878 = vsel %vm2835, %v2823, %v2374
      %v2879 = vsel %vm2835, %v2824, %v2376
      %v2880 = vsel %vm2835, %v2825, %v2378
      %v2881 = vsel %vm2835, %v2826, %v2380
      %v2882 = vsel %vm2835, %v2827, %v2382
      %v2883 = vsel %vm2835, %v2828, %v2384
      %v2884 = vsel %vm2835, %v2829, %v2386
      %v2885 = vsel %vm2835, %v2830, %v2388
      %v2886 = vsel %vm2835, %v2831, %v2390
      %v2887 = vsel %vm2835, %v2832, %v2392
      %v2888 = vsel %vm2835, %v2833, %v2394
      %v2889 = vsel %vm2835, %v2834, %v2396
      %v2890 = vpack.c.bf16 %v2837, %v2836
      %v2891 = vpack.c.bf16 %v2839, %v2838
      %v2892 = vpack.c.bf16 %v2841, %v2840
      %v2893 = vpack.c.bf16 %v2843, %v2842
      %v2894 = vpack.c.bf16 %v2845, %v2844
      %v2895 = vpack.c.bf16 %v2847, %v2846
      %v2896 = vpack.c.bf16 %v2849, %v2848
      %v2897 = vpack.c.bf16 %v2851, %v2850
      %v2898 = vpack.c.bf16 %v2853, %v2852
      %v2899 = vpack.c.bf16 %v2855, %v2854
      %v2900 = vpack.c.bf16 %v2857, %v2856
      %v2901 = vpack.c.bf16 %v2859, %v2858
      %v2902 = vpack.c.bf16 %v2861, %v2860
      %v2903 = vpack.c.bf16 %v2863, %v2862
      %v2904 = vpack.c.bf16 %v2865, %v2864
      %v2905 = vpack.c.bf16 %v2867, %v2866
      %v2906 = vpack.c.bf16 %v2869, %v2868
      %v2907 = vpack.c.bf16 %v2871, %v2870
      %v2908 = vpack.c.bf16 %v2873, %v2872
      %v2909 = vpack.c.bf16 %v2875, %v2874
      %v2910 = vpack.c.bf16 %v2877, %v2876
      %v2911 = vpack.c.bf16 %v2879, %v2878
      %v2912 = vpack.c.bf16 %v2881, %v2880
      %v2913 = vpack.c.bf16 %v2883, %v2882
      %v2914 = vpack.c.bf16 %v2885, %v2884
      %v2915 = vpack.c.bf16 %v2887, %v2886
      %v2916 = vpack.c.bf16 %v2889, %v2888
      %v2917 = vld [vmem:[%s3] sm:$0xf]
      %v2918 = vld [vmem:[%s3 + $0x4] sm:$0xf]
      %v2919 = vld [vmem:[%s3 + $0x8] sm:$0xf]
      %v2920 = vld [vmem:[%s3 + $0xc] sm:$0xf]
      %v2921 = vld [vmem:[%s3 + $0x10] sm:$0x3]
      %v2922 = vld [vmem:[%s4] sm:$0x1]
      %v2924 = vperm.slane %v2922, 0
      %v2931 = vunpack.c.l.b16 %v2917
      %v2932 = vunpack.c.l.b16 %v2918
      %v2933 = vunpack.c.l.b16 %v2919
      %v2934 = vunpack.c.l.b16 %v2920
      %v2935 = vunpack.c.l.b16 %v2921
      %v2936 = vpack.c.b16 %v2932, %v2931
      %v2937 = vpack.c.b16 %v2934, %v2933
      %v2938 = vpack.c.b16 %v2935, %v2935
      %vm2941 = vcmask 293888
      %v2943 = vsel %vm2941, %v2890, 0
      %v2946 = vsel %vm2941, %v2891, 0
      %v2949 = vsel %vm2941, %v2892, 0
      %v2952 = vsel %vm2941, %v2893, 0
      %v2955 = vsel %vm2941, %v2894, 0
      %v2958 = vsel %vm2941, %v2895, 0
      %v2961 = vsel %vm2941, %v2896, 0
      %v2964 = vsel %vm2941, %v2897, 0
      %v2967 = vsel %vm2941, %v2898, 0
      %v2970 = vsel %vm2941, %v2899, 0
      %v2973 = vsel %vm2941, %v2900, 0
      %v2976 = vsel %vm2941, %v2901, 0
      %v2979 = vsel %vm2941, %v2902, 0
      %v2982 = vsel %vm2941, %v2903, 0
      %v2985 = vsel %vm2941, %v2904, 0
      %v2988 = vsel %vm2941, %v2905, 0
      %v2991 = vsel %vm2941, %v2906, 0
      %v2994 = vsel %vm2941, %v2907, 0
      %v2997 = vsel %vm2941, %v2908, 0
      %v3000 = vsel %vm2941, %v2909, 0
      %v3003 = vsel %vm2941, %v2910, 0
      %v3006 = vsel %vm2941, %v2911, 0
      %v3009 = vsel %vm2941, %v2912, 0
      %v3012 = vsel %vm2941, %v2913, 0
      %v3015 = vsel %vm2941, %v2914, 0
      %v3018 = vsel %vm2941, %v2915, 0
      %v3021 = vsel %vm2941, %v2916, 0
      %vm3023 = vcmask 1041408
      %v3025 = vsel %vm3023, %v2938, 0
      %3027 = vmatpush.bf16.msra.mxu0 0
      %3028 = vmatpush.bf16.msra.mxu0 0
      %3029 = vmatpush.bf16.msra.mxu0 0
      %3030 = vmatpush.bf16.msra.mxu0 0
      %3031 = vmatpush.bf16.msra.mxu0 0
      %3032 = vmatpush.bf16.msra.mxu0 %v3025
      %3033 = vmatpush.bf16.msra.mxu0 %v2937
      %3034 = vmatpush.bf16.msra.mxu0 %v2936
      %3035 = vmatmul.bf16.gmra.mxu0 %v2943
      %v3036 = vpop.f32.mrf.mxu0
      %v3037 = vadd.f32 %v2924, %v3036
      %v3038 = vpop.f32.mrf.mxu0
      %v3039 = vadd.f32 %v2924, %v3038
      %3040 = vmatmul.bf16.gmra.mxu0 %v2946
      %v3041 = vpop.f32.mrf.mxu0
      %v3042 = vadd.f32 %v2924, %v3041
      %v3043 = vpop.f32.mrf.mxu0
      %v3044 = vadd.f32 %v2924, %v3043
      %3045 = vmatmul.bf16.gmra.mxu0 %v2949
      %v3046 = vpop.f32.mrf.mxu0
      %v3047 = vadd.f32 %v2924, %v3046
      %v3048 = vpop.f32.mrf.mxu0
      %v3049 = vadd.f32 %v2924, %v3048
      %3050 = vmatmul.bf16.gmra.mxu0 %v2952
      %v3051 = vpop.f32.mrf.mxu0
      %v3052 = vadd.f32 %v2924, %v3051
      %v3053 = vpop.f32.mrf.mxu0
      %v3054 = vadd.f32 %v2924, %v3053
      %3055 = vmatmul.bf16.gmra.mxu0 %v2955
      %v3056 = vpop.f32.mrf.mxu0
      %v3057 = vadd.f32 %v2924, %v3056
      %v3058 = vpop.f32.mrf.mxu0
      %v3059 = vadd.f32 %v2924, %v3058
      %3060 = vmatmul.bf16.gmra.mxu0 %v2958
      %v3061 = vpop.f32.mrf.mxu0
      %v3062 = vadd.f32 %v2924, %v3061
      %v3063 = vpop.f32.mrf.mxu0
      %v3064 = vadd.f32 %v2924, %v3063
      %3065 = vmatmul.bf16.gmra.mxu0 %v2961
      %v3066 = vpop.f32.mrf.mxu0
      %v3067 = vadd.f32 %v2924, %v3066
      %v3068 = vpop.f32.mrf.mxu0
      %v3069 = vadd.f32 %v2924, %v3068
      %3070 = vmatmul.bf16.gmra.mxu0 %v2964
      %v3071 = vpop.f32.mrf.mxu0
      %v3072 = vadd.f32 %v2924, %v3071
      %v3073 = vpop.f32.mrf.mxu0
      %v3074 = vadd.f32 %v2924, %v3073
      %3075 = vmatmul.bf16.gmra.mxu0 %v2967
      %v3076 = vpop.f32.mrf.mxu0
      %v3077 = vadd.f32 %v2924, %v3076
      %v3078 = vpop.f32.mrf.mxu0
      %v3079 = vadd.f32 %v2924, %v3078
      %3080 = vmatmul.bf16.gmra.mxu0 %v2970
      %v3081 = vpop.f32.mrf.mxu0
      %v3082 = vadd.f32 %v2924, %v3081
      %v3083 = vpop.f32.mrf.mxu0
      %v3084 = vadd.f32 %v2924, %v3083
      %3085 = vmatmul.bf16.gmra.mxu0 %v2973
      %v3086 = vpop.f32.mrf.mxu0
      %v3087 = vadd.f32 %v2924, %v3086
      %v3088 = vpop.f32.mrf.mxu0
      %v3089 = vadd.f32 %v2924, %v3088
      %3090 = vmatmul.bf16.gmra.mxu0 %v2976
      %v3091 = vpop.f32.mrf.mxu0
      %v3092 = vadd.f32 %v2924, %v3091
      %v3093 = vpop.f32.mrf.mxu0
      %v3094 = vadd.f32 %v2924, %v3093
      %3095 = vmatmul.bf16.gmra.mxu0 %v2979
      %v3096 = vpop.f32.mrf.mxu0
      %v3097 = vadd.f32 %v2924, %v3096
      %v3098 = vpop.f32.mrf.mxu0
      %v3099 = vadd.f32 %v2924, %v3098
      %3100 = vmatmul.bf16.gmra.mxu0 %v2982
      %v3101 = vpop.f32.mrf.mxu0
      %v3102 = vadd.f32 %v2924, %v3101
      %v3103 = vpop.f32.mrf.mxu0
      %v3104 = vadd.f32 %v2924, %v3103
      %3105 = vmatmul.bf16.gmra.mxu0 %v2985
      %v3106 = vpop.f32.mrf.mxu0
      %v3107 = vadd.f32 %v2924, %v3106
      %v3108 = vpop.f32.mrf.mxu0
      %v3109 = vadd.f32 %v2924, %v3108
      %3110 = vmatmul.bf16.gmra.mxu0 %v2988
      %v3111 = vpop.f32.mrf.mxu0
      %v3112 = vadd.f32 %v2924, %v3111
      %v3113 = vpop.f32.mrf.mxu0
      %v3114 = vadd.f32 %v2924, %v3113
      %3115 = vmatmul.bf16.gmra.mxu0 %v2991
      %v3116 = vpop.f32.mrf.mxu0
      %v3117 = vadd.f32 %v2924, %v3116
      %v3118 = vpop.f32.mrf.mxu0
      %v3119 = vadd.f32 %v2924, %v3118
      %3120 = vmatmul.bf16.gmra.mxu0 %v2994
      %v3121 = vpop.f32.mrf.mxu0
      %v3122 = vadd.f32 %v2924, %v3121
      %v3123 = vpop.f32.mrf.mxu0
      %v3124 = vadd.f32 %v2924, %v3123
      %3125 = vmatmul.bf16.gmra.mxu0 %v2997
      %v3126 = vpop.f32.mrf.mxu0
      %v3127 = vadd.f32 %v2924, %v3126
      %v3128 = vpop.f32.mrf.mxu0
      %v3129 = vadd.f32 %v2924, %v3128
      %3130 = vmatmul.bf16.gmra.mxu0 %v3000
      %v3131 = vpop.f32.mrf.mxu0
      %v3132 = vadd.f32 %v2924, %v3131
      %v3133 = vpop.f32.mrf.mxu0
      %v3134 = vadd.f32 %v2924, %v3133
      %3135 = vmatmul.bf16.gmra.mxu0 %v3003
      %v3136 = vpop.f32.mrf.mxu0
      %v3137 = vadd.f32 %v2924, %v3136
      %v3138 = vpop.f32.mrf.mxu0
      %v3139 = vadd.f32 %v2924, %v3138
      %3140 = vmatmul.bf16.gmra.mxu0 %v3006
      %v3141 = vpop.f32.mrf.mxu0
      %v3142 = vadd.f32 %v2924, %v3141
      %v3143 = vpop.f32.mrf.mxu0
      %v3144 = vadd.f32 %v2924, %v3143
      %3145 = vmatmul.bf16.gmra.mxu0 %v3009
      %v3146 = vpop.f32.mrf.mxu0
      %v3147 = vadd.f32 %v2924, %v3146
      %v3148 = vpop.f32.mrf.mxu0
      %v3149 = vadd.f32 %v2924, %v3148
      %3150 = vmatmul.bf16.gmra.mxu0 %v3012
      %v3151 = vpop.f32.mrf.mxu0
      %v3152 = vadd.f32 %v2924, %v3151
      %v3153 = vpop.f32.mrf.mxu0
      %v3154 = vadd.f32 %v2924, %v3153
      %3155 = vmatmul.bf16.gmra.mxu0 %v3015
      %v3156 = vpop.f32.mrf.mxu0
      %v3157 = vadd.f32 %v2924, %v3156
      %v3158 = vpop.f32.mrf.mxu0
      %v3159 = vadd.f32 %v2924, %v3158
      %3160 = vmatmul.bf16.gmra.mxu0 %v3018
      %v3161 = vpop.f32.mrf.mxu0
      %v3162 = vadd.f32 %v2924, %v3161
      %v3163 = vpop.f32.mrf.mxu0
      %v3164 = vadd.f32 %v2924, %v3163
      %3165 = vmatmul.bf16.gmra.mxu0 %v3021
      %v3166 = vpop.f32.mrf.mxu0
      %v3167 = vadd.f32 %v2924, %v3166
      %v3168 = vpop.f32.mrf.mxu0
      %v3169 = vadd.f32 %v2924, %v3168
      %3170 = vdwg.mxu0
      %v3171 = vmax.f32 %v3037, 0.0
      %v3172 = vmax.f32 %v3039, 0.0
      %v3173 = vmax.f32 %v3042, 0.0
      %v3174 = vmax.f32 %v3044, 0.0
      %v3175 = vmax.f32 %v3047, 0.0
      %v3176 = vmax.f32 %v3049, 0.0
      %v3177 = vmax.f32 %v3052, 0.0
      %v3178 = vmax.f32 %v3054, 0.0
      %v3179 = vmax.f32 %v3057, 0.0
      %v3180 = vmax.f32 %v3059, 0.0
      %v3181 = vmax.f32 %v3062, 0.0
      %v3182 = vmax.f32 %v3064, 0.0
      %v3183 = vmax.f32 %v3067, 0.0
      %v3184 = vmax.f32 %v3069, 0.0
      %v3185 = vmax.f32 %v3072, 0.0
      %v3186 = vmax.f32 %v3074, 0.0
      %v3187 = vmax.f32 %v3077, 0.0
      %v3188 = vmax.f32 %v3079, 0.0
      %v3189 = vmax.f32 %v3082, 0.0
      %v3190 = vmax.f32 %v3084, 0.0
      %v3191 = vmax.f32 %v3087, 0.0
      %v3192 = vmax.f32 %v3089, 0.0
      %v3193 = vmax.f32 %v3092, 0.0
      %v3194 = vmax.f32 %v3094, 0.0
      %v3195 = vmax.f32 %v3097, 0.0
      %v3196 = vmax.f32 %v3099, 0.0
      %v3197 = vmax.f32 %v3102, 0.0
      %v3198 = vmax.f32 %v3104, 0.0
      %v3199 = vmax.f32 %v3107, 0.0
      %v3200 = vmax.f32 %v3109, 0.0
      %v3201 = vmax.f32 %v3112, 0.0
      %v3202 = vmax.f32 %v3114, 0.0
      %v3203 = vmax.f32 %v3117, 0.0
      %v3204 = vmax.f32 %v3119, 0.0
      %v3205 = vmax.f32 %v3122, 0.0
      %v3206 = vmax.f32 %v3124, 0.0
      %v3207 = vmax.f32 %v3127, 0.0
      %v3208 = vmax.f32 %v3129, 0.0
      %v3209 = vmax.f32 %v3132, 0.0
      %v3210 = vmax.f32 %v3134, 0.0
      %v3211 = vmax.f32 %v3137, 0.0
      %v3212 = vmax.f32 %v3139, 0.0
      %v3213 = vmax.f32 %v3142, 0.0
      %v3214 = vmax.f32 %v3144, 0.0
      %v3215 = vmax.f32 %v3147, 0.0
      %v3216 = vmax.f32 %v3149, 0.0
      %v3217 = vmax.f32 %v3152, 0.0
      %v3218 = vmax.f32 %v3154, 0.0
      %v3219 = vmax.f32 %v3157, 0.0
      %v3220 = vmax.f32 %v3159, 0.0
      %v3221 = vmax.f32 %v3162, 0.0
      %v3222 = vmax.f32 %v3164, 0.0
      %v3223 = vmax.f32 %v3167, 0.0
      %v3224 = vmax.f32 %v3169, 0.0
      %v3225 = vld [vmem:[%s292] sm:$0xf]
      %v3226 = vld [vmem:[%s292 + $0x4] sm:$0xf]
      %v3227 = vld [vmem:[%s292 + $0x8] sm:$0xf]
      %v3228 = vld [vmem:[%s292 + $0xc] sm:$0xf]
      %v3229 = vld [vmem:[%s292 + $0x10] sm:$0xf]
      %v3230 = vld [vmem:[%s292 + $0x14] sm:$0xf]
      %v3231 = vld [vmem:[%s292 + $0x18] sm:$0xf]
      %v3232 = vld [vmem:[%s292 + $0x1c] sm:$0xf]
      %v3233 = vld [vmem:[%s292 + $0x20] sm:$0xf]
      %v3234 = vld [vmem:[%s292 + $0x24] sm:$0xf]
      %v3235 = vld [vmem:[%s292 + $0x28] sm:$0xf]
      %v3236 = vld [vmem:[%s292 + $0x2c] sm:$0xf]
      %v3237 = vld [vmem:[%s292 + $0x30] sm:$0xf]
      %v3238 = vld [vmem:[%s292 + $0x34] sm:$0xf]
      %v3239 = vld [vmem:[%s292 + $0x38] sm:$0xf]
      %v3240 = vld [vmem:[%s292 + $0x3c] sm:$0xf]
      %v3241 = vld [vmem:[%s292 + $0x40] sm:$0xf]
      %v3242 = vld [vmem:[%s292 + $0x44] sm:$0xf]
      %v3243 = vld [vmem:[%s292 + $0x48] sm:$0xf]
      %v3244 = vld [vmem:[%s292 + $0x4c] sm:$0xf]
      %v3245 = vld [vmem:[%s292 + $0x50] sm:$0xf]
      %v3246 = vld [vmem:[%s292 + $0x54] sm:$0xf]
      %v3247 = vld [vmem:[%s292 + $0x58] sm:$0xf]
      %v3248 = vld [vmem:[%s292 + $0x5c] sm:$0xf]
      %v3249 = vld [vmem:[%s292 + $0x60] sm:$0xf]
      %v3250 = vld [vmem:[%s292 + $0x64] sm:$0xf]
      %v3251 = vld [vmem:[%s292 + $0x68] sm:$0xf]
      %v3252 = vld [vmem:[%s292 + $0x6c] sm:$0xf]
      %v3253 = vld [vmem:[%s292 + $0x70] sm:$0xf]
      %v3254 = vld [vmem:[%s292 + $0x74] sm:$0xf]
      %v3255 = vld [vmem:[%s292 + $0x78] sm:$0xf]
      %v3256 = vld [vmem:[%s292 + $0x7c] sm:$0xf]
      %v3257 = vld [vmem:[%s292 + $0x80] sm:$0xf]
      %v3258 = vld [vmem:[%s292 + $0x84] sm:$0xf]
      %v3259 = vld [vmem:[%s292 + $0x88] sm:$0xf]
      %v3260 = vld [vmem:[%s292 + $0x8c] sm:$0xf]
      %v3261 = vld [vmem:[%s292 + $0x90] sm:$0xf]
      %v3262 = vld [vmem:[%s292 + $0x94] sm:$0xf]
      %v3263 = vld [vmem:[%s292 + $0x98] sm:$0xf]
      %v3264 = vld [vmem:[%s292 + $0x9c] sm:$0xf]
      %v3265 = vld [vmem:[%s292 + $0xa0] sm:$0xf]
      %v3266 = vld [vmem:[%s292 + $0xa4] sm:$0xf]
      %v3267 = vld [vmem:[%s292 + $0xa8] sm:$0xf]
      %v3268 = vld [vmem:[%s292 + $0xac] sm:$0xf]
      %v3269 = vld [vmem:[%s292 + $0xb0] sm:$0xf]
      %v3270 = vld [vmem:[%s292 + $0xb4] sm:$0xf]
      %v3271 = vld [vmem:[%s292 + $0xb8] sm:$0xf]
      %v3272 = vld [vmem:[%s292 + $0xbc] sm:$0xf]
      %v3273 = vld [vmem:[%s292 + $0xc0] sm:$0xf]
      %v3274 = vld [vmem:[%s292 + $0xc4] sm:$0xf]
      %v3275 = vld [vmem:[%s292 + $0xc8] sm:$0xf]
      %v3276 = vld [vmem:[%s292 + $0xcc] sm:$0xf]
      %v3277 = vld [vmem:[%s292 + $0xd0] sm:$0xf]
      %v3278 = vld [vmem:[%s292 + $0xd4] sm:$0xf]
      %v3279 = vunpack.c.l.bf16 %v3225
      %v3280 = vunpack.c.l.bf16 %v3226
      %v3281 = vunpack.c.l.bf16 %v3227
      %v3282 = vunpack.c.l.bf16 %v3228
      %v3283 = vunpack.c.l.bf16 %v3229
      %v3284 = vunpack.c.l.bf16 %v3230
      %v3285 = vunpack.c.l.bf16 %v3231
      %v3286 = vunpack.c.l.bf16 %v3232
      %v3287 = vunpack.c.l.bf16 %v3233
      %v3288 = vunpack.c.l.bf16 %v3234
      %v3289 = vunpack.c.l.bf16 %v3235
      %v3290 = vunpack.c.l.bf16 %v3236
      %v3291 = vunpack.c.l.bf16 %v3237
      %v3292 = vunpack.c.l.bf16 %v3238
      %v3293 = vunpack.c.l.bf16 %v3239
      %v3294 = vunpack.c.l.bf16 %v3240
      %v3295 = vunpack.c.l.bf16 %v3241
      %v3296 = vunpack.c.l.bf16 %v3242
      %v3297 = vunpack.c.l.bf16 %v3243
      %v3298 = vunpack.c.l.bf16 %v3244
      %v3299 = vunpack.c.l.bf16 %v3245
      %v3300 = vunpack.c.l.bf16 %v3246
      %v3301 = vunpack.c.l.bf16 %v3247
      %v3302 = vunpack.c.l.bf16 %v3248
      %v3303 = vunpack.c.l.bf16 %v3249
      %v3304 = vunpack.c.l.bf16 %v3250
      %v3305 = vunpack.c.l.bf16 %v3251
      %v3306 = vunpack.c.l.bf16 %v3252
      %v3307 = vunpack.c.l.bf16 %v3253
      %v3308 = vunpack.c.l.bf16 %v3254
      %v3309 = vunpack.c.l.bf16 %v3255
      %v3310 = vunpack.c.l.bf16 %v3256
      %v3311 = vunpack.c.l.bf16 %v3257
      %v3312 = vunpack.c.l.bf16 %v3258
      %v3313 = vunpack.c.l.bf16 %v3259
      %v3314 = vunpack.c.l.bf16 %v3260
      %v3315 = vunpack.c.l.bf16 %v3261
      %v3316 = vunpack.c.l.bf16 %v3262
      %v3317 = vunpack.c.l.bf16 %v3263
      %v3318 = vunpack.c.l.bf16 %v3264
      %v3319 = vunpack.c.l.bf16 %v3265
      %v3320 = vunpack.c.l.bf16 %v3266
      %v3321 = vunpack.c.l.bf16 %v3267
      %v3322 = vunpack.c.l.bf16 %v3268
      %v3323 = vunpack.c.l.bf16 %v3269
      %v3324 = vunpack.c.l.bf16 %v3270
      %v3325 = vunpack.c.l.bf16 %v3271
      %v3326 = vunpack.c.l.bf16 %v3272
      %v3327 = vunpack.c.l.bf16 %v3273
      %v3328 = vunpack.c.l.bf16 %v3274
      %v3329 = vunpack.c.l.bf16 %v3275
      %v3330 = vunpack.c.l.bf16 %v3276
      %v3331 = vunpack.c.l.bf16 %v3277
      %v3332 = vunpack.c.l.bf16 %v3278
      %3334 = vset.pattern.permute.xlu0 0
      %3335 = vperm.xlu0 %3334, %v3279
      %v3336 = vpop.permute.xlu0 %3335
      %3339 = vset.pattern.permute.xlu0 0
      %3340 = vperm.xlu0 %3339, %v3280
      %v3341 = vpop.permute.xlu0 %3340
      %3344 = vset.pattern.permute.xlu0 0
      %3345 = vperm.xlu0 %3344, %v3281
      %v3346 = vpop.permute.xlu0 %3345
      %3349 = vset.pattern.permute.xlu0 0
      %3350 = vperm.xlu0 %3349, %v3282
      %v3351 = vpop.permute.xlu0 %3350
      %3354 = vset.pattern.permute.xlu0 0
      %3355 = vperm.xlu0 %3354, %v3283
      %v3356 = vpop.permute.xlu0 %3355
      %3359 = vset.pattern.permute.xlu0 0
      %3360 = vperm.xlu0 %3359, %v3284
      %v3361 = vpop.permute.xlu0 %3360
      %3364 = vset.pattern.permute.xlu0 0
      %3365 = vperm.xlu0 %3364, %v3285
      %v3366 = vpop.permute.xlu0 %3365
      %3369 = vset.pattern.permute.xlu0 0
      %3370 = vperm.xlu0 %3369, %v3286
      %v3371 = vpop.permute.xlu0 %3370
      %3374 = vset.pattern.permute.xlu0 0
      %3375 = vperm.xlu0 %3374, %v3287
      %v3376 = vpop.permute.xlu0 %3375
      %3379 = vset.pattern.permute.xlu0 0
      %3380 = vperm.xlu0 %3379, %v3288
      %v3381 = vpop.permute.xlu0 %3380
      %3384 = vset.pattern.permute.xlu0 0
      %3385 = vperm.xlu0 %3384, %v3289
      %v3386 = vpop.permute.xlu0 %3385
      %3389 = vset.pattern.permute.xlu0 0
      %3390 = vperm.xlu0 %3389, %v3290
      %v3391 = vpop.permute.xlu0 %3390
      %3394 = vset.pattern.permute.xlu0 0
      %3395 = vperm.xlu0 %3394, %v3291
      %v3396 = vpop.permute.xlu0 %3395
      %3399 = vset.pattern.permute.xlu0 0
      %3400 = vperm.xlu0 %3399, %v3292
      %v3401 = vpop.permute.xlu0 %3400
      %3404 = vset.pattern.permute.xlu0 0
      %3405 = vperm.xlu0 %3404, %v3293
      %v3406 = vpop.permute.xlu0 %3405
      %3409 = vset.pattern.permute.xlu0 0
      %3410 = vperm.xlu0 %3409, %v3294
      %v3411 = vpop.permute.xlu0 %3410
      %3414 = vset.pattern.permute.xlu0 0
      %3415 = vperm.xlu0 %3414, %v3295
      %v3416 = vpop.permute.xlu0 %3415
      %3419 = vset.pattern.permute.xlu0 0
      %3420 = vperm.xlu0 %3419, %v3296
      %v3421 = vpop.permute.xlu0 %3420
      %3424 = vset.pattern.permute.xlu0 0
      %3425 = vperm.xlu0 %3424, %v3297
      %v3426 = vpop.permute.xlu0 %3425
      %3429 = vset.pattern.permute.xlu0 0
      %3430 = vperm.xlu0 %3429, %v3298
      %v3431 = vpop.permute.xlu0 %3430
      %3434 = vset.pattern.permute.xlu0 0
      %3435 = vperm.xlu0 %3434, %v3299
      %v3436 = vpop.permute.xlu0 %3435
      %3439 = vset.pattern.permute.xlu0 0
      %3440 = vperm.xlu0 %3439, %v3300
      %v3441 = vpop.permute.xlu0 %3440
      %3444 = vset.pattern.permute.xlu0 0
      %3445 = vperm.xlu0 %3444, %v3301
      %v3446 = vpop.permute.xlu0 %3445
      %3449 = vset.pattern.permute.xlu0 0
      %3450 = vperm.xlu0 %3449, %v3302
      %v3451 = vpop.permute.xlu0 %3450
      %3454 = vset.pattern.permute.xlu0 0
      %3455 = vperm.xlu0 %3454, %v3303
      %v3456 = vpop.permute.xlu0 %3455
      %3459 = vset.pattern.permute.xlu0 0
      %3460 = vperm.xlu0 %3459, %v3304
      %v3461 = vpop.permute.xlu0 %3460
      %3464 = vset.pattern.permute.xlu0 0
      %3465 = vperm.xlu0 %3464, %v3305
      %v3466 = vpop.permute.xlu0 %3465
      %3469 = vset.pattern.permute.xlu0 0
      %3470 = vperm.xlu0 %3469, %v3306
      %v3471 = vpop.permute.xlu0 %3470
      %3474 = vset.pattern.permute.xlu0 0
      %3475 = vperm.xlu0 %3474, %v3307
      %v3476 = vpop.permute.xlu0 %3475
      %3479 = vset.pattern.permute.xlu0 0
      %3480 = vperm.xlu0 %3479, %v3308
      %v3481 = vpop.permute.xlu0 %3480
      %3484 = vset.pattern.permute.xlu0 0
      %3485 = vperm.xlu0 %3484, %v3309
      %v3486 = vpop.permute.xlu0 %3485
      %3489 = vset.pattern.permute.xlu0 0
      %3490 = vperm.xlu0 %3489, %v3310
      %v3491 = vpop.permute.xlu0 %3490
      %3494 = vset.pattern.permute.xlu0 0
      %3495 = vperm.xlu0 %3494, %v3311
      %v3496 = vpop.permute.xlu0 %3495
      %3499 = vset.pattern.permute.xlu0 0
      %3500 = vperm.xlu0 %3499, %v3312
      %v3501 = vpop.permute.xlu0 %3500
      %3504 = vset.pattern.permute.xlu0 0
      %3505 = vperm.xlu0 %3504, %v3313
      %v3506 = vpop.permute.xlu0 %3505
      %3509 = vset.pattern.permute.xlu0 0
      %3510 = vperm.xlu0 %3509, %v3314
      %v3511 = vpop.permute.xlu0 %3510
      %3514 = vset.pattern.permute.xlu0 0
      %3515 = vperm.xlu0 %3514, %v3315
      %v3516 = vpop.permute.xlu0 %3515
      %3519 = vset.pattern.permute.xlu0 0
      %3520 = vperm.xlu0 %3519, %v3316
      %v3521 = vpop.permute.xlu0 %3520
      %3524 = vset.pattern.permute.xlu0 0
      %3525 = vperm.xlu0 %3524, %v3317
      %v3526 = vpop.permute.xlu0 %3525
      %3529 = vset.pattern.permute.xlu0 0
      %3530 = vperm.xlu0 %3529, %v3318
      %v3531 = vpop.permute.xlu0 %3530
      %3534 = vset.pattern.permute.xlu0 0
      %3535 = vperm.xlu0 %3534, %v3319
      %v3536 = vpop.permute.xlu0 %3535
      %3539 = vset.pattern.permute.xlu0 0
      %3540 = vperm.xlu0 %3539, %v3320
      %v3541 = vpop.permute.xlu0 %3540
      %3544 = vset.pattern.permute.xlu0 0
      %3545 = vperm.xlu0 %3544, %v3321
      %v3546 = vpop.permute.xlu0 %3545
      %3549 = vset.pattern.permute.xlu0 0
      %3550 = vperm.xlu0 %3549, %v3322
      %v3551 = vpop.permute.xlu0 %3550
      %3554 = vset.pattern.permute.xlu0 0
      %3555 = vperm.xlu0 %3554, %v3323
      %v3556 = vpop.permute.xlu0 %3555
      %3559 = vset.pattern.permute.xlu0 0
      %3560 = vperm.xlu0 %3559, %v3324
      %v3561 = vpop.permute.xlu0 %3560
      %3564 = vset.pattern.permute.xlu0 0
      %3565 = vperm.xlu0 %3564, %v3325
      %v3566 = vpop.permute.xlu0 %3565
      %3569 = vset.pattern.permute.xlu0 0
      %3570 = vperm.xlu0 %3569, %v3326
      %v3571 = vpop.permute.xlu0 %3570
      %3574 = vset.pattern.permute.xlu0 0
      %3575 = vperm.xlu0 %3574, %v3327
      %v3576 = vpop.permute.xlu0 %3575
      %3579 = vset.pattern.permute.xlu0 0
      %3580 = vperm.xlu0 %3579, %v3328
      %v3581 = vpop.permute.xlu0 %3580
      %3584 = vset.pattern.permute.xlu0 0
      %3585 = vperm.xlu0 %3584, %v3329
      %v3586 = vpop.permute.xlu0 %3585
      %3589 = vset.pattern.permute.xlu0 0
      %3590 = vperm.xlu0 %3589, %v3330
      %v3591 = vpop.permute.xlu0 %3590
      %3594 = vset.pattern.permute.xlu0 0
      %3595 = vperm.xlu0 %3594, %v3331
      %v3596 = vpop.permute.xlu0 %3595
      %3599 = vset.pattern.permute.xlu0 0
      %3600 = vperm.xlu0 %3599, %v3332
      %v3601 = vpop.permute.xlu0 %3600
      %v3603 = vmul.f32 %v3171, %v3336
      %v3604 = vmul.f32 %v3172, %v3341
      %v3605 = vmul.f32 %v3173, %v3346
      %v3606 = vmul.f32 %v3174, %v3351
      %v3607 = vmul.f32 %v3175, %v3356
      %v3608 = vmul.f32 %v3176, %v3361
      %v3609 = vmul.f32 %v3177, %v3366
      %v3610 = vmul.f32 %v3178, %v3371
      %v3611 = vmul.f32 %v3179, %v3376
      %v3612 = vmul.f32 %v3180, %v3381
      %v3613 = vmul.f32 %v3181, %v3386
      %v3614 = vmul.f32 %v3182, %v3391
      %v3615 = vmul.f32 %v3183, %v3396
      %v3616 = vmul.f32 %v3184, %v3401
      %v3617 = vmul.f32 %v3185, %v3406
      %v3618 = vmul.f32 %v3186, %v3411
      %v3619 = vmul.f32 %v3187, %v3416
      %v3620 = vmul.f32 %v3188, %v3421
      %v3621 = vmul.f32 %v3189, %v3426
      %v3622 = vmul.f32 %v3190, %v3431
      %v3623 = vmul.f32 %v3191, %v3436
      %v3624 = vmul.f32 %v3192, %v3441
      %v3625 = vmul.f32 %v3193, %v3446
      %v3626 = vmul.f32 %v3194, %v3451
      %v3627 = vmul.f32 %v3195, %v3456
      %v3628 = vmul.f32 %v3196, %v3461
      %v3629 = vmul.f32 %v3197, %v3466
      %v3630 = vmul.f32 %v3198, %v3471
      %v3631 = vmul.f32 %v3199, %v3476
      %v3632 = vmul.f32 %v3200, %v3481
      %v3633 = vmul.f32 %v3201, %v3486
      %v3634 = vmul.f32 %v3202, %v3491
      %v3635 = vmul.f32 %v3203, %v3496
      %v3636 = vmul.f32 %v3204, %v3501
      %v3637 = vmul.f32 %v3205, %v3506
      %v3638 = vmul.f32 %v3206, %v3511
      %v3639 = vmul.f32 %v3207, %v3516
      %v3640 = vmul.f32 %v3208, %v3521
      %v3641 = vmul.f32 %v3209, %v3526
      %v3642 = vmul.f32 %v3210, %v3531
      %v3643 = vmul.f32 %v3211, %v3536
      %v3644 = vmul.f32 %v3212, %v3541
      %v3645 = vmul.f32 %v3213, %v3546
      %v3646 = vmul.f32 %v3214, %v3551
      %v3647 = vmul.f32 %v3215, %v3556
      %v3648 = vmul.f32 %v3216, %v3561
      %v3649 = vmul.f32 %v3217, %v3566
      %v3650 = vmul.f32 %v3218, %v3571
      %v3651 = vmul.f32 %v3219, %v3576
      %v3652 = vmul.f32 %v3220, %v3581
      %v3653 = vmul.f32 %v3221, %v3586
      %v3654 = vmul.f32 %v3222, %v3591
      %v3655 = vmul.f32 %v3223, %v3596
      %v3656 = vmul.f32 %v3224, %v3601
      %v3657 = vpack.c.bf16 %v3603, %v3603
      %v3658 = vpack.c.bf16 %v3604, %v3604
      %v3659 = vpack.c.bf16 %v3605, %v3605
      %v3660 = vpack.c.bf16 %v3606, %v3606
      %v3661 = vpack.c.bf16 %v3607, %v3607
      %v3662 = vpack.c.bf16 %v3608, %v3608
      %v3663 = vpack.c.bf16 %v3609, %v3609
      %v3664 = vpack.c.bf16 %v3610, %v3610
      %v3665 = vpack.c.bf16 %v3611, %v3611
      %v3666 = vpack.c.bf16 %v3612, %v3612
      %v3667 = vpack.c.bf16 %v3613, %v3613
      %v3668 = vpack.c.bf16 %v3614, %v3614
      %v3669 = vpack.c.bf16 %v3615, %v3615
      %v3670 = vpack.c.bf16 %v3616, %v3616
      %v3671 = vpack.c.bf16 %v3617, %v3617
      %v3672 = vpack.c.bf16 %v3618, %v3618
      %v3673 = vpack.c.bf16 %v3619, %v3619
      %v3674 = vpack.c.bf16 %v3620, %v3620
      %v3675 = vpack.c.bf16 %v3621, %v3621
      %v3676 = vpack.c.bf16 %v3622, %v3622
      %v3677 = vpack.c.bf16 %v3623, %v3623
      %v3678 = vpack.c.bf16 %v3624, %v3624
      %v3679 = vpack.c.bf16 %v3625, %v3625
      %v3680 = vpack.c.bf16 %v3626, %v3626
      %v3681 = vpack.c.bf16 %v3627, %v3627
      %v3682 = vpack.c.bf16 %v3628, %v3628
      %v3683 = vpack.c.bf16 %v3629, %v3629
      %v3684 = vpack.c.bf16 %v3630, %v3630
      %v3685 = vpack.c.bf16 %v3631, %v3631
      %v3686 = vpack.c.bf16 %v3632, %v3632
      %v3687 = vpack.c.bf16 %v3633, %v3633
      %v3688 = vpack.c.bf16 %v3634, %v3634
      %v3689 = vpack.c.bf16 %v3635, %v3635
      %v3690 = vpack.c.bf16 %v3636, %v3636
      %v3691 = vpack.c.bf16 %v3637, %v3637
      %v3692 = vpack.c.bf16 %v3638, %v3638
      %v3693 = vpack.c.bf16 %v3639, %v3639
      %v3694 = vpack.c.bf16 %v3640, %v3640
      %v3695 = vpack.c.bf16 %v3641, %v3641
      %v3696 = vpack.c.bf16 %v3642, %v3642
      %v3697 = vpack.c.bf16 %v3643, %v3643
      %v3698 = vpack.c.bf16 %v3644, %v3644
      %v3699 = vpack.c.bf16 %v3645, %v3645
      %v3700 = vpack.c.bf16 %v3646, %v3646
      %v3701 = vpack.c.bf16 %v3647, %v3647
      %v3702 = vpack.c.bf16 %v3648, %v3648
      %v3703 = vpack.c.bf16 %v3649, %v3649
      %v3704 = vpack.c.bf16 %v3650, %v3650
      %v3705 = vpack.c.bf16 %v3651, %v3651
      %v3706 = vpack.c.bf16 %v3652, %v3652
      %v3707 = vpack.c.bf16 %v3653, %v3653
      %v3708 = vpack.c.bf16 %v3654, %v3654
      %v3709 = vpack.c.bf16 %v3655, %v3655
      %v3710 = vpack.c.bf16 %v3656, %v3656
      %vm3711 = vcmask 60416
      %3712 = vst.msk [vmem:[%s298] sm:$0xf] %vm3711, %v3657
      %3713 = vst.msk [vmem:[%s298 + $0x4] sm:$0xf] %vm3711, %v3658
      %3714 = vst.msk [vmem:[%s298 + $0x8] sm:$0xf] %vm3711, %v3659
      %3715 = vst.msk [vmem:[%s298 + $0xc] sm:$0xf] %vm3711, %v3660
      %3716 = vst.msk [vmem:[%s298 + $0x10] sm:$0xf] %vm3711, %v3661
      %3717 = vst.msk [vmem:[%s298 + $0x14] sm:$0xf] %vm3711, %v3662
      %3718 = vst.msk [vmem:[%s298 + $0x18] sm:$0xf] %vm3711, %v3663
      %3719 = vst.msk [vmem:[%s298 + $0x1c] sm:$0xf] %vm3711, %v3664
      %3720 = vst.msk [vmem:[%s298 + $0x20] sm:$0xf] %vm3711, %v3665
      %3721 = vst.msk [vmem:[%s298 + $0x24] sm:$0xf] %vm3711, %v3666
      %3722 = vst.msk [vmem:[%s298 + $0x28] sm:$0xf] %vm3711, %v3667
      %3723 = vst.msk [vmem:[%s298 + $0x2c] sm:$0xf] %vm3711, %v3668
      %3724 = vst.msk [vmem:[%s298 + $0x30] sm:$0xf] %vm3711, %v3669
      %3725 = vst.msk [vmem:[%s298 + $0x34] sm:$0xf] %vm3711, %v3670
      %3726 = vst.msk [vmem:[%s298 + $0x38] sm:$0xf] %vm3711, %v3671
      %3727 = vst.msk [vmem:[%s298 + $0x3c] sm:$0xf] %vm3711, %v3672
      %3728 = vst.msk [vmem:[%s298 + $0x40] sm:$0xf] %vm3711, %v3673
      %3729 = vst.msk [vmem:[%s298 + $0x44] sm:$0xf] %vm3711, %v3674
      %3730 = vst.msk [vmem:[%s298 + $0x48] sm:$0xf] %vm3711, %v3675
      %3731 = vst.msk [vmem:[%s298 + $0x4c] sm:$0xf] %vm3711, %v3676
      %3732 = vst.msk [vmem:[%s298 + $0x50] sm:$0xf] %vm3711, %v3677
      %3733 = vst.msk [vmem:[%s298 + $0x54] sm:$0xf] %vm3711, %v3678
      %3734 = vst.msk [vmem:[%s298 + $0x58] sm:$0xf] %vm3711, %v3679
      %3735 = vst.msk [vmem:[%s298 + $0x5c] sm:$0xf] %vm3711, %v3680
      %3736 = vst.msk [vmem:[%s298 + $0x60] sm:$0xf] %vm3711, %v3681
      %3737 = vst.msk [vmem:[%s298 + $0x64] sm:$0xf] %vm3711, %v3682
      %3738 = vst.msk [vmem:[%s298 + $0x68] sm:$0xf] %vm3711, %v3683
      %3739 = vst.msk [vmem:[%s298 + $0x6c] sm:$0xf] %vm3711, %v3684
      %3740 = vst.msk [vmem:[%s298 + $0x70] sm:$0xf] %vm3711, %v3685
      %3741 = vst.msk [vmem:[%s298 + $0x74] sm:$0xf] %vm3711, %v3686
      %3742 = vst.msk [vmem:[%s298 + $0x78] sm:$0xf] %vm3711, %v3687
      %3743 = vst.msk [vmem:[%s298 + $0x7c] sm:$0xf] %vm3711, %v3688
      %3744 = vst.msk [vmem:[%s298 + $0x80] sm:$0xf] %vm3711, %v3689
      %3745 = vst.msk [vmem:[%s298 + $0x84] sm:$0xf] %vm3711, %v3690
      %3746 = vst.msk [vmem:[%s298 + $0x88] sm:$0xf] %vm3711, %v3691
      %3747 = vst.msk [vmem:[%s298 + $0x8c] sm:$0xf] %vm3711, %v3692
      %3748 = vst.msk [vmem:[%s298 + $0x90] sm:$0xf] %vm3711, %v3693
      %3749 = vst.msk [vmem:[%s298 + $0x94] sm:$0xf] %vm3711, %v3694
      %3750 = vst.msk [vmem:[%s298 + $0x98] sm:$0xf] %vm3711, %v3695
      %3751 = vst.msk [vmem:[%s298 + $0x9c] sm:$0xf] %vm3711, %v3696
      %3752 = vst.msk [vmem:[%s298 + $0xa0] sm:$0xf] %vm3711, %v3697
      %3753 = vst.msk [vmem:[%s298 + $0xa4] sm:$0xf] %vm3711, %v3698
      %3754 = vst.msk [vmem:[%s298 + $0xa8] sm:$0xf] %vm3711, %v3699
      %3755 = vst.msk [vmem:[%s298 + $0xac] sm:$0xf] %vm3711, %v3700
      %3756 = vst.msk [vmem:[%s298 + $0xb0] sm:$0xf] %vm3711, %v3701
      %3757 = vst.msk [vmem:[%s298 + $0xb4] sm:$0xf] %vm3711, %v3702
      %3758 = vst.msk [vmem:[%s298 + $0xb8] sm:$0xf] %vm3711, %v3703
      %3759 = vst.msk [vmem:[%s298 + $0xbc] sm:$0xf] %vm3711, %v3704
      %3760 = vst.msk [vmem:[%s298 + $0xc0] sm:$0xf] %vm3711, %v3705
      %3761 = vst.msk [vmem:[%s298 + $0xc4] sm:$0xf] %vm3711, %v3706
      %3762 = vst.msk [vmem:[%s298 + $0xc8] sm:$0xf] %vm3711, %v3707
      %3763 = vst.msk [vmem:[%s298 + $0xcc] sm:$0xf] %vm3711, %v3708
      %3764 = vst.msk [vmem:[%s298 + $0xd0] sm:$0xf] %vm3711, %v3709
      %3765 = vst.msk [vmem:[%s298 + $0xd4] sm:$0xf] %vm3711, %v3710
      %s3766 = smul.u32 54, %s16
      %p3767 = scmp.lt.s32.totalorder %s3766, 107
      %s3768 = scalar_select %p3767, %s3766, 107
      %s3769 = smul.addr %s3768, 4
      %s3770 = scalar_lea.vmem %s5, %s3769
      // Predicated region
      $region41: #{residual_block_forward.2} parent=39 // pred_check
        %p3771 = pneg %p162
      $region42: #{residual_block_forward.2} parent=39 // pred_check_branch
        %3773 = sbr.rel (%p3771) target = $region44
      $region43: #{residual_block_forward.2} parent=39 // pred_region
        %s3774 = smul.u32 54, %s16
      $region44: #{residual_block_forward.2} parent=39 // pred_fallthru
        _
    $region40: #{residual_block_forward.2} parent=5 // pred_fallthru
      _
    %p3775 = scmp.le.s32.totalorder 2, %s11
    // Predicated region
    $region45: #{residual_block_forward.2} parent=5 // pred_check
      %p3776 = pneg %p3775
    $region46: #{residual_block_forward.2} parent=5 // pred_check_branch
      %3778 = sbr.rel (%p3776) target = $region48
    $region47: #{residual_block_forward.2} parent=5 // pred_region
      %s3779 = ssub.s32 %s11, 2
      // Predicated region
      $region49: #{residual_block_forward.2} parent=47 // pred_check
        %p3780 = pneg %p168
      $region50: #{residual_block_forward.2} parent=47 // pred_check_branch
        %3782 = sbr.rel (%p3780) target = $region52
      $region51: #{residual_block_forward.2} parent=47 // pred_region
        %s3783 = smul.u32 54, %s17
        %p3784 = scmp.lt.s32.totalorder %s3783, 107
        %s3785 = scalar_select %p3784, %s3783, 107
        %s3786 = smul.addr %s3785, 4
        %s3787 = scalar_lea.vmem %s5, %s3786
      $region52: #{residual_block_forward.2} parent=47 // pred_fallthru
        _
    $region48: #{residual_block_forward.2} parent=5 // pred_fallthru
      _
  $region6: #{residual_block_forward.2} parent=0 // loop_footer
    %s15 = sadd.s32 1, %s11
  $region7: #{residual_block_forward.2} parent=0 // loop_footer_branch
    %10 = sbr.rel target = $region3
  $region8: #{residual_block_forward.2} parent=0 // loop_exit
    _

// kernel: residual_block_forward.3
$region0: #{residual_block_forward.3}
  #allocation0 [shape = 'u32[]', space=smem, size = 0x4, offset = 0x4, fixed_abs, tag = 'smem constant byte address 0x4 - core index']
  #allocation1 [shape = 'u32[72,128]{1,0:T(1,128)}', space=vmem, size = 0x9000, scoped, tag = 'internal scratch']
  #allocation2 [shape = 'f32[480,8]{1,0:T(8,128)}', space=vmem, size = 0x3c000, scoped, tag = 'scratch operand']
  %s0 = inlined_call_operand.vmem [shape: bf16[864,8], index: 0, kind: input, shape index: {}, may-alias: {0,1}]
  %s1 = inlined_call_operand.vmem [shape: bf16[864,8], index: 1, kind: input, shape index: {}, may-alias: {0,1}]
  %s2 = inlined_call_operand.vmem [shape: bf16[864,4], index: 2, kind: input, shape index: {}]
  %s3 = inlined_call_operand.vmem [shape: bf16[76,8], index: 3, kind: input, shape index: {}]
  %s4 = inlined_call_operand.vmem [shape: f32[1,8], index: 4, kind: input, shape index: {}]
  %s5 = inlined_call_operand.vmem [shape: f32[864,8], index: 5, kind: output, shape index: {}]
  %s6 = sld [smem:[#allocation0]]
  $region53: #{residual_block_forward.3} parent=0
    _
  %s8 = ssub.s32 1, %s6
  %s9 = scalar_select 0, %s8, %s6
  loop: start=0, step=1, limit=4
  $region2: #{residual_block_forward.3} parent=0 // loop_pre_header
    _
  $region3: #{residual_block_forward.3} parent=0 // loop_header
    %s11 = sphi 0, %s15
    %p12 = scmp.ge.s32.totalorder %s11, 4
    %s21 = sphi 0, %s23
    %s24 = sphi 0, %s21
    %s25 = sphi 0, %s24
    %s41 = sphi 0, %s25
    %s55 = sphi 0, %s57
    %s58 = sphi 0, %s55
    %s59 = sphi 0, %s58
    %s75 = sphi 0, %s59
    %s81 = sphi 0, %s83
    %s84 = sphi 0, %s81
    %s85 = sphi 0, %s84
    %s101 = sphi 0, %s85
    %s105 = sphi 0, %s105
    %s107 = sphi 0, %s105
    %s108 = sphi 0, %s107
    %s122 = sphi 0, %s108
    %s126 = sphi 0, %s126
    %s128 = sphi 0, %s126
    %s129 = sphi 0, %s128
    %s143 = sphi 0, %s129
    %s149 = sphi 0, %s151
    %s152 = sphi 0, %s149
    %s153 = sphi 0, %s152
    %s169 = sphi 0, %s153
  $region4: #{residual_block_forward.3} parent=0 // loop_header_branch
    %14 = sbr.rel (%p12) target = $region8
  $region5: #{residual_block_forward.3} parent=0 // loop_body
    %s16 = ssub.s32 %s11, 1
    %s17 = ssub.s32 %s11, 2
    %s18 = sadd.s32 %s11, 1
    %s19 = ssub.s32 %s11, %s18
    %p20 = scmp.eq.s32.totalorder %s19, 0
    %s22 = sadd.s32 %s21, 1
    %s23 = scalar_select %p20, %s21, %s22
    %p26 = pneg %p20
    %p27 = scmp.eq.s32.totalorder %s11, 1
    %p28 = por %p26, %p27
    %p29 = scmp.ne.s32.totalorder %s21, %s24
    %p30 = scmp.eq.s32.totalorder %s11, 0
    %p31 = por %p29, %p30
    %p32 = scmp.ne.s32.totalorder %s21, %s24
    %p33 = scmp.eq.s32.totalorder %s16, 1
    %p34 = por %p32, %p33
    %p35 = scmp.ne.s32.totalorder %s24, %s25
    %p36 = scmp.eq.s32.totalorder %s16, 0
    %p37 = por %p35, %p36
    %p38 = scmp.ne.s32.totalorder %s24, %s25
    %p39 = scmp.eq.s32.totalorder %s17, 1
    %p40 = por %p38, %p39
    %p42 = scmp.ne.s32.totalorder %s25, %s41
    %p43 = scmp.eq.s32.totalorder %s17, 0
    %p44 = por %p42, %p43
    %s45 = sadd.s32 %s11, 1
    %s46 = smul.u32 %s45, 9
    %p47 = scmp.lt.s32.totalorder %s46, 17
    %s48 = scalar_select %p47, %s46, 17
    %s49 = sadd.s32 %s18, 1
    %s50 = smul.u32 %s49, 9
    %p51 = scmp.lt.s32.totalorder %s50, 17
    %s52 = scalar_select %p51, %s50, 17
    %s53 = ssub.s32 %s48, %s52
    %p54 = scmp.eq.s32.totalorder %s53, 0
    %s56 = sadd.s32 %s55, 1
    %s57 = scalar_select %p54, %s55, %s56
    %p60 = pneg %p54
    %p61 = scmp.eq.s32.totalorder %s11, 1
    %p62 = por %p60, %p61
    %p63 = scmp.ne.s32.totalorder %s55, %s58
    %p64 = scmp.eq.s32.totalorder %s11, 0
    %p65 = por %p63, %p64
    %p66 = scmp.ne.s32.totalorder %s55, %s58
    %p67 = scmp.eq.s32.totalorder %s16, 1
    %p68 = por %p66, %p67
    %p69 = scmp.ne.s32.totalorder %s58, %s59
    %p70 = scmp.eq.s32.totalorder %s16, 0
    %p71 = por %p69, %p70
    %p72 = scmp.ne.s32.totalorder %s58, %s59
    %p73 = scmp.eq.s32.totalorder %s17, 1
    %p74 = por %p72, %p73
    %p76 = scmp.ne.s32.totalorder %s59, %s75
    %p77 = scmp.eq.s32.totalorder %s17, 0
    %p78 = por %p76, %p77
    %s79 = ssub.s32 %s11, %s18
    %p80 = scmp.eq.s32.totalorder %s79, 0
    %s82 = sadd.s32 %s81, 1
    %s83 = scalar_select %p80, %s81, %s82
    %p86 = pneg %p80
    %p87 = scmp.eq.s32.totalorder %s11, 1
    %p88 = por %p86, %p87
    %p89 = scmp.ne.s32.totalorder %s81, %s84
    %p90 = scmp.eq.s32.totalorder %s11, 0
    %p91 = por %p89, %p90
    %p92 = scmp.ne.s32.totalorder %s81, %s84
    %p93 = scmp.eq.s32.totalorder %s16, 1
    %p94 = por %p92, %p93
    %p95 = scmp.ne.s32.totalorder %s84, %s85
    %p96 = scmp.eq.s32.totalorder %s16, 0
    %p97 = por %p95, %p96
    %p98 = scmp.ne.s32.totalorder %s84, %s85
    %p99 = scmp.eq.s32.totalorder %s17, 1
    %p100 = por %p98, %p99
    %p102 = scmp.ne.s32.totalorder %s85, %s101
    %p103 = scmp.eq.s32.totalorder %s17, 0
    %p104 = por %p102, %p103
    %s106 = sadd.s32 %s105, 1
    %p109 = scmp.eq.s32.totalorder %s11, 1
    %p110 = scmp.ne.s32.totalorder %s105, %s107
    %p111 = scmp.eq.s32.totalorder %s11, 0
    %p112 = por %p110, %p111
    %p113 = scmp.ne.s32.totalorder %s105, %s107
    %p114 = scmp.eq.s32.totalorder %s16, 1
    %p115 = por %p113, %p114
    %p116 = scmp.ne.s32.totalorder %s107, %s108
    %p117 = scmp.eq.s32.totalorder %s16, 0
    %p118 = por %p116, %p117
    %p119 = scmp.ne.s32.totalorder %s107, %s108
    %p120 = scmp.eq.s32.totalorder %s17, 1
    %p121 = por %p119, %p120
    %p123 = scmp.ne.s32.totalorder %s108, %s122
    %p124 = scmp.eq.s32.totalorder %s17, 0
    %p125 = por %p123, %p124
    %s127 = sadd.s32 %s126, 1
    %p130 = scmp.eq.s32.totalorder %s11, 1
    %p131 = scmp.ne.s32.totalorder %s126, %s128
    %p132 = scmp.eq.s32.totalorder %s11, 0
    %p133 = por %p131, %p132
    %p134 = scmp.ne.s32.totalorder %s126, %s128
    %p135 = scmp.eq.s32.totalorder %s16, 1
    %p136 = por %p134, %p135
    %p137 = scmp.ne.s32.totalorder %s128, %s129
    %p138 = scmp.eq.s32.totalorder %s16, 0
    %p139 = por %p137, %p138
    %p140 = scmp.ne.s32.totalorder %s128, %s129
    %p141 = scmp.eq.s32.totalorder %s17, 1
    %p142 = por %p140, %p141
    %p144 = scmp.ne.s32.totalorder %s129, %s143
    %p145 = scmp.eq.s32.totalorder %s17, 0
    %p146 = por %p144, %p145
    %s147 = ssub.s32 %s11, %s18
    %p148 = scmp.eq.s32.totalorder %s147, 0
    %s150 = sadd.s32 %s149, 1
    %s151 = scalar_select %p148, %s149, %s150
    %p154 = pneg %p148
    %p155 = scmp.eq.s32.totalorder %s11, 1
    %p156 = por %p154, %p155
    %p157 = scmp.ne.s32.totalorder %s149, %s152
    %p158 = scmp.eq.s32.totalorder %s11, 0
    %p159 = por %p157, %p158
    %p160 = scmp.ne.s32.totalorder %s149, %s152
    %p161 = scmp.eq.s32.totalorder %s16, 1
    %p162 = por %p160, %p161
    %p163 = scmp.ne.s32.totalorder %s152, %s153
    %p164 = scmp.eq.s32.totalorder %s16, 0
    %p165 = por %p163, %p164
    %p166 = scmp.ne.s32.totalorder %s152, %s153
    %p167 = scmp.eq.s32.totalorder %s17, 1
    %p168 = por %p166, %p167
    %p170 = scmp.ne.s32.totalorder %s153, %s169
    %p171 = scmp.eq.s32.totalorder %s17, 0
    %p172 = por %p170, %p171
    %p173 = scmp.le.s32.totalorder 1, %s11
    %p174 = scmp.lt.s32.totalorder %s11, 3
    %p175 = pnand %p173, %p174
    %p176 = pneg %p175
    // Predicated region
    $region9: #{residual_block_forward.3} parent=5 // pred_check
      _
    $region10: #{residual_block_forward.3} parent=5 // pred_check_branch
      %178 = sbr.rel (%p175) target = $region12
    $region11: #{residual_block_forward.3} parent=5 // pred_region
      %s179 = ssub.s32 %s11, 1
      // Predicated region
      $region13: #{residual_block_forward.3} parent=11 // pred_check
        %p180 = pneg %p118
      $region14: #{residual_block_forward.3} parent=11 // pred_check_branch
        %182 = sbr.rel (%p180) target = $region16
      $region15: #{residual_block_forward.3} parent=11 // pred_region
        _
      $region16: #{residual_block_forward.3} parent=11 // pred_fallthru
        _
      // Predicated region
      $region17: #{residual_block_forward.3} parent=11 // pred_check
        %p183 = pneg %p139
      $region18: #{residual_block_forward.3} parent=11 // pred_check_branch
        %185 = sbr.rel (%p183) target = $region20
      $region19: #{residual_block_forward.3} parent=11 // pred_region
        _
      $region20: #{residual_block_forward.3} parent=11 // pred_fallthru
        _
    $region12: #{residual_block_forward.3} parent=5 // pred_fallthru
      _
    %p186 = scmp.lt.s32.totalorder %s11, 2
    // Predicated region
    $region21: #{residual_block_forward.3} parent=5 // pred_check
      %p187 = pneg %p186
    $region22: #{residual_block_forward.3} parent=5 // pred_check_branch
      %189 = sbr.rel (%p187) target = $region24
    $region23: #{residual_block_forward.3} parent=5 // pred_region
      // Predicated region
      $region25: #{residual_block_forward.3} parent=23 // pred_check
        %p190 = pneg %p31
      $region26: #{residual_block_forward.3} parent=23 // pred_check_branch
        %192 = sbr.rel (%p190) target = $region28
      $region27: #{residual_block_forward.3} parent=23 // pred_region
        %s193 = smul.u32 54, %s11
        %p194 = scmp.lt.s32.totalorder %s193, 107
        %s195 = scalar_select %p194, %s193, 107
        %s196 = smul.addr %s195, 4
        %s197 = scalar_lea.vmem %s0, %s196
        %s198 = smul.u32 54, %s11
      $region28: #{residual_block_forward.3} parent=23 // pred_fallthru
        _
      // Predicated region
      $region29: #{residual_block_forward.3} parent=23 // pred_check
        %p199 = pneg %p65
      $region30: #{residual_block_forward.3} parent=23 // pred_check_branch
        %201 = sbr.rel (%p199) target = $region32
      $region31: #{residual_block_forward.3} parent=23 // pred_region
        %s202 = sadd.s32 %s11, 1
        %s203 = smul.u32 %s202, 9
        %p204 = scmp.lt.s32.totalorder %s203, 17
        %s205 = scalar_select %p204, %s203, 17
        %s206 = smul.u32 6, %s205
        %p207 = scmp.lt.s32.totalorder %s206, 107
        %s208 = scalar_select %p207, %s206, 107
        %s209 = smul.addr %s208, 4
        %s210 = scalar_lea.vmem %s1, %s209
        %s211 = sadd.s32 %s11, 1
        %s212 = smul.u32 %s211, 9
        %p213 = scmp.lt.s32.totalorder %s212, 17
        %s214 = scalar_select %p213, %s212, 17
        %s215 = smul.u32 6, %s214
      $region32: #{residual_block_forward.3} parent=23 // pred_fallthru
        _
      // Predicated region
      $region33: #{residual_block_forward.3} parent=23 // pred_check
        %p216 = pneg %p91
      $region34: #{residual_block_forward.3} parent=23 // pred_check_branch
        %218 = sbr.rel (%p216) target = $region36
      $region35: #{residual_block_forward.3} parent=23 // pred_region
        %s219 = smul.u32 54, %s11
        %p220 = scmp.lt.s32.totalorder %s219, 107
        %s221 = scalar_select %p220, %s219, 107
        %s222 = smul.addr %s221, 4
        %s223 = scalar_lea.vmem %s2, %s222
        %s224 = smul.u32 54, %s11
      $region36: #{residual_block_forward.3} parent=23 // pred_fallthru
        _
    $region24: #{residual_block_forward.3} parent=5 // pred_fallthru
      _
    %p225 = scmp.le.s32.totalorder 1, %s11
    %p226 = scmp.lt.s32.totalorder %s11, 3
    %p227 = pnand %p225, %p226
    %p228 = pneg %p227
    // Predicated region
    $region37: #{residual_block_forward.3} parent=5 // pred_check
      _
    $region38: #{residual_block_forward.3} parent=5 // pred_check_branch
      %230 = sbr.rel (%p227) target = $region40
    $region39: #{residual_block_forward.3} parent=5 // pred_region
      %s231 = ssub.s32 %s11, 1
      %s232 = smul.u32 54, %s16
      %p233 = scmp.lt.s32.totalorder %s232, 107
      %s234 = scalar_select %p233, %s232, 107
      %s235 = smul.addr %s234, 4
      %s236 = scalar_lea.vmem %s0, %s235
      %p237 = pneg %p37
      %p238 = pneg %p34
      %s239 = sadd.s32 %s16, 1
      %s240 = smul.u32 %s239, 9
      %p241 = scmp.lt.s32.totalorder %s240, 17
      %s242 = scalar_select %p241, %s240, 17
      %s243 = smul.u32 6, %s242
      %p244 = scmp.lt.s32.totalorder %s243, 107
      %s245 = scalar_select %p244, %s243, 107
      %s246 = smul.addr %s245, 4
      %s247 = scalar_lea.vmem %s1, %s246
      %p248 = pneg %p71
      %p249 = pneg %p68
      %s250 = smul.u32 54, %s16
      %p251 = scmp.lt.s32.totalorder %s250, 107
      %s252 = scalar_select %p251, %s250, 107
      %s253 = smul.addr %s252, 4
      %s254 = scalar_lea.vmem %s2, %s253
      %p255 = pneg %p97
      %p256 = pneg %p94
      %p257 = pneg %p118
      %p258 = pneg %p115
      %p259 = pneg %p139
      %p260 = pneg %p136
      %p261 = pneg %p165
      %p262 = pneg %p162
      %s263 = smul.u32 54, %s16
      %p264 = scmp.lt.s32.totalorder %s263, 107
      %s265 = scalar_select %p264, %s263, 107
      %s266 = smul.addr %s265, 8
      %s267 = scalar_lea.vmem %s5, %s266
      %s268 = smul.u32 54, %s16
      %p269 = scmp.lt.s32.totalorder %s268, 107
      %s270 = scalar_select %p269, %s268, 107
      %s271 = smul.addr %s270, 4
      %s272 = scalar_lea.vmem %s0, %s271
      %s273 = smul.u32 54, %s16
      %s274 = sadd.s32 %s16, 1
      %s275 = smul.u32 %s274, 9
      %p276 = scmp.lt.s32.totalorder %s275, 17
      %s277 = scalar_select %p276, %s275, 17
      %s278 = smul.u32 6, %s277
      %p279 = scmp.lt.s32.totalorder %s278, 107
      %s280 = scalar_select %p279, %s278, 107
      %s281 = smul.addr %s280, 4
      %s282 = scalar_lea.vmem %s1, %s281
      %s283 = sadd.s32 %s16, 1
      %s284 = smul.u32 %s283, 9
      %p285 = scmp.lt.s32.totalorder %s284, 17
      %s286 = scalar_select %p285, %s284, 17
      %s287 = smul.u32 6, %s286
      %s288 = smul.u32 54, %s16
      %p289 = scmp.lt.s32.totalorder %s288, 107
      %s290 = scalar_select %p289, %s288, 107
      %s291 = smul.addr %s290, 4
      %s292 = scalar_lea.vmem %s2, %s291
      %s293 = smul.u32 54, %s16
      %s294 = smul.u32 54, %s16
      %p295 = scmp.lt.s32.totalorder %s294, 107
      %s296 = scalar_select %p295, %s294, 107
      %s297 = smul.addr %s296, 8
      %s298 = scalar_lea.vmem %s5, %s297
      %s299 = smul.u32 54, %s16
      %v301 = vld [vmem:[%s292] sm:$0xf]
      %v302 = vld [vmem:[%s292 + $0x4] sm:$0xf]
      %v303 = vld [vmem:[%s292 + $0x8] sm:$0xf]
      %v304 = vld [vmem:[%s292 + $0xc] sm:$0xf]
      %v305 = vld [vmem:[%s292 + $0x10] sm:$0xf]
      %v306 = vld [vmem:[%s292 + $0x14] sm:$0xf]
      %v307 = vld [vmem:[%s292 + $0x18] sm:$0xf]
      %v308 = vld [vmem:[%s292 + $0x1c] sm:$0xf]
      %v309 = vld [vmem:[%s292 + $0x20] sm:$0xf]
      %v310 = vld [vmem:[%s292 + $0x24] sm:$0xf]
      %v311 = vld [vmem:[%s292 + $0x28] sm:$0xf]
      %v312 = vld [vmem:[%s292 + $0x2c] sm:$0xf]
      %v313 = vld [vmem:[%s292 + $0x30] sm:$0xf]
      %v314 = vld [vmem:[%s292 + $0x34] sm:$0xf]
      %v315 = vld [vmem:[%s292 + $0x38] sm:$0xf]
      %v316 = vld [vmem:[%s292 + $0x3c] sm:$0xf]
      %v317 = vld [vmem:[%s292 + $0x40] sm:$0xf]
      %v318 = vld [vmem:[%s292 + $0x44] sm:$0xf]
      %v319 = vld [vmem:[%s292 + $0x48] sm:$0xf]
      %v320 = vld [vmem:[%s292 + $0x4c] sm:$0xf]
      %v321 = vld [vmem:[%s292 + $0x50] sm:$0xf]
      %v322 = vld [vmem:[%s292 + $0x54] sm:$0xf]
      %v323 = vld [vmem:[%s292 + $0x58] sm:$0xf]
      %v324 = vld [vmem:[%s292 + $0x5c] sm:$0xf]
      %v325 = vld [vmem:[%s292 + $0x60] sm:$0xf]
      %v326 = vld [vmem:[%s292 + $0x64] sm:$0xf]
      %v327 = vld [vmem:[%s292 + $0x68] sm:$0xf]
      %v328 = vld [vmem:[%s292 + $0x6c] sm:$0xf]
      %v329 = vld [vmem:[%s292 + $0x70] sm:$0xf]
      %v330 = vld [vmem:[%s292 + $0x74] sm:$0xf]
      %v331 = vld [vmem:[%s292 + $0x78] sm:$0xf]
      %v332 = vld [vmem:[%s292 + $0x7c] sm:$0xf]
      %v333 = vld [vmem:[%s292 + $0x80] sm:$0xf]
      %v334 = vld [vmem:[%s292 + $0x84] sm:$0xf]
      %v335 = vld [vmem:[%s292 + $0x88] sm:$0xf]
      %v336 = vld [vmem:[%s292 + $0x8c] sm:$0xf]
      %v337 = vld [vmem:[%s292 + $0x90] sm:$0xf]
      %v338 = vld [vmem:[%s292 + $0x94] sm:$0xf]
      %v339 = vld [vmem:[%s292 + $0x98] sm:$0xf]
      %v340 = vld [vmem:[%s292 + $0x9c] sm:$0xf]
      %v341 = vld [vmem:[%s292 + $0xa0] sm:$0xf]
      %v342 = vld [vmem:[%s292 + $0xa4] sm:$0xf]
      %v343 = vld [vmem:[%s292 + $0xa8] sm:$0xf]
      %v344 = vld [vmem:[%s292 + $0xac] sm:$0xf]
      %v345 = vld [vmem:[%s292 + $0xb0] sm:$0xf]
      %v346 = vld [vmem:[%s292 + $0xb4] sm:$0xf]
      %v347 = vld [vmem:[%s292 + $0xb8] sm:$0xf]
      %v348 = vld [vmem:[%s292 + $0xbc] sm:$0xf]
      %v349 = vld [vmem:[%s292 + $0xc0] sm:$0xf]
      %v350 = vld [vmem:[%s292 + $0xc4] sm:$0xf]
      %v351 = vld [vmem:[%s292 + $0xc8] sm:$0xf]
      %v352 = vld [vmem:[%s292 + $0xcc] sm:$0xf]
      %v353 = vld [vmem:[%s292 + $0xd0] sm:$0xf]
      %v354 = vld [vmem:[%s292 + $0xd4] sm:$0xf]
      %v355 = vunpack.c.l.bf16 %v301
      %v356 = vunpack.c.l.bf16 %v302
      %v357 = vunpack.c.l.bf16 %v303
      %v358 = vunpack.c.l.bf16 %v304
      %v359 = vunpack.c.l.bf16 %v305
      %v360 = vunpack.c.l.bf16 %v306
      %v361 = vunpack.c.l.bf16 %v307
      %v362 = vunpack.c.l.bf16 %v308
      %v363 = vunpack.c.l.bf16 %v309
      %v364 = vunpack.c.l.bf16 %v310
      %v365 = vunpack.c.l.bf16 %v311
      %v366 = vunpack.c.l.bf16 %v312
      %v367 = vunpack.c.l.bf16 %v313
      %v368 = vunpack.c.l.bf16 %v314
      %v369 = vunpack.c.l.bf16 %v315
      %v370 = vunpack.c.l.bf16 %v316
      %v371 = vunpack.c.l.bf16 %v317
      %v372 = vunpack.c.l.bf16 %v318
      %v373 = vunpack.c.l.bf16 %v319
      %v374 = vunpack.c.l.bf16 %v320
      %v375 = vunpack.c.l.bf16 %v321
      %v376 = vunpack.c.l.bf16 %v322
      %v377 = vunpack.c.l.bf16 %v323
      %v378 = vunpack.c.l.bf16 %v324
      %v379 = vunpack.c.l.bf16 %v325
      %v380 = vunpack.c.l.bf16 %v326
      %v381 = vunpack.c.l.bf16 %v327
      %v382 = vunpack.c.l.bf16 %v328
      %v383 = vunpack.c.l.bf16 %v329
      %v384 = vunpack.c.l.bf16 %v330
      %v385 = vunpack.c.l.bf16 %v331
      %v386 = vunpack.c.l.bf16 %v332
      %v387 = vunpack.c.l.bf16 %v333
      %v388 = vunpack.c.l.bf16 %v334
      %v389 = vunpack.c.l.bf16 %v335
      %v390 = vunpack.c.l.bf16 %v336
      %v391 = vunpack.c.l.bf16 %v337
      %v392 = vunpack.c.l.bf16 %v338
      %v393 = vunpack.c.l.bf16 %v339
      %v394 = vunpack.c.l.bf16 %v340
      %v395 = vunpack.c.l.bf16 %v341
      %v396 = vunpack.c.l.bf16 %v342
      %v397 = vunpack.c.l.bf16 %v343
      %v398 = vunpack.c.l.bf16 %v344
      %v399 = vunpack.c.l.bf16 %v345
      %v400 = vunpack.c.l.bf16 %v346
      %v401 = vunpack.c.l.bf16 %v347
      %v402 = vunpack.c.l.bf16 %v348
      %v403 = vunpack.c.l.bf16 %v349
      %v404 = vunpack.c.l.bf16 %v350
      %v405 = vunpack.c.l.bf16 %v351
      %v406 = vunpack.c.l.bf16 %v352
      %v407 = vunpack.c.l.bf16 %v353
      %v408 = vunpack.c.l.bf16 %v354
      %v409 = vld [vmem:[%s272] sm:$0xf]
      %v410 = vld [vmem:[%s272 + $0x4] sm:$0xf]
      %v411 = vld [vmem:[%s272 + $0x8] sm:$0xf]
      %v412 = vld [vmem:[%s272 + $0xc] sm:$0xf]
      %v413 = vld [vmem:[%s272 + $0x10] sm:$0xf]
      %v414 = vld [vmem:[%s272 + $0x14] sm:$0xf]
      %v415 = vld [vmem:[%s272 + $0x18] sm:$0xf]
      %v416 = vld [vmem:[%s272 + $0x1c] sm:$0xf]
      %v417 = vld [vmem:[%s272 + $0x20] sm:$0xf]
      %v418 = vld [vmem:[%s272 + $0x24] sm:$0xf]
      %v419 = vld [vmem:[%s272 + $0x28] sm:$0xf]
      %v420 = vld [vmem:[%s272 + $0x2c] sm:$0xf]
      %v421 = vld [vmem:[%s272 + $0x30] sm:$0xf]
      %v422 = vld [vmem:[%s272 + $0x34] sm:$0xf]
      %v423 = vld [vmem:[%s272 + $0x38] sm:$0xf]
      %v424 = vld [vmem:[%s272 + $0x3c] sm:$0xf]
      %v425 = vld [vmem:[%s272 + $0x40] sm:$0xf]
      %v426 = vld [vmem:[%s272 + $0x44] sm:$0xf]
      %v427 = vld [vmem:[%s272 + $0x48] sm:$0xf]
      %v428 = vld [vmem:[%s272 + $0x4c] sm:$0xf]
      %v429 = vld [vmem:[%s272 + $0x50] sm:$0xf]
      %v430 = vld [vmem:[%s272 + $0x54] sm:$0xf]
      %v431 = vld [vmem:[%s272 + $0x58] sm:$0xf]
      %v432 = vld [vmem:[%s272 + $0x5c] sm:$0xf]
      %v433 = vld [vmem:[%s272 + $0x60] sm:$0xf]
      %v434 = vld [vmem:[%s272 + $0x64] sm:$0xf]
      %v435 = vld [vmem:[%s272 + $0x68] sm:$0xf]
      %v436 = vld [vmem:[%s272 + $0x6c] sm:$0xf]
      %v437 = vld [vmem:[%s272 + $0x70] sm:$0xf]
      %v438 = vld [vmem:[%s272 + $0x74] sm:$0xf]
      %v439 = vld [vmem:[%s272 + $0x78] sm:$0xf]
      %v440 = vld [vmem:[%s272 + $0x7c] sm:$0xf]
      %v441 = vld [vmem:[%s272 + $0x80] sm:$0xf]
      %v442 = vld [vmem:[%s272 + $0x84] sm:$0xf]
      %v443 = vld [vmem:[%s272 + $0x88] sm:$0xf]
      %v444 = vld [vmem:[%s272 + $0x8c] sm:$0xf]
      %v445 = vld [vmem:[%s272 + $0x90] sm:$0xf]
      %v446 = vld [vmem:[%s272 + $0x94] sm:$0xf]
      %v447 = vld [vmem:[%s272 + $0x98] sm:$0xf]
      %v448 = vld [vmem:[%s272 + $0x9c] sm:$0xf]
      %v449 = vld [vmem:[%s272 + $0xa0] sm:$0xf]
      %v450 = vld [vmem:[%s272 + $0xa4] sm:$0xf]
      %v451 = vld [vmem:[%s272 + $0xa8] sm:$0xf]
      %v452 = vld [vmem:[%s272 + $0xac] sm:$0xf]
      %v453 = vld [vmem:[%s272 + $0xb0] sm:$0xf]
      %v454 = vld [vmem:[%s272 + $0xb4] sm:$0xf]
      %v455 = vld [vmem:[%s272 + $0xb8] sm:$0xf]
      %v456 = vld [vmem:[%s272 + $0xbc] sm:$0xf]
      %v457 = vld [vmem:[%s272 + $0xc0] sm:$0xf]
      %v458 = vld [vmem:[%s272 + $0xc4] sm:$0xf]
      %v459 = vld [vmem:[%s272 + $0xc8] sm:$0xf]
      %v460 = vld [vmem:[%s272 + $0xcc] sm:$0xf]
      %v461 = vld [vmem:[%s272 + $0xd0] sm:$0xf]
      %v462 = vld [vmem:[%s272 + $0xd4] sm:$0xf]
      %v463 = vunpack.c.l.bf16 %v409
      %v464 = vunpack.c.l.bf16 %v410
      %v465 = vunpack.c.l.bf16 %v411
      %v466 = vunpack.c.l.bf16 %v412
      %v467 = vunpack.c.l.bf16 %v413
      %v468 = vunpack.c.l.bf16 %v414
      %v469 = vunpack.c.l.bf16 %v415
      %v470 = vunpack.c.l.bf16 %v416
      %v471 = vunpack.c.l.bf16 %v417
      %v472 = vunpack.c.l.bf16 %v418
      %v473 = vunpack.c.l.bf16 %v419
      %v474 = vunpack.c.l.bf16 %v420
      %v475 = vunpack.c.l.bf16 %v421
      %v476 = vunpack.c.l.bf16 %v422
      %v477 = vunpack.c.l.bf16 %v423
      %v478 = vunpack.c.l.bf16 %v424
      %v479 = vunpack.c.l.bf16 %v425
      %v480 = vunpack.c.l.bf16 %v426
      %v481 = vunpack.c.l.bf16 %v427
      %v482 = vunpack.c.l.bf16 %v428
      %v483 = vunpack.c.l.bf16 %v429
      %v484 = vunpack.c.l.bf16 %v430
      %v485 = vunpack.c.l.bf16 %v431
      %v486 = vunpack.c.l.bf16 %v432
      %v487 = vunpack.c.l.bf16 %v433
      %v488 = vunpack.c.l.bf16 %v434
      %v489 = vunpack.c.l.bf16 %v435
      %v490 = vunpack.c.l.bf16 %v436
      %v491 = vunpack.c.l.bf16 %v437
      %v492 = vunpack.c.l.bf16 %v438
      %v493 = vunpack.c.l.bf16 %v439
      %v494 = vunpack.c.l.bf16 %v440
      %v495 = vunpack.c.l.bf16 %v441
      %v496 = vunpack.c.l.bf16 %v442
      %v497 = vunpack.c.l.bf16 %v443
      %v498 = vunpack.c.l.bf16 %v444
      %v499 = vunpack.c.l.bf16 %v445
      %v500 = vunpack.c.l.bf16 %v446
      %v501 = vunpack.c.l.bf16 %v447
      %v502 = vunpack.c.l.bf16 %v448
      %v503 = vunpack.c.l.bf16 %v449
      %v504 = vunpack.c.l.bf16 %v450
      %v505 = vunpack.c.l.bf16 %v451
      %v506 = vunpack.c.l.bf16 %v452
      %v507 = vunpack.c.l.bf16 %v453
      %v508 = vunpack.c.l.bf16 %v454
      %v509 = vunpack.c.l.bf16 %v455
      %v510 = vunpack.c.l.bf16 %v456
      %v511 = vunpack.c.l.bf16 %v457
      %v512 = vunpack.c.l.bf16 %v458
      %v513 = vunpack.c.l.bf16 %v459
      %v514 = vunpack.c.l.bf16 %v460
      %v515 = vunpack.c.l.bf16 %v461
      %v516 = vunpack.c.l.bf16 %v462
      %vm517 = vcmask 64512
      %518 = vst.msk [vmem:[#allocation2] sm:$0xff] %vm517, %v463
      %519 = vst.msk [vmem:[#allocation2 + $0x8] sm:$0xff] %vm517, %v464
      %520 = vst.msk [vmem:[#allocation2 + $0x10] sm:$0xff] %vm517, %v465
      %521 = vst.msk [vmem:[#allocation2 + $0x18] sm:$0xff] %vm517, %v466
      %522 = vst.msk [vmem:[#allocation2 + $0x20] sm:$0xff] %vm517, %v467
      %523 = vst.msk [vmem:[#allocation2 + $0x28] sm:$0xff] %vm517, %v468
      %524 = vst.msk [vmem:[#allocation2 + $0x30] sm:$0xff] %vm517, %v469
      %525 = vst.msk [vmem:[#allocation2 + $0x38] sm:$0xff] %vm517, %v470
      %526 = vst.msk [vmem:[#allocation2 + $0x40] sm:$0xff] %vm517, %v471
      %527 = vst.msk [vmem:[#allocation2 + $0x48] sm:$0xff] %vm517, %v472
      %528 = vst.msk [vmem:[#allocation2 + $0x50] sm:$0xff] %vm517, %v473
      %529 = vst.msk [vmem:[#allocation2 + $0x58] sm:$0xff] %vm517, %v474
      %530 = vst.msk [vmem:[#allocation2 + $0x60] sm:$0xff] %vm517, %v475
      %531 = vst.msk [vmem:[#allocation2 + $0x68] sm:$0xff] %vm517, %v476
      %532 = vst.msk [vmem:[#allocation2 + $0x70] sm:$0xff] %vm517, %v477
      %533 = vst.msk [vmem:[#allocation2 + $0x78] sm:$0xff] %vm517, %v478
      %534 = vst.msk [vmem:[#allocation2 + $0x80] sm:$0xff] %vm517, %v479
      %535 = vst.msk [vmem:[#allocation2 + $0x88] sm:$0xff] %vm517, %v480
      %536 = vst.msk [vmem:[#allocation2 + $0x90] sm:$0xff] %vm517, %v481
      %537 = vst.msk [vmem:[#allocation2 + $0x98] sm:$0xff] %vm517, %v482
      %538 = vst.msk [vmem:[#allocation2 + $0xa0] sm:$0xff] %vm517, %v483
      %539 = vst.msk [vmem:[#allocation2 + $0xa8] sm:$0xff] %vm517, %v484
      %540 = vst.msk [vmem:[#allocation2 + $0xb0] sm:$0xff] %vm517, %v485
      %541 = vst.msk [vmem:[#allocation2 + $0xb8] sm:$0xff] %vm517, %v486
      %542 = vst.msk [vmem:[#allocation2 + $0xc0] sm:$0xff] %vm517, %v487
      %543 = vst.msk [vmem:[#allocation2 + $0xc8] sm:$0xff] %vm517, %v488
      %544 = vst.msk [vmem:[#allocation2 + $0xd0] sm:$0xff] %vm517, %v489
      %545 = vst.msk [vmem:[#allocation2 + $0xd8] sm:$0xff] %vm517, %v490
      %546 = vst.msk [vmem:[#allocation2 + $0xe0] sm:$0xff] %vm517, %v491
      %547 = vst.msk [vmem:[#allocation2 + $0xe8] sm:$0xff] %vm517, %v492
      %548 = vst.msk [vmem:[#allocation2 + $0xf0] sm:$0xff] %vm517, %v493
      %549 = vst.msk [vmem:[#allocation2 + $0xf8] sm:$0xff] %vm517, %v494
      %550 = vst.msk [vmem:[#allocation2 + $0x100] sm:$0xff] %vm517, %v495
      %551 = vst.msk [vmem:[#allocation2 + $0x108] sm:$0xff] %vm517, %v496
      %552 = vst.msk [vmem:[#allocation2 + $0x110] sm:$0xff] %vm517, %v497
      %553 = vst.msk [vmem:[#allocation2 + $0x118] sm:$0xff] %vm517, %v498
      %554 = vst.msk [vmem:[#allocation2 + $0x120] sm:$0xff] %vm517, %v499
      %555 = vst.msk [vmem:[#allocation2 + $0x128] sm:$0xff] %vm517, %v500
      %556 = vst.msk [vmem:[#allocation2 + $0x130] sm:$0xff] %vm517, %v501
      %557 = vst.msk [vmem:[#allocation2 + $0x138] sm:$0xff] %vm517, %v502
      %558 = vst.msk [vmem:[#allocation2 + $0x140] sm:$0xff] %vm517, %v503
      %559 = vst.msk [vmem:[#allocation2 + $0x148] sm:$0xff] %vm517, %v504
      %560 = vst.msk [vmem:[#allocation2 + $0x150] sm:$0xff] %vm517, %v505
      %561 = vst.msk [vmem:[#allocation2 + $0x158] sm:$0xff] %vm517, %v506
      %562 = vst.msk [vmem:[#allocation2 + $0x160] sm:$0xff] %vm517, %v507
      %563 = vst.msk [vmem:[#allocation2 + $0x168] sm:$0xff] %vm517, %v508
      %564 = vst.msk [vmem:[#allocation2 + $0x170] sm:$0xff] %vm517, %v509
      %565 = vst.msk [vmem:[#allocation2 + $0x178] sm:$0xff] %vm517, %v510
      %566 = vst.msk [vmem:[#allocation2 + $0x180] sm:$0xff] %vm517, %v511
      %567 = vst.msk [vmem:[#allocation2 + $0x188] sm:$0xff] %vm517, %v512
      %568 = vst.msk [vmem:[#allocation2 + $0x190] sm:$0xff] %vm517, %v513
      %569 = vst.msk [vmem:[#allocation2 + $0x198] sm:$0xff] %vm517, %v514
      %570 = vst.msk [vmem:[#allocation2 + $0x1a0] sm:$0xff] %vm517, %v515
      %571 = vst.msk [vmem:[#allocation2 + $0x1a8] sm:$0xff] %vm517, %v516
      %v572 = vld [vmem:[%s282] sm:$0xf]
      %v573 = vld [vmem:[%s282 + $0x4] sm:$0xf]
      %v574 = vld [vmem:[%s282 + $0x8] sm:$0xf]
      %v575 = vld [vmem:[%s282 + $0xc] sm:$0xf]
      %v576 = vld [vmem:[%s282 + $0x10] sm:$0xf]
      %v577 = vld [vmem:[%s282 + $0x14] sm:$0xf]
      %v578 = vunpack.c.l.bf16 %v572
      %v579 = vunpack.c.l.bf16 %v573
      %v580 = vunpack.c.l.bf16 %v574
      %v581 = vunpack.c.l.bf16 %v575
      %v582 = vunpack.c.l.bf16 %v576
      %v583 = vunpack.c.l.bf16 %v577
      %584 = vst.msk [vmem:[#allocation2 + $0x1b0] sm:$0xff] %vm517, %v578
      %585 = vst.msk [vmem:[#allocation2 + $0x1b8] sm:$0xff] %vm517, %v579
      %586 = vst.msk [vmem:[#allocation2 + $0x1c0] sm:$0xff] %vm517, %v580
      %587 = vst.msk [vmem:[#allocation2 + $0x1c8] sm:$0xff] %vm517, %v581
      %588 = vst.msk [vmem:[#allocation2 + $0x1d0] sm:$0xff] %vm517, %v582
      %589 = vst.msk [vmem:[#allocation2 + $0x1d8] sm:$0xff] %vm517, %v583
      %v590 = vld [vmem:[#allocation2] sm:$0xff]
      %v591 = vld [vmem:[#allocation2 + $0x8] sm:$0xff]
      %v592 = vld [vmem:[#allocation2 + $0x10] sm:$0xff]
      %v593 = vld [vmem:[#allocation2 + $0x18] sm:$0xff]
      %v594 = vld [vmem:[#allocation2 + $0x20] sm:$0xff]
      %v595 = vld [vmem:[#allocation2 + $0x28] sm:$0xff]
      %v596 = vld [vmem:[#allocation2 + $0x30] sm:$0xff]
      %v597 = vld [vmem:[#allocation2 + $0x38] sm:$0xff]
      %v598 = vld [vmem:[#allocation2 + $0x40] sm:$0xff]
      %v599 = vld [vmem:[#allocation2 + $0x48] sm:$0xff]
      %v600 = vld [vmem:[#allocation2 + $0x50] sm:$0xff]
      %v601 = vld [vmem:[#allocation2 + $0x58] sm:$0xff]
      %v602 = vld [vmem:[#allocation2 + $0x60] sm:$0xff]
      %v603 = vld [vmem:[#allocation2 + $0x68] sm:$0xff]
      %v604 = vld [vmem:[#allocation2 + $0x70] sm:$0xff]
      %v605 = vld [vmem:[#allocation2 + $0x78] sm:$0xff]
      %v606 = vld [vmem:[#allocation2 + $0x80] sm:$0xff]
      %v607 = vld [vmem:[#allocation2 + $0x88] sm:$0xff]
      %v608 = vld [vmem:[#allocation2 + $0x90] sm:$0xff]
      %v609 = vld [vmem:[#allocation2 + $0x98] sm:$0xff]
      %v610 = vld [vmem:[#allocation2 + $0xa0] sm:$0xff]
      %v611 = vld [vmem:[#allocation2 + $0xa8] sm:$0xff]
      %v612 = vld [vmem:[#allocation2 + $0xb0] sm:$0xff]
      %v613 = vld [vmem:[#allocation2 + $0xb8] sm:$0xff]
      %v614 = vld [vmem:[#allocation2 + $0xc0] sm:$0xff]
      %v615 = vld [vmem:[#allocation2 + $0xc8] sm:$0xff]
      %v616 = vld [vmem:[#allocation2 + $0xd0] sm:$0xff]
      %v617 = vld [vmem:[#allocation2 + $0xd8] sm:$0xff]
      %v618 = vld [vmem:[#allocation2 + $0xe0] sm:$0xff]
      %v619 = vld [vmem:[#allocation2 + $0xe8] sm:$0xff]
      %v620 = vld [vmem:[#allocation2 + $0xf0] sm:$0xff]
      %v621 = vld [vmem:[#allocation2 + $0xf8] sm:$0xff]
      %v622 = vld [vmem:[#allocation2 + $0x100] sm:$0xff]
      %v623 = vld [vmem:[#allocation2 + $0x108] sm:$0xff]
      %v624 = vld [vmem:[#allocation2 + $0x110] sm:$0xff]
      %v625 = vld [vmem:[#allocation2 + $0x118] sm:$0xff]
      %v626 = vld [vmem:[#allocation2 + $0x120] sm:$0xff]
      %v627 = vld [vmem:[#allocation2 + $0x128] sm:$0xff]
      %v628 = vld [vmem:[#allocation2 + $0x130] sm:$0xff]
      %v629 = vld [vmem:[#allocation2 + $0x138] sm:$0xff]
      %v630 = vld [vmem:[#allocation2 + $0x140] sm:$0xff]
      %v631 = vld [vmem:[#allocation2 + $0x148] sm:$0xff]
      %v632 = vld [vmem:[#allocation2 + $0x150] sm:$0xff]
      %v633 = vld [vmem:[#allocation2 + $0x158] sm:$0xff]
      %v634 = vld [vmem:[#allocation2 + $0x160] sm:$0xff]
      %v635 = vld [vmem:[#allocation2 + $0x168] sm:$0xff]
      %v636 = vld [vmem:[#allocation2 + $0x170] sm:$0xff]
      %v637 = vld [vmem:[#allocation2 + $0x178] sm:$0xff]
      %v638 = vld [vmem:[#allocation2 + $0x180] sm:$0xff]
      %v639 = vld [vmem:[#allocation2 + $0x188] sm:$0xff]
      %v640 = vld [vmem:[#allocation2 + $0x190] sm:$0xff]
      %v641 = vld [vmem:[#allocation2 + $0x198] sm:$0xff]
      %v642 = vld [vmem:[#allocation2 + $0x1a0] sm:$0xff]
      %v643 = vld [vmem:[#allocation2 + $0x1a8] sm:$0xff]
      %v644 = vld [vmem:[#allocation2 + $0x1] sm:$0xff]
      %v645 = vld [vmem:[#allocation2 + $0x9] sm:$0xff]
      %v646 = vld [vmem:[#allocation2 + $0x11] sm:$0xff]
      %v647 = vld [vmem:[#allocation2 + $0x19] sm:$0xff]
      %v648 = vld [vmem:[#allocation2 + $0x21] sm:$0xff]
      %v649 = vld [vmem:[#allocation2 + $0x29] sm:$0xff]
      %v650 = vld [vmem:[#allocation2 + $0x31] sm:$0xff]
      %v651 = vld [vmem:[#allocation2 + $0x39] sm:$0xff]
      %v652 = vld [vmem:[#allocation2 + $0x41] sm:$0xff]
      %v653 = vld [vmem:[#allocation2 + $0x49] sm:$0xff]
      %v654 = vld [vmem:[#allocation2 + $0x51] sm:$0xff]
      %v655 = vld [vmem:[#allocation2 + $0x59] sm:$0xff]
      %v656 = vld [vmem:[#allocation2 + $0x61] sm:$0xff]
      %v657 = vld [vmem:[#allocation2 + $0x69] sm:$0xff]
      %v658 = vld [vmem:[#allocation2 + $0x71] sm:$0xff]
      %v659 = vld [vmem:[#allocation2 + $0x79] sm:$0xff]
      %v660 = vld [vmem:[#allocation2 + $0x81] sm:$0xff]
      %v661 = vld [vmem:[#allocation2 + $0x89] sm:$0xff]
      %v662 = vld [vmem:[#allocation2 + $0x91] sm:$0xff]
      %v663 = vld [vmem:[#allocation2 + $0x99] sm:$0xff]
      %v664 = vld [vmem:[#allocation2 + $0xa1] sm:$0xff]
      %v665 = vld [vmem:[#allocation2 + $0xa9] sm:$0xff]
      %v666 = vld [vmem:[#allocation2 + $0xb1] sm:$0xff]
      %v667 = vld [vmem:[#allocation2 + $0xb9] sm:$0xff]
      %v668 = vld [vmem:[#allocation2 + $0xc1] sm:$0xff]
      %v669 = vld [vmem:[#allocation2 + $0xc9] sm:$0xff]
      %v670 = vld [vmem:[#allocation2 + $0xd1] sm:$0xff]
      %v671 = vld [vmem:[#allocation2 + $0xd9] sm:$0xff]
      %v672 = vld [vmem:[#allocation2 + $0xe1] sm:$0xff]
      %v673 = vld [vmem:[#allocation2 + $0xe9] sm:$0xff]
      %v674 = vld [vmem:[#allocation2 + $0xf1] sm:$0xff]
      %v675 = vld [vmem:[#allocation2 + $0xf9] sm:$0xff]
      %v676 = vld [vmem:[#allocation2 + $0x101] sm:$0xff]
      %v677 = vld [vmem:[#allocation2 + $0x109] sm:$0xff]
      %v678 = vld [vmem:[#allocation2 + $0x111] sm:$0xff]
      %v679 = vld [vmem:[#allocation2 + $0x119] sm:$0xff]
      %v680 = vld [vmem:[#allocation2 + $0x121] sm:$0xff]
      %v681 = vld [vmem:[#allocation2 + $0x129] sm:$0xff]
      %v682 = vld [vmem:[#allocation2 + $0x131] sm:$0xff]
      %v683 = vld [vmem:[#allocation2 + $0x139] sm:$0xff]
      %v684 = vld [vmem:[#allocation2 + $0x141] sm:$0xff]
      %v685 = vld [vmem:[#allocation2 + $0x149] sm:$0xff]
      %v686 = vld [vmem:[#allocation2 + $0x151] sm:$0xff]
      %v687 = vld [vmem:[#allocation2 + $0x159] sm:$0xff]
      %v688 = vld [vmem:[#allocation2 + $0x161] sm:$0xff]
      %v689 = vld [vmem:[#allocation2 + $0x169] sm:$0xff]
      %v690 = vld [vmem:[#allocation2 + $0x171] sm:$0xff]
      %v691 = vld [vmem:[#allocation2 + $0x179] sm:$0xff]
      %v692 = vld [vmem:[#allocation2 + $0x181] sm:$0xff]
      %v693 = vld [vmem:[#allocation2 + $0x189] sm:$0xff]
      %v694 = vld [vmem:[#allocation2 + $0x191] sm:$0xff]
      %v695 = vld [vmem:[#allocation2 + $0x199] sm:$0xff]
      %v696 = vld [vmem:[#allocation2 + $0x1a1] sm:$0xff]
      %v697 = vld [vmem:[#allocation2 + $0x1a9] sm:$0xff]
      %v698 = vld [vmem:[#allocation2 + $0x2] sm:$0xff]
      %v699 = vld [vmem:[#allocation2 + $0xa] sm:$0xff]
      %v700 = vld [vmem:[#allocation2 + $0x12] sm:$0xff]
      %v701 = vld [vmem:[#allocation2 + $0x1a] sm:$0xff]
      %v702 = vld [vmem:[#allocation2 + $0x22] sm:$0xff]
      %v703 = vld [vmem:[#allocation2 + $0x2a] sm:$0xff]
      %v704 = vld [vmem:[#allocation2 + $0x32] sm:$0xff]
      %v705 = vld [vmem:[#allocation2 + $0x3a] sm:$0xff]
      %v706 = vld [vmem:[#allocation2 + $0x42] sm:$0xff]
      %v707 = vld [vmem:[#allocation2 + $0x4a] sm:$0xff]
      %v708 = vld [vmem:[#allocation2 + $0x52] sm:$0xff]
      %v709 = vld [vmem:[#allocation2 + $0x5a] sm:$0xff]
      %v710 = vld [vmem:[#allocation2 + $0x62] sm:$0xff]
      %v711 = vld [vmem:[#allocation2 + $0x6a] sm:$0xff]
      %v712 = vld [vmem:[#allocation2 + $0x72] sm:$0xff]
      %v713 = vld [vmem:[#allocation2 + $0x7a] sm:$0xff]
      %v714 = vld [vmem:[#allocation2 + $0x82] sm:$0xff]
      %v715 = vld [vmem:[#allocation2 + $0x8a] sm:$0xff]
      %v716 = vld [vmem:[#allocation2 + $0x92] sm:$0xff]
      %v717 = vld [vmem:[#allocation2 + $0x9a] sm:$0xff]
      %v718 = vld [vmem:[#allocation2 + $0xa2] sm:$0xff]
      %v719 = vld [vmem:[#allocation2 + $0xaa] sm:$0xff]
      %v720 = vld [vmem:[#allocation2 + $0xb2] sm:$0xff]
      %v721 = vld [vmem:[#allocation2 + $0xba] sm:$0xff]
      %v722 = vld [vmem:[#allocation2 + $0xc2] sm:$0xff]
      %v723 = vld [vmem:[#allocation2 + $0xca] sm:$0xff]
      %v724 = vld [vmem:[#allocation2 + $0xd2] sm:$0xff]
      %v725 = vld [vmem:[#allocation2 + $0xda] sm:$0xff]
      %v726 = vld [vmem:[#allocation2 + $0xe2] sm:$0xff]
      %v727 = vld [vmem:[#allocation2 + $0xea] sm:$0xff]
      %v728 = vld [vmem:[#allocation2 + $0xf2] sm:$0xff]
      %v729 = vld [vmem:[#allocation2 + $0xfa] sm:$0xff]
      %v730 = vld [vmem:[#allocation2 + $0x102] sm:$0xff]
      %v731 = vld [vmem:[#allocation2 + $0x10a] sm:$0xff]
      %v732 = vld [vmem:[#allocation2 + $0x112] sm:$0xff]
      %v733 = vld [vmem:[#allocation2 + $0x11a] sm:$0xff]
      %v734 = vld [vmem:[#allocation2 + $0x122] sm:$0xff]
      %v735 = vld [vmem:[#allocation2 + $0x12a] sm:$0xff]
      %v736 = vld [vmem:[#allocation2 + $0x132] sm:$0xff]
      %v737 = vld [vmem:[#allocation2 + $0x13a] sm:$0xff]
      %v738 = vld [vmem:[#allocation2 + $0x142] sm:$0xff]
      %v739 = vld [vmem:[#allocation2 + $0x14a] sm:$0xff]
      %v740 = vld [vmem:[#allocation2 + $0x152] sm:$0xff]
      %v741 = vld [vmem:[#allocation2 + $0x15a] sm:$0xff]
      %v742 = vld [vmem:[#allocation2 + $0x162] sm:$0xff]
      %v743 = vld [vmem:[#allocation2 + $0x16a] sm:$0xff]
      %v744 = vld [vmem:[#allocation2 + $0x172] sm:$0xff]
      %v745 = vld [vmem:[#allocation2 + $0x17a] sm:$0xff]
      %v746 = vld [vmem:[#allocation2 + $0x182] sm:$0xff]
      %v747 = vld [vmem:[#allocation2 + $0x18a] sm:$0xff]
      %v748 = vld [vmem:[#allocation2 + $0x192] sm:$0xff]
      %v749 = vld [vmem:[#allocation2 + $0x19a] sm:$0xff]
      %v750 = vld [vmem:[#allocation2 + $0x1a2] sm:$0xff]
      %v751 = vld [vmem:[#allocation2 + $0x1aa] sm:$0xff]
      %v752 = vld [vmem:[#allocation2 + $0x14] sm:$0xff]
      %v753 = vld [vmem:[#allocation2 + $0x1c] sm:$0xff]
      %v754 = vld [vmem:[#allocation2 + $0x24] sm:$0xff]
      %v755 = vld [vmem:[#allocation2 + $0x2c] sm:$0xff]
      %v756 = vld [vmem:[#allocation2 + $0x34] sm:$0xff]
      %v757 = vld [vmem:[#allocation2 + $0x3c] sm:$0xff]
      %v758 = vld [vmem:[#allocation2 + $0x44] sm:$0xff]
      %v759 = vld [vmem:[#allocation2 + $0x4c] sm:$0xff]
      %v760 = vld [vmem:[#allocation2 + $0x54] sm:$0xff]
      %v761 = vld [vmem:[#allocation2 + $0x5c] sm:$0xff]
      %v762 = vld [vmem:[#allocation2 + $0x64] sm:$0xff]
      %v763 = vld [vmem:[#allocation2 + $0x6c] sm:$0xff]
      %v764 = vld [vmem:[#allocation2 + $0x74] sm:$0xff]
      %v765 = vld [vmem:[#allocation2 + $0x7c] sm:$0xff]
      %v766 = vld [vmem:[#allocation2 + $0x84] sm:$0xff]
      %v767 = vld [vmem:[#allocation2 + $0x8c] sm:$0xff]
      %v768 = vld [vmem:[#allocation2 + $0x94] sm:$0xff]
      %v769 = vld [vmem:[#allocation2 + $0x9c] sm:$0xff]
      %v770 = vld [vmem:[#allocation2 + $0xa4] sm:$0xff]
      %v771 = vld [vmem:[#allocation2 + $0xac] sm:$0xff]
      %v772 = vld [vmem:[#allocation2 + $0xb4] sm:$0xff]
      %v773 = vld [vmem:[#allocation2 + $0xbc] sm:$0xff]
      %v774 = vld [vmem:[#allocation2 + $0xc4] sm:$0xff]
      %v775 = vld [vmem:[#allocation2 + $0xcc] sm:$0xff]
      %v776 = vld [vmem:[#allocation2 + $0xd4] sm:$0xff]
      %v777 = vld [vmem:[#allocation2 + $0xdc] sm:$0xff]
      %v778 = vld [vmem:[#allocation2 + $0xe4] sm:$0xff]
      %v779 = vld [vmem:[#allocation2 + $0xec] sm:$0xff]
      %v780 = vld [vmem:[#allocation2 + $0xf4] sm:$0xff]
      %v781 = vld [vmem:[#allocation2 + $0xfc] sm:$0xff]
      %v782 = vld [vmem:[#allocation2 + $0x104] sm:$0xff]
      %v783 = vld [vmem:[#allocation2 + $0x10c] sm:$0xff]
      %v784 = vld [vmem:[#allocation2 + $0x114] sm:$0xff]
      %v785 = vld [vmem:[#allocation2 + $0x11c] sm:$0xff]
      %v786 = vld [vmem:[#allocation2 + $0x124] sm:$0xff]
      %v787 = vld [vmem:[#allocation2 + $0x12c] sm:$0xff]
      %v788 = vld [vmem:[#allocation2 + $0x134] sm:$0xff]
      %v789 = vld [vmem:[#allocation2 + $0x13c] sm:$0xff]
      %v790 = vld [vmem:[#allocation2 + $0x144] sm:$0xff]
      %v791 = vld [vmem:[#allocation2 + $0x14c] sm:$0xff]
      %v792 = vld [vmem:[#allocation2 + $0x154] sm:$0xff]
      %v793 = vld [vmem:[#allocation2 + $0x15c] sm:$0xff]
      %v794 = vld [vmem:[#allocation2 + $0x164] sm:$0xff]
      %v795 = vld [vmem:[#allocation2 + $0x16c] sm:$0xff]
      %v796 = vld [vmem:[#allocation2 + $0x174] sm:$0xff]
      %v797 = vld [vmem:[#allocation2 + $0x17c] sm:$0xff]
      %v798 = vld [vmem:[#allocation2 + $0x184] sm:$0xff]
      %v799 = vld [vmem:[#allocation2 + $0x18c] sm:$0xff]
      %v800 = vld [vmem:[#allocation2 + $0x194] sm:$0xff]
      %v801 = vld [vmem:[#allocation2 + $0x19c] sm:$0xff]
      %v802 = vld [vmem:[#allocation2 + $0x1a4] sm:$0xff]
      %v803 = vld [vmem:[#allocation2 + $0x1ac] sm:$0xff]
      %v804 = vld [vmem:[#allocation2 + $0x1b4] sm:$0xff]
      %v805 = vld [vmem:[#allocation2 + $0x1bc] sm:$0xff]
      %v806 = vld [vmem:[#allocation2 + $0x15] sm:$0xff]
      %v807 = vld [vmem:[#allocation2 + $0x1d] sm:$0xff]
      %v808 = vld [vmem:[#allocation2 + $0x25] sm:$0xff]
      %v809 = vld [vmem:[#allocation2 + $0x2d] sm:$0xff]
      %v810 = vld [vmem:[#allocation2 + $0x35] sm:$0xff]
      %v811 = vld [vmem:[#allocation2 + $0x3d] sm:$0xff]
      %v812 = vld [vmem:[#allocation2 + $0x45] sm:$0xff]
      %v813 = vld [vmem:[#allocation2 + $0x4d] sm:$0xff]
      %v814 = vld [vmem:[#allocation2 + $0x55] sm:$0xff]
      %v815 = vld [vmem:[#allocation2 + $0x5d] sm:$0xff]
      %v816 = vld [vmem:[#allocation2 + $0x65] sm:$0xff]
      %v817 = vld [vmem:[#allocation2 + $0x6d] sm:$0xff]
      %v818 = vld [vmem:[#allocation2 + $0x75] sm:$0xff]
      %v819 = vld [vmem:[#allocation2 + $0x7d] sm:$0xff]
      %v820 = vld [vmem:[#allocation2 + $0x85] sm:$0xff]
      %v821 = vld [vmem:[#allocation2 + $0x8d] sm:$0xff]
      %v822 = vld [vmem:[#allocation2 + $0x95] sm:$0xff]
      %v823 = vld [vmem:[#allocation2 + $0x9d] sm:$0xff]
      %v824 = vld [vmem:[#allocation2 + $0xa5] sm:$0xff]
      %v825 = vld [vmem:[#allocation2 + $0xad] sm:$0xff]
      %v826 = vld [vmem:[#allocation2 + $0xb5] sm:$0xff]
      %v827 = vld [vmem:[#allocation2 + $0xbd] sm:$0xff]
      %v828 = vld [vmem:[#allocation2 + $0xc5] sm:$0xff]
      %v829 = vld [vmem:[#allocation2 + $0xcd] sm:$0xff]
      %v830 = vld [vmem:[#allocation2 + $0xd5] sm:$0xff]
      %v831 = vld [vmem:[#allocation2 + $0xdd] sm:$0xff]
      %v832 = vld [vmem:[#allocation2 + $0xe5] sm:$0xff]
      %v833 = vld [vmem:[#allocation2 + $0xed] sm:$0xff]
      %v834 = vld [vmem:[#allocation2 + $0xf5] sm:$0xff]
      %v835 = vld [vmem:[#allocation2 + $0xfd] sm:$0xff]
      %v836 = vld [vmem:[#allocation2 + $0x105] sm:$0xff]
      %v837 = vld [vmem:[#allocation2 + $0x10d] sm:$0xff]
      %v838 = vld [vmem:[#allocation2 + $0x115] sm:$0xff]
      %v839 = vld [vmem:[#allocation2 + $0x11d] sm:$0xff]
      %v840 = vld [vmem:[#allocation2 + $0x125] sm:$0xff]
      %v841 = vld [vmem:[#allocation2 + $0x12d] sm:$0xff]
      %v842 = vld [vmem:[#allocation2 + $0x135] sm:$0xff]
      %v843 = vld [vmem:[#allocation2 + $0x13d] sm:$0xff]
      %v844 = vld [vmem:[#allocation2 + $0x145] sm:$0xff]
      %v845 = vld [vmem:[#allocation2 + $0x14d] sm:$0xff]
      %v846 = vld [vmem:[#allocation2 + $0x155] sm:$0xff]
      %v847 = vld [vmem:[#allocation2 + $0x15d] sm:$0xff]
      %v848 = vld [vmem:[#allocation2 + $0x165] sm:$0xff]
      %v849 = vld [vmem:[#allocation2 + $0x16d] sm:$0xff]
      %v850 = vld [vmem:[#allocation2 + $0x175] sm:$0xff]
      %v851 = vld [vmem:[#allocation2 + $0x17d] sm:$0xff]
      %v852 = vld [vmem:[#allocation2 + $0x185] sm:$0xff]
      %v853 = vld [vmem:[#allocation2 + $0x18d] sm:$0xff]
      %v854 = vld [vmem:[#allocation2 + $0x195] sm:$0xff]
      %v855 = vld [vmem:[#allocation2 + $0x19d] sm:$0xff]
      %v856 = vld [vmem:[#allocation2 + $0x1a5] sm:$0xff]
      %v857 = vld [vmem:[#allocation2 + $0x1ad] sm:$0xff]
      %v858 = vld [vmem:[#allocation2 + $0x1b5] sm:$0xff]
      %v859 = vld [vmem:[#allocation2 + $0x1bd] sm:$0xff]
      %v860 = vld [vmem:[#allocation2 + $0x16] sm:$0xff]
      %v861 = vld [vmem:[#allocation2 + $0x1e] sm:$0xff]
      %v862 = vld [vmem:[#allocation2 + $0x26] sm:$0xff]
      %v863 = vld [vmem:[#allocation2 + $0x2e] sm:$0xff]
      %v864 = vld [vmem:[#allocation2 + $0x36] sm:$0xff]
      %v865 = vld [vmem:[#allocation2 + $0x3e] sm:$0xff]
      %v866 = vld [vmem:[#allocation2 + $0x46] sm:$0xff]
      %v867 = vld [vmem:[#allocation2 + $0x4e] sm:$0xff]
      %v868 = vld [vmem:[#allocation2 + $0x56] sm:$0xff]
      %v869 = vld [vmem:[#allocation2 + $0x5e] sm:$0xff]
      %v870 = vld [vmem:[#allocation2 + $0x66] sm:$0xff]
      %v871 = vld [vmem:[#allocation2 + $0x6e] sm:$0xff]
      %v872 = vld [vmem:[#allocation2 + $0x76] sm:$0xff]
      %v873 = vld [vmem:[#allocation2 + $0x7e] sm:$0xff]
      %v874 = vld [vmem:[#allocation2 + $0x86] sm:$0xff]
      %v875 = vld [vmem:[#allocation2 + $0x8e] sm:$0xff]
      %v876 = vld [vmem:[#allocation2 + $0x96] sm:$0xff]
      %v877 = vld [vmem:[#allocation2 + $0x9e] sm:$0xff]
      %v878 = vld [vmem:[#allocation2 + $0xa6] sm:$0xff]
      %v879 = vld [vmem:[#allocation2 + $0xae] sm:$0xff]
      %v880 = vld [vmem:[#allocation2 + $0xb6] sm:$0xff]
      %v881 = vld [vmem:[#allocation2 + $0xbe] sm:$0xff]
      %v882 = vld [vmem:[#allocation2 + $0xc6] sm:$0xff]
      %v883 = vld [vmem:[#allocation2 + $0xce] sm:$0xff]
      %v884 = vld [vmem:[#allocation2 + $0xd6] sm:$0xff]
      %v885 = vld [vmem:[#allocation2 + $0xde] sm:$0xff]
      %v886 = vld [vmem:[#allocation2 + $0xe6] sm:$0xff]
      %v887 = vld [vmem:[#allocation2 + $0xee] sm:$0xff]
      %v888 = vld [vmem:[#allocation2 + $0xf6] sm:$0xff]
      %v889 = vld [vmem:[#allocation2 + $0xfe] sm:$0xff]
      %v890 = vld [vmem:[#allocation2 + $0x106] sm:$0xff]
      %v891 = vld [vmem:[#allocation2 + $0x10e] sm:$0xff]
      %v892 = vld [vmem:[#allocation2 + $0x116] sm:$0xff]
      %v893 = vld [vmem:[#allocation2 + $0x11e] sm:$0xff]
      %v894 = vld [vmem:[#allocation2 + $0x126] sm:$0xff]
      %v895 = vld [vmem:[#allocation2 + $0x12e] sm:$0xff]
      %v896 = vld [vmem:[#allocation2 + $0x136] sm:$0xff]
      %v897 = vld [vmem:[#allocation2 + $0x13e] sm:$0xff]
      %v898 = vld [vmem:[#allocation2 + $0x146] sm:$0xff]
      %v899 = vld [vmem:[#allocation2 + $0x14e] sm:$0xff]
      %v900 = vld [vmem:[#allocation2 + $0x156] sm:$0xff]
      %v901 = vld [vmem:[#allocation2 + $0x15e] sm:$0xff]
      %v902 = vld [vmem:[#allocation2 + $0x166] sm:$0xff]
      %v903 = vld [vmem:[#allocation2 + $0x16e] sm:$0xff]
      %v904 = vld [vmem:[#allocation2 + $0x176] sm:$0xff]
      %v905 = vld [vmem:[#allocation2 + $0x17e] sm:$0xff]
      %v906 = vld [vmem:[#allocation2 + $0x186] sm:$0xff]
      %v907 = vld [vmem:[#allocation2 + $0x18e] sm:$0xff]
      %v908 = vld [vmem:[#allocation2 + $0x196] sm:$0xff]
      %v909 = vld [vmem:[#allocation2 + $0x19e] sm:$0xff]
      %v910 = vld [vmem:[#allocation2 + $0x1a6] sm:$0xff]
      %v911 = vld [vmem:[#allocation2 + $0x1ae] sm:$0xff]
      %v912 = vld [vmem:[#allocation2 + $0x1b6] sm:$0xff]
      %v913 = vld [vmem:[#allocation2 + $0x1be] sm:$0xff]
      %v914 = vld [vmem:[#allocation2 + $0x1b0] sm:$0xff]
      %v915 = vld [vmem:[#allocation2 + $0x1b8] sm:$0xff]
      %v916 = vld [vmem:[#allocation2 + $0x1c0] sm:$0xff]
      %v917 = vld [vmem:[#allocation2 + $0x1c8] sm:$0xff]
      %v918 = vld [vmem:[#allocation2 + $0x1d0] sm:$0xff]
      %v919 = vld [vmem:[#allocation2 + $0x1b1] sm:$0xff]
      %v920 = vld [vmem:[#allocation2 + $0x1b9] sm:$0xff]
      %v921 = vld [vmem:[#allocation2 + $0x1c1] sm:$0xff]
      %v922 = vld [vmem:[#allocation2 + $0x1c9] sm:$0xff]
      %v923 = vld [vmem:[#allocation2 + $0x1d1] sm:$0xff]
      %v924 = vld [vmem:[#allocation2 + $0x1b2] sm:$0xff]
      %v925 = vld [vmem:[#allocation2 + $0x1ba] sm:$0xff]
      %v926 = vld [vmem:[#allocation2 + $0x1c2] sm:$0xff]
      %v927 = vld [vmem:[#allocation2 + $0x1ca] sm:$0xff]
      %v928 = vld [vmem:[#allocation2 + $0x1d2] sm:$0xff]
      %983 = vrot.lane.b32.xlu0 %v644, 8
      %v984 = vpop.permute.xlu0 %983
      %985 = vrot.lane.b32.xlu0 %v645, 8
      %v986 = vpop.permute.xlu0 %985
      %987 = vrot.lane.b32.xlu0 %v646, 8
      %v988 = vpop.permute.xlu0 %987
      %989 = vrot.lane.b32.xlu0 %v647, 8
      %v990 = vpop.permute.xlu0 %989
      %991 = vrot.lane.b32.xlu0 %v648, 8
      %v992 = vpop.permute.xlu0 %991
      %993 = vrot.lane.b32.xlu0 %v649, 8
      %v994 = vpop.permute.xlu0 %993
      %995 = vrot.lane.b32.xlu0 %v650, 8
      %v996 = vpop.permute.xlu0 %995
      %997 = vrot.lane.b32.xlu0 %v651, 8
      %v998 = vpop.permute.xlu0 %997
      %999 = vrot.lane.b32.xlu0 %v652, 8
      %v1000 = vpop.permute.xlu0 %999
      %1001 = vrot.lane.b32.xlu0 %v653, 8
      %v1002 = vpop.permute.xlu0 %1001
      %1003 = vrot.lane.b32.xlu0 %v654, 8
      %v1004 = vpop.permute.xlu0 %1003
      %1005 = vrot.lane.b32.xlu0 %v655, 8
      %v1006 = vpop.permute.xlu0 %1005
      %1007 = vrot.lane.b32.xlu0 %v656, 8
      %v1008 = vpop.permute.xlu0 %1007
      %1009 = vrot.lane.b32.xlu0 %v657, 8
      %v1010 = vpop.permute.xlu0 %1009
      %1011 = vrot.lane.b32.xlu0 %v658, 8
      %v1012 = vpop.permute.xlu0 %1011
      %1013 = vrot.lane.b32.xlu0 %v659, 8
      %v1014 = vpop.permute.xlu0 %1013
      %1015 = vrot.lane.b32.xlu0 %v660, 8
      %v1016 = vpop.permute.xlu0 %1015
      %1017 = vrot.lane.b32.xlu0 %v661, 8
      %v1018 = vpop.permute.xlu0 %1017
      %1019 = vrot.lane.b32.xlu0 %v662, 8
      %v1020 = vpop.permute.xlu0 %1019
      %1021 = vrot.lane.b32.xlu0 %v663, 8
      %v1022 = vpop.permute.xlu0 %1021
      %1023 = vrot.lane.b32.xlu0 %v664, 8
      %v1024 = vpop.permute.xlu0 %1023
      %1025 = vrot.lane.b32.xlu0 %v665, 8
      %v1026 = vpop.permute.xlu0 %1025
      %1027 = vrot.lane.b32.xlu0 %v666, 8
      %v1028 = vpop.permute.xlu0 %1027
      %1029 = vrot.lane.b32.xlu0 %v667, 8
      %v1030 = vpop.permute.xlu0 %1029
      %1031 = vrot.lane.b32.xlu0 %v668, 8
      %v1032 = vpop.permute.xlu0 %1031
      %1033 = vrot.lane.b32.xlu0 %v669, 8
      %v1034 = vpop.permute.xlu0 %1033
      %1035 = vrot.lane.b32.xlu0 %v670, 8
      %v1036 = vpop.permute.xlu0 %1035
      %1037 = vrot.lane.b32.xlu0 %v671, 8
      %v1038 = vpop.permute.xlu0 %1037
      %1039 = vrot.lane.b32.xlu0 %v672, 8
      %v1040 = vpop.permute.xlu0 %1039
      %1041 = vrot.lane.b32.xlu0 %v673, 8
      %v1042 = vpop.permute.xlu0 %1041
      %1043 = vrot.lane.b32.xlu0 %v674, 8
      %v1044 = vpop.permute.xlu0 %1043
      %1045 = vrot.lane.b32.xlu0 %v675, 8
      %v1046 = vpop.permute.xlu0 %1045
      %1047 = vrot.lane.b32.xlu0 %v676, 8
      %v1048 = vpop.permute.xlu0 %1047
      %1049 = vrot.lane.b32.xlu0 %v677, 8
      %v1050 = vpop.permute.xlu0 %1049
      %1051 = vrot.lane.b32.xlu0 %v678, 8
      %v1052 = vpop.permute.xlu0 %1051
      %1053 = vrot.lane.b32.xlu0 %v679, 8
      %v1054 = vpop.permute.xlu0 %1053
      %1055 = vrot.lane.b32.xlu0 %v680, 8
      %v1056 = vpop.permute.xlu0 %1055
      %1057 = vrot.lane.b32.xlu0 %v681, 8
      %v1058 = vpop.permute.xlu0 %1057
      %1059 = vrot.lane.b32.xlu0 %v682, 8
      %v1060 = vpop.permute.xlu0 %1059
      %1061 = vrot.lane.b32.xlu0 %v683, 8
      %v1062 = vpop.permute.xlu0 %1061
      %1063 = vrot.lane.b32.xlu0 %v684, 8
      %v1064 = vpop.permute.xlu0 %1063
      %1065 = vrot.lane.b32.xlu0 %v685, 8
      %v1066 = vpop.permute.xlu0 %1065
      %1067 = vrot.lane.b32.xlu0 %v686, 8
      %v1068 = vpop.permute.xlu0 %1067
      %1069 = vrot.lane.b32.xlu0 %v687, 8
      %v1070 = vpop.permute.xlu0 %1069
      %1071 = vrot.lane.b32.xlu0 %v688, 8
      %v1072 = vpop.permute.xlu0 %1071
      %1073 = vrot.lane.b32.xlu0 %v689, 8
      %v1074 = vpop.permute.xlu0 %1073
      %1075 = vrot.lane.b32.xlu0 %v690, 8
      %v1076 = vpop.permute.xlu0 %1075
      %1077 = vrot.lane.b32.xlu0 %v691, 8
      %v1078 = vpop.permute.xlu0 %1077
      %1079 = vrot.lane.b32.xlu0 %v692, 8
      %v1080 = vpop.permute.xlu0 %1079
      %1081 = vrot.lane.b32.xlu0 %v693, 8
      %v1082 = vpop.permute.xlu0 %1081
      %1083 = vrot.lane.b32.xlu0 %v694, 8
      %v1084 = vpop.permute.xlu0 %1083
      %1085 = vrot.lane.b32.xlu0 %v695, 8
      %v1086 = vpop.permute.xlu0 %1085
      %1087 = vrot.lane.b32.xlu0 %v696, 8
      %v1088 = vpop.permute.xlu0 %1087
      %1089 = vrot.lane.b32.xlu0 %v697, 8
      %v1090 = vpop.permute.xlu0 %1089
      %1199 = vrot.lane.b32.xlu0 %v698, 16
      %v1200 = vpop.permute.xlu0 %1199
      %1201 = vrot.lane.b32.xlu0 %v699, 16
      %v1202 = vpop.permute.xlu0 %1201
      %1203 = vrot.lane.b32.xlu0 %v700, 16
      %v1204 = vpop.permute.xlu0 %1203
      %1205 = vrot.lane.b32.xlu0 %v701, 16
      %v1206 = vpop.permute.xlu0 %1205
      %1207 = vrot.lane.b32.xlu0 %v702, 16
      %v1208 = vpop.permute.xlu0 %1207
      %1209 = vrot.lane.b32.xlu0 %v703, 16
      %v1210 = vpop.permute.xlu0 %1209
      %1211 = vrot.lane.b32.xlu0 %v704, 16
      %v1212 = vpop.permute.xlu0 %1211
      %1213 = vrot.lane.b32.xlu0 %v705, 16
      %v1214 = vpop.permute.xlu0 %1213
      %1215 = vrot.lane.b32.xlu0 %v706, 16
      %v1216 = vpop.permute.xlu0 %1215
      %1217 = vrot.lane.b32.xlu0 %v707, 16
      %v1218 = vpop.permute.xlu0 %1217
      %1219 = vrot.lane.b32.xlu0 %v708, 16
      %v1220 = vpop.permute.xlu0 %1219
      %1221 = vrot.lane.b32.xlu0 %v709, 16
      %v1222 = vpop.permute.xlu0 %1221
      %1223 = vrot.lane.b32.xlu0 %v710, 16
      %v1224 = vpop.permute.xlu0 %1223
      %1225 = vrot.lane.b32.xlu0 %v711, 16
      %v1226 = vpop.permute.xlu0 %1225
      %1227 = vrot.lane.b32.xlu0 %v712, 16
      %v1228 = vpop.permute.xlu0 %1227
      %1229 = vrot.lane.b32.xlu0 %v713, 16
      %v1230 = vpop.permute.xlu0 %1229
      %1231 = vrot.lane.b32.xlu0 %v714, 16
      %v1232 = vpop.permute.xlu0 %1231
      %1233 = vrot.lane.b32.xlu0 %v715, 16
      %v1234 = vpop.permute.xlu0 %1233
      %1235 = vrot.lane.b32.xlu0 %v716, 16
      %v1236 = vpop.permute.xlu0 %1235
      %1237 = vrot.lane.b32.xlu0 %v717, 16
      %v1238 = vpop.permute.xlu0 %1237
      %1239 = vrot.lane.b32.xlu0 %v718, 16
      %v1240 = vpop.permute.xlu0 %1239
      %1241 = vrot.lane.b32.xlu0 %v719, 16
      %v1242 = vpop.permute.xlu0 %1241
      %1243 = vrot.lane.b32.xlu0 %v720, 16
      %v1244 = vpop.permute.xlu0 %1243
      %1245 = vrot.lane.b32.xlu0 %v721, 16
      %v1246 = vpop.permute.xlu0 %1245
      %1247 = vrot.lane.b32.xlu0 %v722, 16
      %v1248 = vpop.permute.xlu0 %1247
      %1249 = vrot.lane.b32.xlu0 %v723, 16
      %v1250 = vpop.permute.xlu0 %1249
      %1251 = vrot.lane.b32.xlu0 %v724, 16
      %v1252 = vpop.permute.xlu0 %1251
      %1253 = vrot.lane.b32.xlu0 %v725, 16
      %v1254 = vpop.permute.xlu0 %1253
      %1255 = vrot.lane.b32.xlu0 %v726, 16
      %v1256 = vpop.permute.xlu0 %1255
      %1257 = vrot.lane.b32.xlu0 %v727, 16
      %v1258 = vpop.permute.xlu0 %1257
      %1259 = vrot.lane.b32.xlu0 %v728, 16
      %v1260 = vpop.permute.xlu0 %1259
      %1261 = vrot.lane.b32.xlu0 %v729, 16
      %v1262 = vpop.permute.xlu0 %1261
      %1263 = vrot.lane.b32.xlu0 %v730, 16
      %v1264 = vpop.permute.xlu0 %1263
      %1265 = vrot.lane.b32.xlu0 %v731, 16
      %v1266 = vpop.permute.xlu0 %1265
      %1267 = vrot.lane.b32.xlu0 %v732, 16
      %v1268 = vpop.permute.xlu0 %1267
      %1269 = vrot.lane.b32.xlu0 %v733, 16
      %v1270 = vpop.permute.xlu0 %1269
      %1271 = vrot.lane.b32.xlu0 %v734, 16
      %v1272 = vpop.permute.xlu0 %1271
      %1273 = vrot.lane.b32.xlu0 %v735, 16
      %v1274 = vpop.permute.xlu0 %1273
      %1275 = vrot.lane.b32.xlu0 %v736, 16
      %v1276 = vpop.permute.xlu0 %1275
      %1277 = vrot.lane.b32.xlu0 %v737, 16
      %v1278 = vpop.permute.xlu0 %1277
      %1279 = vrot.lane.b32.xlu0 %v738, 16
      %v1280 = vpop.permute.xlu0 %1279
      %1281 = vrot.lane.b32.xlu0 %v739, 16
      %v1282 = vpop.permute.xlu0 %1281
      %1283 = vrot.lane.b32.xlu0 %v740, 16
      %v1284 = vpop.permute.xlu0 %1283
      %1285 = vrot.lane.b32.xlu0 %v741, 16
      %v1286 = vpop.permute.xlu0 %1285
      %1287 = vrot.lane.b32.xlu0 %v742, 16
      %v1288 = vpop.permute.xlu0 %1287
      %1289 = vrot.lane.b32.xlu0 %v743, 16
      %v1290 = vpop.permute.xlu0 %1289
      %1291 = vrot.lane.b32.xlu0 %v744, 16
      %v1292 = vpop.permute.xlu0 %1291
      %1293 = vrot.lane.b32.xlu0 %v745, 16
      %v1294 = vpop.permute.xlu0 %1293
      %1295 = vrot.lane.b32.xlu0 %v746, 16
      %v1296 = vpop.permute.xlu0 %1295
      %1297 = vrot.lane.b32.xlu0 %v747, 16
      %v1298 = vpop.permute.xlu0 %1297
      %1299 = vrot.lane.b32.xlu0 %v748, 16
      %v1300 = vpop.permute.xlu0 %1299
      %1301 = vrot.lane.b32.xlu0 %v749, 16
      %v1302 = vpop.permute.xlu0 %1301
      %1303 = vrot.lane.b32.xlu0 %v750, 16
      %v1304 = vpop.permute.xlu0 %1303
      %1305 = vrot.lane.b32.xlu0 %v751, 16
      %v1306 = vpop.permute.xlu0 %1305
      %1415 = vrot.lane.b32.xlu0 %v752, 24
      %v1416 = vpop.permute.xlu0 %1415
      %1417 = vrot.lane.b32.xlu0 %v753, 24
      %v1418 = vpop.permute.xlu0 %1417
      %1419 = vrot.lane.b32.xlu0 %v754, 24
      %v1420 = vpop.permute.xlu0 %1419
      %1421 = vrot.lane.b32.xlu0 %v755, 24
      %v1422 = vpop.permute.xlu0 %1421
      %1423 = vrot.lane.b32.xlu0 %v756, 24
      %v1424 = vpop.permute.xlu0 %1423
      %1425 = vrot.lane.b32.xlu0 %v757, 24
      %v1426 = vpop.permute.xlu0 %1425
      %1427 = vrot.lane.b32.xlu0 %v758, 24
      %v1428 = vpop.permute.xlu0 %1427
      %1429 = vrot.lane.b32.xlu0 %v759, 24
      %v1430 = vpop.permute.xlu0 %1429
      %1431 = vrot.lane.b32.xlu0 %v760, 24
      %v1432 = vpop.permute.xlu0 %1431
      %1433 = vrot.lane.b32.xlu0 %v761, 24
      %v1434 = vpop.permute.xlu0 %1433
      %1435 = vrot.lane.b32.xlu0 %v762, 24
      %v1436 = vpop.permute.xlu0 %1435
      %1437 = vrot.lane.b32.xlu0 %v763, 24
      %v1438 = vpop.permute.xlu0 %1437
      %1439 = vrot.lane.b32.xlu0 %v764, 24
      %v1440 = vpop.permute.xlu0 %1439
      %1441 = vrot.lane.b32.xlu0 %v765, 24
      %v1442 = vpop.permute.xlu0 %1441
      %1443 = vrot.lane.b32.xlu0 %v766, 24
      %v1444 = vpop.permute.xlu0 %1443
      %1445 = vrot.lane.b32.xlu0 %v767, 24
      %v1446 = vpop.permute.xlu0 %1445
      %1447 = vrot.lane.b32.xlu0 %v768, 24
      %v1448 = vpop.permute.xlu0 %1447
      %1449 = vrot.lane.b32.xlu0 %v769, 24
      %v1450 = vpop.permute.xlu0 %1449
      %1451 = vrot.lane.b32.xlu0 %v770, 24
      %v1452 = vpop.permute.xlu0 %1451
      %1453 = vrot.lane.b32.xlu0 %v771, 24
      %v1454 = vpop.permute.xlu0 %1453
      %1455 = vrot.lane.b32.xlu0 %v772, 24
      %v1456 = vpop.permute.xlu0 %1455
      %1457 = vrot.lane.b32.xlu0 %v773, 24
      %v1458 = vpop.permute.xlu0 %1457
      %1459 = vrot.lane.b32.xlu0 %v774, 24
      %v1460 = vpop.permute.xlu0 %1459
      %1461 = vrot.lane.b32.xlu0 %v775, 24
      %v1462 = vpop.permute.xlu0 %1461
      %1463 = vrot.lane.b32.xlu0 %v776, 24
      %v1464 = vpop.permute.xlu0 %1463
      %1465 = vrot.lane.b32.xlu0 %v777, 24
      %v1466 = vpop.permute.xlu0 %1465
      %1467 = vrot.lane.b32.xlu0 %v778, 24
      %v1468 = vpop.permute.xlu0 %1467
      %1469 = vrot.lane.b32.xlu0 %v779, 24
      %v1470 = vpop.permute.xlu0 %1469
      %1471 = vrot.lane.b32.xlu0 %v780, 24
      %v1472 = vpop.permute.xlu0 %1471
      %1473 = vrot.lane.b32.xlu0 %v781, 24
      %v1474 = vpop.permute.xlu0 %1473
      %1475 = vrot.lane.b32.xlu0 %v782, 24
      %v1476 = vpop.permute.xlu0 %1475
      %1477 = vrot.lane.b32.xlu0 %v783, 24
      %v1478 = vpop.permute.xlu0 %1477
      %1479 = vrot.lane.b32.xlu0 %v784, 24
      %v1480 = vpop.permute.xlu0 %1479
      %1481 = vrot.lane.b32.xlu0 %v785, 24
      %v1482 = vpop.permute.xlu0 %1481
      %1483 = vrot.lane.b32.xlu0 %v786, 24
      %v1484 = vpop.permute.xlu0 %1483
      %1485 = vrot.lane.b32.xlu0 %v787, 24
      %v1486 = vpop.permute.xlu0 %1485
      %1487 = vrot.lane.b32.xlu0 %v788, 24
      %v1488 = vpop.permute.xlu0 %1487
      %1489 = vrot.lane.b32.xlu0 %v789, 24
      %v1490 = vpop.permute.xlu0 %1489
      %1491 = vrot.lane.b32.xlu0 %v790, 24
      %v1492 = vpop.permute.xlu0 %1491
      %1493 = vrot.lane.b32.xlu0 %v791, 24
      %v1494 = vpop.permute.xlu0 %1493
      %1495 = vrot.lane.b32.xlu0 %v792, 24
      %v1496 = vpop.permute.xlu0 %1495
      %1497 = vrot.lane.b32.xlu0 %v793, 24
      %v1498 = vpop.permute.xlu0 %1497
      %1499 = vrot.lane.b32.xlu0 %v794, 24
      %v1500 = vpop.permute.xlu0 %1499
      %1501 = vrot.lane.b32.xlu0 %v795, 24
      %v1502 = vpop.permute.xlu0 %1501
      %1503 = vrot.lane.b32.xlu0 %v796, 24
      %v1504 = vpop.permute.xlu0 %1503
      %1505 = vrot.lane.b32.xlu0 %v797, 24
      %v1506 = vpop.permute.xlu0 %1505
      %1507 = vrot.lane.b32.xlu0 %v798, 24
      %v1508 = vpop.permute.xlu0 %1507
      %1509 = vrot.lane.b32.xlu0 %v799, 24
      %v1510 = vpop.permute.xlu0 %1509
      %1511 = vrot.lane.b32.xlu0 %v800, 24
      %v1512 = vpop.permute.xlu0 %1511
      %1513 = vrot.lane.b32.xlu0 %v801, 24
      %v1514 = vpop.permute.xlu0 %1513
      %1515 = vrot.lane.b32.xlu0 %v802, 24
      %v1516 = vpop.permute.xlu0 %1515
      %1517 = vrot.lane.b32.xlu0 %v803, 24
      %v1518 = vpop.permute.xlu0 %1517
      %1519 = vrot.lane.b32.xlu0 %v804, 24
      %v1520 = vpop.permute.xlu0 %1519
      %1521 = vrot.lane.b32.xlu0 %v805, 24
      %v1522 = vpop.permute.xlu0 %1521
      %1631 = vrot.lane.b32.xlu0 %v806, 32
      %v1632 = vpop.permute.xlu0 %1631
      %1633 = vrot.lane.b32.xlu0 %v807, 32
      %v1634 = vpop.permute.xlu0 %1633
      %1635 = vrot.lane.b32.xlu0 %v808, 32
      %v1636 = vpop.permute.xlu0 %1635
      %1637 = vrot.lane.b32.xlu0 %v809, 32
      %v1638 = vpop.permute.xlu0 %1637
      %1639 = vrot.lane.b32.xlu0 %v810, 32
      %v1640 = vpop.permute.xlu0 %1639
      %1641 = vrot.lane.b32.xlu0 %v811, 32
      %v1642 = vpop.permute.xlu0 %1641
      %1643 = vrot.lane.b32.xlu0 %v812, 32
      %v1644 = vpop.permute.xlu0 %1643
      %1645 = vrot.lane.b32.xlu0 %v813, 32
      %v1646 = vpop.permute.xlu0 %1645
      %1647 = vrot.lane.b32.xlu0 %v814, 32
      %v1648 = vpop.permute.xlu0 %1647
      %1649 = vrot.lane.b32.xlu0 %v815, 32
      %v1650 = vpop.permute.xlu0 %1649
      %1651 = vrot.lane.b32.xlu0 %v816, 32
      %v1652 = vpop.permute.xlu0 %1651
      %1653 = vrot.lane.b32.xlu0 %v817, 32
      %v1654 = vpop.permute.xlu0 %1653
      %1655 = vrot.lane.b32.xlu0 %v818, 32
      %v1656 = vpop.permute.xlu0 %1655
      %1657 = vrot.lane.b32.xlu0 %v819, 32
      %v1658 = vpop.permute.xlu0 %1657
      %1659 = vrot.lane.b32.xlu0 %v820, 32
      %v1660 = vpop.permute.xlu0 %1659
      %1661 = vrot.lane.b32.xlu0 %v821, 32
      %v1662 = vpop.permute.xlu0 %1661
      %1663 = vrot.lane.b32.xlu0 %v822, 32
      %v1664 = vpop.permute.xlu0 %1663
      %1665 = vrot.lane.b32.xlu0 %v823, 32
      %v1666 = vpop.permute.xlu0 %1665
      %1667 = vrot.lane.b32.xlu0 %v824, 32
      %v1668 = vpop.permute.xlu0 %1667
      %1669 = vrot.lane.b32.xlu0 %v825, 32
      %v1670 = vpop.permute.xlu0 %1669
      %1671 = vrot.lane.b32.xlu0 %v826, 32
      %v1672 = vpop.permute.xlu0 %1671
      %1673 = vrot.lane.b32.xlu0 %v827, 32
      %v1674 = vpop.permute.xlu0 %1673
      %1675 = vrot.lane.b32.xlu0 %v828, 32
      %v1676 = vpop.permute.xlu0 %1675
      %1677 = vrot.lane.b32.xlu0 %v829, 32
      %v1678 = vpop.permute.xlu0 %1677
      %1679 = vrot.lane.b32.xlu0 %v830, 32
      %v1680 = vpop.permute.xlu0 %1679
      %1681 = vrot.lane.b32.xlu0 %v831, 32
      %v1682 = vpop.permute.xlu0 %1681
      %1683 = vrot.lane.b32.xlu0 %v832, 32
      %v1684 = vpop.permute.xlu0 %1683
      %1685 = vrot.lane.b32.xlu0 %v833, 32
      %v1686 = vpop.permute.xlu0 %1685
      %1687 = vrot.lane.b32.xlu0 %v834, 32
      %v1688 = vpop.permute.xlu0 %1687
      %1689 = vrot.lane.b32.xlu0 %v835, 32
      %v1690 = vpop.permute.xlu0 %1689
      %1691 = vrot.lane.b32.xlu0 %v836, 32
      %v1692 = vpop.permute.xlu0 %1691
      %1693 = vrot.lane.b32.xlu0 %v837, 32
      %v1694 = vpop.permute.xlu0 %1693
      %1695 = vrot.lane.b32.xlu0 %v838, 32
      %v1696 = vpop.permute.xlu0 %1695
      %1697 = vrot.lane.b32.xlu0 %v839, 32
      %v1698 = vpop.permute.xlu0 %1697
      %1699 = vrot.lane.b32.xlu0 %v840, 32
      %v1700 = vpop.permute.xlu0 %1699
      %1701 = vrot.lane.b32.xlu0 %v841, 32
      %v1702 = vpop.permute.xlu0 %1701
      %1703 = vrot.lane.b32.xlu0 %v842, 32
      %v1704 = vpop.permute.xlu0 %1703
      %1705 = vrot.lane.b32.xlu0 %v843, 32
      %v1706 = vpop.permute.xlu0 %1705
      %1707 = vrot.lane.b32.xlu0 %v844, 32
      %v1708 = vpop.permute.xlu0 %1707
      %1709 = vrot.lane.b32.xlu0 %v845, 32
      %v1710 = vpop.permute.xlu0 %1709
      %1711 = vrot.lane.b32.xlu0 %v846, 32
      %v1712 = vpop.permute.xlu0 %1711
      %1713 = vrot.lane.b32.xlu0 %v847, 32
      %v1714 = vpop.permute.xlu0 %1713
      %1715 = vrot.lane.b32.xlu0 %v848, 32
      %v1716 = vpop.permute.xlu0 %1715
      %1717 = vrot.lane.b32.xlu0 %v849, 32
      %v1718 = vpop.permute.xlu0 %1717
      %1719 = vrot.lane.b32.xlu0 %v850, 32
      %v1720 = vpop.permute.xlu0 %1719
      %1721 = vrot.lane.b32.xlu0 %v851, 32
      %v1722 = vpop.permute.xlu0 %1721
      %1723 = vrot.lane.b32.xlu0 %v852, 32
      %v1724 = vpop.permute.xlu0 %1723
      %1725 = vrot.lane.b32.xlu0 %v853, 32
      %v1726 = vpop.permute.xlu0 %1725
      %1727 = vrot.lane.b32.xlu0 %v854, 32
      %v1728 = vpop.permute.xlu0 %1727
      %1729 = vrot.lane.b32.xlu0 %v855, 32
      %v1730 = vpop.permute.xlu0 %1729
      %1731 = vrot.lane.b32.xlu0 %v856, 32
      %v1732 = vpop.permute.xlu0 %1731
      %1733 = vrot.lane.b32.xlu0 %v857, 32
      %v1734 = vpop.permute.xlu0 %1733
      %1735 = vrot.lane.b32.xlu0 %v858, 32
      %v1736 = vpop.permute.xlu0 %1735
      %1737 = vrot.lane.b32.xlu0 %v859, 32
      %v1738 = vpop.permute.xlu0 %1737
      %1847 = vrot.lane.b32.xlu0 %v860, 40
      %v1848 = vpop.permute.xlu0 %1847
      %1849 = vrot.lane.b32.xlu0 %v861, 40
      %v1850 = vpop.permute.xlu0 %1849
      %1851 = vrot.lane.b32.xlu0 %v862, 40
      %v1852 = vpop.permute.xlu0 %1851
      %1853 = vrot.lane.b32.xlu0 %v863, 40
      %v1854 = vpop.permute.xlu0 %1853
      %1855 = vrot.lane.b32.xlu0 %v864, 40
      %v1856 = vpop.permute.xlu0 %1855
      %1857 = vrot.lane.b32.xlu0 %v865, 40
      %v1858 = vpop.permute.xlu0 %1857
      %1859 = vrot.lane.b32.xlu0 %v866, 40
      %v1860 = vpop.permute.xlu0 %1859
      %1861 = vrot.lane.b32.xlu0 %v867, 40
      %v1862 = vpop.permute.xlu0 %1861
      %1863 = vrot.lane.b32.xlu0 %v868, 40
      %v1864 = vpop.permute.xlu0 %1863
      %1865 = vrot.lane.b32.xlu0 %v869, 40
      %v1866 = vpop.permute.xlu0 %1865
      %1867 = vrot.lane.b32.xlu0 %v870, 40
      %v1868 = vpop.permute.xlu0 %1867
      %1869 = vrot.lane.b32.xlu0 %v871, 40
      %v1870 = vpop.permute.xlu0 %1869
      %1871 = vrot.lane.b32.xlu0 %v872, 40
      %v1872 = vpop.permute.xlu0 %1871
      %1873 = vrot.lane.b32.xlu0 %v873, 40
      %v1874 = vpop.permute.xlu0 %1873
      %1875 = vrot.lane.b32.xlu0 %v874, 40
      %v1876 = vpop.permute.xlu0 %1875
      %1877 = vrot.lane.b32.xlu0 %v875, 40
      %v1878 = vpop.permute.xlu0 %1877
      %1879 = vrot.lane.b32.xlu0 %v876, 40
      %v1880 = vpop.permute.xlu0 %1879
      %1881 = vrot.lane.b32.xlu0 %v877, 40
      %v1882 = vpop.permute.xlu0 %1881
      %1883 = vrot.lane.b32.xlu0 %v878, 40
      %v1884 = vpop.permute.xlu0 %1883
      %1885 = vrot.lane.b32.xlu0 %v879, 40
      %v1886 = vpop.permute.xlu0 %1885
      %1887 = vrot.lane.b32.xlu0 %v880, 40
      %v1888 = vpop.permute.xlu0 %1887
      %1889 = vrot.lane.b32.xlu0 %v881, 40
      %v1890 = vpop.permute.xlu0 %1889
      %1891 = vrot.lane.b32.xlu0 %v882, 40
      %v1892 = vpop.permute.xlu0 %1891
      %1893 = vrot.lane.b32.xlu0 %v883, 40
      %v1894 = vpop.permute.xlu0 %1893
      %1895 = vrot.lane.b32.xlu0 %v884, 40
      %v1896 = vpop.permute.xlu0 %1895
      %1897 = vrot.lane.b32.xlu0 %v885, 40
      %v1898 = vpop.permute.xlu0 %1897
      %1899 = vrot.lane.b32.xlu0 %v886, 40
      %v1900 = vpop.permute.xlu0 %1899
      %1901 = vrot.lane.b32.xlu0 %v887, 40
      %v1902 = vpop.permute.xlu0 %1901
      %1903 = vrot.lane.b32.xlu0 %v888, 40
      %v1904 = vpop.permute.xlu0 %1903
      %1905 = vrot.lane.b32.xlu0 %v889, 40
      %v1906 = vpop.permute.xlu0 %1905
      %1907 = vrot.lane.b32.xlu0 %v890, 40
      %v1908 = vpop.permute.xlu0 %1907
      %1909 = vrot.lane.b32.xlu0 %v891, 40
      %v1910 = vpop.permute.xlu0 %1909
      %1911 = vrot.lane.b32.xlu0 %v892, 40
      %v1912 = vpop.permute.xlu0 %1911
      %1913 = vrot.lane.b32.xlu0 %v893, 40
      %v1914 = vpop.permute.xlu0 %1913
      %1915 = vrot.lane.b32.xlu0 %v894, 40
      %v1916 = vpop.permute.xlu0 %1915
      %1917 = vrot.lane.b32.xlu0 %v895, 40
      %v1918 = vpop.permute.xlu0 %1917
      %1919 = vrot.lane.b32.xlu0 %v896, 40
      %v1920 = vpop.permute.xlu0 %1919
      %1921 = vrot.lane.b32.xlu0 %v897, 40
      %v1922 = vpop.permute.xlu0 %1921
      %1923 = vrot.lane.b32.xlu0 %v898, 40
      %v1924 = vpop.permute.xlu0 %1923
      %1925 = vrot.lane.b32.xlu0 %v899, 40
      %v1926 = vpop.permute.xlu0 %1925
      %1927 = vrot.lane.b32.xlu0 %v900, 40
      %v1928 = vpop.permute.xlu0 %1927
      %1929 = vrot.lane.b32.xlu0 %v901, 40
      %v1930 = vpop.permute.xlu0 %1929
      %1931 = vrot.lane.b32.xlu0 %v902, 40
      %v1932 = vpop.permute.xlu0 %1931
      %1933 = vrot.lane.b32.xlu0 %v903, 40
      %v1934 = vpop.permute.xlu0 %1933
      %1935 = vrot.lane.b32.xlu0 %v904, 40
      %v1936 = vpop.permute.xlu0 %1935
      %1937 = vrot.lane.b32.xlu0 %v905, 40
      %v1938 = vpop.permute.xlu0 %1937
      %1939 = vrot.lane.b32.xlu0 %v906, 40
      %v1940 = vpop.permute.xlu0 %1939
      %1941 = vrot.lane.b32.xlu0 %v907, 40
      %v1942 = vpop.permute.xlu0 %1941
      %1943 = vrot.lane.b32.xlu0 %v908, 40
      %v1944 = vpop.permute.xlu0 %1943
      %1945 = vrot.lane.b32.xlu0 %v909, 40
      %v1946 = vpop.permute.xlu0 %1945
      %1947 = vrot.lane.b32.xlu0 %v910, 40
      %v1948 = vpop.permute.xlu0 %1947
      %1949 = vrot.lane.b32.xlu0 %v911, 40
      %v1950 = vpop.permute.xlu0 %1949
      %1951 = vrot.lane.b32.xlu0 %v912, 40
      %v1952 = vpop.permute.xlu0 %1951
      %1953 = vrot.lane.b32.xlu0 %v913, 40
      %v1954 = vpop.permute.xlu0 %1953
      %2063 = vrot.lane.b32.xlu0 %v595, 48
      %v2064 = vpop.permute.xlu0 %2063
      %2065 = vrot.lane.b32.xlu0 %v596, 48
      %v2066 = vpop.permute.xlu0 %2065
      %2067 = vrot.lane.b32.xlu0 %v597, 48
      %v2068 = vpop.permute.xlu0 %2067
      %2069 = vrot.lane.b32.xlu0 %v598, 48
      %v2070 = vpop.permute.xlu0 %2069
      %2071 = vrot.lane.b32.xlu0 %v599, 48
      %v2072 = vpop.permute.xlu0 %2071
      %2073 = vrot.lane.b32.xlu0 %v600, 48
      %v2074 = vpop.permute.xlu0 %2073
      %2075 = vrot.lane.b32.xlu0 %v601, 48
      %v2076 = vpop.permute.xlu0 %2075
      %2077 = vrot.lane.b32.xlu0 %v602, 48
      %v2078 = vpop.permute.xlu0 %2077
      %2079 = vrot.lane.b32.xlu0 %v603, 48
      %v2080 = vpop.permute.xlu0 %2079
      %2081 = vrot.lane.b32.xlu0 %v604, 48
      %v2082 = vpop.permute.xlu0 %2081
      %2083 = vrot.lane.b32.xlu0 %v605, 48
      %v2084 = vpop.permute.xlu0 %2083
      %2085 = vrot.lane.b32.xlu0 %v606, 48
      %v2086 = vpop.permute.xlu0 %2085
      %2087 = vrot.lane.b32.xlu0 %v607, 48
      %v2088 = vpop.permute.xlu0 %2087
      %2089 = vrot.lane.b32.xlu0 %v608, 48
      %v2090 = vpop.permute.xlu0 %2089
      %2091 = vrot.lane.b32.xlu0 %v609, 48
      %v2092 = vpop.permute.xlu0 %2091
      %2093 = vrot.lane.b32.xlu0 %v610, 48
      %v2094 = vpop.permute.xlu0 %2093
      %2095 = vrot.lane.b32.xlu0 %v611, 48
      %v2096 = vpop.permute.xlu0 %2095
      %2097 = vrot.lane.b32.xlu0 %v612, 48
      %v2098 = vpop.permute.xlu0 %2097
      %2099 = vrot.lane.b32.xlu0 %v613, 48
      %v2100 = vpop.permute.xlu0 %2099
      %2101 = vrot.lane.b32.xlu0 %v614, 48
      %v2102 = vpop.permute.xlu0 %2101
      %2103 = vrot.lane.b32.xlu0 %v615, 48
      %v2104 = vpop.permute.xlu0 %2103
      %2105 = vrot.lane.b32.xlu0 %v616, 48
      %v2106 = vpop.permute.xlu0 %2105
      %2107 = vrot.lane.b32.xlu0 %v617, 48
      %v2108 = vpop.permute.xlu0 %2107
      %2109 = vrot.lane.b32.xlu0 %v618, 48
      %v2110 = vpop.permute.xlu0 %2109
      %2111 = vrot.lane.b32.xlu0 %v619, 48
      %v2112 = vpop.permute.xlu0 %2111
      %2113 = vrot.lane.b32.xlu0 %v620, 48
      %v2114 = vpop.permute.xlu0 %2113
      %2115 = vrot.lane.b32.xlu0 %v621, 48
      %v2116 = vpop.permute.xlu0 %2115
      %2117 = vrot.lane.b32.xlu0 %v622, 48
      %v2118 = vpop.permute.xlu0 %2117
      %2119 = vrot.lane.b32.xlu0 %v623, 48
      %v2120 = vpop.permute.xlu0 %2119
      %2121 = vrot.lane.b32.xlu0 %v624, 48
      %v2122 = vpop.permute.xlu0 %2121
      %2123 = vrot.lane.b32.xlu0 %v625, 48
      %v2124 = vpop.permute.xlu0 %2123
      %2125 = vrot.lane.b32.xlu0 %v626, 48
      %v2126 = vpop.permute.xlu0 %2125
      %2127 = vrot.lane.b32.xlu0 %v627, 48
      %v2128 = vpop.permute.xlu0 %2127
      %2129 = vrot.lane.b32.xlu0 %v628, 48
      %v2130 = vpop.permute.xlu0 %2129
      %2131 = vrot.lane.b32.xlu0 %v629, 48
      %v2132 = vpop.permute.xlu0 %2131
      %2133 = vrot.lane.b32.xlu0 %v630, 48
      %v2134 = vpop.permute.xlu0 %2133
      %2135 = vrot.lane.b32.xlu0 %v631, 48
      %v2136 = vpop.permute.xlu0 %2135
      %2137 = vrot.lane.b32.xlu0 %v632, 48
      %v2138 = vpop.permute.xlu0 %2137
      %2139 = vrot.lane.b32.xlu0 %v633, 48
      %v2140 = vpop.permute.xlu0 %2139
      %2141 = vrot.lane.b32.xlu0 %v634, 48
      %v2142 = vpop.permute.xlu0 %2141
      %2143 = vrot.lane.b32.xlu0 %v635, 48
      %v2144 = vpop.permute.xlu0 %2143
      %2145 = vrot.lane.b32.xlu0 %v636, 48
      %v2146 = vpop.permute.xlu0 %2145
      %2147 = vrot.lane.b32.xlu0 %v637, 48
      %v2148 = vpop.permute.xlu0 %2147
      %2149 = vrot.lane.b32.xlu0 %v638, 48
      %v2150 = vpop.permute.xlu0 %2149
      %2151 = vrot.lane.b32.xlu0 %v639, 48
      %v2152 = vpop.permute.xlu0 %2151
      %2153 = vrot.lane.b32.xlu0 %v640, 48
      %v2154 = vpop.permute.xlu0 %2153
      %2155 = vrot.lane.b32.xlu0 %v641, 48
      %v2156 = vpop.permute.xlu0 %2155
      %2157 = vrot.lane.b32.xlu0 %v642, 48
      %v2158 = vpop.permute.xlu0 %2157
      %2159 = vrot.lane.b32.xlu0 %v643, 48
      %v2160 = vpop.permute.xlu0 %2159
      %2161 = vrot.lane.b32.xlu0 %v914, 48
      %v2162 = vpop.permute.xlu0 %2161
      %2163 = vrot.lane.b32.xlu0 %v915, 48
      %v2164 = vpop.permute.xlu0 %2163
      %2165 = vrot.lane.b32.xlu0 %v916, 48
      %v2166 = vpop.permute.xlu0 %2165
      %2167 = vrot.lane.b32.xlu0 %v917, 48
      %v2168 = vpop.permute.xlu0 %2167
      %2169 = vrot.lane.b32.xlu0 %v918, 48
      %v2170 = vpop.permute.xlu0 %2169
      %2230 = vrot.lane.b32.xlu0 %v649, 56
      %v2231 = vpop.permute.xlu0 %2230
      %2232 = vrot.lane.b32.xlu0 %v650, 56
      %v2233 = vpop.permute.xlu0 %2232
      %2234 = vrot.lane.b32.xlu0 %v651, 56
      %v2235 = vpop.permute.xlu0 %2234
      %2236 = vrot.lane.b32.xlu0 %v652, 56
      %v2237 = vpop.permute.xlu0 %2236
      %2238 = vrot.lane.b32.xlu0 %v653, 56
      %v2239 = vpop.permute.xlu0 %2238
      %2240 = vrot.lane.b32.xlu0 %v654, 56
      %v2241 = vpop.permute.xlu0 %2240
      %2242 = vrot.lane.b32.xlu0 %v655, 56
      %v2243 = vpop.permute.xlu0 %2242
      %2244 = vrot.lane.b32.xlu0 %v656, 56
      %v2245 = vpop.permute.xlu0 %2244
      %2246 = vrot.lane.b32.xlu0 %v657, 56
      %v2247 = vpop.permute.xlu0 %2246
      %2248 = vrot.lane.b32.xlu0 %v658, 56
      %v2249 = vpop.permute.xlu0 %2248
      %2250 = vrot.lane.b32.xlu0 %v659, 56
      %v2251 = vpop.permute.xlu0 %2250
      %2252 = vrot.lane.b32.xlu0 %v660, 56
      %v2253 = vpop.permute.xlu0 %2252
      %2254 = vrot.lane.b32.xlu0 %v661, 56
      %v2255 = vpop.permute.xlu0 %2254
      %2256 = vrot.lane.b32.xlu0 %v662, 56
      %v2257 = vpop.permute.xlu0 %2256
      %2258 = vrot.lane.b32.xlu0 %v663, 56
      %v2259 = vpop.permute.xlu0 %2258
      %2260 = vrot.lane.b32.xlu0 %v664, 56
      %v2261 = vpop.permute.xlu0 %2260
      %2262 = vrot.lane.b32.xlu0 %v665, 56
      %v2263 = vpop.permute.xlu0 %2262
      %2264 = vrot.lane.b32.xlu0 %v666, 56
      %v2265 = vpop.permute.xlu0 %2264
      %2266 = vrot.lane.b32.xlu0 %v667, 56
      %v2267 = vpop.permute.xlu0 %2266
      %2268 = vrot.lane.b32.xlu0 %v668, 56
      %v2269 = vpop.permute.xlu0 %2268
      %2270 = vrot.lane.b32.xlu0 %v669, 56
      %v2271 = vpop.permute.xlu0 %2270
      %2272 = vrot.lane.b32.xlu0 %v670, 56
      %v2273 = vpop.permute.xlu0 %2272
      %2274 = vrot.lane.b32.xlu0 %v671, 56
      %v2275 = vpop.permute.xlu0 %2274
      %2276 = vrot.lane.b32.xlu0 %v672, 56
      %v2277 = vpop.permute.xlu0 %2276
      %2278 = vrot.lane.b32.xlu0 %v673, 56
      %v2279 = vpop.permute.xlu0 %2278
      %2280 = vrot.lane.b32.xlu0 %v674, 56
      %v2281 = vpop.permute.xlu0 %2280
      %2282 = vrot.lane.b32.xlu0 %v675, 56
      %v2283 = vpop.permute.xlu0 %2282
      %2284 = vrot.lane.b32.xlu0 %v676, 56
      %v2285 = vpop.permute.xlu0 %2284
      %2286 = vrot.lane.b32.xlu0 %v677, 56
      %v2287 = vpop.permute.xlu0 %2286
      %2288 = vrot.lane.b32.xlu0 %v678, 56
      %v2289 = vpop.permute.xlu0 %2288
      %2290 = vrot.lane.b32.xlu0 %v679, 56
      %v2291 = vpop.permute.xlu0 %2290
      %2292 = vrot.lane.b32.xlu0 %v680, 56
      %v2293 = vpop.permute.xlu0 %2292
      %2294 = vrot.lane.b32.xlu0 %v681, 56
      %v2295 = vpop.permute.xlu0 %2294
      %2296 = vrot.lane.b32.xlu0 %v682, 56
      %v2297 = vpop.permute.xlu0 %2296
      %2298 = vrot.lane.b32.xlu0 %v683, 56
      %v2299 = vpop.permute.xlu0 %2298
      %2300 = vrot.lane.b32.xlu0 %v684, 56
      %v2301 = vpop.permute.xlu0 %2300
      %2302 = vrot.lane.b32.xlu0 %v685, 56
      %v2303 = vpop.permute.xlu0 %2302
      %2304 = vrot.lane.b32.xlu0 %v686, 56
      %v2305 = vpop.permute.xlu0 %2304
      %2306 = vrot.lane.b32.xlu0 %v687, 56
      %v2307 = vpop.permute.xlu0 %2306
      %2308 = vrot.lane.b32.xlu0 %v688, 56
      %v2309 = vpop.permute.xlu0 %2308
      %2310 = vrot.lane.b32.xlu0 %v689, 56
      %v2311 = vpop.permute.xlu0 %2310
      %2312 = vrot.lane.b32.xlu0 %v690, 56
      %v2313 = vpop.permute.xlu0 %2312
      %2314 = vrot.lane.b32.xlu0 %v691, 56
      %v2315 = vpop.permute.xlu0 %2314
      %2316 = vrot.lane.b32.xlu0 %v692, 56
      %v2317 = vpop.permute.xlu0 %2316
      %2318 = vrot.lane.b32.xlu0 %v693, 56
      %v2319 = vpop.permute.xlu0 %2318
      %2320 = vrot.lane.b32.xlu0 %v694, 56
      %v2321 = vpop.permute.xlu0 %2320
      %2322 = vrot.lane.b32.xlu0 %v695, 56
      %v2323 = vpop.permute.xlu0 %2322
      %2324 = vrot.lane.b32.xlu0 %v696, 56
      %v2325 = vpop.permute.xlu0 %2324
      %2326 = vrot.lane.b32.xlu0 %v697, 56
      %v2327 = vpop.permute.xlu0 %2326
      %2328 = vrot.lane.b32.xlu0 %v919, 56
      %v2329 = vpop.permute.xlu0 %2328
      %2330 = vrot.lane.b32.xlu0 %v920, 56
      %v2331 = vpop.permute.xlu0 %2330
      %2332 = vrot.lane.b32.xlu0 %v921, 56
      %v2333 = vpop.permute.xlu0 %2332
      %2334 = vrot.lane.b32.xlu0 %v922, 56
      %v2335 = vpop.permute.xlu0 %2334
      %2336 = vrot.lane.b32.xlu0 %v923, 56
      %v2337 = vpop.permute.xlu0 %2336
      %2397 = vrot.lane.b32.xlu0 %v703, 64
      %v2398 = vpop.permute.xlu0 %2397
      %2399 = vrot.lane.b32.xlu0 %v704, 64
      %v2400 = vpop.permute.xlu0 %2399
      %2401 = vrot.lane.b32.xlu0 %v705, 64
      %v2402 = vpop.permute.xlu0 %2401
      %2403 = vrot.lane.b32.xlu0 %v706, 64
      %v2404 = vpop.permute.xlu0 %2403
      %2405 = vrot.lane.b32.xlu0 %v707, 64
      %v2406 = vpop.permute.xlu0 %2405
      %2407 = vrot.lane.b32.xlu0 %v708, 64
      %v2408 = vpop.permute.xlu0 %2407
      %2409 = vrot.lane.b32.xlu0 %v709, 64
      %v2410 = vpop.permute.xlu0 %2409
      %2411 = vrot.lane.b32.xlu0 %v710, 64
      %v2412 = vpop.permute.xlu0 %2411
      %2413 = vrot.lane.b32.xlu0 %v711, 64
      %v2414 = vpop.permute.xlu0 %2413
      %2415 = vrot.lane.b32.xlu0 %v712, 64
      %v2416 = vpop.permute.xlu0 %2415
      %2417 = vrot.lane.b32.xlu0 %v713, 64
      %v2418 = vpop.permute.xlu0 %2417
      %2419 = vrot.lane.b32.xlu0 %v714, 64
      %v2420 = vpop.permute.xlu0 %2419
      %2421 = vrot.lane.b32.xlu0 %v715, 64
      %v2422 = vpop.permute.xlu0 %2421
      %2423 = vrot.lane.b32.xlu0 %v716, 64
      %v2424 = vpop.permute.xlu0 %2423
      %2425 = vrot.lane.b32.xlu0 %v717, 64
      %v2426 = vpop.permute.xlu0 %2425
      %2427 = vrot.lane.b32.xlu0 %v718, 64
      %v2428 = vpop.permute.xlu0 %2427
      %2429 = vrot.lane.b32.xlu0 %v719, 64
      %v2430 = vpop.permute.xlu0 %2429
      %2431 = vrot.lane.b32.xlu0 %v720, 64
      %v2432 = vpop.permute.xlu0 %2431
      %2433 = vrot.lane.b32.xlu0 %v721, 64
      %v2434 = vpop.permute.xlu0 %2433
      %2435 = vrot.lane.b32.xlu0 %v722, 64
      %v2436 = vpop.permute.xlu0 %2435
      %2437 = vrot.lane.b32.xlu0 %v723, 64
      %v2438 = vpop.permute.xlu0 %2437
      %2439 = vrot.lane.b32.xlu0 %v724, 64
      %v2440 = vpop.permute.xlu0 %2439
      %2441 = vrot.lane.b32.xlu0 %v725, 64
      %v2442 = vpop.permute.xlu0 %2441
      %2443 = vrot.lane.b32.xlu0 %v726, 64
      %v2444 = vpop.permute.xlu0 %2443
      %2445 = vrot.lane.b32.xlu0 %v727, 64
      %v2446 = vpop.permute.xlu0 %2445
      %2447 = vrot.lane.b32.xlu0 %v728, 64
      %v2448 = vpop.permute.xlu0 %2447
      %2449 = vrot.lane.b32.xlu0 %v729, 64
      %v2450 = vpop.permute.xlu0 %2449
      %2451 = vrot.lane.b32.xlu0 %v730, 64
      %v2452 = vpop.permute.xlu0 %2451
      %2453 = vrot.lane.b32.xlu0 %v731, 64
      %v2454 = vpop.permute.xlu0 %2453
      %2455 = vrot.lane.b32.xlu0 %v732, 64
      %v2456 = vpop.permute.xlu0 %2455
      %2457 = vrot.lane.b32.xlu0 %v733, 64
      %v2458 = vpop.permute.xlu0 %2457
      %2459 = vrot.lane.b32.xlu0 %v734, 64
      %v2460 = vpop.permute.xlu0 %2459
      %2461 = vrot.lane.b32.xlu0 %v735, 64
      %v2462 = vpop.permute.xlu0 %2461
      %2463 = vrot.lane.b32.xlu0 %v736, 64
      %v2464 = vpop.permute.xlu0 %2463
      %2465 = vrot.lane.b32.xlu0 %v737, 64
      %v2466 = vpop.permute.xlu0 %2465
      %2467 = vrot.lane.b32.xlu0 %v738, 64
      %v2468 = vpop.permute.xlu0 %2467
      %2469 = vrot.lane.b32.xlu0 %v739, 64
      %v2470 = vpop.permute.xlu0 %2469
      %2471 = vrot.lane.b32.xlu0 %v740, 64
      %v2472 = vpop.permute.xlu0 %2471
      %2473 = vrot.lane.b32.xlu0 %v741, 64
      %v2474 = vpop.permute.xlu0 %2473
      %2475 = vrot.lane.b32.xlu0 %v742, 64
      %v2476 = vpop.permute.xlu0 %2475
      %2477 = vrot.lane.b32.xlu0 %v743, 64
      %v2478 = vpop.permute.xlu0 %2477
      %2479 = vrot.lane.b32.xlu0 %v744, 64
      %v2480 = vpop.permute.xlu0 %2479
      %2481 = vrot.lane.b32.xlu0 %v745, 64
      %v2482 = vpop.permute.xlu0 %2481
      %2483 = vrot.lane.b32.xlu0 %v746, 64
      %v2484 = vpop.permute.xlu0 %2483
      %2485 = vrot.lane.b32.xlu0 %v747, 64
      %v2486 = vpop.permute.xlu0 %2485
      %2487 = vrot.lane.b32.xlu0 %v748, 64
      %v2488 = vpop.permute.xlu0 %2487
      %2489 = vrot.lane.b32.xlu0 %v749, 64
      %v2490 = vpop.permute.xlu0 %2489
      %2491 = vrot.lane.b32.xlu0 %v750, 64
      %v2492 = vpop.permute.xlu0 %2491
      %2493 = vrot.lane.b32.xlu0 %v751, 64
      %v2494 = vpop.permute.xlu0 %2493
      %2495 = vrot.lane.b32.xlu0 %v924, 64
      %v2496 = vpop.permute.xlu0 %2495
      %2497 = vrot.lane.b32.xlu0 %v925, 64
      %v2498 = vpop.permute.xlu0 %2497
      %2499 = vrot.lane.b32.xlu0 %v926, 64
      %v2500 = vpop.permute.xlu0 %2499
      %2501 = vrot.lane.b32.xlu0 %v927, 64
      %v2502 = vpop.permute.xlu0 %2501
      %2503 = vrot.lane.b32.xlu0 %v928, 64
      %v2504 = vpop.permute.xlu0 %2503
      %2613 = vrot.lane.b32.xlu0 %v355, 72
      %v2614 = vpop.permute.xlu0 %2613
      %2615 = vrot.lane.b32.xlu0 %v356, 72
      %v2616 = vpop.permute.xlu0 %2615
      %2617 = vrot.lane.b32.xlu0 %v357, 72
      %v2618 = vpop.permute.xlu0 %2617
      %2619 = vrot.lane.b32.xlu0 %v358, 72
      %v2620 = vpop.permute.xlu0 %2619
      %2621 = vrot.lane.b32.xlu0 %v359, 72
      %v2622 = vpop.permute.xlu0 %2621
      %2623 = vrot.lane.b32.xlu0 %v360, 72
      %v2624 = vpop.permute.xlu0 %2623
      %2625 = vrot.lane.b32.xlu0 %v361, 72
      %v2626 = vpop.permute.xlu0 %2625
      %2627 = vrot.lane.b32.xlu0 %v362, 72
      %v2628 = vpop.permute.xlu0 %2627
      %2629 = vrot.lane.b32.xlu0 %v363, 72
      %v2630 = vpop.permute.xlu0 %2629
      %2631 = vrot.lane.b32.xlu0 %v364, 72
      %v2632 = vpop.permute.xlu0 %2631
      %2633 = vrot.lane.b32.xlu0 %v365, 72
      %v2634 = vpop.permute.xlu0 %2633
      %2635 = vrot.lane.b32.xlu0 %v366, 72
      %v2636 = vpop.permute.xlu0 %2635
      %2637 = vrot.lane.b32.xlu0 %v367, 72
      %v2638 = vpop.permute.xlu0 %2637
      %2639 = vrot.lane.b32.xlu0 %v368, 72
      %v2640 = vpop.permute.xlu0 %2639
      %2641 = vrot.lane.b32.xlu0 %v369, 72
      %v2642 = vpop.permute.xlu0 %2641
      %2643 = vrot.lane.b32.xlu0 %v370, 72
      %v2644 = vpop.permute.xlu0 %2643
      %2645 = vrot.lane.b32.xlu0 %v371, 72
      %v2646 = vpop.permute.xlu0 %2645
      %2647 = vrot.lane.b32.xlu0 %v372, 72
      %v2648 = vpop.permute.xlu0 %2647
      %2649 = vrot.lane.b32.xlu0 %v373, 72
      %v2650 = vpop.permute.xlu0 %2649
      %2651 = vrot.lane.b32.xlu0 %v374, 72
      %v2652 = vpop.permute.xlu0 %2651
      %2653 = vrot.lane.b32.xlu0 %v375, 72
      %v2654 = vpop.permute.xlu0 %2653
      %2655 = vrot.lane.b32.xlu0 %v376, 72
      %v2656 = vpop.permute.xlu0 %2655
      %2657 = vrot.lane.b32.xlu0 %v377, 72
      %v2658 = vpop.permute.xlu0 %2657
      %2659 = vrot.lane.b32.xlu0 %v378, 72
      %v2660 = vpop.permute.xlu0 %2659
      %2661 = vrot.lane.b32.xlu0 %v379, 72
      %v2662 = vpop.permute.xlu0 %2661
      %2663 = vrot.lane.b32.xlu0 %v380, 72
      %v2664 = vpop.permute.xlu0 %2663
      %2665 = vrot.lane.b32.xlu0 %v381, 72
      %v2666 = vpop.permute.xlu0 %2665
      %2667 = vrot.lane.b32.xlu0 %v382, 72
      %v2668 = vpop.permute.xlu0 %2667
      %2669 = vrot.lane.b32.xlu0 %v383, 72
      %v2670 = vpop.permute.xlu0 %2669
      %2671 = vrot.lane.b32.xlu0 %v384, 72
      %v2672 = vpop.permute.xlu0 %2671
      %2673 = vrot.lane.b32.xlu0 %v385, 72
      %v2674 = vpop.permute.xlu0 %2673
      %2675 = vrot.lane.b32.xlu0 %v386, 72
      %v2676 = vpop.permute.xlu0 %2675
      %2677 = vrot.lane.b32.xlu0 %v387, 72
      %v2678 = vpop.permute.xlu0 %2677
      %2679 = vrot.lane.b32.xlu0 %v388, 72
      %v2680 = vpop.permute.xlu0 %2679
      %2681 = vrot.lane.b32.xlu0 %v389, 72
      %v2682 = vpop.permute.xlu0 %2681
      %2683 = vrot.lane.b32.xlu0 %v390, 72
      %v2684 = vpop.permute.xlu0 %2683
      %2685 = vrot.lane.b32.xlu0 %v391, 72
      %v2686 = vpop.permute.xlu0 %2685
      %2687 = vrot.lane.b32.xlu0 %v392, 72
      %v2688 = vpop.permute.xlu0 %2687
      %2689 = vrot.lane.b32.xlu0 %v393, 72
      %v2690 = vpop.permute.xlu0 %2689
      %2691 = vrot.lane.b32.xlu0 %v394, 72
      %v2692 = vpop.permute.xlu0 %2691
      %2693 = vrot.lane.b32.xlu0 %v395, 72
      %v2694 = vpop.permute.xlu0 %2693
      %2695 = vrot.lane.b32.xlu0 %v396, 72
      %v2696 = vpop.permute.xlu0 %2695
      %2697 = vrot.lane.b32.xlu0 %v397, 72
      %v2698 = vpop.permute.xlu0 %2697
      %2699 = vrot.lane.b32.xlu0 %v398, 72
      %v2700 = vpop.permute.xlu0 %2699
      %2701 = vrot.lane.b32.xlu0 %v399, 72
      %v2702 = vpop.permute.xlu0 %2701
      %2703 = vrot.lane.b32.xlu0 %v400, 72
      %v2704 = vpop.permute.xlu0 %2703
      %2705 = vrot.lane.b32.xlu0 %v401, 72
      %v2706 = vpop.permute.xlu0 %2705
      %2707 = vrot.lane.b32.xlu0 %v402, 72
      %v2708 = vpop.permute.xlu0 %2707
      %2709 = vrot.lane.b32.xlu0 %v403, 72
      %v2710 = vpop.permute.xlu0 %2709
      %2711 = vrot.lane.b32.xlu0 %v404, 72
      %v2712 = vpop.permute.xlu0 %2711
      %2713 = vrot.lane.b32.xlu0 %v405, 72
      %v2714 = vpop.permute.xlu0 %2713
      %2715 = vrot.lane.b32.xlu0 %v406, 72
      %v2716 = vpop.permute.xlu0 %2715
      %2717 = vrot.lane.b32.xlu0 %v407, 72
      %v2718 = vpop.permute.xlu0 %2717
      %2719 = vrot.lane.b32.xlu0 %v408, 72
      %v2720 = vpop.permute.xlu0 %2719
      %v2775 = vsel %vm517, %v590, %v984
      %v2776 = vsel %vm517, %v591, %v986
      %v2777 = vsel %vm517, %v592, %v988
      %v2778 = vsel %vm517, %v593, %v990
      %v2779 = vsel %vm517, %v594, %v992
      %v2780 = vsel %vm517, %v595, %v994
      %v2781 = vsel %vm517, %v596, %v996
      %v2782 = vsel %vm517, %v597, %v998
      %v2783 = vsel %vm517, %v598, %v1000
      %v2784 = vsel %vm517, %v599, %v1002
      %v2785 = vsel %vm517, %v600, %v1004
      %v2786 = vsel %vm517, %v601, %v1006
      %v2787 = vsel %vm517, %v602, %v1008
      %v2788 = vsel %vm517, %v603, %v1010
      %v2789 = vsel %vm517, %v604, %v1012
      %v2790 = vsel %vm517, %v605, %v1014
      %v2791 = vsel %vm517, %v606, %v1016
      %v2792 = vsel %vm517, %v607, %v1018
      %v2793 = vsel %vm517, %v608, %v1020
      %v2794 = vsel %vm517, %v609, %v1022
      %v2795 = vsel %vm517, %v610, %v1024
      %v2796 = vsel %vm517, %v611, %v1026
      %v2797 = vsel %vm517, %v612, %v1028
      %v2798 = vsel %vm517, %v613, %v1030
      %v2799 = vsel %vm517, %v614, %v1032
      %v2800 = vsel %vm517, %v615, %v1034
      %v2801 = vsel %vm517, %v616, %v1036
      %v2802 = vsel %vm517, %v617, %v1038
      %v2803 = vsel %vm517, %v618, %v1040
      %v2804 = vsel %vm517, %v619, %v1042
      %v2805 = vsel %vm517, %v620, %v1044
      %v2806 = vsel %vm517, %v621, %v1046
      %v2807 = vsel %vm517, %v622, %v1048
      %v2808 = vsel %vm517, %v623, %v1050
      %v2809 = vsel %vm517, %v624, %v1052
      %v2810 = vsel %vm517, %v625, %v1054
      %v2811 = vsel %vm517, %v626, %v1056
      %v2812 = vsel %vm517, %v627, %v1058
      %v2813 = vsel %vm517, %v628, %v1060
      %v2814 = vsel %vm517, %v629, %v1062
      %v2815 = vsel %vm517, %v630, %v1064
      %v2816 = vsel %vm517, %v631, %v1066
      %v2817 = vsel %vm517, %v632, %v1068
      %v2818 = vsel %vm517, %v633, %v1070
      %v2819 = vsel %vm517, %v634, %v1072
      %v2820 = vsel %vm517, %v635, %v1074
      %v2821 = vsel %vm517, %v636, %v1076
      %v2822 = vsel %vm517, %v637, %v1078
      %v2823 = vsel %vm517, %v638, %v1080
      %v2824 = vsel %vm517, %v639, %v1082
      %v2825 = vsel %vm517, %v640, %v1084
      %v2826 = vsel %vm517, %v641, %v1086
      %v2827 = vsel %vm517, %v642, %v1088
      %v2828 = vsel %vm517, %v643, %v1090
      %vm2829 = vcmask 130048
      %v2830 = vsel %vm2829, %v2775, %v1200
      %v2831 = vsel %vm2829, %v2776, %v1202
      %v2832 = vsel %vm2829, %v2777, %v1204
      %v2833 = vsel %vm2829, %v2778, %v1206
      %v2834 = vsel %vm2829, %v2779, %v1208
      %v2835 = vsel %vm2829, %v2780, %v1210
      %v2836 = vsel %vm2829, %v2781, %v1212
      %v2837 = vsel %vm2829, %v2782, %v1214
      %v2838 = vsel %vm2829, %v2783, %v1216
      %v2839 = vsel %vm2829, %v2784, %v1218
      %v2840 = vsel %vm2829, %v2785, %v1220
      %v2841 = vsel %vm2829, %v2786, %v1222
      %v2842 = vsel %vm2829, %v2787, %v1224
      %v2843 = vsel %vm2829, %v2788, %v1226
      %v2844 = vsel %vm2829, %v2789, %v1228
      %v2845 = vsel %vm2829, %v2790, %v1230
      %v2846 = vsel %vm2829, %v2791, %v1232
      %v2847 = vsel %vm2829, %v2792, %v1234
      %v2848 = vsel %vm2829, %v2793, %v1236
      %v2849 = vsel %vm2829, %v2794, %v1238
      %v2850 = vsel %vm2829, %v2795, %v1240
      %v2851 = vsel %vm2829, %v2796, %v1242
      %v2852 = vsel %vm2829, %v2797, %v1244
      %v2853 = vsel %vm2829, %v2798, %v1246
      %v2854 = vsel %vm2829, %v2799, %v1248
      %v2855 = vsel %vm2829, %v2800, %v1250
      %v2856 = vsel %vm2829, %v2801, %v1252
      %v2857 = vsel %vm2829, %v2802, %v1254
      %v2858 = vsel %vm2829, %v2803, %v1256
      %v2859 = vsel %vm2829, %v2804, %v1258
      %v2860 = vsel %vm2829, %v2805, %v1260
      %v2861 = vsel %vm2829, %v2806, %v1262
      %v2862 = vsel %vm2829, %v2807, %v1264
      %v2863 = vsel %vm2829, %v2808, %v1266
      %v2864 = vsel %vm2829, %v2809, %v1268
      %v2865 = vsel %vm2829, %v2810, %v1270
      %v2866 = vsel %vm2829, %v2811, %v1272
      %v2867 = vsel %vm2829, %v2812, %v1274
      %v2868 = vsel %vm2829, %v2813, %v1276
      %v2869 = vsel %vm2829, %v2814, %v1278
      %v2870 = vsel %vm2829, %v2815, %v1280
      %v2871 = vsel %vm2829, %v2816, %v1282
      %v2872 = vsel %vm2829, %v2817, %v1284
      %v2873 = vsel %vm2829, %v2818, %v1286
      %v2874 = vsel %vm2829, %v2819, %v1288
      %v2875 = vsel %vm2829, %v2820, %v1290
      %v2876 = vsel %vm2829, %v2821, %v1292
      %v2877 = vsel %vm2829, %v2822, %v1294
      %v2878 = vsel %vm2829, %v2823, %v1296
      %v2879 = vsel %vm2829, %v2824, %v1298
      %v2880 = vsel %vm2829, %v2825, %v1300
      %v2881 = vsel %vm2829, %v2826, %v1302
      %v2882 = vsel %vm2829, %v2827, %v1304
      %v2883 = vsel %vm2829, %v2828, %v1306
      %vm2884 = vcmask 195584
      %v2885 = vsel %vm2884, %v2830, %v1416
      %v2886 = vsel %vm2884, %v2831, %v1418
      %v2887 = vsel %vm2884, %v2832, %v1420
      %v2888 = vsel %vm2884, %v2833, %v1422
      %v2889 = vsel %vm2884, %v2834, %v1424
      %v2890 = vsel %vm2884, %v2835, %v1426
      %v2891 = vsel %vm2884, %v2836, %v1428
      %v2892 = vsel %vm2884, %v2837, %v1430
      %v2893 = vsel %vm2884, %v2838, %v1432
      %v2894 = vsel %vm2884, %v2839, %v1434
      %v2895 = vsel %vm2884, %v2840, %v1436
      %v2896 = vsel %vm2884, %v2841, %v1438
      %v2897 = vsel %vm2884, %v2842, %v1440
      %v2898 = vsel %vm2884, %v2843, %v1442
      %v2899 = vsel %vm2884, %v2844, %v1444
      %v2900 = vsel %vm2884, %v2845, %v1446
      %v2901 = vsel %vm2884, %v2846, %v1448
      %v2902 = vsel %vm2884, %v2847, %v1450
      %v2903 = vsel %vm2884, %v2848, %v1452
      %v2904 = vsel %vm2884, %v2849, %v1454
      %v2905 = vsel %vm2884, %v2850, %v1456
      %v2906 = vsel %vm2884, %v2851, %v1458
      %v2907 = vsel %vm2884, %v2852, %v1460
      %v2908 = vsel %vm2884, %v2853, %v1462
      %v2909 = vsel %vm2884, %v2854, %v1464
      %v2910 = vsel %vm2884, %v2855, %v1466
      %v2911 = vsel %vm2884, %v2856, %v1468
      %v2912 = vsel %vm2884, %v2857, %v1470
      %v2913 = vsel %vm2884, %v2858, %v1472
      %v2914 = vsel %vm2884, %v2859, %v1474
      %v2915 = vsel %vm2884, %v2860, %v1476
      %v2916 = vsel %vm2884, %v2861, %v1478
      %v2917 = vsel %vm2884, %v2862, %v1480
      %v2918 = vsel %vm2884, %v2863, %v1482
      %v2919 = vsel %vm2884, %v2864, %v1484
      %v2920 = vsel %vm2884, %v2865, %v1486
      %v2921 = vsel %vm2884, %v2866, %v1488
      %v2922 = vsel %vm2884, %v2867, %v1490
      %v2923 = vsel %vm2884, %v2868, %v1492
      %v2924 = vsel %vm2884, %v2869, %v1494
      %v2925 = vsel %vm2884, %v2870, %v1496
      %v2926 = vsel %vm2884, %v2871, %v1498
      %v2927 = vsel %vm2884, %v2872, %v1500
      %v2928 = vsel %vm2884, %v2873, %v1502
      %v2929 = vsel %vm2884, %v2874, %v1504
      %v2930 = vsel %vm2884, %v2875, %v1506
      %v2931 = vsel %vm2884, %v2876, %v1508
      %v2932 = vsel %vm2884, %v2877, %v1510
      %v2933 = vsel %vm2884, %v2878, %v1512
      %v2934 = vsel %vm2884, %v2879, %v1514
      %v2935 = vsel %vm2884, %v2880, %v1516
      %v2936 = vsel %vm2884, %v2881, %v1518
      %v2937 = vsel %vm2884, %v2882, %v1520
      %v2938 = vsel %vm2884, %v2883, %v1522
      %vm2939 = vcmask 261120
      %v2940 = vsel %vm2939, %v2885, %v1632
      %v2941 = vsel %vm2939, %v2886, %v1634
      %v2942 = vsel %vm2939, %v2887, %v1636
      %v2943 = vsel %vm2939, %v2888, %v1638
      %v2944 = vsel %vm2939, %v2889, %v1640
      %v2945 = vsel %vm2939, %v2890, %v1642
      %v2946 = vsel %vm2939, %v2891, %v1644
      %v2947 = vsel %vm2939, %v2892, %v1646
      %v2948 = vsel %vm2939, %v2893, %v1648
      %v2949 = vsel %vm2939, %v2894, %v1650
      %v2950 = vsel %vm2939, %v2895, %v1652
      %v2951 = vsel %vm2939, %v2896, %v1654
      %v2952 = vsel %vm2939, %v2897, %v1656
      %v2953 = vsel %vm2939, %v2898, %v1658
      %v2954 = vsel %vm2939, %v2899, %v1660
      %v2955 = vsel %vm2939, %v2900, %v1662
      %v2956 = vsel %vm2939, %v2901, %v1664
      %v2957 = vsel %vm2939, %v2902, %v1666
      %v2958 = vsel %vm2939, %v2903, %v1668
      %v2959 = vsel %vm2939, %v2904, %v1670
      %v2960 = vsel %vm2939, %v2905, %v1672
      %v2961 = vsel %vm2939, %v2906, %v1674
      %v2962 = vsel %vm2939, %v2907, %v1676
      %v2963 = vsel %vm2939, %v2908, %v1678
      %v2964 = vsel %vm2939, %v2909, %v1680
      %v2965 = vsel %vm2939, %v2910, %v1682
      %v2966 = vsel %vm2939, %v2911, %v1684
      %v2967 = vsel %vm2939, %v2912, %v1686
      %v2968 = vsel %vm2939, %v2913, %v1688
      %v2969 = vsel %vm2939, %v2914, %v1690
      %v2970 = vsel %vm2939, %v2915, %v1692
      %v2971 = vsel %vm2939, %v2916, %v1694
      %v2972 = vsel %vm2939, %v2917, %v1696
      %v2973 = vsel %vm2939, %v2918, %v1698
      %v2974 = vsel %vm2939, %v2919, %v1700
      %v2975 = vsel %vm2939, %v2920, %v1702
      %v2976 = vsel %vm2939, %v2921, %v1704
      %v2977 = vsel %vm2939, %v2922, %v1706
      %v2978 = vsel %vm2939, %v2923, %v1708
      %v2979 = vsel %vm2939, %v2924, %v1710
      %v2980 = vsel %vm2939, %v2925, %v1712
      %v2981 = vsel %vm2939, %v2926, %v1714
      %v2982 = vsel %vm2939, %v2927, %v1716
      %v2983 = vsel %vm2939, %v2928, %v1718
      %v2984 = vsel %vm2939, %v2929, %v1720
      %v2985 = vsel %vm2939, %v2930, %v1722
      %v2986 = vsel %vm2939, %v2931, %v1724
      %v2987 = vsel %vm2939, %v2932, %v1726
      %v2988 = vsel %vm2939, %v2933, %v1728
      %v2989 = vsel %vm2939, %v2934, %v1730
      %v2990 = vsel %vm2939, %v2935, %v1732
      %v2991 = vsel %vm2939, %v2936, %v1734
      %v2992 = vsel %vm2939, %v2937, %v1736
      %v2993 = vsel %vm2939, %v2938, %v1738
      %vm2994 = vcmask 326656
      %v2995 = vsel %vm2994, %v2940, %v1848
      %v2996 = vsel %vm2994, %v2941, %v1850
      %v2997 = vsel %vm2994, %v2942, %v1852
      %v2998 = vsel %vm2994, %v2943, %v1854
      %v2999 = vsel %vm2994, %v2944, %v1856
      %v3000 = vsel %vm2994, %v2945, %v1858
      %v3001 = vsel %vm2994, %v2946, %v1860
      %v3002 = vsel %vm2994, %v2947, %v1862
      %v3003 = vsel %vm2994, %v2948, %v1864
      %v3004 = vsel %vm2994, %v2949, %v1866
      %v3005 = vsel %vm2994, %v2950, %v1868
      %v3006 = vsel %vm2994, %v2951, %v1870
      %v3007 = vsel %vm2994, %v2952, %v1872
      %v3008 = vsel %vm2994, %v2953, %v1874
      %v3009 = vsel %vm2994, %v2954, %v1876
      %v3010 = vsel %vm2994, %v2955, %v1878
      %v3011 = vsel %vm2994, %v2956, %v1880
      %v3012 = vsel %vm2994, %v2957, %v1882
      %v3013 = vsel %vm2994, %v2958, %v1884
      %v3014 = vsel %vm2994, %v2959, %v1886
      %v3015 = vsel %vm2994, %v2960, %v1888
      %v3016 = vsel %vm2994, %v2961, %v1890
      %v3017 = vsel %vm2994, %v2962, %v1892
      %v3018 = vsel %vm2994, %v2963, %v1894
      %v3019 = vsel %vm2994, %v2964, %v1896
      %v3020 = vsel %vm2994, %v2965, %v1898
      %v3021 = vsel %vm2994, %v2966, %v1900
      %v3022 = vsel %vm2994, %v2967, %v1902
      %v3023 = vsel %vm2994, %v2968, %v1904
      %v3024 = vsel %vm2994, %v2969, %v1906
      %v3025 = vsel %vm2994, %v2970, %v1908
      %v3026 = vsel %vm2994, %v2971, %v1910
      %v3027 = vsel %vm2994, %v2972, %v1912
      %v3028 = vsel %vm2994, %v2973, %v1914
      %v3029 = vsel %vm2994, %v2974, %v1916
      %v3030 = vsel %vm2994, %v2975, %v1918
      %v3031 = vsel %vm2994, %v2976, %v1920
      %v3032 = vsel %vm2994, %v2977, %v1922
      %v3033 = vsel %vm2994, %v2978, %v1924
      %v3034 = vsel %vm2994, %v2979, %v1926
      %v3035 = vsel %vm2994, %v2980, %v1928
      %v3036 = vsel %vm2994, %v2981, %v1930
      %v3037 = vsel %vm2994, %v2982, %v1932
      %v3038 = vsel %vm2994, %v2983, %v1934
      %v3039 = vsel %vm2994, %v2984, %v1936
      %v3040 = vsel %vm2994, %v2985, %v1938
      %v3041 = vsel %vm2994, %v2986, %v1940
      %v3042 = vsel %vm2994, %v2987, %v1942
      %v3043 = vsel %vm2994, %v2988, %v1944
      %v3044 = vsel %vm2994, %v2989, %v1946
      %v3045 = vsel %vm2994, %v2990, %v1948
      %v3046 = vsel %vm2994, %v2991, %v1950
      %v3047 = vsel %vm2994, %v2992, %v1952
      %v3048 = vsel %vm2994, %v2993, %v1954
      %vm3049 = vcmask 392192
      %v3050 = vsel %vm3049, %v2995, %v2064
      %v3051 = vsel %vm3049, %v2996, %v2066
      %v3052 = vsel %vm3049, %v2997, %v2068
      %v3053 = vsel %vm3049, %v2998, %v2070
      %v3054 = vsel %vm3049, %v2999, %v2072
      %v3055 = vsel %vm3049, %v3000, %v2074
      %v3056 = vsel %vm3049, %v3001, %v2076
      %v3057 = vsel %vm3049, %v3002, %v2078
      %v3058 = vsel %vm3049, %v3003, %v2080
      %v3059 = vsel %vm3049, %v3004, %v2082
      %v3060 = vsel %vm3049, %v3005, %v2084
      %v3061 = vsel %vm3049, %v3006, %v2086
      %v3062 = vsel %vm3049, %v3007, %v2088
      %v3063 = vsel %vm3049, %v3008, %v2090
      %v3064 = vsel %vm3049, %v3009, %v2092
      %v3065 = vsel %vm3049, %v3010, %v2094
      %v3066 = vsel %vm3049, %v3011, %v2096
      %v3067 = vsel %vm3049, %v3012, %v2098
      %v3068 = vsel %vm3049, %v3013, %v2100
      %v3069 = vsel %vm3049, %v3014, %v2102
      %v3070 = vsel %vm3049, %v3015, %v2104
      %v3071 = vsel %vm3049, %v3016, %v2106
      %v3072 = vsel %vm3049, %v3017, %v2108
      %v3073 = vsel %vm3049, %v3018, %v2110
      %v3074 = vsel %vm3049, %v3019, %v2112
      %v3075 = vsel %vm3049, %v3020, %v2114
      %v3076 = vsel %vm3049, %v3021, %v2116
      %v3077 = vsel %vm3049, %v3022, %v2118
      %v3078 = vsel %vm3049, %v3023, %v2120
      %v3079 = vsel %vm3049, %v3024, %v2122
      %v3080 = vsel %vm3049, %v3025, %v2124
      %v3081 = vsel %vm3049, %v3026, %v2126
      %v3082 = vsel %vm3049, %v3027, %v2128
      %v3083 = vsel %vm3049, %v3028, %v2130
      %v3084 = vsel %vm3049, %v3029, %v2132
      %v3085 = vsel %vm3049, %v3030, %v2134
      %v3086 = vsel %vm3049, %v3031, %v2136
      %v3087 = vsel %vm3049, %v3032, %v2138
      %v3088 = vsel %vm3049, %v3033, %v2140
      %v3089 = vsel %vm3049, %v3034, %v2142
      %v3090 = vsel %vm3049, %v3035, %v2144
      %v3091 = vsel %vm3049, %v3036, %v2146
      %v3092 = vsel %vm3049, %v3037, %v2148
      %v3093 = vsel %vm3049, %v3038, %v2150
      %v3094 = vsel %vm3049, %v3039, %v2152
      %v3095 = vsel %vm3049, %v3040, %v2154
      %v3096 = vsel %vm3049, %v3041, %v2156
      %v3097 = vsel %vm3049, %v3042, %v2158
      %v3098 = vsel %vm3049, %v3043, %v2160
      %v3099 = vsel %vm3049, %v3044, %v2162
      %v3100 = vsel %vm3049, %v3045, %v2164
      %v3101 = vsel %vm3049, %v3046, %v2166
      %v3102 = vsel %vm3049, %v3047, %v2168
      %v3103 = vsel %vm3049, %v3048, %v2170
      %vm3104 = vcmask 457728
      %v3105 = vsel %vm3104, %v3050, %v2231
      %v3106 = vsel %vm3104, %v3051, %v2233
      %v3107 = vsel %vm3104, %v3052, %v2235
      %v3108 = vsel %vm3104, %v3053, %v2237
      %v3109 = vsel %vm3104, %v3054, %v2239
      %v3110 = vsel %vm3104, %v3055, %v2241
      %v3111 = vsel %vm3104, %v3056, %v2243
      %v3112 = vsel %vm3104, %v3057, %v2245
      %v3113 = vsel %vm3104, %v3058, %v2247
      %v3114 = vsel %vm3104, %v3059, %v2249
      %v3115 = vsel %vm3104, %v3060, %v2251
      %v3116 = vsel %vm3104, %v3061, %v2253
      %v3117 = vsel %vm3104, %v3062, %v2255
      %v3118 = vsel %vm3104, %v3063, %v2257
      %v3119 = vsel %vm3104, %v3064, %v2259
      %v3120 = vsel %vm3104, %v3065, %v2261
      %v3121 = vsel %vm3104, %v3066, %v2263
      %v3122 = vsel %vm3104, %v3067, %v2265
      %v3123 = vsel %vm3104, %v3068, %v2267
      %v3124 = vsel %vm3104, %v3069, %v2269
      %v3125 = vsel %vm3104, %v3070, %v2271
      %v3126 = vsel %vm3104, %v3071, %v2273
      %v3127 = vsel %vm3104, %v3072, %v2275
      %v3128 = vsel %vm3104, %v3073, %v2277
      %v3129 = vsel %vm3104, %v3074, %v2279
      %v3130 = vsel %vm3104, %v3075, %v2281
      %v3131 = vsel %vm3104, %v3076, %v2283
      %v3132 = vsel %vm3104, %v3077, %v2285
      %v3133 = vsel %vm3104, %v3078, %v2287
      %v3134 = vsel %vm3104, %v3079, %v2289
      %v3135 = vsel %vm3104, %v3080, %v2291
      %v3136 = vsel %vm3104, %v3081, %v2293
      %v3137 = vsel %vm3104, %v3082, %v2295
      %v3138 = vsel %vm3104, %v3083, %v2297
      %v3139 = vsel %vm3104, %v3084, %v2299
      %v3140 = vsel %vm3104, %v3085, %v2301
      %v3141 = vsel %vm3104, %v3086, %v2303
      %v3142 = vsel %vm3104, %v3087, %v2305
      %v3143 = vsel %vm3104, %v3088, %v2307
      %v3144 = vsel %vm3104, %v3089, %v2309
      %v3145 = vsel %vm3104, %v3090, %v2311
      %v3146 = vsel %vm3104, %v3091, %v2313
      %v3147 = vsel %vm3104, %v3092, %v2315
      %v3148 = vsel %vm3104, %v3093, %v2317
      %v3149 = vsel %vm3104, %v3094, %v2319
      %v3150 = vsel %vm3104, %v3095, %v2321
      %v3151 = vsel %vm3104, %v3096, %v2323
      %v3152 = vsel %vm3104, %v3097, %v2325
      %v3153 = vsel %vm3104, %v3098, %v2327
      %v3154 = vsel %vm3104, %v3099, %v2329
      %v3155 = vsel %vm3104, %v3100, %v2331
      %v3156 = vsel %vm3104, %v3101, %v2333
      %v3157 = vsel %vm3104, %v3102, %v2335
      %v3158 = vsel %vm3104, %v3103, %v2337
      %vm3159 = vcmask 523264
      %v3160 = vsel %vm3159, %v3105, %v2398
      %v3161 = vsel %vm3159, %v3106, %v2400
      %v3162 = vsel %vm3159, %v3107, %v2402
      %v3163 = vsel %vm3159, %v3108, %v2404
      %v3164 = vsel %vm3159, %v3109, %v2406
      %v3165 = vsel %vm3159, %v3110, %v2408
      %v3166 = vsel %vm3159, %v3111, %v2410
      %v3167 = vsel %vm3159, %v3112, %v2412
      %v3168 = vsel %vm3159, %v3113, %v2414
      %v3169 = vsel %vm3159, %v3114, %v2416
      %v3170 = vsel %vm3159, %v3115, %v2418
      %v3171 = vsel %vm3159, %v3116, %v2420
      %v3172 = vsel %vm3159, %v3117, %v2422
      %v3173 = vsel %vm3159, %v3118, %v2424
      %v3174 = vsel %vm3159, %v3119, %v2426
      %v3175 = vsel %vm3159, %v3120, %v2428
      %v3176 = vsel %vm3159, %v3121, %v2430
      %v3177 = vsel %vm3159, %v3122, %v2432
      %v3178 = vsel %vm3159, %v3123, %v2434
      %v3179 = vsel %vm3159, %v3124, %v2436
      %v3180 = vsel %vm3159, %v3125, %v2438
      %v3181 = vsel %vm3159, %v3126, %v2440
      %v3182 = vsel %vm3159, %v3127, %v2442
      %v3183 = vsel %vm3159, %v3128, %v2444
      %v3184 = vsel %vm3159, %v3129, %v2446
      %v3185 = vsel %vm3159, %v3130, %v2448
      %v3186 = vsel %vm3159, %v3131, %v2450
      %v3187 = vsel %vm3159, %v3132, %v2452
      %v3188 = vsel %vm3159, %v3133, %v2454
      %v3189 = vsel %vm3159, %v3134, %v2456
      %v3190 = vsel %vm3159, %v3135, %v2458
      %v3191 = vsel %vm3159, %v3136, %v2460
      %v3192 = vsel %vm3159, %v3137, %v2462
      %v3193 = vsel %vm3159, %v3138, %v2464
      %v3194 = vsel %vm3159, %v3139, %v2466
      %v3195 = vsel %vm3159, %v3140, %v2468
      %v3196 = vsel %vm3159, %v3141, %v2470
      %v3197 = vsel %vm3159, %v3142, %v2472
      %v3198 = vsel %vm3159, %v3143, %v2474
      %v3199 = vsel %vm3159, %v3144, %v2476
      %v3200 = vsel %vm3159, %v3145, %v2478
      %v3201 = vsel %vm3159, %v3146, %v2480
      %v3202 = vsel %vm3159, %v3147, %v2482
      %v3203 = vsel %vm3159, %v3148, %v2484
      %v3204 = vsel %vm3159, %v3149, %v2486
      %v3205 = vsel %vm3159, %v3150, %v2488
      %v3206 = vsel %vm3159, %v3151, %v2490
      %v3207 = vsel %vm3159, %v3152, %v2492
      %v3208 = vsel %vm3159, %v3153, %v2494
      %v3209 = vsel %vm3159, %v3154, %v2496
      %v3210 = vsel %vm3159, %v3155, %v2498
      %v3211 = vsel %vm3159, %v3156, %v2500
      %v3212 = vsel %vm3159, %v3157, %v2502
      %v3213 = vsel %vm3159, %v3158, %v2504
      %vm3214 = vcmask 588800
      %v3215 = vsel %vm3214, %v3160, %v2614
      %v3216 = vsel %vm3214, %v3161, %v2616
      %v3217 = vsel %vm3214, %v3162, %v2618
      %v3218 = vsel %vm3214, %v3163, %v2620
      %v3219 = vsel %vm3214, %v3164, %v2622
      %v3220 = vsel %vm3214, %v3165, %v2624
      %v3221 = vsel %vm3214, %v3166, %v2626
      %v3222 = vsel %vm3214, %v3167, %v2628
      %v3223 = vsel %vm3214, %v3168, %v2630
      %v3224 = vsel %vm3214, %v3169, %v2632
      %v3225 = vsel %vm3214, %v3170, %v2634
      %v3226 = vsel %vm3214, %v3171, %v2636
      %v3227 = vsel %vm3214, %v3172, %v2638
      %v3228 = vsel %vm3214, %v3173, %v2640
      %v3229 = vsel %vm3214, %v3174, %v2642
      %v3230 = vsel %vm3214, %v3175, %v2644
      %v3231 = vsel %vm3214, %v3176, %v2646
      %v3232 = vsel %vm3214, %v3177, %v2648
      %v3233 = vsel %vm3214, %v3178, %v2650
      %v3234 = vsel %vm3214, %v3179, %v2652
      %v3235 = vsel %vm3214, %v3180, %v2654
      %v3236 = vsel %vm3214, %v3181, %v2656
      %v3237 = vsel %vm3214, %v3182, %v2658
      %v3238 = vsel %vm3214, %v3183, %v2660
      %v3239 = vsel %vm3214, %v3184, %v2662
      %v3240 = vsel %vm3214, %v3185, %v2664
      %v3241 = vsel %vm3214, %v3186, %v2666
      %v3242 = vsel %vm3214, %v3187, %v2668
      %v3243 = vsel %vm3214, %v3188, %v2670
      %v3244 = vsel %vm3214, %v3189, %v2672
      %v3245 = vsel %vm3214, %v3190, %v2674
      %v3246 = vsel %vm3214, %v3191, %v2676
      %v3247 = vsel %vm3214, %v3192, %v2678
      %v3248 = vsel %vm3214, %v3193, %v2680
      %v3249 = vsel %vm3214, %v3194, %v2682
      %v3250 = vsel %vm3214, %v3195, %v2684
      %v3251 = vsel %vm3214, %v3196, %v2686
      %v3252 = vsel %vm3214, %v3197, %v2688
      %v3253 = vsel %vm3214, %v3198, %v2690
      %v3254 = vsel %vm3214, %v3199, %v2692
      %v3255 = vsel %vm3214, %v3200, %v2694
      %v3256 = vsel %vm3214, %v3201, %v2696
      %v3257 = vsel %vm3214, %v3202, %v2698
      %v3258 = vsel %vm3214, %v3203, %v2700
      %v3259 = vsel %vm3214, %v3204, %v2702
      %v3260 = vsel %vm3214, %v3205, %v2704
      %v3261 = vsel %vm3214, %v3206, %v2706
      %v3262 = vsel %vm3214, %v3207, %v2708
      %v3263 = vsel %vm3214, %v3208, %v2710
      %v3264 = vsel %vm3214, %v3209, %v2712
      %v3265 = vsel %vm3214, %v3210, %v2714
      %v3266 = vsel %vm3214, %v3211, %v2716
      %v3267 = vsel %vm3214, %v3212, %v2718
      %v3268 = vsel %vm3214, %v3213, %v2720
      %v3269 = vpack.c.bf16 %v3216, %v3215
      %v3270 = vpack.c.bf16 %v3218, %v3217
      %v3271 = vpack.c.bf16 %v3220, %v3219
      %v3272 = vpack.c.bf16 %v3222, %v3221
      %v3273 = vpack.c.bf16 %v3224, %v3223
      %v3274 = vpack.c.bf16 %v3226, %v3225
      %v3275 = vpack.c.bf16 %v3228, %v3227
      %v3276 = vpack.c.bf16 %v3230, %v3229
      %v3277 = vpack.c.bf16 %v3232, %v3231
      %v3278 = vpack.c.bf16 %v3234, %v3233
      %v3279 = vpack.c.bf16 %v3236, %v3235
      %v3280 = vpack.c.bf16 %v3238, %v3237
      %v3281 = vpack.c.bf16 %v3240, %v3239
      %v3282 = vpack.c.bf16 %v3242, %v3241
      %v3283 = vpack.c.bf16 %v3244, %v3243
      %v3284 = vpack.c.bf16 %v3246, %v3245
      %v3285 = vpack.c.bf16 %v3248, %v3247
      %v3286 = vpack.c.bf16 %v3250, %v3249
      %v3287 = vpack.c.bf16 %v3252, %v3251
      %v3288 = vpack.c.bf16 %v3254, %v3253
      %v3289 = vpack.c.bf16 %v3256, %v3255
      %v3290 = vpack.c.bf16 %v3258, %v3257
      %v3291 = vpack.c.bf16 %v3260, %v3259
      %v3292 = vpack.c.bf16 %v3262, %v3261
      %v3293 = vpack.c.bf16 %v3264, %v3263
      %v3294 = vpack.c.bf16 %v3266, %v3265
      %v3295 = vpack.c.bf16 %v3268, %v3267
      %v3296 = vld [vmem:[%s3] sm:$0xf]
      %v3297 = vld [vmem:[%s3 + $0x4] sm:$0xf]
      %v3298 = vld [vmem:[%s3 + $0x8] sm:$0xf]
      %v3299 = vld [vmem:[%s3 + $0xc] sm:$0xf]
      %v3300 = vld [vmem:[%s3 + $0x10] sm:$0xf]
      %v3301 = vld [vmem:[%s3 + $0x14] sm:$0xf]
      %v3302 = vld [vmem:[%s3 + $0x18] sm:$0xf]
      %v3303 = vld [vmem:[%s3 + $0x1c] sm:$0xf]
      %v3304 = vld [vmem:[%s3 + $0x20] sm:$0xf]
      %v3305 = vld [vmem:[%s3 + $0x24] sm:$0x3]
      %v3306 = vld [vmem:[%s4] sm:$0x1]
      %v3308 = vperm.slane %v3306, 0
      %v3320 = vunpack.c.l.b16 %v3296
      %v3321 = vunpack.c.l.b16 %v3297
      %v3322 = vunpack.c.l.b16 %v3298
      %v3323 = vunpack.c.l.b16 %v3299
      %v3324 = vunpack.c.l.b16 %v3300
      %v3325 = vunpack.c.l.b16 %v3301
      %v3326 = vunpack.c.l.b16 %v3302
      %v3327 = vunpack.c.l.b16 %v3303
      %v3328 = vunpack.c.l.b16 %v3304
      %v3329 = vunpack.c.l.b16 %v3305
      %v3330 = vpack.c.b16 %v3321, %v3320
      %v3331 = vpack.c.b16 %v3323, %v3322
      %v3332 = vpack.c.b16 %v3325, %v3324
      %v3333 = vpack.c.b16 %v3327, %v3326
      %v3334 = vpack.c.b16 %v3329, %v3328
      %vm3339 = vcmask 621568
      %v3341 = vsel %vm3339, %v3269, 0
      %v3344 = vsel %vm3339, %v3270, 0
      %v3347 = vsel %vm3339, %v3271, 0
      %v3350 = vsel %vm3339, %v3272, 0
      %v3353 = vsel %vm3339, %v3273, 0
      %v3356 = vsel %vm3339, %v3274, 0
      %v3359 = vsel %vm3339, %v3275, 0
      %v3362 = vsel %vm3339, %v3276, 0
      %v3365 = vsel %vm3339, %v3277, 0
      %v3368 = vsel %vm3339, %v3278, 0
      %v3371 = vsel %vm3339, %v3279, 0
      %v3374 = vsel %vm3339, %v3280, 0
      %v3377 = vsel %vm3339, %v3281, 0
      %v3380 = vsel %vm3339, %v3282, 0
      %v3383 = vsel %vm3339, %v3283, 0
      %v3386 = vsel %vm3339, %v3284, 0
      %v3389 = vsel %vm3339, %v3285, 0
      %v3392 = vsel %vm3339, %v3286, 0
      %v3395 = vsel %vm3339, %v3287, 0
      %v3398 = vsel %vm3339, %v3288, 0
      %v3401 = vsel %vm3339, %v3289, 0
      %v3404 = vsel %vm3339, %v3290, 0
      %v3407 = vsel %vm3339, %v3291, 0
      %v3410 = vsel %vm3339, %v3292, 0
      %v3413 = vsel %vm3339, %v3293, 0
      %v3416 = vsel %vm3339, %v3294, 0
      %v3419 = vsel %vm3339, %v3295, 0
      %vm3421 = vcmask 1045504
      %v3423 = vsel %vm3421, %v3334, 0
      %3425 = vmatpush.bf16.msra.mxu0 0
      %3426 = vmatpush.bf16.msra.mxu0 0
      %3427 = vmatpush.bf16.msra.mxu0 0
      %3428 = vmatpush.bf16.msra.mxu0 %v3423
      %3429 = vmatpush.bf16.msra.mxu0 %v3333
      %3430 = vmatpush.bf16.msra.mxu0 %v3332
      %3431 = vmatpush.bf16.msra.mxu0 %v3331
      %3432 = vmatpush.bf16.msra.mxu0 %v3330
      %3433 = vmatmul.bf16.gmra.mxu0 %v3341
      %v3434 = vpop.f32.mrf.mxu0
      %v3435 = vadd.f32 %v3308, %v3434
      %v3436 = vpop.f32.mrf.mxu0
      %v3437 = vadd.f32 %v3308, %v3436
      %3438 = vmatmul.bf16.gmra.mxu0 %v3344
      %v3439 = vpop.f32.mrf.mxu0
      %v3440 = vadd.f32 %v3308, %v3439
      %v3441 = vpop.f32.mrf.mxu0
      %v3442 = vadd.f32 %v3308, %v3441
      %3443 = vmatmul.bf16.gmra.mxu0 %v3347
      %v3444 = vpop.f32.mrf.mxu0
      %v3445 = vadd.f32 %v3308, %v3444
      %v3446 = vpop.f32.mrf.mxu0
      %v3447 = vadd.f32 %v3308, %v3446
      %3448 = vmatmul.bf16.gmra.mxu0 %v3350
      %v3449 = vpop.f32.mrf.mxu0
      %v3450 = vadd.f32 %v3308, %v3449
      %v3451 = vpop.f32.mrf.mxu0
      %v3452 = vadd.f32 %v3308, %v3451
      %3453 = vmatmul.bf16.gmra.mxu0 %v3353
      %v3454 = vpop.f32.mrf.mxu0
      %v3455 = vadd.f32 %v3308, %v3454
      %v3456 = vpop.f32.mrf.mxu0
      %v3457 = vadd.f32 %v3308, %v3456
      %3458 = vmatmul.bf16.gmra.mxu0 %v3356
      %v3459 = vpop.f32.mrf.mxu0
      %v3460 = vadd.f32 %v3308, %v3459
      %v3461 = vpop.f32.mrf.mxu0
      %v3462 = vadd.f32 %v3308, %v3461
      %3463 = vmatmul.bf16.gmra.mxu0 %v3359
      %v3464 = vpop.f32.mrf.mxu0
      %v3465 = vadd.f32 %v3308, %v3464
      %v3466 = vpop.f32.mrf.mxu0
      %v3467 = vadd.f32 %v3308, %v3466
      %3468 = vmatmul.bf16.gmra.mxu0 %v3362
      %v3469 = vpop.f32.mrf.mxu0
      %v3470 = vadd.f32 %v3308, %v3469
      %v3471 = vpop.f32.mrf.mxu0
      %v3472 = vadd.f32 %v3308, %v3471
      %3473 = vmatmul.bf16.gmra.mxu0 %v3365
      %v3474 = vpop.f32.mrf.mxu0
      %v3475 = vadd.f32 %v3308, %v3474
      %v3476 = vpop.f32.mrf.mxu0
      %v3477 = vadd.f32 %v3308, %v3476
      %3478 = vmatmul.bf16.gmra.mxu0 %v3368
      %v3479 = vpop.f32.mrf.mxu0
      %v3480 = vadd.f32 %v3308, %v3479
      %v3481 = vpop.f32.mrf.mxu0
      %v3482 = vadd.f32 %v3308, %v3481
      %3483 = vmatmul.bf16.gmra.mxu0 %v3371
      %v3484 = vpop.f32.mrf.mxu0
      %v3485 = vadd.f32 %v3308, %v3484
      %v3486 = vpop.f32.mrf.mxu0
      %v3487 = vadd.f32 %v3308, %v3486
      %3488 = vmatmul.bf16.gmra.mxu0 %v3374
      %v3489 = vpop.f32.mrf.mxu0
      %v3490 = vadd.f32 %v3308, %v3489
      %v3491 = vpop.f32.mrf.mxu0
      %v3492 = vadd.f32 %v3308, %v3491
      %3493 = vmatmul.bf16.gmra.mxu0 %v3377
      %v3494 = vpop.f32.mrf.mxu0
      %v3495 = vadd.f32 %v3308, %v3494
      %v3496 = vpop.f32.mrf.mxu0
      %v3497 = vadd.f32 %v3308, %v3496
      %3498 = vmatmul.bf16.gmra.mxu0 %v3380
      %v3499 = vpop.f32.mrf.mxu0
      %v3500 = vadd.f32 %v3308, %v3499
      %v3501 = vpop.f32.mrf.mxu0
      %v3502 = vadd.f32 %v3308, %v3501
      %3503 = vmatmul.bf16.gmra.mxu0 %v3383
      %v3504 = vpop.f32.mrf.mxu0
      %v3505 = vadd.f32 %v3308, %v3504
      %v3506 = vpop.f32.mrf.mxu0
      %v3507 = vadd.f32 %v3308, %v3506
      %3508 = vmatmul.bf16.gmra.mxu0 %v3386
      %v3509 = vpop.f32.mrf.mxu0
      %v3510 = vadd.f32 %v3308, %v3509
      %v3511 = vpop.f32.mrf.mxu0
      %v3512 = vadd.f32 %v3308, %v3511
      %3513 = vmatmul.bf16.gmra.mxu0 %v3389
      %v3514 = vpop.f32.mrf.mxu0
      %v3515 = vadd.f32 %v3308, %v3514
      %v3516 = vpop.f32.mrf.mxu0
      %v3517 = vadd.f32 %v3308, %v3516
      %3518 = vmatmul.bf16.gmra.mxu0 %v3392
      %v3519 = vpop.f32.mrf.mxu0
      %v3520 = vadd.f32 %v3308, %v3519
      %v3521 = vpop.f32.mrf.mxu0
      %v3522 = vadd.f32 %v3308, %v3521
      %3523 = vmatmul.bf16.gmra.mxu0 %v3395
      %v3524 = vpop.f32.mrf.mxu0
      %v3525 = vadd.f32 %v3308, %v3524
      %v3526 = vpop.f32.mrf.mxu0
      %v3527 = vadd.f32 %v3308, %v3526
      %3528 = vmatmul.bf16.gmra.mxu0 %v3398
      %v3529 = vpop.f32.mrf.mxu0
      %v3530 = vadd.f32 %v3308, %v3529
      %v3531 = vpop.f32.mrf.mxu0
      %v3532 = vadd.f32 %v3308, %v3531
      %3533 = vmatmul.bf16.gmra.mxu0 %v3401
      %v3534 = vpop.f32.mrf.mxu0
      %v3535 = vadd.f32 %v3308, %v3534
      %v3536 = vpop.f32.mrf.mxu0
      %v3537 = vadd.f32 %v3308, %v3536
      %3538 = vmatmul.bf16.gmra.mxu0 %v3404
      %v3539 = vpop.f32.mrf.mxu0
      %v3540 = vadd.f32 %v3308, %v3539
      %v3541 = vpop.f32.mrf.mxu0
      %v3542 = vadd.f32 %v3308, %v3541
      %3543 = vmatmul.bf16.gmra.mxu0 %v3407
      %v3544 = vpop.f32.mrf.mxu0
      %v3545 = vadd.f32 %v3308, %v3544
      %v3546 = vpop.f32.mrf.mxu0
      %v3547 = vadd.f32 %v3308, %v3546
      %3548 = vmatmul.bf16.gmra.mxu0 %v3410
      %v3549 = vpop.f32.mrf.mxu0
      %v3550 = vadd.f32 %v3308, %v3549
      %v3551 = vpop.f32.mrf.mxu0
      %v3552 = vadd.f32 %v3308, %v3551
      %3553 = vmatmul.bf16.gmra.mxu0 %v3413
      %v3554 = vpop.f32.mrf.mxu0
      %v3555 = vadd.f32 %v3308, %v3554
      %v3556 = vpop.f32.mrf.mxu0
      %v3557 = vadd.f32 %v3308, %v3556
      %3558 = vmatmul.bf16.gmra.mxu0 %v3416
      %v3559 = vpop.f32.mrf.mxu0
      %v3560 = vadd.f32 %v3308, %v3559
      %v3561 = vpop.f32.mrf.mxu0
      %v3562 = vadd.f32 %v3308, %v3561
      %3563 = vmatmul.bf16.gmra.mxu0 %v3419
      %v3564 = vpop.f32.mrf.mxu0
      %v3565 = vadd.f32 %v3308, %v3564
      %v3566 = vpop.f32.mrf.mxu0
      %v3567 = vadd.f32 %v3308, %v3566
      %3568 = vdwg.mxu0
      %v3569 = vmax.f32 %v3435, 0.0
      %v3570 = vmax.f32 %v3437, 0.0
      %v3571 = vmax.f32 %v3440, 0.0
      %v3572 = vmax.f32 %v3442, 0.0
      %v3573 = vmax.f32 %v3445, 0.0
      %v3574 = vmax.f32 %v3447, 0.0
      %v3575 = vmax.f32 %v3450, 0.0
      %v3576 = vmax.f32 %v3452, 0.0
      %v3577 = vmax.f32 %v3455, 0.0
      %v3578 = vmax.f32 %v3457, 0.0
      %v3579 = vmax.f32 %v3460, 0.0
      %v3580 = vmax.f32 %v3462, 0.0
      %v3581 = vmax.f32 %v3465, 0.0
      %v3582 = vmax.f32 %v3467, 0.0
      %v3583 = vmax.f32 %v3470, 0.0
      %v3584 = vmax.f32 %v3472, 0.0
      %v3585 = vmax.f32 %v3475, 0.0
      %v3586 = vmax.f32 %v3477, 0.0
      %v3587 = vmax.f32 %v3480, 0.0
      %v3588 = vmax.f32 %v3482, 0.0
      %v3589 = vmax.f32 %v3485, 0.0
      %v3590 = vmax.f32 %v3487, 0.0
      %v3591 = vmax.f32 %v3490, 0.0
      %v3592 = vmax.f32 %v3492, 0.0
      %v3593 = vmax.f32 %v3495, 0.0
      %v3594 = vmax.f32 %v3497, 0.0
      %v3595 = vmax.f32 %v3500, 0.0
      %v3596 = vmax.f32 %v3502, 0.0
      %v3597 = vmax.f32 %v3505, 0.0
      %v3598 = vmax.f32 %v3507, 0.0
      %v3599 = vmax.f32 %v3510, 0.0
      %v3600 = vmax.f32 %v3512, 0.0
      %v3601 = vmax.f32 %v3515, 0.0
      %v3602 = vmax.f32 %v3517, 0.0
      %v3603 = vmax.f32 %v3520, 0.0
      %v3604 = vmax.f32 %v3522, 0.0
      %v3605 = vmax.f32 %v3525, 0.0
      %v3606 = vmax.f32 %v3527, 0.0
      %v3607 = vmax.f32 %v3530, 0.0
      %v3608 = vmax.f32 %v3532, 0.0
      %v3609 = vmax.f32 %v3535, 0.0
      %v3610 = vmax.f32 %v3537, 0.0
      %v3611 = vmax.f32 %v3540, 0.0
      %v3612 = vmax.f32 %v3542, 0.0
      %v3613 = vmax.f32 %v3545, 0.0
      %v3614 = vmax.f32 %v3547, 0.0
      %v3615 = vmax.f32 %v3550, 0.0
      %v3616 = vmax.f32 %v3552, 0.0
      %v3617 = vmax.f32 %v3555, 0.0
      %v3618 = vmax.f32 %v3557, 0.0
      %v3619 = vmax.f32 %v3560, 0.0
      %v3620 = vmax.f32 %v3562, 0.0
      %v3621 = vmax.f32 %v3565, 0.0
      %v3622 = vmax.f32 %v3567, 0.0
      %3623 = vst.msk [vmem:[%s298] sm:$0xff] %vm517, %v3569
      %3624 = vst.msk [vmem:[%s298 + $0x8] sm:$0xff] %vm517, %v3570
      %3625 = vst.msk [vmem:[%s298 + $0x10] sm:$0xff] %vm517, %v3571
      %3626 = vst.msk [vmem:[%s298 + $0x18] sm:$0xff] %vm517, %v3572
      %3627 = vst.msk [vmem:[%s298 + $0x20] sm:$0xff] %vm517, %v3573
      %3628 = vst.msk [vmem:[%s298 + $0x28] sm:$0xff] %vm517, %v3574
      %3629 = vst.msk [vmem:[%s298 + $0x30] sm:$0xff] %vm517, %v3575
      %3630 = vst.msk [vmem:[%s298 + $0x38] sm:$0xff] %vm517, %v3576
      %3631 = vst.msk [vmem:[%s298 + $0x40] sm:$0xff] %vm517, %v3577
      %3632 = vst.msk [vmem:[%s298 + $0x48] sm:$0xff] %vm517, %v3578
      %3633 = vst.msk [vmem:[%s298 + $0x50] sm:$0xff] %vm517, %v3579
      %3634 = vst.msk [vmem:[%s298 + $0x58] sm:$0xff] %vm517, %v3580
      %3635 = vst.msk [vmem:[%s298 + $0x60] sm:$0xff] %vm517, %v3581
      %3636 = vst.msk [vmem:[%s298 + $0x68] sm:$0xff] %vm517, %v3582
      %3637 = vst.msk [vmem:[%s298 + $0x70] sm:$0xff] %vm517, %v3583
      %3638 = vst.msk [vmem:[%s298 + $0x78] sm:$0xff] %vm517, %v3584
      %3639 = vst.msk [vmem:[%s298 + $0x80] sm:$0xff] %vm517, %v3585
      %3640 = vst.msk [vmem:[%s298 + $0x88] sm:$0xff] %vm517, %v3586
      %3641 = vst.msk [vmem:[%s298 + $0x90] sm:$0xff] %vm517, %v3587
      %3642 = vst.msk [vmem:[%s298 + $0x98] sm:$0xff] %vm517, %v3588
      %3643 = vst.msk [vmem:[%s298 + $0xa0] sm:$0xff] %vm517, %v3589
      %3644 = vst.msk [vmem:[%s298 + $0xa8] sm:$0xff] %vm517, %v3590
      %3645 = vst.msk [vmem:[%s298 + $0xb0] sm:$0xff] %vm517, %v3591
      %3646 = vst.msk [vmem:[%s298 + $0xb8] sm:$0xff] %vm517, %v3592
      %3647 = vst.msk [vmem:[%s298 + $0xc0] sm:$0xff] %vm517, %v3593
      %3648 = vst.msk [vmem:[%s298 + $0xc8] sm:$0xff] %vm517, %v3594
      %3649 = vst.msk [vmem:[%s298 + $0xd0] sm:$0xff] %vm517, %v3595
      %3650 = vst.msk [vmem:[%s298 + $0xd8] sm:$0xff] %vm517, %v3596
      %3651 = vst.msk [vmem:[%s298 + $0xe0] sm:$0xff] %vm517, %v3597
      %3652 = vst.msk [vmem:[%s298 + $0xe8] sm:$0xff] %vm517, %v3598
      %3653 = vst.msk [vmem:[%s298 + $0xf0] sm:$0xff] %vm517, %v3599
      %3654 = vst.msk [vmem:[%s298 + $0xf8] sm:$0xff] %vm517, %v3600
      %3655 = vst.msk [vmem:[%s298 + $0x100] sm:$0xff] %vm517, %v3601
      %3656 = vst.msk [vmem:[%s298 + $0x108] sm:$0xff] %vm517, %v3602
      %3657 = vst.msk [vmem:[%s298 + $0x110] sm:$0xff] %vm517, %v3603
      %3658 = vst.msk [vmem:[%s298 + $0x118] sm:$0xff] %vm517, %v3604
      %3659 = vst.msk [vmem:[%s298 + $0x120] sm:$0xff] %vm517, %v3605
      %3660 = vst.msk [vmem:[%s298 + $0x128] sm:$0xff] %vm517, %v3606
      %3661 = vst.msk [vmem:[%s298 + $0x130] sm:$0xff] %vm517, %v3607
      %3662 = vst.msk [vmem:[%s298 + $0x138] sm:$0xff] %vm517, %v3608
      %3663 = vst.msk [vmem:[%s298 + $0x140] sm:$0xff] %vm517, %v3609
      %3664 = vst.msk [vmem:[%s298 + $0x148] sm:$0xff] %vm517, %v3610
      %3665 = vst.msk [vmem:[%s298 + $0x150] sm:$0xff] %vm517, %v3611
      %3666 = vst.msk [vmem:[%s298 + $0x158] sm:$0xff] %vm517, %v3612
      %3667 = vst.msk [vmem:[%s298 + $0x160] sm:$0xff] %vm517, %v3613
      %3668 = vst.msk [vmem:[%s298 + $0x168] sm:$0xff] %vm517, %v3614
      %3669 = vst.msk [vmem:[%s298 + $0x170] sm:$0xff] %vm517, %v3615
      %3670 = vst.msk [vmem:[%s298 + $0x178] sm:$0xff] %vm517, %v3616
      %3671 = vst.msk [vmem:[%s298 + $0x180] sm:$0xff] %vm517, %v3617
      %3672 = vst.msk [vmem:[%s298 + $0x188] sm:$0xff] %vm517, %v3618
      %3673 = vst.msk [vmem:[%s298 + $0x190] sm:$0xff] %vm517, %v3619
      %3674 = vst.msk [vmem:[%s298 + $0x198] sm:$0xff] %vm517, %v3620
      %3675 = vst.msk [vmem:[%s298 + $0x1a0] sm:$0xff] %vm517, %v3621
      %3676 = vst.msk [vmem:[%s298 + $0x1a8] sm:$0xff] %vm517, %v3622
      %s3677 = smul.u32 54, %s16
      %p3678 = scmp.lt.s32.totalorder %s3677, 107
      %s3679 = scalar_select %p3678, %s3677, 107
      %s3680 = smul.addr %s3679, 8
      %s3681 = scalar_lea.vmem %s5, %s3680
      // Predicated region
      $region41: #{residual_block_forward.3} parent=39 // pred_check
        %p3682 = pneg %p162
      $region42: #{residual_block_forward.3} parent=39 // pred_check_branch
        %3684 = sbr.rel (%p3682) target = $region44
      $region43: #{residual_block_forward.3} parent=39 // pred_region
        %s3685 = smul.u32 54, %s16
      $region44: #{residual_block_forward.3} parent=39 // pred_fallthru
        _
    $region40: #{residual_block_forward.3} parent=5 // pred_fallthru
      _
    %p3686 = scmp.le.s32.totalorder 2, %s11
    // Predicated region
    $region45: #{residual_block_forward.3} parent=5 // pred_check
      %p3687 = pneg %p3686
    $region46: #{residual_block_forward.3} parent=5 // pred_check_branch
      %3689 = sbr.rel (%p3687) target = $region48
    $region47: #{residual_block_forward.3} parent=5 // pred_region
      %s3690 = ssub.s32 %s11, 2
      // Predicated region
      $region49: #{residual_block_forward.3} parent=47 // pred_check
        %p3691 = pneg %p168
      $region50: #{residual_block_forward.3} parent=47 // pred_check_branch
        %3693 = sbr.rel (%p3691) target = $region52
      $region51: #{residual_block_forward.3} parent=47 // pred_region
        %s3694 = smul.u32 54, %s17
        %p3695 = scmp.lt.s32.totalorder %s3694, 107
        %s3696 = scalar_select %p3695, %s3694, 107
        %s3697 = smul.addr %s3696, 8
        %s3698 = scalar_lea.vmem %s5, %s3697
      $region52: #{residual_block_forward.3} parent=47 // pred_fallthru
        _
    $region48: #{residual_block_forward.3} parent=5 // pred_fallthru
      _
  $region6: #{residual_block_forward.3} parent=0 // loop_footer
    %s15 = sadd.s32 1, %s11
  $region7: #{residual_block_forward.3} parent=0 // loop_footer_branch
    %10 = sbr.rel target = $region3
  $region8: #{residual_block_forward.3} parent=0 // loop_exit
    _

</llo_original>
